<compile_context>
chip_gen: v7x
topology: tpu7x:2x2x1
jax: 0.10.0
libtpu: 0.0.40
codegen_flags: <defaults>
</compile_context>

<pallas_src>
import functools
import numpy as np
import jax
import jax.numpy as jnp
from jax.experimental import pallas as pl
from jax.experimental.pallas import tpu as pltpu

_BF16 = jnp.bfloat16
_ACT_DTYPE = jnp.bfloat16          # inter-kernel activation storage dtype


# ------------------------- capability probes (import time) -------------------------

def _query_vmem_capacity():
    try:
        return int(pltpu.get_tpu_info().vmem_capacity_bytes)
    except Exception:
        return 64 << 20            # conservative (v7x-sized) fallback


_VMEM_CAP = _query_vmem_capacity()
_ROW_TILE = 512 if _VMEM_CAP >= (96 << 20) else 256     # 512 on v5e/v6e, 256 on v7x


def _probe_single_buffering():
    """Check that pipeline_mode=pl.Buffered(1) is accepted by this JAX/Mosaic build."""
    try:
        def k(x_ref, o_ref):
            o_ref[...] = x_ref[...] + 1.0
        spec = pl.BlockSpec((8, 128), lambda i: (0, 0), pipeline_mode=pl.Buffered(1))
        f = pl.pallas_call(
            k, grid=(2,),
            out_shape=jax.ShapeDtypeStruct((8, 128), jnp.float32),
            in_specs=[spec],
            out_specs=pl.BlockSpec((8, 128), lambda i: (0, 0)))
        jax.block_until_ready(f(jnp.zeros((8, 128), jnp.float32)))
        return True
    except Exception:
        return False


_SINGLE_BUF_OK = _probe_single_buffering()


def _bspec(shape, index_map, single=False):
    """BlockSpec; single-buffer constant-index broadcast operands when supported."""
    if single and _SINGLE_BUF_OK:
        return pl.BlockSpec(shape, index_map, pipeline_mode=pl.Buffered(1))
    return pl.BlockSpec(shape, index_map)


def _vmem_limit(nbytes):
    hi = min(_VMEM_CAP - (8 << 20), 100 << 20)
    return int(min(max(2 * nbytes + (2 << 20), 8 << 20), hi))


# ----------------------------------- kernels ----------------------------------------

def _gelu(y):
    # exact (erf-based) GELU, matching nn.GELU() default
    return 0.5 * y * (1.0 + jax.lax.erf(y * 0.7071067811865476))


def _ln_linear_kernel(x_ref, g_ref, bta_ref, w_ref, b_ref, o_ref, *, act):
    # out = act(LN(x) @ W + b)   (norm2 + fc1 + GELU; patch-merging norm + reduction)
    x = x_ref[...].astype(jnp.float32)
    mu = jnp.mean(x, axis=-1, keepdims=True)
    var = jnp.mean((x - mu) ** 2, axis=-1, keepdims=True)
    xn = (x - mu) * jax.lax.rsqrt(var + 1e-5) * g_ref[...] + bta_ref[...]
    y = jnp.dot(xn.astype(_BF16), w_ref[...],
                preferred_element_type=jnp.float32) + b_ref[...]
    if act == 'gelu':
        y = _gelu(y)
    o_ref[...] = y.astype(o_ref.dtype)


def _linear_residual_kernel(x_ref, r_ref, w_ref, b_ref, o_ref):
    # out = r + x @ W + b   (fc2 + residual add fused)
    y = (r_ref[...].astype(jnp.float32) +
         jnp.dot(x_ref[...].astype(_BF16), w_ref[...],
                 preferred_element_type=jnp.float32) + b_ref[...])
    o_ref[...] = y.astype(o_ref.dtype)


def _linear_ln_kernel(x_ref, w_ref, b_ref, g_ref, bta_ref, o_ref):
    # out = LN(x @ W + b)   (patch-embed conv-as-matmul + norm)
    y = jnp.dot(x_ref[...].astype(_BF16), w_ref[...],
                preferred_element_type=jnp.float32) + b_ref[...]
    mu = jnp.mean(y, axis=-1, keepdims=True)
    var = jnp.mean((y - mu) ** 2, axis=-1, keepdims=True)
    o_ref[...] = ((y - mu) * jax.lax.rsqrt(var + 1e-5) * g_ref[...]
                  + bta_ref[...]).astype(o_ref.dtype)


def _ln_residual_kernel(x_ref, g_ref, bta_ref, o_ref):
    # out = x + LN(x)
    x = x_ref[...].astype(jnp.float32)
    mu = jnp.mean(x, axis=-1, keepdims=True)
    var = jnp.mean((x - mu) ** 2, axis=-1, keepdims=True)
    y = x + (x - mu) * jax.lax.rsqrt(var + 1e-5) * g_ref[...] + bta_ref[...]
    o_ref[...] = y.astype(o_ref.dtype)


def _attn_block_kernel(x_ref, qkvw_ref, qkvb_ref, bias_ref, projw_ref, projb_ref,
                       o_ref, *, heads, scale):
    # Fused: qkv projection -> windowed multi-head attention -> output projection,
    # for one batch of WB windows per grid step. Per-head outputs are accumulated
    # directly into the proj matmul (out = sum_h softmax(q_h k_h^T + bias_h) v_h @ Wp_h),
    # so no head-concat copy and no stacked per-head outputs are kept live.
    x = x_ref[...]
    WB, N, C = x.shape
    hd = C // heads

    qkv = jnp.dot(x.reshape(WB * N, C).astype(_BF16), qkvw_ref[...],
                  preferred_element_type=jnp.float32) + qkvb_ref[...]
    qkv = qkv.reshape(WB, N, 3 * C)

    acc = jnp.zeros((WB * N, C), jnp.float32)
    for h in range(heads):
        q = qkv[:, :, h * hd:(h + 1) * hd].astype(_BF16)
        k = qkv[:, :, C + h * hd:C + (h + 1) * hd].astype(_BF16)
        v = qkv[:, :, 2 * C + h * hd:2 * C + (h + 1) * hd].astype(_BF16)
        s = jnp.einsum('wnd,wmd->wnm', q, k,
                       preferred_element_type=jnp.float32) * scale
        s = s + bias_ref[h]                                  # (N, N) bcast over windows
        s = s - jnp.max(s, axis=-1, keepdims=True)
        p = jnp.exp(s)
        p = p * pl.reciprocal(jnp.sum(p, axis=-1, keepdims=True), approx=True)
        oh = jnp.einsum('wnm,wmd->wnd', p.astype(_BF16), v,
                        preferred_element_type=jnp.float32)  # (WB, N, hd)
        acc = acc + jnp.dot(oh.reshape(WB * N, hd).astype(_BF16),
                            projw_ref[h * hd:(h + 1) * hd, :],
                            preferred_element_type=jnp.float32)
    o_ref[...] = (acc + projb_ref[...]).reshape(WB, N, C).astype(o_ref.dtype)


def _ln_mean_head_kernel(x_ref, g_ref, bta_ref, w_ref, b_ref, o_ref):
    # out = mean_tokens(LN(x)) @ Wh + bh   (final norm + pool + classifier fused)
    x = x_ref[...].astype(jnp.float32)                       # (B, L, C)
    mu = jnp.mean(x, axis=-1, keepdims=True)
    var = jnp.mean((x - mu) ** 2, axis=-1, keepdims=True)
    xn = (x - mu) * jax.lax.rsqrt(var + 1e-5) * g_ref[...] + bta_ref[...]
    pooled = jnp.mean(xn, axis=1)                            # (B, C)
    o_ref[...] = jnp.dot(pooled.astype(_BF16), w_ref[...],
                         preferred_element_type=jnp.float32) + b_ref[...]


# ------------------------------- kernel wrappers ------------------------------------

def _round_up(x, m):
    return ((x + m - 1) // m) * m


def _tiles(M):
    """Row-tile size (multiple of 8, <= chip-derived target) and padded row count."""
    tm = min(_ROW_TILE, _round_up(M, 8))
    return tm, _round_up(M, tm)


def _col_tile(n):
    for t in (512, 256, 128):
        if n > t and n % t == 0:
            return t
    return n


def _pad_rows(a, Mp):
    M = a.shape[0]
    return a if M == Mp else jnp.pad(a, ((0, Mp - M), (0, 0)))


def _row_tiled_call(kernel, operands, n_out, *, out_dtype, col_tiled=True):
    """Grid over (row tiles, output-column tiles), both "parallel".

    operands: list of (array, mode):
      'row_full'  : row-tiled, full columns            (matmul / LN input)
      'row_col'   : row-tiled and column-tiled         (residual input)
      'bcast_full': whole array, constant block index  (input-side LN gamma/beta)
      'bcast_col' : column-tiled broadcast             (weights, biases, output LN params)
    Constant-index broadcast blocks are single-buffered (pl.Buffered(1)).
    """
    M = next(a.shape[0] for a, m in operands if m.startswith('row'))
    tm, Mp = _tiles(M)
    tn = _col_tile(n_out) if col_tiled else n_out
    n_col = n_out // tn

    args, in_specs, nbytes = [], [], 0
    for a, mode in operands:
        if mode == 'row_full':
            a = _pad_rows(a, Mp)
            spec = pl.BlockSpec((tm, a.shape[1]), lambda i, j: (i, 0))
            nbytes += 2 * tm * a.shape[1] * a.dtype.itemsize
        elif mode == 'row_col':
            a = _pad_rows(a, Mp)
            spec = pl.BlockSpec((tm, tn), lambda i, j: (i, j))
            nbytes += 2 * tm * tn * a.dtype.itemsize
        elif mode == 'bcast_full':
            nd = a.ndim
            spec = _bspec(a.shape, lambda i, j, nd=nd: (0,) * nd, single=True)
            nbytes += int(a.size) * a.dtype.itemsize
        else:  # 'bcast_col'
            nd = a.ndim
            blk = a.shape[:-1] + (tn,)
            single = (n_col == 1)          # constant block index only when not col-tiled
            spec = _bspec(blk, lambda i, j, nd=nd: (0,) * (nd - 1) + (j,), single=single)
            nbuf = 1 if (single and _SINGLE_BUF_OK) else 2
            nbytes += nbuf * int(np.prod(blk)) * a.dtype.itemsize
        args.append(a)
        in_specs.append(spec)
    nbytes += 2 * tm * tn * jnp.dtype(out_dtype).itemsize

    out = pl.pallas_call(
        kernel,
        grid=(Mp // tm, n_col),
        out_shape=jax.ShapeDtypeStruct((Mp, n_out), out_dtype),
        in_specs=in_specs,
        out_specs=pl.BlockSpec((tm, tn), lambda i, j: (i, j)),
        compiler_params=pltpu.CompilerParams(
            dimension_semantics=("parallel", "parallel"),
            vmem_limit_bytes=_vmem_limit(nbytes)),
    )(*args)
    return out[:M] if Mp != M else out


def ln_linear(x, g, bta, w, b, act=None):
    kern = functools.partial(_ln_linear_kernel, act=act)
    return _row_tiled_call(
        kern,
        [(x, 'row_full'),
         (g.reshape(1, -1), 'bcast_full'),
         (bta.reshape(1, -1), 'bcast_full'),
         (w.astype(_BF16), 'bcast_col'),
         (b.reshape(1, -1), 'bcast_col')],
        n_out=w.shape[1], out_dtype=_ACT_DTYPE)


def linear_residual(x, r, w, b):
    return _row_tiled_call(
        _linear_residual_kernel,
        [(x, 'row_full'), (r, 'row_col'),
         (w.astype(_BF16), 'bcast_col'), (b.reshape(1, -1), 'bcast_col')],
        n_out=w.shape[1], out_dtype=_ACT_DTYPE)


def linear_ln(x, w, b, g, bta):
    # LN is on the matmul output -> cannot column-tile this one.
    return _row_tiled_call(
        _linear_ln_kernel,
        [(x, 'row_full'),
         (w.astype(_BF16), 'bcast_col'), (b.reshape(1, -1), 'bcast_col'),
         (g.reshape(1, -1), 'bcast_col'), (bta.reshape(1, -1), 'bcast_col')],
        n_out=w.shape[1], out_dtype=_ACT_DTYPE, col_tiled=False)


def ln_residual(x, g, bta):
    return _row_tiled_call(
        _ln_residual_kernel,
        [(x, 'row_full'),
         (g.reshape(1, -1), 'bcast_full'),
         (bta.reshape(1, -1), 'bcast_full')],
        n_out=x.shape[1], out_dtype=_ACT_DTYPE, col_tiled=False)


def _pick_window_batch(B_, N, C, heads):
    """Windows per grid step, derived from a VMEM budget. The caller pads B_ up to a
    multiple of this (never shrinks to a tiny divisor)."""
    per_win = N * (9 * C + heads * N) * 4          # rough per-window working set (bytes)
    budget = max(_VMEM_CAP // 16, 2 << 20)
    cap = max(1, min(64, budget // max(per_win, 1)))
    return min(B_, cap)


def window_attention_block(xw, ap, heads, scale):
    """Fused qkv proj + window attention + output proj. xw: (B_, N, C) -> (B_, N, C)."""
    B_, N, C = xw.shape
    qkv_w = ap['qkv_w'].astype(_BF16)
    qkv_b = ap['qkv_b'].reshape(1, -1).astype(jnp.float32)
    proj_w = ap['proj_w'].astype(_BF16)
    proj_b = ap['proj_b'].reshape(1, -1).astype(jnp.float32)
    rel_bias = ap['rel_bias']                                 # (heads, N, N) f32

    WB = _pick_window_batch(B_, N, C, heads)
    Bp = _round_up(B_, WB)
    if Bp != B_:
        xw = jnp.pad(xw, ((0, Bp - B_), (0, 0), (0, 0)))

    nbytes = (2 * WB * N * C * xw.dtype.itemsize              # input, double-buffered
              + 2 * WB * N * C * jnp.dtype(_ACT_DTYPE).itemsize  # output
              + qkv_w.size * 2 + proj_w.size * 2              # resident bf16 weights
              + rel_bias.size * 4 + (qkv_b.size + proj_b.size) * 4
              + WB * N * 3 * C * 4 + WB * N * N * 4)          # in-kernel intermediates

    kern = functools.partial(_attn_block_kernel, heads=heads, scale=scale)
    out = pl.pallas_call(
        kern,
        grid=(Bp // WB,),
        out_shape=jax.ShapeDtypeStruct((Bp, N, C), _ACT_DTYPE),
        in_specs=[
            pl.BlockSpec((WB, N, C), lambda b: (b, 0, 0)),
            _bspec(qkv_w.shape, lambda b: (0, 0), single=True),
            _bspec(qkv_b.shape, lambda b: (0, 0), single=True),
            _bspec(rel_bias.shape, lambda b: (0, 0, 0), single=True),
            _bspec(proj_w.shape, lambda b: (0, 0), single=True),
            _bspec(proj_b.shape, lambda b: (0, 0), single=True),
        ],
        out_specs=pl.BlockSpec((WB, N, C), lambda b: (b, 0, 0)),
        compiler_params=pltpu.CompilerParams(
            dimension_semantics=("parallel",),
            vmem_limit_bytes=_vmem_limit(nbytes)),
    )(xw, qkv_w, qkv_b, rel_bias, proj_w, proj_b)
    return out[:B_] if Bp != B_ else out


def ln_mean_head(x, g, bta, w, b):
    """Final LayerNorm + mean over tokens + classifier head, fused. One tiny call;
    grid=(1,) is acceptable here (tokens already reduced to a handful)."""
    B, L, C = x.shape
    Nc = w.shape[1]
    w = w.astype(_BF16)
    nbytes = x.size * x.dtype.itemsize + w.size * 2 + (2 * C + Nc) * 4 + B * Nc * 4
    return pl.pallas_call(
        _ln_mean_head_kernel,
        grid=(1,),
        out_shape=jax.ShapeDtypeStruct((B, Nc), jnp.float32),
        in_specs=[pl.BlockSpec((B, L, C), lambda i: (0, 0, 0)),
                  pl.BlockSpec((1, 1, C), lambda i: (0, 0, 0)),
                  pl.BlockSpec((1, 1, C), lambda i: (0, 0, 0)),
                  pl.BlockSpec((C, Nc), lambda i: (0, 0)),
                  pl.BlockSpec((1, Nc), lambda i: (0, 0))],
        out_specs=pl.BlockSpec((B, Nc), lambda i: (0, 0)),
        compiler_params=pltpu.CompilerParams(vmem_limit_bytes=_vmem_limit(nbytes)),
    )(x, g.reshape(1, 1, C), bta.reshape(1, 1, C), w, b.reshape(1, Nc))


# ----------------------------- Swin forward (glue) -----------------------------------

def window_partition(x, ws):
    B, H, W, C = x.shape
    x = x.reshape(B, H // ws, ws, W // ws, ws, C)
    return x.transpose(0, 1, 3, 2, 4, 5).reshape(-1, ws, ws, C)


def window_reverse(windows, ws, H, W):
    B = windows.shape[0] // (H * W // ws // ws)
    x = windows.reshape(B, H // ws, W // ws, ws, ws, -1)
    return x.transpose(0, 1, 3, 2, 4, 5).reshape(B, H, W, -1)


def relative_position_index(ws):
    coords = np.stack(np.meshgrid(np.arange(ws), np.arange(ws), indexing='ij'))
    cf = coords.reshape(2, -1)
    rel = cf[:, :, None] - cf[:, None, :]
    rel = rel.transpose(1, 2, 0).astype(np.int64)
    rel[:, :, 0] += ws - 1
    rel[:, :, 1] += ws - 1
    rel[:, :, 0] *= 2 * ws - 1
    return rel.sum(-1)                                        # (N, N)


def _precompute_rel_bias(rel_table, ws):
    # Done once at init time: gather + permute to (heads, N, N), no per-forward work.
    N = ws * ws
    idx = relative_position_index(ws).reshape(-1)
    bias = rel_table[idx].reshape(N, N, -1)
    return jnp.transpose(bias, (2, 0, 1)).astype(jnp.float32)


def swin_block(x, p, H, W, ws, shift, heads):
    B, L, C = x.shape
    xm = x.reshape(B, H, W, C)
    if shift > 0:
        xm = jnp.roll(xm, shift=(-shift, -shift), axis=(1, 2))
    xw = window_partition(xm, ws).reshape(-1, ws * ws, C)     # (B_, N, C)

    # fused qkv proj + attention + output proj (one kernel, window-batched)
    o = window_attention_block(xw, p['attn'], heads, (C // heads) ** (-0.5))

    xm = window_reverse(o.reshape(-1, ws, ws, C), ws, H, W)
    if shift > 0:
        xm = jnp.roll(xm, shift=(shift, shift), axis=(1, 2))
    # NOTE: replicates the reference exactly: no shifted-window attention mask, and the
    # (unusual) residuals  x = x + norm1(x);  x = x + mlp(norm2(x)).
    xr = xm.reshape(B * H * W, C)
    xr = ln_residual(xr, p['norm1_g'], p['norm1_b'])               # x + norm1(x)
    h = ln_linear(xr, p['norm2_g'], p['norm2_b'],
                  p['fc1_w'], p['fc1_b'], act='gelu')              # gelu(fc1(norm2(x)))
    xr = linear_residual(h, xr, p['fc2_w'], p['fc2_b'])            # x + fc2(...)
    return xr.reshape(B, H * W, C)


def patch_merging(x, p, H, W):
    B, L, C = x.shape
    xm = x.reshape(B, H, W, C)
    x0 = xm[:, 0::2, 0::2, :]
    x1 = xm[:, 1::2, 0::2, :]
    x2 = xm[:, 0::2, 1::2, :]
    x3 = xm[:, 1::2, 1::2, :]
    xc = jnp.concatenate([x0, x1, x2, x3], axis=-1).reshape(-1, 4 * C)
    h = ln_linear(xc, p['norm_g'], p['norm_b'], p['red_w'], p['red_b'])
    return h.reshape(B, (H // 2) * (W // 2), 2 * C)


def patch_embed(x, p, ps, embed_dim):
    # Conv2d(in, embed, kernel=ps, stride=ps) == matmul over non-overlapping patches,
    # with the patch flattened in (C, kh, kw) order to match PyTorch Conv2d weight layout.
    B, C, H, W = x.shape
    Hp, Wp = H // ps, W // ps
    patches = x.reshape(B, C, Hp, ps, Wp, ps).transpose(0, 2, 4, 1, 3, 5)
    patches = patches.reshape(B * Hp * Wp, C * ps * ps)
    h = linear_ln(patches, p['proj_w'], p['proj_b'], p['norm_g'], p['norm_b'])
    return h.reshape(B, Hp * Wp, embed_dim)


def swin_forward(x, params, cfg):
    x = patch_embed(x, params['patch_embed'], cfg['patch_size'], cfg['embed_dim'])
    res = cfg['img_size'] // cfg['patch_size']
    for i, layer in enumerate(params['layers']):
        H = W = res // (2 ** i)
        heads = cfg['num_heads'][i]
        ws = cfg['window_size']
        for j, blk in enumerate(layer['blocks']):
            shift = 0 if j % 2 == 0 else ws // 2
            x = swin_block(x, blk, H, W, ws, shift, heads)
        x = patch_merging(x, layer['downsample'], H, W)
    return ln_mean_head(x, params['norm_g'], params['norm_b'],
                        params['head_w'], params['head_b'])


# ------------------------------ deterministic params ---------------------------------

def init_params(cfg, key):
    ks = iter(jax.random.split(key, 256))

    def randn(shape, dtype=jnp.float32):
        return (0.02 * jax.random.normal(next(ks), shape)).astype(dtype)

    def wmat(shape):                     # matmul weights stored bf16 (MXU-native operands)
        return randn(shape, _BF16)

    def zeros(shape):
        return jnp.zeros(shape, jnp.float32)

    def ones(shape):
        return jnp.ones(shape, jnp.float32)

    ps, ed, ic = cfg['patch_size'], cfg['embed_dim'], cfg['in_chans']
    ws = cfg['window_size']
    params = {
        'patch_embed': {
            'proj_w': wmat((ic * ps * ps, ed)), 'proj_b': zeros((ed,)),
            'norm_g': ones((ed,)), 'norm_b': zeros((ed,)),
        },
        'layers': [],
    }
    for i, depth in enumerate(cfg['depths']):
        d = ed * (2 ** i)
        h = cfg['num_heads'][i]
        blocks = []
        for _ in range(depth):
            blocks.append({
                'norm1_g': ones((d,)), 'norm1_b': zeros((d,)),
                'norm2_g': ones((d,)), 'norm2_b': zeros((d,)),
                'attn': {
                    'qkv_w': wmat((d, 3 * d)), 'qkv_b': zeros((3 * d,)),
                    'proj_w': wmat((d, d)), 'proj_b': zeros((d,)),
                    # relative-position bias precomputed to (heads, N, N)
                    'rel_bias': _precompute_rel_bias(
                        randn(((2 * ws - 1) ** 2, h)), ws),
                },
                'fc1_w': wmat((d, 4 * d)), 'fc1_b': zeros((4 * d,)),
                'fc2_w': wmat((4 * d, d)), 'fc2_b': zeros((d,)),
            })
        params['layers'].append({
            'blocks': blocks,
            'downsample': {
                'norm_g': ones((4 * d,)), 'norm_b': zeros((4 * d,)),
                'red_w': wmat((4 * d, 2 * d)), 'red_b': zeros((2 * d,)),
            },
        })
    final_dim = ed * (2 ** len(cfg['depths']))
    params['norm_g'] = ones((final_dim,))
    params['norm_b'] = zeros((final_dim,))
    params['head_w'] = wmat((final_dim, cfg['num_classes']))
    params['head_b'] = zeros((cfg['num_classes'],))
    return params


# --------------------------------------- main ----------------------------------------

if __name__ == "__main__":
    # Small configuration consistent with the module's constraints:
    # resolution (16/4=4) divisible by window_size (2); resolution/2 (=2) also divisible;
    # every layer dim divisible by its head count.
    cfg = dict(img_size=16, patch_size=4, in_chans=3, embed_dim=8,
               depths=[2, 2], num_heads=[2, 4], window_size=2, num_classes=2)

    key = jax.random.PRNGKey(0)
    kx, kp = jax.random.split(key)
    x = jax.random.normal(kx, (2, cfg['in_chans'], cfg['img_size'], cfg['img_size']),
                          dtype=jnp.float32)
    params = init_params(cfg, kp)

    fwd = jax.jit(functools.partial(swin_forward, cfg=cfg))
    logits = jax.block_until_ready(fwd(x, params))
    assert logits.shape == (2, cfg['num_classes'])
    assert bool(jnp.all(jnp.isfinite(logits)))
    print("KERNEL_OK")
</pallas_src>

<mosaic_0001>
module attributes {stable_mosaic.version = 11 : i64} {
  func.func @k(%arg0: i32, %arg1: memref<8x128xf32, #tpu.memory_space<vmem>>, %arg2: memref<8x128xf32, #tpu.memory_space<vmem>>) attributes {dimension_semantics = [#tpu.dimension_semantics<arbitrary>], iteration_bounds = array<i64: 2>, scalar_prefetch = 0 : i64, scratch_operands = 0 : i64, tpu.core_type = #tpu.core_type<tc>, window_params = [{pipeline_mode = #tpu.pipeline_mode<synchronous>, transform_indices = @transform_0, window_bounds = array<i64: 8, 128>}, {pipeline_mode = #tpu.pipeline_mode<synchronous>, transform_indices = @transform_1, window_bounds = array<i64: 8, 128>}]} {
    %c0 = arith.constant 0 : index
    %c0_0 = arith.constant 0 : index
    %0 = vector.load %arg1[%c0, %c0_0] : memref<8x128xf32, #tpu.memory_space<vmem>>, vector<8x128xf32>
    %cst = arith.constant 1.000000e+00 : f32
    %1 = vector.broadcast %cst : f32 to vector<8x128xf32>
    %2 = arith.addf %0, %1 : vector<8x128xf32>
    %c0_1 = arith.constant 0 : index
    %c0_2 = arith.constant 0 : index
    %3 = vector.load %arg2[%c0_1, %c0_2] : memref<8x128xf32, #tpu.memory_space<vmem>>, vector<8x128xf32>
    tpu.vector_store %arg2[%c0_1, %c0_2], %2 {strides = array<i32>} : memref<8x128xf32, #tpu.memory_space<vmem>>, vector<8x128xf32>,
    return
  }
  func.func @transform_0(%arg0: i32) -> (i32, i32) {
    %c0_i32 = arith.constant 0 : i32
    %c0_i32_0 = arith.constant 0 : i32
    %c0_i32_1 = arith.constant 0 : i32
    return %c0_i32, %c0_i32_0 : i32, i32
  }
  func.func @transform_1(%arg0: i32) -> (i32, i32) {
    %c0_i32 = arith.constant 0 : i32
    %c0_i32_0 = arith.constant 0 : i32
    %c0_i32_1 = arith.constant 0 : i32
    return %c0_i32, %c0_i32_0 : i32, i32
  }
}

module attributes {stable_mosaic.version = 11 : i64} {
  func.func @_linear_ln_kernel(%arg0: i32, %arg1: i32, %arg2: memref<32x48xf32, #tpu.memory_space<vmem>>, %arg3: memref<48x8xbf16, #tpu.memory_space<vmem>>, %arg4: memref<1x8xf32, #tpu.memory_space<vmem>>, %arg5: memref<1x8xf32, #tpu.memory_space<vmem>>, %arg6: memref<1x8xf32, #tpu.memory_space<vmem>>, %arg7: memref<32x8xbf16, #tpu.memory_space<vmem>>) attributes {dimension_semantics = [#tpu.dimension_semantics<parallel>, #tpu.dimension_semantics<parallel>], iteration_bounds = array<i64: 1, 1>, scalar_prefetch = 0 : i64, scratch_operands = 0 : i64, tpu.core_type = #tpu.core_type<tc>, window_params = [{transform_indices = @transform_0, window_bounds = array<i64: 32, 48>}, {transform_indices = @transform_1, window_bounds = array<i64: 48, 8>}, {transform_indices = @transform_2, window_bounds = array<i64: 1, 8>}, {transform_indices = @transform_3, window_bounds = array<i64: 1, 8>}, {transform_indices = @transform_4, window_bounds = array<i64: 1, 8>}, {transform_indices = @transform_5, window_bounds = array<i64: 32, 8>}]} {
    %c0 = arith.constant 0 : index
    %c0_0 = arith.constant 0 : index
    %0 = vector.load %arg2[%c0, %c0_0] : memref<32x48xf32, #tpu.memory_space<vmem>>, vector<32x48xf32>
    %1 = arith.truncf %0 : vector<32x48xf32> to vector<32x48xbf16>
    %c0_1 = arith.constant 0 : index
    %c0_2 = arith.constant 0 : index
    %2 = vector.load %arg3[%c0_1, %c0_2] : memref<48x8xbf16, #tpu.memory_space<vmem>>, vector<48x8xbf16>
    %cst = arith.constant dense<0.000000e+00> : vector<32x8xf32>
    %3 = tpu.matmul %1, %2, %cst {dimension_numbers = #tpu.dot_dimension_numbers<[1], [0], [0], [1], [0, 0, 1, 1], [], []>} : vector<32x48xbf16>, vector<48x8xbf16>, vector<32x8xf32> -> vector<32x8xf32>
    %c0_3 = arith.constant 0 : index
    %c0_4 = arith.constant 0 : index
    %4 = vector.load %arg4[%c0_3, %c0_4] : memref<1x8xf32, #tpu.memory_space<vmem>>, vector<1x8xf32>
    %5 = vector.broadcast %4 : vector<1x8xf32> to vector<32x8xf32>
    %6 = arith.addf %3, %5 : vector<32x8xf32>
    %cst_5 = arith.constant dense<0.000000e+00> : vector<32xf32>
    %7 = vector.multi_reduction <add>, %6, %cst_5 [1] : vector<32x8xf32> to vector<32xf32>
    %8 = vector.shape_cast %7 : vector<32xf32> to vector<32x1xf32>
    %cst_6 = arith.constant 8.000000e+00 : f32
    %9 = vector.broadcast %cst_6 : f32 to vector<32x1xf32>
    %10 = arith.divf %8, %9 : vector<32x1xf32>
    %11 = vector.broadcast %10 : vector<32x1xf32> to vector<32x8xf32>
    %12 = arith.subf %6, %11 : vector<32x8xf32>
    %13 = arith.mulf %12, %12 : vector<32x8xf32>
    %cst_7 = arith.constant dense<0.000000e+00> : vector<32xf32>
    %14 = vector.multi_reduction <add>, %13, %cst_7 [1] : vector<32x8xf32> to vector<32xf32>
    %15 = vector.shape_cast %14 : vector<32xf32> to vector<32x1xf32>
    %cst_8 = arith.constant 8.000000e+00 : f32
    %16 = vector.broadcast %cst_8 : f32 to vector<32x1xf32>
    %17 = arith.divf %15, %16 : vector<32x1xf32>
    %18 = vector.broadcast %10 : vector<32x1xf32> to vector<32x8xf32>
    %19 = arith.subf %6, %18 : vector<32x8xf32>
    %cst_9 = arith.constant 9.99999974E-6 : f32
    %20 = vector.broadcast %cst_9 : f32 to vector<32x1xf32>
    %21 = arith.addf %17, %20 : vector<32x1xf32>
    %22 = math.rsqrt %21 : vector<32x1xf32>
    %23 = vector.broadcast %22 : vector<32x1xf32> to vector<32x8xf32>
    %24 = arith.mulf %19, %23 : vector<32x8xf32>
    %c0_10 = arith.constant 0 : index
    %c0_11 = arith.constant 0 : index
    %25 = vector.load %arg5[%c0_10, %c0_11] : memref<1x8xf32, #tpu.memory_space<vmem>>, vector<1x8xf32>
    %26 = vector.broadcast %25 : vector<1x8xf32> to vector<32x8xf32>
    %27 = arith.mulf %24, %26 : vector<32x8xf32>
    %c0_12 = arith.constant 0 : index
    %c0_13 = arith.constant 0 : index
    %28 = vector.load %arg6[%c0_12, %c0_13] : memref<1x8xf32, #tpu.memory_space<vmem>>, vector<1x8xf32>
    %29 = vector.broadcast %28 : vector<1x8xf32> to vector<32x8xf32>
    %30 = arith.addf %27, %29 : vector<32x8xf32>
    %31 = arith.truncf %30 : vector<32x8xf32> to vector<32x8xbf16>
    %c0_14 = arith.constant 0 : index
    %c0_15 = arith.constant 0 : index
    %32 = vector.load %arg7[%c0_14, %c0_15] : memref<32x8xbf16, #tpu.memory_space<vmem>>, vector<32x8xbf16>
    tpu.vector_store %arg7[%c0_14, %c0_15], %31 {strides = array<i32>} : memref<32x8xbf16, #tpu.memory_space<vmem>>, vector<32x8xbf16>,
    return
  }
  func.func @transform_0(%arg0: i32, %arg1: i32) -> (i32, i32) {
    %c0_i32 = arith.constant 0 : i32
    %c0_i32_0 = arith.constant 0 : i32
    return %arg0, %c0_i32 : i32, i32
  }
  func.func @transform_1(%arg0: i32, %arg1: i32) -> (i32, i32) {
    %c0_i32 = arith.constant 0 : i32
    %c0_i32_0 = arith.constant 0 : i32
    return %c0_i32, %arg1 : i32, i32
  }
  func.func @transform_2(%arg0: i32, %arg1: i32) -> (i32, i32) {
    %c0_i32 = arith.constant 0 : i32
    %c0_i32_0 = arith.constant 0 : i32
    return %c0_i32, %arg1 : i32, i32
  }
  func.func @transform_3(%arg0: i32, %arg1: i32) -> (i32, i32) {
    %c0_i32 = arith.constant 0 : i32
    %c0_i32_0 = arith.constant 0 : i32
    return %c0_i32, %arg1 : i32, i32
  }
  func.func @transform_4(%arg0: i32, %arg1: i32) -> (i32, i32) {
    %c0_i32 = arith.constant 0 : i32
    %c0_i32_0 = arith.constant 0 : i32
    return %c0_i32, %arg1 : i32, i32
  }
  func.func @transform_5(%arg0: i32, %arg1: i32) -> (i32, i32) {
    %c0_i32 = arith.constant 0 : i32
    return %arg0, %arg1 : i32, i32
  }
}

module attributes {stable_mosaic.version = 11 : i64} {
  func.func @_attn_block_kernel(%arg0: i32, %arg1: memref<8x4x8xbf16, #tpu.memory_space<vmem>>, %arg2: memref<8x24xbf16, #tpu.memory_space<vmem>>, %arg3: memref<1x24xf32, #tpu.memory_space<vmem>>, %arg4: memref<2x4x4xf32, #tpu.memory_space<vmem>>, %arg5: memref<8x8xbf16, #tpu.memory_space<vmem>>, %arg6: memref<1x8xf32, #tpu.memory_space<vmem>>, %arg7: memref<8x4x8xbf16, #tpu.memory_space<vmem>>) attributes {dimension_semantics = [#tpu.dimension_semantics<parallel>], iteration_bounds = array<i64: 1>, scalar_prefetch = 0 : i64, scratch_operands = 0 : i64, tpu.core_type = #tpu.core_type<tc>, window_params = [{transform_indices = @transform_0, window_bounds = array<i64: 8, 4, 8>}, {pipeline_mode = #tpu.pipeline_mode<synchronous>, transform_indices = @transform_1, window_bounds = array<i64: 8, 24>}, {pipeline_mode = #tpu.pipeline_mode<synchronous>, transform_indices = @transform_2, window_bounds = array<i64: 1, 24>}, {pipeline_mode = #tpu.pipeline_mode<synchronous>, transform_indices = @transform_3, window_bounds = array<i64: 2, 4, 4>}, {pipeline_mode = #tpu.pipeline_mode<synchronous>, transform_indices = @transform_4, window_bounds = array<i64: 8, 8>}, {pipeline_mode = #tpu.pipeline_mode<synchronous>, transform_indices = @transform_5, window_bounds = array<i64: 1, 8>}, {transform_indices = @transform_6, window_bounds = array<i64: 8, 4, 8>}]} {
    %c0 = arith.constant 0 : index
    %c0_0 = arith.constant 0 : index
    %c0_1 = arith.constant 0 : index
    %0 = vector.load %arg1[%c0, %c0_0, %c0_1] : memref<8x4x8xbf16, #tpu.memory_space<vmem>>, vector<8x4x8xbf16>
    %1 = vector.shape_cast %0 : vector<8x4x8xbf16> to vector<32x8xbf16>
    %c0_2 = arith.constant 0 : index
    %c0_3 = arith.constant 0 : index
    %2 = vector.load %arg2[%c0_2, %c0_3] : memref<8x24xbf16, #tpu.memory_space<vmem>>, vector<8x24xbf16>
    %cst = arith.constant dense<0.000000e+00> : vector<32x24xf32>
    %3 = tpu.matmul %1, %2, %cst {dimension_numbers = #tpu.dot_dimension_numbers<[1], [0], [0], [1], [0, 0, 1, 1], [], []>} : vector<32x8xbf16>, vector<8x24xbf16>, vector<32x24xf32> -> vector<32x24xf32>
    %c0_4 = arith.constant 0 : index
    %c0_5 = arith.constant 0 : index
    %4 = vector.load %arg3[%c0_4, %c0_5] : memref<1x24xf32, #tpu.memory_space<vmem>>, vector<1x24xf32>
    %5 = vector.broadcast %4 : vector<1x24xf32> to vector<32x24xf32>
    %6 = arith.addf %3, %5 : vector<32x24xf32>
    %7 = vector.shape_cast %6 : vector<32x24xf32> to vector<8x4x24xf32>
    %cst_6 = arith.constant 0.000000e+00 : f32
    %8 = vector.broadcast %cst_6 : f32 to vector<32x8xf32>
    %9 = vector.extract_strided_slice %7 {offsets = [0, 0, 0], sizes = [8, 4, 4], strides = [1, 1, 1]} : vector<8x4x24xf32> to vector<8x4x4xf32>
    %10 = arith.truncf %9 : vector<8x4x4xf32> to vector<8x4x4xbf16>
    %11 = vector.extract_strided_slice %7 {offsets = [0, 0, 8], sizes = [8, 4, 4], strides = [1, 1, 1]} : vector<8x4x24xf32> to vector<8x4x4xf32>
    %12 = arith.truncf %11 : vector<8x4x4xf32> to vector<8x4x4xbf16>
    %13 = vector.extract_strided_slice %7 {offsets = [0, 0, 16], sizes = [8, 4, 4], strides = [1, 1, 1]} : vector<8x4x24xf32> to vector<8x4x4xf32>
    %14 = arith.truncf %13 : vector<8x4x4xf32> to vector<8x4x4xbf16>
    "tpu.trace_start"() <{level = 10 : i32, message = "wnd,wmd->wnm"}> : () -> ()
    %cst_7 = arith.constant dense<0.000000e+00> : vector<8x4x4xf32>
    %15 = tpu.matmul %10, %12, %cst_7 {dimension_numbers = #tpu.dot_dimension_numbers<[2], [2], [1], [1], [0, 0, 0, 1, 1, 1], [0], [0]>} : vector<8x4x4xbf16>, vector<8x4x4xbf16>, vector<8x4x4xf32> -> vector<8x4x4xf32>
    "tpu.trace_stop"() : () -> ()
    %cst_8 = arith.constant 5.000000e-01 : f32
    %16 = vector.broadcast %cst_8 : f32 to vector<8x4x4xf32>
    %17 = arith.mulf %15, %16 : vector<8x4x4xf32>
    %c0_9 = arith.constant 0 : index
    %c0_10 = arith.constant 0 : index
    %c0_11 = arith.constant 0 : index
    %18 = vector.load %arg4[%c0_9, %c0_10, %c0_11] : memref<2x4x4xf32, #tpu.memory_space<vmem>>, vector<1x4x4xf32>
    %19 = vector.shape_cast %18 : vector<1x4x4xf32> to vector<4x4xf32>
    %20 = vector.shape_cast %19 : vector<4x4xf32> to vector<1x4x4xf32>
    %21 = vector.broadcast %20 : vector<1x4x4xf32> to vector<8x4x4xf32>
    %22 = arith.addf %17, %21 : vector<8x4x4xf32>
    %cst_12 = arith.constant dense<0xFF800000> : vector<8x4xf32>
    %23 = vector.multi_reduction <maximumf>, %22, %cst_12 [2] : vector<8x4x4xf32> to vector<8x4xf32>
    %24 = vector.shape_cast %23 : vector<8x4xf32> to vector<8x4x1xf32>
    %25 = vector.broadcast %24 : vector<8x4x1xf32> to vector<8x4x4xf32>
    %26 = arith.subf %22, %25 : vector<8x4x4xf32>
    %27 = math.exp %26 : vector<8x4x4xf32>
    %cst_13 = arith.constant dense<0.000000e+00> : vector<8x4xf32>
    %28 = vector.multi_reduction <add>, %27, %cst_13 [2] : vector<8x4x4xf32> to vector<8x4xf32>
    %29 = vector.shape_cast %28 : vector<8x4xf32> to vector<8x4x1xf32>
    %30 = tpu.reciprocal %29 {approx = true} : vector<8x4x1xf32> -> vector<8x4x1xf32>
    %31 = vector.broadcast %30 : vector<8x4x1xf32> to vector<8x4x4xf32>
    %32 = arith.mulf %27, %31 : vector<8x4x4xf32>
    %33 = arith.truncf %32 : vector<8x4x4xf32> to vector<8x4x4xbf16>
    "tpu.trace_start"() <{level = 10 : i32, message = "wnm,wmd->wnd"}> : () -> ()
    %cst_14 = arith.constant dense<0.000000e+00> : vector<8x4x4xf32>
    %34 = tpu.matmul %33, %14, %cst_14 {dimension_numbers = #tpu.dot_dimension_numbers<[2], [1], [1], [2], [0, 0, 0, 1, 1, 2], [0], [0]>} : vector<8x4x4xbf16>, vector<8x4x4xbf16>, vector<8x4x4xf32> -> vector<8x4x4xf32>
    "tpu.trace_stop"() : () -> ()
    %35 = vector.shape_cast %34 : vector<8x4x4xf32> to vector<32x4xf32>
    %36 = arith.truncf %35 : vector<32x4xf32> to vector<32x4xbf16>
    %c0_15 = arith.constant 0 : index
    %c0_16 = arith.constant 0 : index
    %37 = vector.load %arg5[%c0_15, %c0_16] : memref<8x8xbf16, #tpu.memory_space<vmem>>, vector<4x8xbf16>
    %cst_17 = arith.constant dense<0.000000e+00> : vector<32x8xf32>
    %38 = tpu.matmul %36, %37, %cst_17 {dimension_numbers = #tpu.dot_dimension_numbers<[1], [0], [0], [1], [0, 0, 1, 1], [], []>} : vector<32x4xbf16>, vector<4x8xbf16>, vector<32x8xf32> -> vector<32x8xf32>
    %39 = arith.addf %8, %38 : vector<32x8xf32>
    %40 = vector.extract_strided_slice %7 {offsets = [0, 0, 4], sizes = [8, 4, 4], strides = [1, 1, 1]} : vector<8x4x24xf32> to vector<8x4x4xf32>
    %41 = arith.truncf %40 : vector<8x4x4xf32> to vector<8x4x4xbf16>
    %42 = vector.extract_strided_slice %7 {offsets = [0, 0, 12], sizes = [8, 4, 4], strides = [1, 1, 1]} : vector<8x4x24xf32> to vector<8x4x4xf32>
    %43 = arith.truncf %42 : vector<8x4x4xf32> to vector<8x4x4xbf16>
    %44 = vector.extract_strided_slice %7 {offsets = [0, 0, 20], sizes = [8, 4, 4], strides = [1, 1, 1]} : vector<8x4x24xf32> to vector<8x4x4xf32>
    %45 = arith.truncf %44 : vector<8x4x4xf32> to vector<8x4x4xbf16>
    "tpu.trace_start"() <{level = 10 : i32, message = "wnd,wmd->wnm"}> : () -> ()
    %cst_18 = arith.constant dense<0.000000e+00> : vector<8x4x4xf32>
    %46 = tpu.matmul %41, %43, %cst_18 {dimension_numbers = #tpu.dot_dimension_numbers<[2], [2], [1], [1], [0, 0, 0, 1, 1, 1], [0], [0]>} : vector<8x4x4xbf16>, vector<8x4x4xbf16>, vector<8x4x4xf32> -> vector<8x4x4xf32>
    "tpu.trace_stop"() : () -> ()
    %cst_19 = arith.constant 5.000000e-01 : f32
    %47 = vector.broadcast %cst_19 : f32 to vector<8x4x4xf32>
    %48 = arith.mulf %46, %47 : vector<8x4x4xf32>
    %c1 = arith.constant 1 : index
    %c0_20 = arith.constant 0 : index
    %c0_21 = arith.constant 0 : index
    %49 = vector.load %arg4[%c1, %c0_20, %c0_21] : memref<2x4x4xf32, #tpu.memory_space<vmem>>, vector<1x4x4xf32>
    %50 = vector.shape_cast %49 : vector<1x4x4xf32> to vector<4x4xf32>
    %51 = vector.shape_cast %50 : vector<4x4xf32> to vector<1x4x4xf32>
    %52 = vector.broadcast %51 : vector<1x4x4xf32> to vector<8x4x4xf32>
    %53 = arith.addf %48, %52 : vector<8x4x4xf32>
    %cst_22 = arith.constant dense<0xFF800000> : vector<8x4xf32>
    %54 = vector.multi_reduction <maximumf>, %53, %cst_22 [2] : vector<8x4x4xf32> to vector<8x4xf32>
    %55 = vector.shape_cast %54 : vector<8x4xf32> to vector<8x4x1xf32>
    %56 = vector.broadcast %55 : vector<8x4x1xf32> to vector<8x4x4xf32>
    %57 = arith.subf %53, %56 : vector<8x4x4xf32>
    %58 = math.exp %57 : vector<8x4x4xf32>
    %cst_23 = arith.constant dense<0.000000e+00> : vector<8x4xf32>
    %59 = vector.multi_reduction <add>, %58, %cst_23 [2] : vector<8x4x4xf32> to vector<8x4xf32>
    %60 = vector.shape_cast %59 : vector<8x4xf32> to vector<8x4x1xf32>
    %61 = tpu.reciprocal %60 {approx = true} : vector<8x4x1xf32> -> vector<8x4x1xf32>
    %62 = vector.broadcast %61 : vector<8x4x1xf32> to vector<8x4x4xf32>
    %63 = arith.mulf %58, %62 : vector<8x4x4xf32>
    %64 = arith.truncf %63 : vector<8x4x4xf32> to vector<8x4x4xbf16>
    "tpu.trace_start"() <{level = 10 : i32, message = "wnm,wmd->wnd"}> : () -> ()
    %cst_24 = arith.constant dense<0.000000e+00> : vector<8x4x4xf32>
    %65 = tpu.matmul %64, %45, %cst_24 {dimension_numbers = #tpu.dot_dimension_numbers<[2], [1], [1], [2], [0, 0, 0, 1, 1, 2], [0], [0]>} : vector<8x4x4xbf16>, vector<8x4x4xbf16>, vector<8x4x4xf32> -> vector<8x4x4xf32>
    "tpu.trace_stop"() : () -> ()
    %66 = vector.shape_cast %65 : vector<8x4x4xf32> to vector<32x4xf32>
    %67 = arith.truncf %66 : vector<32x4xf32> to vector<32x4xbf16>
    %c4 = arith.constant 4 : index
    %c0_25 = arith.constant 0 : index
    %68 = vector.load %arg5[%c4, %c0_25] : memref<8x8xbf16, #tpu.memory_space<vmem>>, vector<4x8xbf16>
    %cst_26 = arith.constant dense<0.000000e+00> : vector<32x8xf32>
    %69 = tpu.matmul %67, %68, %cst_26 {dimension_numbers = #tpu.dot_dimension_numbers<[1], [0], [0], [1], [0, 0, 1, 1], [], []>} : vector<32x4xbf16>, vector<4x8xbf16>, vector<32x8xf32> -> vector<32x8xf32>
    %70 = arith.addf %39, %69 : vector<32x8xf32>
    %c0_27 = arith.constant 0 : index
    %c0_28 = arith.constant 0 : index
    %71 = vector.load %arg6[%c0_27, %c0_28] : memref<1x8xf32, #tpu.memory_space<vmem>>, vector<1x8xf32>
    %72 = vector.broadcast %71 : vector<1x8xf32> to vector<32x8xf32>
    %73 = arith.addf %70, %72 : vector<32x8xf32>
    %74 = vector.shape_cast %73 : vector<32x8xf32> to vector<8x4x8xf32>
    %75 = arith.truncf %74 : vector<8x4x8xf32> to vector<8x4x8xbf16>
    %c0_29 = arith.constant 0 : index
    %c0_30 = arith.constant 0 : index
    %c0_31 = arith.constant 0 : index
    %76 = vector.load %arg7[%c0_29, %c0_30, %c0_31] : memref<8x4x8xbf16, #tpu.memory_space<vmem>>, vector<8x4x8xbf16>
    tpu.vector_store %arg7[%c0_29, %c0_30, %c0_31], %75 {strides = array<i32>} : memref<8x4x8xbf16, #tpu.memory_space<vmem>>, vector<8x4x8xbf16>,
    return
  }
  func.func @transform_0(%arg0: i32) -> (i32, i32, i32) {
    %c0_i32 = arith.constant 0 : i32
    %c0_i32_0 = arith.constant 0 : i32
    %c0_i32_1 = arith.constant 0 : i32
    return %arg0, %c0_i32, %c0_i32_0 : i32, i32, i32
  }
  func.func @transform_1(%arg0: i32) -> (i32, i32) {
    %c0_i32 = arith.constant 0 : i32
    %c0_i32_0 = arith.constant 0 : i32
    %c0_i32_1 = arith.constant 0 : i32
    return %c0_i32, %c0_i32_0 : i32, i32
  }
  func.func @transform_2(%arg0: i32) -> (i32, i32) {
    %c0_i32 = arith.constant 0 : i32
    %c0_i32_0 = arith.constant 0 : i32
    %c0_i32_1 = arith.constant 0 : i32
    return %c0_i32, %c0_i32_0 : i32, i32
  }
  func.func @transform_3(%arg0: i32) -> (i32, i32, i32) {
    %c0_i32 = arith.constant 0 : i32
    %c0_i32_0 = arith.constant 0 : i32
    %c0_i32_1 = arith.constant 0 : i32
    %c0_i32_2 = arith.constant 0 : i32
    return %c0_i32, %c0_i32_0, %c0_i32_1 : i32, i32, i32
  }
  func.func @transform_4(%arg0: i32) -> (i32, i32) {
    %c0_i32 = arith.constant 0 : i32
    %c0_i32_0 = arith.constant 0 : i32
    %c0_i32_1 = arith.constant 0 : i32
    return %c0_i32, %c0_i32_0 : i32, i32
  }
  func.func @transform_5(%arg0: i32) -> (i32, i32) {
    %c0_i32 = arith.constant 0 : i32
    %c0_i32_0 = arith.constant 0 : i32
    %c0_i32_1 = arith.constant 0 : i32
    return %c0_i32, %c0_i32_0 : i32, i32
  }
  func.func @transform_6(%arg0: i32) -> (i32, i32, i32) {
    %c0_i32 = arith.constant 0 : i32
    %c0_i32_0 = arith.constant 0 : i32
    %c0_i32_1 = arith.constant 0 : i32
    return %arg0, %c0_i32, %c0_i32_0 : i32, i32, i32
  }
}

module attributes {stable_mosaic.version = 11 : i64} {
  func.func @_ln_residual_kernel(%arg0: i32, %arg1: i32, %arg2: memref<32x8xbf16, #tpu.memory_space<vmem>>, %arg3: memref<1x8xf32, #tpu.memory_space<vmem>>, %arg4: memref<1x8xf32, #tpu.memory_space<vmem>>, %arg5: memref<32x8xbf16, #tpu.memory_space<vmem>>) attributes {dimension_semantics = [#tpu.dimension_semantics<parallel>, #tpu.dimension_semantics<parallel>], iteration_bounds = array<i64: 1, 1>, scalar_prefetch = 0 : i64, scratch_operands = 0 : i64, tpu.core_type = #tpu.core_type<tc>, window_params = [{transform_indices = @transform_0, window_bounds = array<i64: 32, 8>}, {pipeline_mode = #tpu.pipeline_mode<synchronous>, transform_indices = @transform_1, window_bounds = array<i64: 1, 8>}, {pipeline_mode = #tpu.pipeline_mode<synchronous>, transform_indices = @transform_2, window_bounds = array<i64: 1, 8>}, {transform_indices = @transform_3, window_bounds = array<i64: 32, 8>}]} {
    %c0 = arith.constant 0 : index
    %c0_0 = arith.constant 0 : index
    %0 = vector.load %arg2[%c0, %c0_0] : memref<32x8xbf16, #tpu.memory_space<vmem>>, vector<32x8xbf16>
    %1 = arith.extf %0 : vector<32x8xbf16> to vector<32x8xf32>
    %cst = arith.constant dense<0.000000e+00> : vector<32xf32>
    %2 = vector.multi_reduction <add>, %1, %cst [1] : vector<32x8xf32> to vector<32xf32>
    %3 = vector.shape_cast %2 : vector<32xf32> to vector<32x1xf32>
    %cst_1 = arith.constant 8.000000e+00 : f32
    %4 = vector.broadcast %cst_1 : f32 to vector<32x1xf32>
    %5 = arith.divf %3, %4 : vector<32x1xf32>
    %6 = vector.broadcast %5 : vector<32x1xf32> to vector<32x8xf32>
    %7 = arith.subf %1, %6 : vector<32x8xf32>
    %8 = arith.mulf %7, %7 : vector<32x8xf32>
    %cst_2 = arith.constant dense<0.000000e+00> : vector<32xf32>
    %9 = vector.multi_reduction <add>, %8, %cst_2 [1] : vector<32x8xf32> to vector<32xf32>
    %10 = vector.shape_cast %9 : vector<32xf32> to vector<32x1xf32>
    %cst_3 = arith.constant 8.000000e+00 : f32
    %11 = vector.broadcast %cst_3 : f32 to vector<32x1xf32>
    %12 = arith.divf %10, %11 : vector<32x1xf32>
    %13 = vector.broadcast %5 : vector<32x1xf32> to vector<32x8xf32>
    %14 = arith.subf %1, %13 : vector<32x8xf32>
    %cst_4 = arith.constant 9.99999974E-6 : f32
    %15 = vector.broadcast %cst_4 : f32 to vector<32x1xf32>
    %16 = arith.addf %12, %15 : vector<32x1xf32>
    %17 = math.rsqrt %16 : vector<32x1xf32>
    %18 = vector.broadcast %17 : vector<32x1xf32> to vector<32x8xf32>
    %19 = arith.mulf %14, %18 : vector<32x8xf32>
    %c0_5 = arith.constant 0 : index
    %c0_6 = arith.constant 0 : index
    %20 = vector.load %arg3[%c0_5, %c0_6] : memref<1x8xf32, #tpu.memory_space<vmem>>, vector<1x8xf32>
    %21 = vector.broadcast %20 : vector<1x8xf32> to vector<32x8xf32>
    %22 = arith.mulf %19, %21 : vector<32x8xf32>
    %23 = arith.addf %1, %22 : vector<32x8xf32>
    %c0_7 = arith.constant 0 : index
    %c0_8 = arith.constant 0 : index
    %24 = vector.load %arg4[%c0_7, %c0_8] : memref<1x8xf32, #tpu.memory_space<vmem>>, vector<1x8xf32>
    %25 = vector.broadcast %24 : vector<1x8xf32> to vector<32x8xf32>
    %26 = arith.addf %23, %25 : vector<32x8xf32>
    %27 = arith.truncf %26 : vector<32x8xf32> to vector<32x8xbf16>
    %c0_9 = arith.constant 0 : index
    %c0_10 = arith.constant 0 : index
    %28 = vector.load %arg5[%c0_9, %c0_10] : memref<32x8xbf16, #tpu.memory_space<vmem>>, vector<32x8xbf16>
    tpu.vector_store %arg5[%c0_9, %c0_10], %27 {strides = array<i32>} : memref<32x8xbf16, #tpu.memory_space<vmem>>, vector<32x8xbf16>,
    return
  }
  func.func @transform_0(%arg0: i32, %arg1: i32) -> (i32, i32) {
    %c0_i32 = arith.constant 0 : i32
    %c0_i32_0 = arith.constant 0 : i32
    return %arg0, %c0_i32 : i32, i32
  }
  func.func @transform_1(%arg0: i32, %arg1: i32) -> (i32, i32) {
    %c0_i32 = arith.constant 0 : i32
    %c0_i32_0 = arith.constant 0 : i32
    %c0_i32_1 = arith.constant 0 : i32
    return %c0_i32, %c0_i32_0 : i32, i32
  }
  func.func @transform_2(%arg0: i32, %arg1: i32) -> (i32, i32) {
    %c0_i32 = arith.constant 0 : i32
    %c0_i32_0 = arith.constant 0 : i32
    %c0_i32_1 = arith.constant 0 : i32
    return %c0_i32, %c0_i32_0 : i32, i32
  }
  func.func @transform_3(%arg0: i32, %arg1: i32) -> (i32, i32) {
    %c0_i32 = arith.constant 0 : i32
    return %arg0, %arg1 : i32, i32
  }
}

module attributes {stable_mosaic.version = 11 : i64} {
  func.func @_ln_linear_kernel(%arg0: i32, %arg1: i32, %arg2: memref<32x8xbf16, #tpu.memory_space<vmem>>, %arg3: memref<1x8xf32, #tpu.memory_space<vmem>>, %arg4: memref<1x8xf32, #tpu.memory_space<vmem>>, %arg5: memref<8x32xbf16, #tpu.memory_space<vmem>>, %arg6: memref<1x32xf32, #tpu.memory_space<vmem>>, %arg7: memref<32x32xbf16, #tpu.memory_space<vmem>>) attributes {dimension_semantics = [#tpu.dimension_semantics<parallel>, #tpu.dimension_semantics<parallel>], iteration_bounds = array<i64: 1, 1>, scalar_prefetch = 0 : i64, scratch_operands = 0 : i64, tpu.core_type = #tpu.core_type<tc>, window_params = [{transform_indices = @transform_0, window_bounds = array<i64: 32, 8>}, {pipeline_mode = #tpu.pipeline_mode<synchronous>, transform_indices = @transform_1, window_bounds = array<i64: 1, 8>}, {pipeline_mode = #tpu.pipeline_mode<synchronous>, transform_indices = @transform_2, window_bounds = array<i64: 1, 8>}, {transform_indices = @transform_3, window_bounds = array<i64: 8, 32>}, {transform_indices = @transform_4, window_bounds = array<i64: 1, 32>}, {transform_indices = @transform_5, window_bounds = array<i64: 32, 32>}]} {
    %c0 = arith.constant 0 : index
    %c0_0 = arith.constant 0 : index
    %0 = vector.load %arg2[%c0, %c0_0] : memref<32x8xbf16, #tpu.memory_space<vmem>>, vector<32x8xbf16>
    %1 = arith.extf %0 : vector<32x8xbf16> to vector<32x8xf32>
    %cst = arith.constant dense<0.000000e+00> : vector<32xf32>
    %2 = vector.multi_reduction <add>, %1, %cst [1] : vector<32x8xf32> to vector<32xf32>
    %3 = vector.shape_cast %2 : vector<32xf32> to vector<32x1xf32>
    %cst_1 = arith.constant 8.000000e+00 : f32
    %4 = vector.broadcast %cst_1 : f32 to vector<32x1xf32>
    %5 = arith.divf %3, %4 : vector<32x1xf32>
    %6 = vector.broadcast %5 : vector<32x1xf32> to vector<32x8xf32>
    %7 = arith.subf %1, %6 : vector<32x8xf32>
    %8 = arith.mulf %7, %7 : vector<32x8xf32>
    %cst_2 = arith.constant dense<0.000000e+00> : vector<32xf32>
    %9 = vector.multi_reduction <add>, %8, %cst_2 [1] : vector<32x8xf32> to vector<32xf32>
    %10 = vector.shape_cast %9 : vector<32xf32> to vector<32x1xf32>
    %cst_3 = arith.constant 8.000000e+00 : f32
    %11 = vector.broadcast %cst_3 : f32 to vector<32x1xf32>
    %12 = arith.divf %10, %11 : vector<32x1xf32>
    %13 = vector.broadcast %5 : vector<32x1xf32> to vector<32x8xf32>
    %14 = arith.subf %1, %13 : vector<32x8xf32>
    %cst_4 = arith.constant 9.99999974E-6 : f32
    %15 = vector.broadcast %cst_4 : f32 to vector<32x1xf32>
    %16 = arith.addf %12, %15 : vector<32x1xf32>
    %17 = math.rsqrt %16 : vector<32x1xf32>
    %18 = vector.broadcast %17 : vector<32x1xf32> to vector<32x8xf32>
    %19 = arith.mulf %14, %18 : vector<32x8xf32>
    %c0_5 = arith.constant 0 : index
    %c0_6 = arith.constant 0 : index
    %20 = vector.load %arg3[%c0_5, %c0_6] : memref<1x8xf32, #tpu.memory_space<vmem>>, vector<1x8xf32>
    %21 = vector.broadcast %20 : vector<1x8xf32> to vector<32x8xf32>
    %22 = arith.mulf %19, %21 : vector<32x8xf32>
    %c0_7 = arith.constant 0 : index
    %c0_8 = arith.constant 0 : index
    %23 = vector.load %arg4[%c0_7, %c0_8] : memref<1x8xf32, #tpu.memory_space<vmem>>, vector<1x8xf32>
    %24 = vector.broadcast %23 : vector<1x8xf32> to vector<32x8xf32>
    %25 = arith.addf %22, %24 : vector<32x8xf32>
    %26 = arith.truncf %25 : vector<32x8xf32> to vector<32x8xbf16>
    %c0_9 = arith.constant 0 : index
    %c0_10 = arith.constant 0 : index
    %27 = vector.load %arg5[%c0_9, %c0_10] : memref<8x32xbf16, #tpu.memory_space<vmem>>, vector<8x32xbf16>
    %cst_11 = arith.constant dense<0.000000e+00> : vector<32x32xf32>
    %28 = tpu.matmul %26, %27, %cst_11 {dimension_numbers = #tpu.dot_dimension_numbers<[1], [0], [0], [1], [0, 0, 1, 1], [], []>} : vector<32x8xbf16>, vector<8x32xbf16>, vector<32x32xf32> -> vector<32x32xf32>
    %c0_12 = arith.constant 0 : index
    %c0_13 = arith.constant 0 : index
    %29 = vector.load %arg6[%c0_12, %c0_13] : memref<1x32xf32, #tpu.memory_space<vmem>>, vector<1x32xf32>
    %30 = vector.broadcast %29 : vector<1x32xf32> to vector<32x32xf32>
    %31 = arith.addf %28, %30 : vector<32x32xf32>
    %cst_14 = arith.constant 5.000000e-01 : f32
    %32 = vector.broadcast %cst_14 : f32 to vector<32x32xf32>
    %33 = arith.mulf %32, %31 : vector<32x32xf32>
    %cst_15 = arith.constant 0.707106769 : f32
    %34 = vector.broadcast %cst_15 : f32 to vector<32x32xf32>
    %35 = arith.mulf %31, %34 : vector<32x32xf32>
    %36 = math.erf %35 : vector<32x32xf32>
    %cst_16 = arith.constant 1.000000e+00 : f32
    %37 = vector.broadcast %cst_16 : f32 to vector<32x32xf32>
    %38 = arith.addf %37, %36 : vector<32x32xf32>
    %39 = arith.mulf %33, %38 : vector<32x32xf32>
    %40 = arith.truncf %39 : vector<32x32xf32> to vector<32x32xbf16>
    %c0_17 = arith.constant 0 : index
    %c0_18 = arith.constant 0 : index
    %41 = vector.load %arg7[%c0_17, %c0_18] : memref<32x32xbf16, #tpu.memory_space<vmem>>, vector<32x32xbf16>
    tpu.vector_store %arg7[%c0_17, %c0_18], %40 {strides = array<i32>} : memref<32x32xbf16, #tpu.memory_space<vmem>>, vector<32x32xbf16>,
    return
  }
  func.func @transform_0(%arg0: i32, %arg1: i32) -> (i32, i32) {
    %c0_i32 = arith.constant 0 : i32
    %c0_i32_0 = arith.constant 0 : i32
    return %arg0, %c0_i32 : i32, i32
  }
  func.func @transform_1(%arg0: i32, %arg1: i32) -> (i32, i32) {
    %c0_i32 = arith.constant 0 : i32
    %c0_i32_0 = arith.constant 0 : i32
    %c0_i32_1 = arith.constant 0 : i32
    return %c0_i32, %c0_i32_0 : i32, i32
  }
  func.func @transform_2(%arg0: i32, %arg1: i32) -> (i32, i32) {
    %c0_i32 = arith.constant 0 : i32
    %c0_i32_0 = arith.constant 0 : i32
    %c0_i32_1 = arith.constant 0 : i32
    return %c0_i32, %c0_i32_0 : i32, i32
  }
  func.func @transform_3(%arg0: i32, %arg1: i32) -> (i32, i32) {
    %c0_i32 = arith.constant 0 : i32
    %c0_i32_0 = arith.constant 0 : i32
    return %c0_i32, %arg1 : i32, i32
  }
  func.func @transform_4(%arg0: i32, %arg1: i32) -> (i32, i32) {
    %c0_i32 = arith.constant 0 : i32
    %c0_i32_0 = arith.constant 0 : i32
    return %c0_i32, %arg1 : i32, i32
  }
  func.func @transform_5(%arg0: i32, %arg1: i32) -> (i32, i32) {
    %c0_i32 = arith.constant 0 : i32
    return %arg0, %arg1 : i32, i32
  }
}

module attributes {stable_mosaic.version = 11 : i64} {
  func.func @_linear_residual_kernel(%arg0: i32, %arg1: i32, %arg2: memref<32x32xbf16, #tpu.memory_space<vmem>>, %arg3: memref<32x8xbf16, #tpu.memory_space<vmem>>, %arg4: memref<32x8xbf16, #tpu.memory_space<vmem>>, %arg5: memref<1x8xf32, #tpu.memory_space<vmem>>, %arg6: memref<32x8xbf16, #tpu.memory_space<vmem>>) attributes {dimension_semantics = [#tpu.dimension_semantics<parallel>, #tpu.dimension_semantics<parallel>], iteration_bounds = array<i64: 1, 1>, scalar_prefetch = 0 : i64, scratch_operands = 0 : i64, tpu.core_type = #tpu.core_type<tc>, window_params = [{transform_indices = @transform_0, window_bounds = array<i64: 32, 32>}, {transform_indices = @transform_1, window_bounds = array<i64: 32, 8>}, {transform_indices = @transform_2, window_bounds = array<i64: 32, 8>}, {transform_indices = @transform_3, window_bounds = array<i64: 1, 8>}, {transform_indices = @transform_4, window_bounds = array<i64: 32, 8>}]} {
    %c0 = arith.constant 0 : index
    %c0_0 = arith.constant 0 : index
    %0 = vector.load %arg3[%c0, %c0_0] : memref<32x8xbf16, #tpu.memory_space<vmem>>, vector<32x8xbf16>
    %1 = arith.extf %0 : vector<32x8xbf16> to vector<32x8xf32>
    %c0_1 = arith.constant 0 : index
    %c0_2 = arith.constant 0 : index
    %2 = vector.load %arg2[%c0_1, %c0_2] : memref<32x32xbf16, #tpu.memory_space<vmem>>, vector<32x32xbf16>
    %c0_3 = arith.constant 0 : index
    %c0_4 = arith.constant 0 : index
    %3 = vector.load %arg4[%c0_3, %c0_4] : memref<32x8xbf16, #tpu.memory_space<vmem>>, vector<32x8xbf16>
    %cst = arith.constant dense<0.000000e+00> : vector<32x8xf32>
    %4 = tpu.matmul %2, %3, %cst {dimension_numbers = #tpu.dot_dimension_numbers<[1], [0], [0], [1], [0, 0, 1, 1], [], []>} : vector<32x32xbf16>, vector<32x8xbf16>, vector<32x8xf32> -> vector<32x8xf32>
    %5 = arith.addf %1, %4 : vector<32x8xf32>
    %c0_5 = arith.constant 0 : index
    %c0_6 = arith.constant 0 : index
    %6 = vector.load %arg5[%c0_5, %c0_6] : memref<1x8xf32, #tpu.memory_space<vmem>>, vector<1x8xf32>
    %7 = vector.broadcast %6 : vector<1x8xf32> to vector<32x8xf32>
    %8 = arith.addf %5, %7 : vector<32x8xf32>
    %9 = arith.truncf %8 : vector<32x8xf32> to vector<32x8xbf16>
    %c0_7 = arith.constant 0 : index
    %c0_8 = arith.constant 0 : index
    %10 = vector.load %arg6[%c0_7, %c0_8] : memref<32x8xbf16, #tpu.memory_space<vmem>>, vector<32x8xbf16>
    tpu.vector_store %arg6[%c0_7, %c0_8], %9 {strides = array<i32>} : memref<32x8xbf16, #tpu.memory_space<vmem>>, vector<32x8xbf16>,
    return
  }
  func.func @transform_0(%arg0: i32, %arg1: i32) -> (i32, i32) {
    %c0_i32 = arith.constant 0 : i32
    %c0_i32_0 = arith.constant 0 : i32
    return %arg0, %c0_i32 : i32, i32
  }
  func.func @transform_1(%arg0: i32, %arg1: i32) -> (i32, i32) {
    %c0_i32 = arith.constant 0 : i32
    return %arg0, %arg1 : i32, i32
  }
  func.func @transform_2(%arg0: i32, %arg1: i32) -> (i32, i32) {
    %c0_i32 = arith.constant 0 : i32
    %c0_i32_0 = arith.constant 0 : i32
    return %c0_i32, %arg1 : i32, i32
  }
  func.func @transform_3(%arg0: i32, %arg1: i32) -> (i32, i32) {
    %c0_i32 = arith.constant 0 : i32
    %c0_i32_0 = arith.constant 0 : i32
    return %c0_i32, %arg1 : i32, i32
  }
  func.func @transform_4(%arg0: i32, %arg1: i32) -> (i32, i32) {
    %c0_i32 = arith.constant 0 : i32
    return %arg0, %arg1 : i32, i32
  }
}

module attributes {stable_mosaic.version = 11 : i64} {
  func.func @_ln_linear_kernel(%arg0: i32, %arg1: i32, %arg2: memref<8x32xbf16, #tpu.memory_space<vmem>>, %arg3: memref<1x32xf32, #tpu.memory_space<vmem>>, %arg4: memref<1x32xf32, #tpu.memory_space<vmem>>, %arg5: memref<32x16xbf16, #tpu.memory_space<vmem>>, %arg6: memref<1x16xf32, #tpu.memory_space<vmem>>, %arg7: memref<8x16xbf16, #tpu.memory_space<vmem>>) attributes {dimension_semantics = [#tpu.dimension_semantics<parallel>, #tpu.dimension_semantics<parallel>], iteration_bounds = array<i64: 1, 1>, scalar_prefetch = 0 : i64, scratch_operands = 0 : i64, tpu.core_type = #tpu.core_type<tc>, window_params = [{transform_indices = @transform_0, window_bounds = array<i64: 8, 32>}, {pipeline_mode = #tpu.pipeline_mode<synchronous>, transform_indices = @transform_1, window_bounds = array<i64: 1, 32>}, {pipeline_mode = #tpu.pipeline_mode<synchronous>, transform_indices = @transform_2, window_bounds = array<i64: 1, 32>}, {transform_indices = @transform_3, window_bounds = array<i64: 32, 16>}, {transform_indices = @transform_4, window_bounds = array<i64: 1, 16>}, {transform_indices = @transform_5, window_bounds = array<i64: 8, 16>}]} {
    %c0 = arith.constant 0 : index
    %c0_0 = arith.constant 0 : index
    %0 = vector.load %arg2[%c0, %c0_0] : memref<8x32xbf16, #tpu.memory_space<vmem>>, vector<8x32xbf16>
    %1 = arith.extf %0 : vector<8x32xbf16> to vector<8x32xf32>
    %cst = arith.constant dense<0.000000e+00> : vector<8xf32>
    %2 = vector.multi_reduction <add>, %1, %cst [1] : vector<8x32xf32> to vector<8xf32>
    %3 = vector.shape_cast %2 : vector<8xf32> to vector<8x1xf32>
    %cst_1 = arith.constant 3.200000e+01 : f32
    %4 = vector.broadcast %cst_1 : f32 to vector<8x1xf32>
    %5 = arith.divf %3, %4 : vector<8x1xf32>
    %6 = vector.broadcast %5 : vector<8x1xf32> to vector<8x32xf32>
    %7 = arith.subf %1, %6 : vector<8x32xf32>
    %8 = arith.mulf %7, %7 : vector<8x32xf32>
    %cst_2 = arith.constant dense<0.000000e+00> : vector<8xf32>
    %9 = vector.multi_reduction <add>, %8, %cst_2 [1] : vector<8x32xf32> to vector<8xf32>
    %10 = vector.shape_cast %9 : vector<8xf32> to vector<8x1xf32>
    %cst_3 = arith.constant 3.200000e+01 : f32
    %11 = vector.broadcast %cst_3 : f32 to vector<8x1xf32>
    %12 = arith.divf %10, %11 : vector<8x1xf32>
    %13 = vector.broadcast %5 : vector<8x1xf32> to vector<8x32xf32>
    %14 = arith.subf %1, %13 : vector<8x32xf32>
    %cst_4 = arith.constant 9.99999974E-6 : f32
    %15 = vector.broadcast %cst_4 : f32 to vector<8x1xf32>
    %16 = arith.addf %12, %15 : vector<8x1xf32>
    %17 = math.rsqrt %16 : vector<8x1xf32>
    %18 = vector.broadcast %17 : vector<8x1xf32> to vector<8x32xf32>
    %19 = arith.mulf %14, %18 : vector<8x32xf32>
    %c0_5 = arith.constant 0 : index
    %c0_6 = arith.constant 0 : index
    %20 = vector.load %arg3[%c0_5, %c0_6] : memref<1x32xf32, #tpu.memory_space<vmem>>, vector<1x32xf32>
    %21 = vector.broadcast %20 : vector<1x32xf32> to vector<8x32xf32>
    %22 = arith.mulf %19, %21 : vector<8x32xf32>
    %c0_7 = arith.constant 0 : index
    %c0_8 = arith.constant 0 : index
    %23 = vector.load %arg4[%c0_7, %c0_8] : memref<1x32xf32, #tpu.memory_space<vmem>>, vector<1x32xf32>
    %24 = vector.broadcast %23 : vector<1x32xf32> to vector<8x32xf32>
    %25 = arith.addf %22, %24 : vector<8x32xf32>
    %26 = arith.truncf %25 : vector<8x32xf32> to vector<8x32xbf16>
    %c0_9 = arith.constant 0 : index
    %c0_10 = arith.constant 0 : index
    %27 = vector.load %arg5[%c0_9, %c0_10] : memref<32x16xbf16, #tpu.memory_space<vmem>>, vector<32x16xbf16>
    %cst_11 = arith.constant dense<0.000000e+00> : vector<8x16xf32>
    %28 = tpu.matmul %26, %27, %cst_11 {dimension_numbers = #tpu.dot_dimension_numbers<[1], [0], [0], [1], [0, 0, 1, 1], [], []>} : vector<8x32xbf16>, vector<32x16xbf16>, vector<8x16xf32> -> vector<8x16xf32>
    %c0_12 = arith.constant 0 : index
    %c0_13 = arith.constant 0 : index
    %29 = vector.load %arg6[%c0_12, %c0_13] : memref<1x16xf32, #tpu.memory_space<vmem>>, vector<1x16xf32>
    %30 = vector.broadcast %29 : vector<1x16xf32> to vector<8x16xf32>
    %31 = arith.addf %28, %30 : vector<8x16xf32>
    %32 = arith.truncf %31 : vector<8x16xf32> to vector<8x16xbf16>
    %c0_14 = arith.constant 0 : index
    %c0_15 = arith.constant 0 : index
    %33 = vector.load %arg7[%c0_14, %c0_15] : memref<8x16xbf16, #tpu.memory_space<vmem>>, vector<8x16xbf16>
    tpu.vector_store %arg7[%c0_14, %c0_15], %32 {strides = array<i32>} : memref<8x16xbf16, #tpu.memory_space<vmem>>, vector<8x16xbf16>,
    return
  }
  func.func @transform_0(%arg0: i32, %arg1: i32) -> (i32, i32) {
    %c0_i32 = arith.constant 0 : i32
    %c0_i32_0 = arith.constant 0 : i32
    return %arg0, %c0_i32 : i32, i32
  }
  func.func @transform_1(%arg0: i32, %arg1: i32) -> (i32, i32) {
    %c0_i32 = arith.constant 0 : i32
    %c0_i32_0 = arith.constant 0 : i32
    %c0_i32_1 = arith.constant 0 : i32
    return %c0_i32, %c0_i32_0 : i32, i32
  }
  func.func @transform_2(%arg0: i32, %arg1: i32) -> (i32, i32) {
    %c0_i32 = arith.constant 0 : i32
    %c0_i32_0 = arith.constant 0 : i32
    %c0_i32_1 = arith.constant 0 : i32
    return %c0_i32, %c0_i32_0 : i32, i32
  }
  func.func @transform_3(%arg0: i32, %arg1: i32) -> (i32, i32) {
    %c0_i32 = arith.constant 0 : i32
    %c0_i32_0 = arith.constant 0 : i32
    return %c0_i32, %arg1 : i32, i32
  }
  func.func @transform_4(%arg0: i32, %arg1: i32) -> (i32, i32) {
    %c0_i32 = arith.constant 0 : i32
    %c0_i32_0 = arith.constant 0 : i32
    return %c0_i32, %arg1 : i32, i32
  }
  func.func @transform_5(%arg0: i32, %arg1: i32) -> (i32, i32) {
    %c0_i32 = arith.constant 0 : i32
    return %arg0, %arg1 : i32, i32
  }
}

module attributes {stable_mosaic.version = 11 : i64} {
  func.func @_attn_block_kernel(%arg0: i32, %arg1: memref<2x4x16xbf16, #tpu.memory_space<vmem>>, %arg2: memref<16x48xbf16, #tpu.memory_space<vmem>>, %arg3: memref<1x48xf32, #tpu.memory_space<vmem>>, %arg4: memref<4x4x4xf32, #tpu.memory_space<vmem>>, %arg5: memref<16x16xbf16, #tpu.memory_space<vmem>>, %arg6: memref<1x16xf32, #tpu.memory_space<vmem>>, %arg7: memref<2x4x16xbf16, #tpu.memory_space<vmem>>) attributes {dimension_semantics = [#tpu.dimension_semantics<parallel>], iteration_bounds = array<i64: 1>, scalar_prefetch = 0 : i64, scratch_operands = 0 : i64, tpu.core_type = #tpu.core_type<tc>, window_params = [{transform_indices = @transform_0, window_bounds = array<i64: 2, 4, 16>}, {pipeline_mode = #tpu.pipeline_mode<synchronous>, transform_indices = @transform_1, window_bounds = array<i64: 16, 48>}, {pipeline_mode = #tpu.pipeline_mode<synchronous>, transform_indices = @transform_2, window_bounds = array<i64: 1, 48>}, {pipeline_mode = #tpu.pipeline_mode<synchronous>, transform_indices = @transform_3, window_bounds = array<i64: 4, 4, 4>}, {pipeline_mode = #tpu.pipeline_mode<synchronous>, transform_indices = @transform_4, window_bounds = array<i64: 16, 16>}, {pipeline_mode = #tpu.pipeline_mode<synchronous>, transform_indices = @transform_5, window_bounds = array<i64: 1, 16>}, {transform_indices = @transform_6, window_bounds = array<i64: 2, 4, 16>}]} {
    %c0 = arith.constant 0 : index
    %c0_0 = arith.constant 0 : index
    %c0_1 = arith.constant 0 : index
    %0 = vector.load %arg1[%c0, %c0_0, %c0_1] : memref<2x4x16xbf16, #tpu.memory_space<vmem>>, vector<2x4x16xbf16>
    %1 = vector.shape_cast %0 : vector<2x4x16xbf16> to vector<8x16xbf16>
    %c0_2 = arith.constant 0 : index
    %c0_3 = arith.constant 0 : index
    %2 = vector.load %arg2[%c0_2, %c0_3] : memref<16x48xbf16, #tpu.memory_space<vmem>>, vector<16x48xbf16>
    %cst = arith.constant dense<0.000000e+00> : vector<8x48xf32>
    %3 = tpu.matmul %1, %2, %cst {dimension_numbers = #tpu.dot_dimension_numbers<[1], [0], [0], [1], [0, 0, 1, 1], [], []>} : vector<8x16xbf16>, vector<16x48xbf16>, vector<8x48xf32> -> vector<8x48xf32>
    %c0_4 = arith.constant 0 : index
    %c0_5 = arith.constant 0 : index
    %4 = vector.load %arg3[%c0_4, %c0_5] : memref<1x48xf32, #tpu.memory_space<vmem>>, vector<1x48xf32>
    %5 = vector.broadcast %4 : vector<1x48xf32> to vector<8x48xf32>
    %6 = arith.addf %3, %5 : vector<8x48xf32>
    %7 = vector.shape_cast %6 : vector<8x48xf32> to vector<2x4x48xf32>
    %cst_6 = arith.constant 0.000000e+00 : f32
    %8 = vector.broadcast %cst_6 : f32 to vector<8x16xf32>
    %9 = vector.extract_strided_slice %7 {offsets = [0, 0, 0], sizes = [2, 4, 4], strides = [1, 1, 1]} : vector<2x4x48xf32> to vector<2x4x4xf32>
    %10 = arith.truncf %9 : vector<2x4x4xf32> to vector<2x4x4xbf16>
    %11 = vector.extract_strided_slice %7 {offsets = [0, 0, 16], sizes = [2, 4, 4], strides = [1, 1, 1]} : vector<2x4x48xf32> to vector<2x4x4xf32>
    %12 = arith.truncf %11 : vector<2x4x4xf32> to vector<2x4x4xbf16>
    %13 = vector.extract_strided_slice %7 {offsets = [0, 0, 32], sizes = [2, 4, 4], strides = [1, 1, 1]} : vector<2x4x48xf32> to vector<2x4x4xf32>
    %14 = arith.truncf %13 : vector<2x4x4xf32> to vector<2x4x4xbf16>
    "tpu.trace_start"() <{level = 10 : i32, message = "wnd,wmd->wnm"}> : () -> ()
    %cst_7 = arith.constant dense<0.000000e+00> : vector<2x4x4xf32>
    %15 = tpu.matmul %10, %12, %cst_7 {dimension_numbers = #tpu.dot_dimension_numbers<[2], [2], [1], [1], [0, 0, 0, 1, 1, 1], [0], [0]>} : vector<2x4x4xbf16>, vector<2x4x4xbf16>, vector<2x4x4xf32> -> vector<2x4x4xf32>
    "tpu.trace_stop"() : () -> ()
    %cst_8 = arith.constant 5.000000e-01 : f32
    %16 = vector.broadcast %cst_8 : f32 to vector<2x4x4xf32>
    %17 = arith.mulf %15, %16 : vector<2x4x4xf32>
    %c0_9 = arith.constant 0 : index
    %c0_10 = arith.constant 0 : index
    %c0_11 = arith.constant 0 : index
    %18 = vector.load %arg4[%c0_9, %c0_10, %c0_11] : memref<4x4x4xf32, #tpu.memory_space<vmem>>, vector<1x4x4xf32>
    %19 = vector.shape_cast %18 : vector<1x4x4xf32> to vector<4x4xf32>
    %20 = vector.shape_cast %19 : vector<4x4xf32> to vector<1x4x4xf32>
    %21 = vector.broadcast %20 : vector<1x4x4xf32> to vector<2x4x4xf32>
    %22 = arith.addf %17, %21 : vector<2x4x4xf32>
    %cst_12 = arith.constant dense<0xFF800000> : vector<2x4xf32>
    %23 = vector.multi_reduction <maximumf>, %22, %cst_12 [2] : vector<2x4x4xf32> to vector<2x4xf32>
    %24 = vector.shape_cast %23 : vector<2x4xf32> to vector<2x4x1xf32>
    %25 = vector.broadcast %24 : vector<2x4x1xf32> to vector<2x4x4xf32>
    %26 = arith.subf %22, %25 : vector<2x4x4xf32>
    %27 = math.exp %26 : vector<2x4x4xf32>
    %cst_13 = arith.constant dense<0.000000e+00> : vector<2x4xf32>
    %28 = vector.multi_reduction <add>, %27, %cst_13 [2] : vector<2x4x4xf32> to vector<2x4xf32>
    %29 = vector.shape_cast %28 : vector<2x4xf32> to vector<2x4x1xf32>
    %30 = tpu.reciprocal %29 {approx = true} : vector<2x4x1xf32> -> vector<2x4x1xf32>
    %31 = vector.broadcast %30 : vector<2x4x1xf32> to vector<2x4x4xf32>
    %32 = arith.mulf %27, %31 : vector<2x4x4xf32>
    %33 = arith.truncf %32 : vector<2x4x4xf32> to vector<2x4x4xbf16>
    "tpu.trace_start"() <{level = 10 : i32, message = "wnm,wmd->wnd"}> : () -> ()
    %cst_14 = arith.constant dense<0.000000e+00> : vector<2x4x4xf32>
    %34 = tpu.matmul %33, %14, %cst_14 {dimension_numbers = #tpu.dot_dimension_numbers<[2], [1], [1], [2], [0, 0, 0, 1, 1, 2], [0], [0]>} : vector<2x4x4xbf16>, vector<2x4x4xbf16>, vector<2x4x4xf32> -> vector<2x4x4xf32>
    "tpu.trace_stop"() : () -> ()
    %35 = vector.shape_cast %34 : vector<2x4x4xf32> to vector<8x4xf32>
    %36 = arith.truncf %35 : vector<8x4xf32> to vector<8x4xbf16>
    %c0_15 = arith.constant 0 : index
    %c0_16 = arith.constant 0 : index
    %37 = vector.load %arg5[%c0_15, %c0_16] : memref<16x16xbf16, #tpu.memory_space<vmem>>, vector<4x16xbf16>
    %cst_17 = arith.constant dense<0.000000e+00> : vector<8x16xf32>
    %38 = tpu.matmul %36, %37, %cst_17 {dimension_numbers = #tpu.dot_dimension_numbers<[1], [0], [0], [1], [0, 0, 1, 1], [], []>} : vector<8x4xbf16>, vector<4x16xbf16>, vector<8x16xf32> -> vector<8x16xf32>
    %39 = arith.addf %8, %38 : vector<8x16xf32>
    %40 = vector.extract_strided_slice %7 {offsets = [0, 0, 4], sizes = [2, 4, 4], strides = [1, 1, 1]} : vector<2x4x48xf32> to vector<2x4x4xf32>
    %41 = arith.truncf %40 : vector<2x4x4xf32> to vector<2x4x4xbf16>
    %42 = vector.extract_strided_slice %7 {offsets = [0, 0, 20], sizes = [2, 4, 4], strides = [1, 1, 1]} : vector<2x4x48xf32> to vector<2x4x4xf32>
    %43 = arith.truncf %42 : vector<2x4x4xf32> to vector<2x4x4xbf16>
    %44 = vector.extract_strided_slice %7 {offsets = [0, 0, 36], sizes = [2, 4, 4], strides = [1, 1, 1]} : vector<2x4x48xf32> to vector<2x4x4xf32>
    %45 = arith.truncf %44 : vector<2x4x4xf32> to vector<2x4x4xbf16>
    "tpu.trace_start"() <{level = 10 : i32, message = "wnd,wmd->wnm"}> : () -> ()
    %cst_18 = arith.constant dense<0.000000e+00> : vector<2x4x4xf32>
    %46 = tpu.matmul %41, %43, %cst_18 {dimension_numbers = #tpu.dot_dimension_numbers<[2], [2], [1], [1], [0, 0, 0, 1, 1, 1], [0], [0]>} : vector<2x4x4xbf16>, vector<2x4x4xbf16>, vector<2x4x4xf32> -> vector<2x4x4xf32>
    "tpu.trace_stop"() : () -> ()
    %cst_19 = arith.constant 5.000000e-01 : f32
    %47 = vector.broadcast %cst_19 : f32 to vector<2x4x4xf32>
    %48 = arith.mulf %46, %47 : vector<2x4x4xf32>
    %c1 = arith.constant 1 : index
    %c0_20 = arith.constant 0 : index
    %c0_21 = arith.constant 0 : index
    %49 = vector.load %arg4[%c1, %c0_20, %c0_21] : memref<4x4x4xf32, #tpu.memory_space<vmem>>, vector<1x4x4xf32>
    %50 = vector.shape_cast %49 : vector<1x4x4xf32> to vector<4x4xf32>
    %51 = vector.shape_cast %50 : vector<4x4xf32> to vector<1x4x4xf32>
    %52 = vector.broadcast %51 : vector<1x4x4xf32> to vector<2x4x4xf32>
    %53 = arith.addf %48, %52 : vector<2x4x4xf32>
    %cst_22 = arith.constant dense<0xFF800000> : vector<2x4xf32>
    %54 = vector.multi_reduction <maximumf>, %53, %cst_22 [2] : vector<2x4x4xf32> to vector<2x4xf32>
    %55 = vector.shape_cast %54 : vector<2x4xf32> to vector<2x4x1xf32>
    %56 = vector.broadcast %55 : vector<2x4x1xf32> to vector<2x4x4xf32>
    %57 = arith.subf %53, %56 : vector<2x4x4xf32>
    %58 = math.exp %57 : vector<2x4x4xf32>
    %cst_23 = arith.constant dense<0.000000e+00> : vector<2x4xf32>
    %59 = vector.multi_reduction <add>, %58, %cst_23 [2] : vector<2x4x4xf32> to vector<2x4xf32>
    %60 = vector.shape_cast %59 : vector<2x4xf32> to vector<2x4x1xf32>
    %61 = tpu.reciprocal %60 {approx = true} : vector<2x4x1xf32> -> vector<2x4x1xf32>
    %62 = vector.broadcast %61 : vector<2x4x1xf32> to vector<2x4x4xf32>
    %63 = arith.mulf %58, %62 : vector<2x4x4xf32>
    %64 = arith.truncf %63 : vector<2x4x4xf32> to vector<2x4x4xbf16>
    "tpu.trace_start"() <{level = 10 : i32, message = "wnm,wmd->wnd"}> : () -> ()
    %cst_24 = arith.constant dense<0.000000e+00> : vector<2x4x4xf32>
    %65 = tpu.matmul %64, %45, %cst_24 {dimension_numbers = #tpu.dot_dimension_numbers<[2], [1], [1], [2], [0, 0, 0, 1, 1, 2], [0], [0]>} : vector<2x4x4xbf16>, vector<2x4x4xbf16>, vector<2x4x4xf32> -> vector<2x4x4xf32>
    "tpu.trace_stop"() : () -> ()
    %66 = vector.shape_cast %65 : vector<2x4x4xf32> to vector<8x4xf32>
    %67 = arith.truncf %66 : vector<8x4xf32> to vector<8x4xbf16>
    %c4 = arith.constant 4 : index
    %c0_25 = arith.constant 0 : index
    %68 = vector.load %arg5[%c4, %c0_25] : memref<16x16xbf16, #tpu.memory_space<vmem>>, vector<4x16xbf16>
    %cst_26 = arith.constant dense<0.000000e+00> : vector<8x16xf32>
    %69 = tpu.matmul %67, %68, %cst_26 {dimension_numbers = #tpu.dot_dimension_numbers<[1], [0], [0], [1], [0, 0, 1, 1], [], []>} : vector<8x4xbf16>, vector<4x16xbf16>, vector<8x16xf32> -> vector<8x16xf32>
    %70 = arith.addf %39, %69 : vector<8x16xf32>
    %71 = vector.extract_strided_slice %7 {offsets = [0, 0, 8], sizes = [2, 4, 4], strides = [1, 1, 1]} : vector<2x4x48xf32> to vector<2x4x4xf32>
    %72 = arith.truncf %71 : vector<2x4x4xf32> to vector<2x4x4xbf16>
    %73 = vector.extract_strided_slice %7 {offsets = [0, 0, 24], sizes = [2, 4, 4], strides = [1, 1, 1]} : vector<2x4x48xf32> to vector<2x4x4xf32>
    %74 = arith.truncf %73 : vector<2x4x4xf32> to vector<2x4x4xbf16>
    %75 = vector.extract_strided_slice %7 {offsets = [0, 0, 40], sizes = [2, 4, 4], strides = [1, 1, 1]} : vector<2x4x48xf32> to vector<2x4x4xf32>
    %76 = arith.truncf %75 : vector<2x4x4xf32> to vector<2x4x4xbf16>
    "tpu.trace_start"() <{level = 10 : i32, message = "wnd,wmd->wnm"}> : () -> ()
    %cst_27 = arith.constant dense<0.000000e+00> : vector<2x4x4xf32>
    %77 = tpu.matmul %72, %74, %cst_27 {dimension_numbers = #tpu.dot_dimension_numbers<[2], [2], [1], [1], [0, 0, 0, 1, 1, 1], [0], [0]>} : vector<2x4x4xbf16>, vector<2x4x4xbf16>, vector<2x4x4xf32> -> vector<2x4x4xf32>
    "tpu.trace_stop"() : () -> ()
    %cst_28 = arith.constant 5.000000e-01 : f32
    %78 = vector.broadcast %cst_28 : f32 to vector<2x4x4xf32>
    %79 = arith.mulf %77, %78 : vector<2x4x4xf32>
    %c2 = arith.constant 2 : index
    %c0_29 = arith.constant 0 : index
    %c0_30 = arith.constant 0 : index
    %80 = vector.load %arg4[%c2, %c0_29, %c0_30] : memref<4x4x4xf32, #tpu.memory_space<vmem>>, vector<1x4x4xf32>
    %81 = vector.shape_cast %80 : vector<1x4x4xf32> to vector<4x4xf32>
    %82 = vector.shape_cast %81 : vector<4x4xf32> to vector<1x4x4xf32>
    %83 = vector.broadcast %82 : vector<1x4x4xf32> to vector<2x4x4xf32>
    %84 = arith.addf %79, %83 : vector<2x4x4xf32>
    %cst_31 = arith.constant dense<0xFF800000> : vector<2x4xf32>
    %85 = vector.multi_reduction <maximumf>, %84, %cst_31 [2] : vector<2x4x4xf32> to vector<2x4xf32>
    %86 = vector.shape_cast %85 : vector<2x4xf32> to vector<2x4x1xf32>
    %87 = vector.broadcast %86 : vector<2x4x1xf32> to vector<2x4x4xf32>
    %88 = arith.subf %84, %87 : vector<2x4x4xf32>
    %89 = math.exp %88 : vector<2x4x4xf32>
    %cst_32 = arith.constant dense<0.000000e+00> : vector<2x4xf32>
    %90 = vector.multi_reduction <add>, %89, %cst_32 [2] : vector<2x4x4xf32> to vector<2x4xf32>
    %91 = vector.shape_cast %90 : vector<2x4xf32> to vector<2x4x1xf32>
    %92 = tpu.reciprocal %91 {approx = true} : vector<2x4x1xf32> -> vector<2x4x1xf32>
    %93 = vector.broadcast %92 : vector<2x4x1xf32> to vector<2x4x4xf32>
    %94 = arith.mulf %89, %93 : vector<2x4x4xf32>
    %95 = arith.truncf %94 : vector<2x4x4xf32> to vector<2x4x4xbf16>
    "tpu.trace_start"() <{level = 10 : i32, message = "wnm,wmd->wnd"}> : () -> ()
    %cst_33 = arith.constant dense<0.000000e+00> : vector<2x4x4xf32>
    %96 = tpu.matmul %95, %76, %cst_33 {dimension_numbers = #tpu.dot_dimension_numbers<[2], [1], [1], [2], [0, 0, 0, 1, 1, 2], [0], [0]>} : vector<2x4x4xbf16>, vector<2x4x4xbf16>, vector<2x4x4xf32> -> vector<2x4x4xf32>
    "tpu.trace_stop"() : () -> ()
    %97 = vector.shape_cast %96 : vector<2x4x4xf32> to vector<8x4xf32>
    %98 = arith.truncf %97 : vector<8x4xf32> to vector<8x4xbf16>
    %c8 = arith.constant 8 : index
    %c0_34 = arith.constant 0 : index
    %99 = vector.load %arg5[%c8, %c0_34] : memref<16x16xbf16, #tpu.memory_space<vmem>>, vector<4x16xbf16>
    %cst_35 = arith.constant dense<0.000000e+00> : vector<8x16xf32>
    %100 = tpu.matmul %98, %99, %cst_35 {dimension_numbers = #tpu.dot_dimension_numbers<[1], [0], [0], [1], [0, 0, 1, 1], [], []>} : vector<8x4xbf16>, vector<4x16xbf16>, vector<8x16xf32> -> vector<8x16xf32>
    %101 = arith.addf %70, %100 : vector<8x16xf32>
    %102 = vector.extract_strided_slice %7 {offsets = [0, 0, 12], sizes = [2, 4, 4], strides = [1, 1, 1]} : vector<2x4x48xf32> to vector<2x4x4xf32>
    %103 = arith.truncf %102 : vector<2x4x4xf32> to vector<2x4x4xbf16>
    %104 = vector.extract_strided_slice %7 {offsets = [0, 0, 28], sizes = [2, 4, 4], strides = [1, 1, 1]} : vector<2x4x48xf32> to vector<2x4x4xf32>
    %105 = arith.truncf %104 : vector<2x4x4xf32> to vector<2x4x4xbf16>
    %106 = vector.extract_strided_slice %7 {offsets = [0, 0, 44], sizes = [2, 4, 4], strides = [1, 1, 1]} : vector<2x4x48xf32> to vector<2x4x4xf32>
    %107 = arith.truncf %106 : vector<2x4x4xf32> to vector<2x4x4xbf16>
    "tpu.trace_start"() <{level = 10 : i32, message = "wnd,wmd->wnm"}> : () -> ()
    %cst_36 = arith.constant dense<0.000000e+00> : vector<2x4x4xf32>
    %108 = tpu.matmul %103, %105, %cst_36 {dimension_numbers = #tpu.dot_dimension_numbers<[2], [2], [1], [1], [0, 0, 0, 1, 1, 1], [0], [0]>} : vector<2x4x4xbf16>, vector<2x4x4xbf16>, vector<2x4x4xf32> -> vector<2x4x4xf32>
    "tpu.trace_stop"() : () -> ()
    %cst_37 = arith.constant 5.000000e-01 : f32
    %109 = vector.broadcast %cst_37 : f32 to vector<2x4x4xf32>
    %110 = arith.mulf %108, %109 : vector<2x4x4xf32>
    %c3 = arith.constant 3 : index
    %c0_38 = arith.constant 0 : index
    %c0_39 = arith.constant 0 : index
    %111 = vector.load %arg4[%c3, %c0_38, %c0_39] : memref<4x4x4xf32, #tpu.memory_space<vmem>>, vector<1x4x4xf32>
    %112 = vector.shape_cast %111 : vector<1x4x4xf32> to vector<4x4xf32>
    %113 = vector.shape_cast %112 : vector<4x4xf32> to vector<1x4x4xf32>
    %114 = vector.broadcast %113 : vector<1x4x4xf32> to vector<2x4x4xf32>
    %115 = arith.addf %110, %114 : vector<2x4x4xf32>
    %cst_40 = arith.constant dense<0xFF800000> : vector<2x4xf32>
    %116 = vector.multi_reduction <maximumf>, %115, %cst_40 [2] : vector<2x4x4xf32> to vector<2x4xf32>
    %117 = vector.shape_cast %116 : vector<2x4xf32> to vector<2x4x1xf32>
    %118 = vector.broadcast %117 : vector<2x4x1xf32> to vector<2x4x4xf32>
    %119 = arith.subf %115, %118 : vector<2x4x4xf32>
    %120 = math.exp %119 : vector<2x4x4xf32>
    %cst_41 = arith.constant dense<0.000000e+00> : vector<2x4xf32>
    %121 = vector.multi_reduction <add>, %120, %cst_41 [2] : vector<2x4x4xf32> to vector<2x4xf32>
    %122 = vector.shape_cast %121 : vector<2x4xf32> to vector<2x4x1xf32>
    %123 = tpu.reciprocal %122 {approx = true} : vector<2x4x1xf32> -> vector<2x4x1xf32>
    %124 = vector.broadcast %123 : vector<2x4x1xf32> to vector<2x4x4xf32>
    %125 = arith.mulf %120, %124 : vector<2x4x4xf32>
    %126 = arith.truncf %125 : vector<2x4x4xf32> to vector<2x4x4xbf16>
    "tpu.trace_start"() <{level = 10 : i32, message = "wnm,wmd->wnd"}> : () -> ()
    %cst_42 = arith.constant dense<0.000000e+00> : vector<2x4x4xf32>
    %127 = tpu.matmul %126, %107, %cst_42 {dimension_numbers = #tpu.dot_dimension_numbers<[2], [1], [1], [2], [0, 0, 0, 1, 1, 2], [0], [0]>} : vector<2x4x4xbf16>, vector<2x4x4xbf16>, vector<2x4x4xf32> -> vector<2x4x4xf32>
    "tpu.trace_stop"() : () -> ()
    %128 = vector.shape_cast %127 : vector<2x4x4xf32> to vector<8x4xf32>
    %129 = arith.truncf %128 : vector<8x4xf32> to vector<8x4xbf16>
    %c12 = arith.constant 12 : index
    %c0_43 = arith.constant 0 : index
    %130 = vector.load %arg5[%c12, %c0_43] : memref<16x16xbf16, #tpu.memory_space<vmem>>, vector<4x16xbf16>
    %cst_44 = arith.constant dense<0.000000e+00> : vector<8x16xf32>
    %131 = tpu.matmul %129, %130, %cst_44 {dimension_numbers = #tpu.dot_dimension_numbers<[1], [0], [0], [1], [0, 0, 1, 1], [], []>} : vector<8x4xbf16>, vector<4x16xbf16>, vector<8x16xf32> -> vector<8x16xf32>
    %132 = arith.addf %101, %131 : vector<8x16xf32>
    %c0_45 = arith.constant 0 : index
    %c0_46 = arith.constant 0 : index
    %133 = vector.load %arg6[%c0_45, %c0_46] : memref<1x16xf32, #tpu.memory_space<vmem>>, vector<1x16xf32>
    %134 = vector.broadcast %133 : vector<1x16xf32> to vector<8x16xf32>
    %135 = arith.addf %132, %134 : vector<8x16xf32>
    %136 = vector.shape_cast %135 : vector<8x16xf32> to vector<2x4x16xf32>
    %137 = arith.truncf %136 : vector<2x4x16xf32> to vector<2x4x16xbf16>
    %c0_47 = arith.constant 0 : index
    %c0_48 = arith.constant 0 : index
    %c0_49 = arith.constant 0 : index
    %138 = vector.load %arg7[%c0_47, %c0_48, %c0_49] : memref<2x4x16xbf16, #tpu.memory_space<vmem>>, vector<2x4x16xbf16>
    tpu.vector_store %arg7[%c0_47, %c0_48, %c0_49], %137 {strides = array<i32>} : memref<2x4x16xbf16, #tpu.memory_space<vmem>>, vector<2x4x16xbf16>,
    return
  }
  func.func @transform_0(%arg0: i32) -> (i32, i32, i32) {
    %c0_i32 = arith.constant 0 : i32
    %c0_i32_0 = arith.constant 0 : i32
    %c0_i32_1 = arith.constant 0 : i32
    return %arg0, %c0_i32, %c0_i32_0 : i32, i32, i32
  }
  func.func @transform_1(%arg0: i32) -> (i32, i32) {
    %c0_i32 = arith.constant 0 : i32
    %c0_i32_0 = arith.constant 0 : i32
    %c0_i32_1 = arith.constant 0 : i32
    return %c0_i32, %c0_i32_0 : i32, i32
  }
  func.func @transform_2(%arg0: i32) -> (i32, i32) {
    %c0_i32 = arith.constant 0 : i32
    %c0_i32_0 = arith.constant 0 : i32
    %c0_i32_1 = arith.constant 0 : i32
    return %c0_i32, %c0_i32_0 : i32, i32
  }
  func.func @transform_3(%arg0: i32) -> (i32, i32, i32) {
    %c0_i32 = arith.constant 0 : i32
    %c0_i32_0 = arith.constant 0 : i32
    %c0_i32_1 = arith.constant 0 : i32
    %c0_i32_2 = arith.constant 0 : i32
    return %c0_i32, %c0_i32_0, %c0_i32_1 : i32, i32, i32
  }
  func.func @transform_4(%arg0: i32) -> (i32, i32) {
    %c0_i32 = arith.constant 0 : i32
    %c0_i32_0 = arith.constant 0 : i32
    %c0_i32_1 = arith.constant 0 : i32
    return %c0_i32, %c0_i32_0 : i32, i32
  }
  func.func @transform_5(%arg0: i32) -> (i32, i32) {
    %c0_i32 = arith.constant 0 : i32
    %c0_i32_0 = arith.constant 0 : i32
    %c0_i32_1 = arith.constant 0 : i32
    return %c0_i32, %c0_i32_0 : i32, i32
  }
  func.func @transform_6(%arg0: i32) -> (i32, i32, i32) {
    %c0_i32 = arith.constant 0 : i32
    %c0_i32_0 = arith.constant 0 : i32
    %c0_i32_1 = arith.constant 0 : i32
    return %arg0, %c0_i32, %c0_i32_0 : i32, i32, i32
  }
}

module attributes {stable_mosaic.version = 11 : i64} {
  func.func @_ln_residual_kernel(%arg0: i32, %arg1: i32, %arg2: memref<8x16xbf16, #tpu.memory_space<vmem>>, %arg3: memref<1x16xf32, #tpu.memory_space<vmem>>, %arg4: memref<1x16xf32, #tpu.memory_space<vmem>>, %arg5: memref<8x16xbf16, #tpu.memory_space<vmem>>) attributes {dimension_semantics = [#tpu.dimension_semantics<parallel>, #tpu.dimension_semantics<parallel>], iteration_bounds = array<i64: 1, 1>, scalar_prefetch = 0 : i64, scratch_operands = 0 : i64, tpu.core_type = #tpu.core_type<tc>, window_params = [{transform_indices = @transform_0, window_bounds = array<i64: 8, 16>}, {pipeline_mode = #tpu.pipeline_mode<synchronous>, transform_indices = @transform_1, window_bounds = array<i64: 1, 16>}, {pipeline_mode = #tpu.pipeline_mode<synchronous>, transform_indices = @transform_2, window_bounds = array<i64: 1, 16>}, {transform_indices = @transform_3, window_bounds = array<i64: 8, 16>}]} {
    %c0 = arith.constant 0 : index
    %c0_0 = arith.constant 0 : index
    %0 = vector.load %arg2[%c0, %c0_0] : memref<8x16xbf16, #tpu.memory_space<vmem>>, vector<8x16xbf16>
    %1 = arith.extf %0 : vector<8x16xbf16> to vector<8x16xf32>
    %cst = arith.constant dense<0.000000e+00> : vector<8xf32>
    %2 = vector.multi_reduction <add>, %1, %cst [1] : vector<8x16xf32> to vector<8xf32>
    %3 = vector.shape_cast %2 : vector<8xf32> to vector<8x1xf32>
    %cst_1 = arith.constant 1.600000e+01 : f32
    %4 = vector.broadcast %cst_1 : f32 to vector<8x1xf32>
    %5 = arith.divf %3, %4 : vector<8x1xf32>
    %6 = vector.broadcast %5 : vector<8x1xf32> to vector<8x16xf32>
    %7 = arith.subf %1, %6 : vector<8x16xf32>
    %8 = arith.mulf %7, %7 : vector<8x16xf32>
    %cst_2 = arith.constant dense<0.000000e+00> : vector<8xf32>
    %9 = vector.multi_reduction <add>, %8, %cst_2 [1] : vector<8x16xf32> to vector<8xf32>
    %10 = vector.shape_cast %9 : vector<8xf32> to vector<8x1xf32>
    %cst_3 = arith.constant 1.600000e+01 : f32
    %11 = vector.broadcast %cst_3 : f32 to vector<8x1xf32>
    %12 = arith.divf %10, %11 : vector<8x1xf32>
    %13 = vector.broadcast %5 : vector<8x1xf32> to vector<8x16xf32>
    %14 = arith.subf %1, %13 : vector<8x16xf32>
    %cst_4 = arith.constant 9.99999974E-6 : f32
    %15 = vector.broadcast %cst_4 : f32 to vector<8x1xf32>
    %16 = arith.addf %12, %15 : vector<8x1xf32>
    %17 = math.rsqrt %16 : vector<8x1xf32>
    %18 = vector.broadcast %17 : vector<8x1xf32> to vector<8x16xf32>
    %19 = arith.mulf %14, %18 : vector<8x16xf32>
    %c0_5 = arith.constant 0 : index
    %c0_6 = arith.constant 0 : index
    %20 = vector.load %arg3[%c0_5, %c0_6] : memref<1x16xf32, #tpu.memory_space<vmem>>, vector<1x16xf32>
    %21 = vector.broadcast %20 : vector<1x16xf32> to vector<8x16xf32>
    %22 = arith.mulf %19, %21 : vector<8x16xf32>
    %23 = arith.addf %1, %22 : vector<8x16xf32>
    %c0_7 = arith.constant 0 : index
    %c0_8 = arith.constant 0 : index
    %24 = vector.load %arg4[%c0_7, %c0_8] : memref<1x16xf32, #tpu.memory_space<vmem>>, vector<1x16xf32>
    %25 = vector.broadcast %24 : vector<1x16xf32> to vector<8x16xf32>
    %26 = arith.addf %23, %25 : vector<8x16xf32>
    %27 = arith.truncf %26 : vector<8x16xf32> to vector<8x16xbf16>
    %c0_9 = arith.constant 0 : index
    %c0_10 = arith.constant 0 : index
    %28 = vector.load %arg5[%c0_9, %c0_10] : memref<8x16xbf16, #tpu.memory_space<vmem>>, vector<8x16xbf16>
    tpu.vector_store %arg5[%c0_9, %c0_10], %27 {strides = array<i32>} : memref<8x16xbf16, #tpu.memory_space<vmem>>, vector<8x16xbf16>,
    return
  }
  func.func @transform_0(%arg0: i32, %arg1: i32) -> (i32, i32) {
    %c0_i32 = arith.constant 0 : i32
    %c0_i32_0 = arith.constant 0 : i32
    return %arg0, %c0_i32 : i32, i32
  }
  func.func @transform_1(%arg0: i32, %arg1: i32) -> (i32, i32) {
    %c0_i32 = arith.constant 0 : i32
    %c0_i32_0 = arith.constant 0 : i32
    %c0_i32_1 = arith.constant 0 : i32
    return %c0_i32, %c0_i32_0 : i32, i32
  }
  func.func @transform_2(%arg0: i32, %arg1: i32) -> (i32, i32) {
    %c0_i32 = arith.constant 0 : i32
    %c0_i32_0 = arith.constant 0 : i32
    %c0_i32_1 = arith.constant 0 : i32
    return %c0_i32, %c0_i32_0 : i32, i32
  }
  func.func @transform_3(%arg0: i32, %arg1: i32) -> (i32, i32) {
    %c0_i32 = arith.constant 0 : i32
    return %arg0, %arg1 : i32, i32
  }
}

module attributes {stable_mosaic.version = 11 : i64} {
  func.func @_ln_linear_kernel(%arg0: i32, %arg1: i32, %arg2: memref<8x16xbf16, #tpu.memory_space<vmem>>, %arg3: memref<1x16xf32, #tpu.memory_space<vmem>>, %arg4: memref<1x16xf32, #tpu.memory_space<vmem>>, %arg5: memref<16x64xbf16, #tpu.memory_space<vmem>>, %arg6: memref<1x64xf32, #tpu.memory_space<vmem>>, %arg7: memref<8x64xbf16, #tpu.memory_space<vmem>>) attributes {dimension_semantics = [#tpu.dimension_semantics<parallel>, #tpu.dimension_semantics<parallel>], iteration_bounds = array<i64: 1, 1>, scalar_prefetch = 0 : i64, scratch_operands = 0 : i64, tpu.core_type = #tpu.core_type<tc>, window_params = [{transform_indices = @transform_0, window_bounds = array<i64: 8, 16>}, {pipeline_mode = #tpu.pipeline_mode<synchronous>, transform_indices = @transform_1, window_bounds = array<i64: 1, 16>}, {pipeline_mode = #tpu.pipeline_mode<synchronous>, transform_indices = @transform_2, window_bounds = array<i64: 1, 16>}, {transform_indices = @transform_3, window_bounds = array<i64: 16, 64>}, {transform_indices = @transform_4, window_bounds = array<i64: 1, 64>}, {transform_indices = @transform_5, window_bounds = array<i64: 8, 64>}]} {
    %c0 = arith.constant 0 : index
    %c0_0 = arith.constant 0 : index
    %0 = vector.load %arg2[%c0, %c0_0] : memref<8x16xbf16, #tpu.memory_space<vmem>>, vector<8x16xbf16>
    %1 = arith.extf %0 : vector<8x16xbf16> to vector<8x16xf32>
    %cst = arith.constant dense<0.000000e+00> : vector<8xf32>
    %2 = vector.multi_reduction <add>, %1, %cst [1] : vector<8x16xf32> to vector<8xf32>
    %3 = vector.shape_cast %2 : vector<8xf32> to vector<8x1xf32>
    %cst_1 = arith.constant 1.600000e+01 : f32
    %4 = vector.broadcast %cst_1 : f32 to vector<8x1xf32>
    %5 = arith.divf %3, %4 : vector<8x1xf32>
    %6 = vector.broadcast %5 : vector<8x1xf32> to vector<8x16xf32>
    %7 = arith.subf %1, %6 : vector<8x16xf32>
    %8 = arith.mulf %7, %7 : vector<8x16xf32>
    %cst_2 = arith.constant dense<0.000000e+00> : vector<8xf32>
    %9 = vector.multi_reduction <add>, %8, %cst_2 [1] : vector<8x16xf32> to vector<8xf32>
    %10 = vector.shape_cast %9 : vector<8xf32> to vector<8x1xf32>
    %cst_3 = arith.constant 1.600000e+01 : f32
    %11 = vector.broadcast %cst_3 : f32 to vector<8x1xf32>
    %12 = arith.divf %10, %11 : vector<8x1xf32>
    %13 = vector.broadcast %5 : vector<8x1xf32> to vector<8x16xf32>
    %14 = arith.subf %1, %13 : vector<8x16xf32>
    %cst_4 = arith.constant 9.99999974E-6 : f32
    %15 = vector.broadcast %cst_4 : f32 to vector<8x1xf32>
    %16 = arith.addf %12, %15 : vector<8x1xf32>
    %17 = math.rsqrt %16 : vector<8x1xf32>
    %18 = vector.broadcast %17 : vector<8x1xf32> to vector<8x16xf32>
    %19 = arith.mulf %14, %18 : vector<8x16xf32>
    %c0_5 = arith.constant 0 : index
    %c0_6 = arith.constant 0 : index
    %20 = vector.load %arg3[%c0_5, %c0_6] : memref<1x16xf32, #tpu.memory_space<vmem>>, vector<1x16xf32>
    %21 = vector.broadcast %20 : vector<1x16xf32> to vector<8x16xf32>
    %22 = arith.mulf %19, %21 : vector<8x16xf32>
    %c0_7 = arith.constant 0 : index
    %c0_8 = arith.constant 0 : index
    %23 = vector.load %arg4[%c0_7, %c0_8] : memref<1x16xf32, #tpu.memory_space<vmem>>, vector<1x16xf32>
    %24 = vector.broadcast %23 : vector<1x16xf32> to vector<8x16xf32>
    %25 = arith.addf %22, %24 : vector<8x16xf32>
    %26 = arith.truncf %25 : vector<8x16xf32> to vector<8x16xbf16>
    %c0_9 = arith.constant 0 : index
    %c0_10 = arith.constant 0 : index
    %27 = vector.load %arg5[%c0_9, %c0_10] : memref<16x64xbf16, #tpu.memory_space<vmem>>, vector<16x64xbf16>
    %cst_11 = arith.constant dense<0.000000e+00> : vector<8x64xf32>
    %28 = tpu.matmul %26, %27, %cst_11 {dimension_numbers = #tpu.dot_dimension_numbers<[1], [0], [0], [1], [0, 0, 1, 1], [], []>} : vector<8x16xbf16>, vector<16x64xbf16>, vector<8x64xf32> -> vector<8x64xf32>
    %c0_12 = arith.constant 0 : index
    %c0_13 = arith.constant 0 : index
    %29 = vector.load %arg6[%c0_12, %c0_13] : memref<1x64xf32, #tpu.memory_space<vmem>>, vector<1x64xf32>
    %30 = vector.broadcast %29 : vector<1x64xf32> to vector<8x64xf32>
    %31 = arith.addf %28, %30 : vector<8x64xf32>
    %cst_14 = arith.constant 5.000000e-01 : f32
    %32 = vector.broadcast %cst_14 : f32 to vector<8x64xf32>
    %33 = arith.mulf %32, %31 : vector<8x64xf32>
    %cst_15 = arith.constant 0.707106769 : f32
    %34 = vector.broadcast %cst_15 : f32 to vector<8x64xf32>
    %35 = arith.mulf %31, %34 : vector<8x64xf32>
    %36 = math.erf %35 : vector<8x64xf32>
    %cst_16 = arith.constant 1.000000e+00 : f32
    %37 = vector.broadcast %cst_16 : f32 to vector<8x64xf32>
    %38 = arith.addf %37, %36 : vector<8x64xf32>
    %39 = arith.mulf %33, %38 : vector<8x64xf32>
    %40 = arith.truncf %39 : vector<8x64xf32> to vector<8x64xbf16>
    %c0_17 = arith.constant 0 : index
    %c0_18 = arith.constant 0 : index
    %41 = vector.load %arg7[%c0_17, %c0_18] : memref<8x64xbf16, #tpu.memory_space<vmem>>, vector<8x64xbf16>
    tpu.vector_store %arg7[%c0_17, %c0_18], %40 {strides = array<i32>} : memref<8x64xbf16, #tpu.memory_space<vmem>>, vector<8x64xbf16>,
    return
  }
  func.func @transform_0(%arg0: i32, %arg1: i32) -> (i32, i32) {
    %c0_i32 = arith.constant 0 : i32
    %c0_i32_0 = arith.constant 0 : i32
    return %arg0, %c0_i32 : i32, i32
  }
  func.func @transform_1(%arg0: i32, %arg1: i32) -> (i32, i32) {
    %c0_i32 = arith.constant 0 : i32
    %c0_i32_0 = arith.constant 0 : i32
    %c0_i32_1 = arith.constant 0 : i32
    return %c0_i32, %c0_i32_0 : i32, i32
  }
  func.func @transform_2(%arg0: i32, %arg1: i32) -> (i32, i32) {
    %c0_i32 = arith.constant 0 : i32
    %c0_i32_0 = arith.constant 0 : i32
    %c0_i32_1 = arith.constant 0 : i32
    return %c0_i32, %c0_i32_0 : i32, i32
  }
  func.func @transform_3(%arg0: i32, %arg1: i32) -> (i32, i32) {
    %c0_i32 = arith.constant 0 : i32
    %c0_i32_0 = arith.constant 0 : i32
    return %c0_i32, %arg1 : i32, i32
  }
  func.func @transform_4(%arg0: i32, %arg1: i32) -> (i32, i32) {
    %c0_i32 = arith.constant 0 : i32
    %c0_i32_0 = arith.constant 0 : i32
    return %c0_i32, %arg1 : i32, i32
  }
  func.func @transform_5(%arg0: i32, %arg1: i32) -> (i32, i32) {
    %c0_i32 = arith.constant 0 : i32
    return %arg0, %arg1 : i32, i32
  }
}

module attributes {stable_mosaic.version = 11 : i64} {
  func.func @_linear_residual_kernel(%arg0: i32, %arg1: i32, %arg2: memref<8x64xbf16, #tpu.memory_space<vmem>>, %arg3: memref<8x16xbf16, #tpu.memory_space<vmem>>, %arg4: memref<64x16xbf16, #tpu.memory_space<vmem>>, %arg5: memref<1x16xf32, #tpu.memory_space<vmem>>, %arg6: memref<8x16xbf16, #tpu.memory_space<vmem>>) attributes {dimension_semantics = [#tpu.dimension_semantics<parallel>, #tpu.dimension_semantics<parallel>], iteration_bounds = array<i64: 1, 1>, scalar_prefetch = 0 : i64, scratch_operands = 0 : i64, tpu.core_type = #tpu.core_type<tc>, window_params = [{transform_indices = @transform_0, window_bounds = array<i64: 8, 64>}, {transform_indices = @transform_1, window_bounds = array<i64: 8, 16>}, {transform_indices = @transform_2, window_bounds = array<i64: 64, 16>}, {transform_indices = @transform_3, window_bounds = array<i64: 1, 16>}, {transform_indices = @transform_4, window_bounds = array<i64: 8, 16>}]} {
    %c0 = arith.constant 0 : index
    %c0_0 = arith.constant 0 : index
    %0 = vector.load %arg3[%c0, %c0_0] : memref<8x16xbf16, #tpu.memory_space<vmem>>, vector<8x16xbf16>
    %1 = arith.extf %0 : vector<8x16xbf16> to vector<8x16xf32>
    %c0_1 = arith.constant 0 : index
    %c0_2 = arith.constant 0 : index
    %2 = vector.load %arg2[%c0_1, %c0_2] : memref<8x64xbf16, #tpu.memory_space<vmem>>, vector<8x64xbf16>
    %c0_3 = arith.constant 0 : index
    %c0_4 = arith.constant 0 : index
    %3 = vector.load %arg4[%c0_3, %c0_4] : memref<64x16xbf16, #tpu.memory_space<vmem>>, vector<64x16xbf16>
    %cst = arith.constant dense<0.000000e+00> : vector<8x16xf32>
    %4 = tpu.matmul %2, %3, %cst {dimension_numbers = #tpu.dot_dimension_numbers<[1], [0], [0], [1], [0, 0, 1, 1], [], []>} : vector<8x64xbf16>, vector<64x16xbf16>, vector<8x16xf32> -> vector<8x16xf32>
    %5 = arith.addf %1, %4 : vector<8x16xf32>
    %c0_5 = arith.constant 0 : index
    %c0_6 = arith.constant 0 : index
    %6 = vector.load %arg5[%c0_5, %c0_6] : memref<1x16xf32, #tpu.memory_space<vmem>>, vector<1x16xf32>
    %7 = vector.broadcast %6 : vector<1x16xf32> to vector<8x16xf32>
    %8 = arith.addf %5, %7 : vector<8x16xf32>
    %9 = arith.truncf %8 : vector<8x16xf32> to vector<8x16xbf16>
    %c0_7 = arith.constant 0 : index
    %c0_8 = arith.constant 0 : index
    %10 = vector.load %arg6[%c0_7, %c0_8] : memref<8x16xbf16, #tpu.memory_space<vmem>>, vector<8x16xbf16>
    tpu.vector_store %arg6[%c0_7, %c0_8], %9 {strides = array<i32>} : memref<8x16xbf16, #tpu.memory_space<vmem>>, vector<8x16xbf16>,
    return
  }
  func.func @transform_0(%arg0: i32, %arg1: i32) -> (i32, i32) {
    %c0_i32 = arith.constant 0 : i32
    %c0_i32_0 = arith.constant 0 : i32
    return %arg0, %c0_i32 : i32, i32
  }
  func.func @transform_1(%arg0: i32, %arg1: i32) -> (i32, i32) {
    %c0_i32 = arith.constant 0 : i32
    return %arg0, %arg1 : i32, i32
  }
  func.func @transform_2(%arg0: i32, %arg1: i32) -> (i32, i32) {
    %c0_i32 = arith.constant 0 : i32
    %c0_i32_0 = arith.constant 0 : i32
    return %c0_i32, %arg1 : i32, i32
  }
  func.func @transform_3(%arg0: i32, %arg1: i32) -> (i32, i32) {
    %c0_i32 = arith.constant 0 : i32
    %c0_i32_0 = arith.constant 0 : i32
    return %c0_i32, %arg1 : i32, i32
  }
  func.func @transform_4(%arg0: i32, %arg1: i32) -> (i32, i32) {
    %c0_i32 = arith.constant 0 : i32
    return %arg0, %arg1 : i32, i32
  }
}

module attributes {stable_mosaic.version = 11 : i64} {
  func.func @_ln_linear_kernel(%arg0: i32, %arg1: i32, %arg2: memref<8x64xbf16, #tpu.memory_space<vmem>>, %arg3: memref<1x64xf32, #tpu.memory_space<vmem>>, %arg4: memref<1x64xf32, #tpu.memory_space<vmem>>, %arg5: memref<64x32xbf16, #tpu.memory_space<vmem>>, %arg6: memref<1x32xf32, #tpu.memory_space<vmem>>, %arg7: memref<8x32xbf16, #tpu.memory_space<vmem>>) attributes {dimension_semantics = [#tpu.dimension_semantics<parallel>, #tpu.dimension_semantics<parallel>], iteration_bounds = array<i64: 1, 1>, scalar_prefetch = 0 : i64, scratch_operands = 0 : i64, tpu.core_type = #tpu.core_type<tc>, window_params = [{transform_indices = @transform_0, window_bounds = array<i64: 8, 64>}, {pipeline_mode = #tpu.pipeline_mode<synchronous>, transform_indices = @transform_1, window_bounds = array<i64: 1, 64>}, {pipeline_mode = #tpu.pipeline_mode<synchronous>, transform_indices = @transform_2, window_bounds = array<i64: 1, 64>}, {transform_indices = @transform_3, window_bounds = array<i64: 64, 32>}, {transform_indices = @transform_4, window_bounds = array<i64: 1, 32>}, {transform_indices = @transform_5, window_bounds = array<i64: 8, 32>}]} {
    %c0 = arith.constant 0 : index
    %c0_0 = arith.constant 0 : index
    %0 = vector.load %arg2[%c0, %c0_0] : memref<8x64xbf16, #tpu.memory_space<vmem>>, vector<8x64xbf16>
    %1 = arith.extf %0 : vector<8x64xbf16> to vector<8x64xf32>
    %cst = arith.constant dense<0.000000e+00> : vector<8xf32>
    %2 = vector.multi_reduction <add>, %1, %cst [1] : vector<8x64xf32> to vector<8xf32>
    %3 = vector.shape_cast %2 : vector<8xf32> to vector<8x1xf32>
    %cst_1 = arith.constant 6.400000e+01 : f32
    %4 = vector.broadcast %cst_1 : f32 to vector<8x1xf32>
    %5 = arith.divf %3, %4 : vector<8x1xf32>
    %6 = vector.broadcast %5 : vector<8x1xf32> to vector<8x64xf32>
    %7 = arith.subf %1, %6 : vector<8x64xf32>
    %8 = arith.mulf %7, %7 : vector<8x64xf32>
    %cst_2 = arith.constant dense<0.000000e+00> : vector<8xf32>
    %9 = vector.multi_reduction <add>, %8, %cst_2 [1] : vector<8x64xf32> to vector<8xf32>
    %10 = vector.shape_cast %9 : vector<8xf32> to vector<8x1xf32>
    %cst_3 = arith.constant 6.400000e+01 : f32
    %11 = vector.broadcast %cst_3 : f32 to vector<8x1xf32>
    %12 = arith.divf %10, %11 : vector<8x1xf32>
    %13 = vector.broadcast %5 : vector<8x1xf32> to vector<8x64xf32>
    %14 = arith.subf %1, %13 : vector<8x64xf32>
    %cst_4 = arith.constant 9.99999974E-6 : f32
    %15 = vector.broadcast %cst_4 : f32 to vector<8x1xf32>
    %16 = arith.addf %12, %15 : vector<8x1xf32>
    %17 = math.rsqrt %16 : vector<8x1xf32>
    %18 = vector.broadcast %17 : vector<8x1xf32> to vector<8x64xf32>
    %19 = arith.mulf %14, %18 : vector<8x64xf32>
    %c0_5 = arith.constant 0 : index
    %c0_6 = arith.constant 0 : index
    %20 = vector.load %arg3[%c0_5, %c0_6] : memref<1x64xf32, #tpu.memory_space<vmem>>, vector<1x64xf32>
    %21 = vector.broadcast %20 : vector<1x64xf32> to vector<8x64xf32>
    %22 = arith.mulf %19, %21 : vector<8x64xf32>
    %c0_7 = arith.constant 0 : index
    %c0_8 = arith.constant 0 : index
    %23 = vector.load %arg4[%c0_7, %c0_8] : memref<1x64xf32, #tpu.memory_space<vmem>>, vector<1x64xf32>
    %24 = vector.broadcast %23 : vector<1x64xf32> to vector<8x64xf32>
    %25 = arith.addf %22, %24 : vector<8x64xf32>
    %26 = arith.truncf %25 : vector<8x64xf32> to vector<8x64xbf16>
    %c0_9 = arith.constant 0 : index
    %c0_10 = arith.constant 0 : index
    %27 = vector.load %arg5[%c0_9, %c0_10] : memref<64x32xbf16, #tpu.memory_space<vmem>>, vector<64x32xbf16>
    %cst_11 = arith.constant dense<0.000000e+00> : vector<8x32xf32>
    %28 = tpu.matmul %26, %27, %cst_11 {dimension_numbers = #tpu.dot_dimension_numbers<[1], [0], [0], [1], [0, 0, 1, 1], [], []>} : vector<8x64xbf16>, vector<64x32xbf16>, vector<8x32xf32> -> vector<8x32xf32>
    %c0_12 = arith.constant 0 : index
    %c0_13 = arith.constant 0 : index
    %29 = vector.load %arg6[%c0_12, %c0_13] : memref<1x32xf32, #tpu.memory_space<vmem>>, vector<1x32xf32>
    %30 = vector.broadcast %29 : vector<1x32xf32> to vector<8x32xf32>
    %31 = arith.addf %28, %30 : vector<8x32xf32>
    %32 = arith.truncf %31 : vector<8x32xf32> to vector<8x32xbf16>
    %c0_14 = arith.constant 0 : index
    %c0_15 = arith.constant 0 : index
    %33 = vector.load %arg7[%c0_14, %c0_15] : memref<8x32xbf16, #tpu.memory_space<vmem>>, vector<8x32xbf16>
    tpu.vector_store %arg7[%c0_14, %c0_15], %32 {strides = array<i32>} : memref<8x32xbf16, #tpu.memory_space<vmem>>, vector<8x32xbf16>,
    return
  }
  func.func @transform_0(%arg0: i32, %arg1: i32) -> (i32, i32) {
    %c0_i32 = arith.constant 0 : i32
    %c0_i32_0 = arith.constant 0 : i32
    return %arg0, %c0_i32 : i32, i32
  }
  func.func @transform_1(%arg0: i32, %arg1: i32) -> (i32, i32) {
    %c0_i32 = arith.constant 0 : i32
    %c0_i32_0 = arith.constant 0 : i32
    %c0_i32_1 = arith.constant 0 : i32
    return %c0_i32, %c0_i32_0 : i32, i32
  }
  func.func @transform_2(%arg0: i32, %arg1: i32) -> (i32, i32) {
    %c0_i32 = arith.constant 0 : i32
    %c0_i32_0 = arith.constant 0 : i32
    %c0_i32_1 = arith.constant 0 : i32
    return %c0_i32, %c0_i32_0 : i32, i32
  }
  func.func @transform_3(%arg0: i32, %arg1: i32) -> (i32, i32) {
    %c0_i32 = arith.constant 0 : i32
    %c0_i32_0 = arith.constant 0 : i32
    return %c0_i32, %arg1 : i32, i32
  }
  func.func @transform_4(%arg0: i32, %arg1: i32) -> (i32, i32) {
    %c0_i32 = arith.constant 0 : i32
    %c0_i32_0 = arith.constant 0 : i32
    return %c0_i32, %arg1 : i32, i32
  }
  func.func @transform_5(%arg0: i32, %arg1: i32) -> (i32, i32) {
    %c0_i32 = arith.constant 0 : i32
    return %arg0, %arg1 : i32, i32
  }
}

module attributes {stable_mosaic.version = 11 : i64} {
  func.func @_ln_mean_head_kernel(%arg0: i32, %arg1: memref<2x1x32xbf16, #tpu.memory_space<vmem>>, %arg2: memref<1x1x32xf32, #tpu.memory_space<vmem>>, %arg3: memref<1x1x32xf32, #tpu.memory_space<vmem>>, %arg4: memref<32x2xbf16, #tpu.memory_space<vmem>>, %arg5: memref<1x2xf32, #tpu.memory_space<vmem>>, %arg6: memref<2x2xf32, #tpu.memory_space<vmem>>) attributes {dimension_semantics = [#tpu.dimension_semantics<arbitrary>], iteration_bounds = array<i64: 1>, scalar_prefetch = 0 : i64, scratch_operands = 0 : i64, tpu.core_type = #tpu.core_type<tc>, window_params = [{pipeline_mode = #tpu.pipeline_mode<synchronous>, transform_indices = @transform_0, window_bounds = array<i64: 2, 1, 32>}, {pipeline_mode = #tpu.pipeline_mode<synchronous>, transform_indices = @transform_1, window_bounds = array<i64: 1, 1, 32>}, {pipeline_mode = #tpu.pipeline_mode<synchronous>, transform_indices = @transform_2, window_bounds = array<i64: 1, 1, 32>}, {pipeline_mode = #tpu.pipeline_mode<synchronous>, transform_indices = @transform_3, window_bounds = array<i64: 32, 2>}, {pipeline_mode = #tpu.pipeline_mode<synchronous>, transform_indices = @transform_4, window_bounds = array<i64: 1, 2>}, {pipeline_mode = #tpu.pipeline_mode<synchronous>, transform_indices = @transform_5, window_bounds = array<i64: 2, 2>}]} {
    %c0 = arith.constant 0 : index
    %c0_0 = arith.constant 0 : index
    %c0_1 = arith.constant 0 : index
    %0 = vector.load %arg1[%c0, %c0_0, %c0_1] : memref<2x1x32xbf16, #tpu.memory_space<vmem>>, vector<2x1x32xbf16>
    %1 = arith.extf %0 : vector<2x1x32xbf16> to vector<2x1x32xf32>
    %cst = arith.constant dense<0.000000e+00> : vector<2x1xf32>
    %2 = vector.multi_reduction <add>, %1, %cst [2] : vector<2x1x32xf32> to vector<2x1xf32>
    %3 = vector.shape_cast %2 : vector<2x1xf32> to vector<2x1x1xf32>
    %cst_2 = arith.constant 3.200000e+01 : f32
    %4 = vector.broadcast %cst_2 : f32 to vector<2x1x1xf32>
    %5 = arith.divf %3, %4 : vector<2x1x1xf32>
    %6 = vector.broadcast %5 : vector<2x1x1xf32> to vector<2x1x32xf32>
    %7 = arith.subf %1, %6 : vector<2x1x32xf32>
    %8 = arith.mulf %7, %7 : vector<2x1x32xf32>
    %cst_3 = arith.constant dense<0.000000e+00> : vector<2x1xf32>
    %9 = vector.multi_reduction <add>, %8, %cst_3 [2] : vector<2x1x32xf32> to vector<2x1xf32>
    %10 = vector.shape_cast %9 : vector<2x1xf32> to vector<2x1x1xf32>
    %cst_4 = arith.constant 3.200000e+01 : f32
    %11 = vector.broadcast %cst_4 : f32 to vector<2x1x1xf32>
    %12 = arith.divf %10, %11 : vector<2x1x1xf32>
    %13 = vector.broadcast %5 : vector<2x1x1xf32> to vector<2x1x32xf32>
    %14 = arith.subf %1, %13 : vector<2x1x32xf32>
    %cst_5 = arith.constant 9.99999974E-6 : f32
    %15 = vector.broadcast %cst_5 : f32 to vector<2x1x1xf32>
    %16 = arith.addf %12, %15 : vector<2x1x1xf32>
    %17 = math.rsqrt %16 : vector<2x1x1xf32>
    %18 = vector.broadcast %17 : vector<2x1x1xf32> to vector<2x1x32xf32>
    %19 = arith.mulf %14, %18 : vector<2x1x32xf32>
    %c0_6 = arith.constant 0 : index
    %c0_7 = arith.constant 0 : index
    %c0_8 = arith.constant 0 : index
    %20 = vector.load %arg2[%c0_6, %c0_7, %c0_8] : memref<1x1x32xf32, #tpu.memory_space<vmem>>, vector<1x1x32xf32>
    %21 = vector.broadcast %20 : vector<1x1x32xf32> to vector<2x1x32xf32>
    %22 = arith.mulf %19, %21 : vector<2x1x32xf32>
    %c0_9 = arith.constant 0 : index
    %c0_10 = arith.constant 0 : index
    %c0_11 = arith.constant 0 : index
    %23 = vector.load %arg3[%c0_9, %c0_10, %c0_11] : memref<1x1x32xf32, #tpu.memory_space<vmem>>, vector<1x1x32xf32>
    %24 = vector.broadcast %23 : vector<1x1x32xf32> to vector<2x1x32xf32>
    %25 = arith.addf %22, %24 : vector<2x1x32xf32>
    %cst_12 = arith.constant dense<0.000000e+00> : vector<2x32xf32>
    %26 = vector.multi_reduction <add>, %25, %cst_12 [1] : vector<2x1x32xf32> to vector<2x32xf32>
    %cst_13 = arith.constant 1.000000e+00 : f32
    %27 = vector.broadcast %cst_13 : f32 to vector<2x32xf32>
    %28 = arith.divf %26, %27 : vector<2x32xf32>
    %29 = arith.truncf %28 : vector<2x32xf32> to vector<2x32xbf16>
    %c0_14 = arith.constant 0 : index
    %c0_15 = arith.constant 0 : index
    %30 = vector.load %arg4[%c0_14, %c0_15] : memref<32x2xbf16, #tpu.memory_space<vmem>>, vector<32x2xbf16>
    %cst_16 = arith.constant dense<0.000000e+00> : vector<2x2xf32>
    %31 = tpu.matmul %29, %30, %cst_16 {dimension_numbers = #tpu.dot_dimension_numbers<[1], [0], [0], [1], [0, 0, 1, 1], [], []>} : vector<2x32xbf16>, vector<32x2xbf16>, vector<2x2xf32> -> vector<2x2xf32>
    %c0_17 = arith.constant 0 : index
    %c0_18 = arith.constant 0 : index
    %32 = vector.load %arg5[%c0_17, %c0_18] : memref<1x2xf32, #tpu.memory_space<vmem>>, vector<1x2xf32>
    %33 = vector.broadcast %32 : vector<1x2xf32> to vector<2x2xf32>
    %34 = arith.addf %31, %33 : vector<2x2xf32>
    %c0_19 = arith.constant 0 : index
    %c0_20 = arith.constant 0 : index
    %35 = vector.load %arg6[%c0_19, %c0_20] : memref<2x2xf32, #tpu.memory_space<vmem>>, vector<2x2xf32>
    tpu.vector_store %arg6[%c0_19, %c0_20], %34 {strides = array<i32>} : memref<2x2xf32, #tpu.memory_space<vmem>>, vector<2x2xf32>,
    return
  }
  func.func @transform_0(%arg0: i32) -> (i32, i32, i32) {
    %c0_i32 = arith.constant 0 : i32
    %c0_i32_0 = arith.constant 0 : i32
    %c0_i32_1 = arith.constant 0 : i32
    %c0_i32_2 = arith.constant 0 : i32
    return %c0_i32, %c0_i32_0, %c0_i32_1 : i32, i32, i32
  }
  func.func @transform_1(%arg0: i32) -> (i32, i32, i32) {
    %c0_i32 = arith.constant 0 : i32
    %c0_i32_0 = arith.constant 0 : i32
    %c0_i32_1 = arith.constant 0 : i32
    %c0_i32_2 = arith.constant 0 : i32
    return %c0_i32, %c0_i32_0, %c0_i32_1 : i32, i32, i32
  }
  func.func @transform_2(%arg0: i32) -> (i32, i32, i32) {
    %c0_i32 = arith.constant 0 : i32
    %c0_i32_0 = arith.constant 0 : i32
    %c0_i32_1 = arith.constant 0 : i32
    %c0_i32_2 = arith.constant 0 : i32
    return %c0_i32, %c0_i32_0, %c0_i32_1 : i32, i32, i32
  }
  func.func @transform_3(%arg0: i32) -> (i32, i32) {
    %c0_i32 = arith.constant 0 : i32
    %c0_i32_0 = arith.constant 0 : i32
    %c0_i32_1 = arith.constant 0 : i32
    return %c0_i32, %c0_i32_0 : i32, i32
  }
  func.func @transform_4(%arg0: i32) -> (i32, i32) {
    %c0_i32 = arith.constant 0 : i32
    %c0_i32_0 = arith.constant 0 : i32
    %c0_i32_1 = arith.constant 0 : i32
    return %c0_i32, %c0_i32_0 : i32, i32
  }
  func.func @transform_5(%arg0: i32) -> (i32, i32) {
    %c0_i32 = arith.constant 0 : i32
    %c0_i32_0 = arith.constant 0 : i32
    %c0_i32_1 = arith.constant 0 : i32
    return %c0_i32, %c0_i32_0 : i32, i32
  }
}

</mosaic_0001>

<llo_original>
// kernel: tpu_custom_call.1
$region0: #{tpu_custom_call.1}
  #allocation0 [shape = 'u32[]', space=smem, size = 0x4, offset = 0x4, fixed_abs, tag = 'smem constant byte address 0x4 - core index']
  #allocation1 [shape = 'u32[144,128]{1,0:T(1,128)}', space=vmem, size = 0x12000, scoped, tag = 'internal scratch']
  %s0 = inlined_call_operand.hbm [shape: f32[8,128], index: 0, kind: input, shape index: {}]
  %s1 = inlined_call_operand.hbm [shape: f32[8,128], index: 1, kind: output, shape index: {}]
  %s2 = sld [smem:[#allocation0]]
  $region41: #{tpu_custom_call.1} parent=0
    _
  %s4 = ssub.s32 1, %s2
  %s5 = scalar_select 0, %s4, %s2
  $region1: #{tpu_custom_call.1} parent=0
    #allocation2 [shape = 'u8[4096]{0}', space=vmem, size = 0x1000, scoped, tag = 'input window, operand 0, single buffered']
    #allocation3 [shape = 's32[2]{0}', space=sflag, size = 0x8, scoped, tag = 'scoped memory for tpu_custom_call.1']
    #allocation4 [shape = 's32[2]{0}', space=sflag, size = 0x8, scoped, tag = 'scoped memory for tpu_custom_call.1']
    #allocation5 [shape = 'u8[4096]{0}', space=vmem, size = 0x1000, scoped, tag = 'output window, operand 0, single buffered']
    %6 = vsyncpa [#allocation3], 0
    %7 = vsyncpa [#allocation4], 0
    loop: start=0, step=1, limit=4
    $region2: #{tpu_custom_call.1} parent=1 // loop_pre_header
      _
    $region3: #{tpu_custom_call.1} parent=1 // loop_header
      %s9 = sphi 0, %s13
      %p10 = scmp.ge.s32.totalorder %s9, 4
      %s17 = sphi 0, %s17
      %s19 = sphi 0, %s17
      %s20 = sphi 0, %s19
      %s34 = sphi 0, %s20
      %s38 = sphi 0, %s38
      %s40 = sphi 0, %s38
      %s41 = sphi 0, %s40
      %s55 = sphi 0, %s41
    $region4: #{tpu_custom_call.1} parent=1 // loop_header_branch
      %12 = sbr.rel (%p10) target = $region8
    $region5: #{tpu_custom_call.1} parent=1 // loop_body
      %s14 = ssub.s32 %s9, 1
      %s15 = ssub.s32 %s9, 2
      %s16 = sadd.s32 %s9, 1
      %s18 = sadd.s32 %s17, 1
      %p21 = scmp.eq.s32.totalorder %s9, 1
      %p22 = scmp.ne.s32.totalorder %s17, %s19
      %p23 = scmp.eq.s32.totalorder %s9, 0
      %p24 = por %p22, %p23
      %p25 = scmp.ne.s32.totalorder %s17, %s19
      %p26 = scmp.eq.s32.totalorder %s14, 1
      %p27 = por %p25, %p26
      %p28 = scmp.ne.s32.totalorder %s19, %s20
      %p29 = scmp.eq.s32.totalorder %s14, 0
      %p30 = por %p28, %p29
      %p31 = scmp.ne.s32.totalorder %s19, %s20
      %p32 = scmp.eq.s32.totalorder %s15, 1
      %p33 = por %p31, %p32
      %p35 = scmp.ne.s32.totalorder %s20, %s34
      %p36 = scmp.eq.s32.totalorder %s15, 0
      %p37 = por %p35, %p36
      %s39 = sadd.s32 %s38, 1
      %p42 = scmp.eq.s32.totalorder %s9, 1
      %p43 = scmp.ne.s32.totalorder %s38, %s40
      %p44 = scmp.eq.s32.totalorder %s9, 0
      %p45 = por %p43, %p44
      %p46 = scmp.ne.s32.totalorder %s38, %s40
      %p47 = scmp.eq.s32.totalorder %s14, 1
      %p48 = por %p46, %p47
      %p49 = scmp.ne.s32.totalorder %s40, %s41
      %p50 = scmp.eq.s32.totalorder %s14, 0
      %p51 = por %p49, %p50
      %p52 = scmp.ne.s32.totalorder %s40, %s41
      %p53 = scmp.eq.s32.totalorder %s15, 1
      %p54 = por %p52, %p53
      %p56 = scmp.ne.s32.totalorder %s41, %s55
      %p57 = scmp.eq.s32.totalorder %s15, 0
      %p58 = por %p56, %p57
      %p59 = scmp.le.s32.totalorder 1, %s9
      %p60 = scmp.lt.s32.totalorder %s9, 3
      %p61 = pnand %p59, %p60
      %p62 = pneg %p61
      // Predicated region
      $region9: #{tpu_custom_call.1} parent=5 // pred_check
        _
      $region10: #{tpu_custom_call.1} parent=5 // pred_check_branch
        %64 = sbr.rel (%p61) target = $region12
      $region11: #{tpu_custom_call.1} parent=5 // pred_region
        %s65 = ssub.s32 %s9, 1
        // Predicated region
        $region13: #{tpu_custom_call.1} parent=11 // pred_check
          %p66 = pneg %p30
        $region14: #{tpu_custom_call.1} parent=11 // pred_check_branch
          %68 = sbr.rel (%p66) target = $region16
        $region15: #{tpu_custom_call.1} parent=11 // pred_region
          %s70 = ssub.s32 128, 128
          %71 = vsyncadd [#allocation3], %s70
          %s73 = sshll.u32 [#allocation2], 4
          %s74 = int_to_ptr.vmem [resolvable:$true] %s73
          %76 = dma.hbm_to_vmem [thread:$0]  %s0, 128, %s74, [#allocation3]
        $region16: #{tpu_custom_call.1} parent=11 // pred_fallthru
          _
      $region12: #{tpu_custom_call.1} parent=5 // pred_fallthru
        _
      %p77 = scmp.lt.s32.totalorder %s9, 2
      // Predicated region
      $region17: #{tpu_custom_call.1} parent=5 // pred_check
        %p78 = pneg %p77
      $region18: #{tpu_custom_call.1} parent=5 // pred_check_branch
        %80 = sbr.rel (%p78) target = $region20
      $region19: #{tpu_custom_call.1} parent=5 // pred_region
        _
      $region20: #{tpu_custom_call.1} parent=5 // pred_fallthru
        _
      %p81 = scmp.le.s32.totalorder 1, %s9
      %p82 = scmp.lt.s32.totalorder %s9, 3
      %p83 = pnand %p81, %p82
      %p84 = pneg %p83
      // Predicated region
      $region21: #{tpu_custom_call.1} parent=5 // pred_check
        _
      $region22: #{tpu_custom_call.1} parent=5 // pred_check_branch
        %86 = sbr.rel (%p83) target = $region24
      $region23: #{tpu_custom_call.1} parent=5 // pred_region
        %s87 = ssub.s32 %s9, 1
        // Predicated region
        $region25: #{tpu_custom_call.1} parent=23 // pred_check
          %p88 = pneg %p30
        $region26: #{tpu_custom_call.1} parent=23 // pred_check_branch
          %90 = sbr.rel (%p88) target = $region28
        $region27: #{tpu_custom_call.1} parent=23 // pred_region
          %91 = dma.done [#allocation3], 128
        $region28: #{tpu_custom_call.1} parent=23 // pred_fallthru
          _
        %p92 = pneg %p30
        %p93 = pneg %p27
        %p94 = pneg %p51
        %p95 = pneg %p48
        %v96 = vld [vmem:[#allocation2] sm:$0xff]
        %v97 = vadd.f32 %v96, 1.0
        %98 = vst [vmem:[#allocation5] sm:$0xff] %v97
        // Predicated region
        $region29: #{tpu_custom_call.1} parent=23 // pred_check
          %p99 = pneg %p48
        $region30: #{tpu_custom_call.1} parent=23 // pred_check_branch
          %101 = sbr.rel (%p99) target = $region32
        $region31: #{tpu_custom_call.1} parent=23 // pred_region
          %s103 = ssub.s32 128, 128
          %104 = vsyncadd [#allocation4], %s103
          %s106 = sshll.u32 [#allocation5], 4
          %s107 = int_to_ptr.vmem [resolvable:$true] %s106
          %109 = dma.vmem_to_hbm [thread:$0]  %s107, 128, %s1, [#allocation4]
        $region32: #{tpu_custom_call.1} parent=23 // pred_fallthru
          _
        // Predicated region
        $region33: #{tpu_custom_call.1} parent=23 // pred_check
          %p110 = pneg %p48
        $region34: #{tpu_custom_call.1} parent=23 // pred_check_branch
          %112 = sbr.rel (%p110) target = $region36
        $region35: #{tpu_custom_call.1} parent=23 // pred_region
          %113 = dma.done [#allocation4], 128
        $region36: #{tpu_custom_call.1} parent=23 // pred_fallthru
          _
      $region24: #{tpu_custom_call.1} parent=5 // pred_fallthru
        _
      %p114 = scmp.le.s32.totalorder 2, %s9
      // Predicated region
      $region37: #{tpu_custom_call.1} parent=5 // pred_check
        %p115 = pneg %p114
      $region38: #{tpu_custom_call.1} parent=5 // pred_check_branch
        %117 = sbr.rel (%p115) target = $region40
      $region39: #{tpu_custom_call.1} parent=5 // pred_region
        %s118 = ssub.s32 %s9, 2
      $region40: #{tpu_custom_call.1} parent=5 // pred_fallthru
        _
    $region6: #{tpu_custom_call.1} parent=1 // loop_footer
      %s13 = sadd.s32 1, %s9
    $region7: #{tpu_custom_call.1} parent=1 // loop_footer_branch
      %8 = sbr.rel target = $region3
    $region8: #{tpu_custom_call.1} parent=1 // loop_exit
      _
    %119 = vsyncpa [#allocation3], 1
    %s120 = scalar_lea.sflag [#allocation3], 1
    %121 = vsyncpa %s120, 1
    %122 = vsyncpa [#allocation4], 1
    %s123 = scalar_lea.sflag [#allocation4], 1
    %124 = vsyncpa %s123, 1

// kernel: swin_forward.20
$region0: #{swin_forward.20}
  #allocation0 [shape = 'u32[]', space=smem, size = 0x4, offset = 0x4, fixed_abs, tag = 'smem constant byte address 0x4 - core index']
  #allocation1 [shape = 'u32[144,128]{1,0:T(1,128)}', space=vmem, size = 0x12000, scoped, tag = 'internal scratch']
  %s0 = inlined_call_operand.vmem [shape: f32[32,48], index: 0, kind: input, shape index: {}]
  %s1 = inlined_call_operand.vmem [shape: bf16[48,8], index: 1, kind: input, shape index: {}]
  %s2 = inlined_call_operand.vmem [shape: f32[1,8], index: 2, kind: input, shape index: {}]
  %s3 = inlined_call_operand.vmem [shape: f32[1,8], index: 3, kind: input, shape index: {}]
  %s4 = inlined_call_operand.vmem [shape: f32[1,8], index: 4, kind: input, shape index: {}]
  %s5 = inlined_call_operand.vmem [shape: bf16[32,8], index: 5, kind: output, shape index: {}]
  %s6 = sld [smem:[#allocation0]]
  $region30: #{swin_forward.20} parent=0
    _
  %s8 = ssub.s32 1, %s6
  %s9 = scalar_select 0, %s8, %s6
  // Predicated region
  $region2: #{swin_forward.20} parent=0 // pred_check
    _
  $region3: #{swin_forward.20} parent=0 // pred_check_branch
    %11 = sbr.rel (0) target = $region5
  $region4: #{swin_forward.20} parent=0 // pred_region
    _
  $region5: #{swin_forward.20} parent=0 // pred_fallthru
    _
  // Predicated region
  $region6: #{swin_forward.20} parent=0 // pred_check
    _
  $region7: #{swin_forward.20} parent=0 // pred_check_branch
    %13 = sbr.rel (0) target = $region9
  $region8: #{swin_forward.20} parent=0 // pred_region
    _
  $region9: #{swin_forward.20} parent=0 // pred_fallthru
    _
  // Predicated region
  $region10: #{swin_forward.20} parent=0 // pred_check
    _
  $region11: #{swin_forward.20} parent=0 // pred_check_branch
    %15 = sbr.rel (0) target = $region13
  $region12: #{swin_forward.20} parent=0 // pred_region
    _
  $region13: #{swin_forward.20} parent=0 // pred_fallthru
    _
  // Predicated region
  $region14: #{swin_forward.20} parent=0 // pred_check
    _
  $region15: #{swin_forward.20} parent=0 // pred_check_branch
    %17 = sbr.rel (0) target = $region17
  $region16: #{swin_forward.20} parent=0 // pred_region
    _
  $region17: #{swin_forward.20} parent=0 // pred_fallthru
    _
  // Predicated region
  $region18: #{swin_forward.20} parent=0 // pred_check
    _
  $region19: #{swin_forward.20} parent=0 // pred_check_branch
    %19 = sbr.rel (0) target = $region21
  $region20: #{swin_forward.20} parent=0 // pred_region
    _
  $region21: #{swin_forward.20} parent=0 // pred_fallthru
    _
  %v21 = vld [vmem:[%s0] sm:$0xff]
  %v22 = vld [vmem:[%s0 + $0x8] sm:$0xff]
  %v23 = vld [vmem:[%s0 + $0x10] sm:$0xff]
  %v24 = vld [vmem:[%s0 + $0x18] sm:$0xff]
  %v25 = vpack.c.bf16 %v22, %v21
  %v26 = vpack.c.bf16 %v24, %v23
  %v27 = vld [vmem:[%s1] sm:$0xf]
  %v28 = vld [vmem:[%s1 + $0x4] sm:$0xf]
  %v29 = vld [vmem:[%s1 + $0x8] sm:$0xf]
  %v30 = vld [vmem:[%s1 + $0xc] sm:$0xf]
  %v31 = vld [vmem:[%s1 + $0x10] sm:$0xf]
  %v32 = vld [vmem:[%s1 + $0x14] sm:$0xf]
  %v33 = vld [vmem:[%s2] sm:$0x1]
  %v35 = vlaneseq
  %v36 = vshrl.u32 %v35, 7
  %v37 = vsub.s32 0, %v36
  %v38 = vrot.slane %v33, %v37
  %v46 = vunpack.c.l.b16 %v27
  %v47 = vunpack.c.l.b16 %v28
  %v48 = vunpack.c.l.b16 %v29
  %v49 = vunpack.c.l.b16 %v30
  %v50 = vunpack.c.l.b16 %v31
  %v51 = vunpack.c.l.b16 %v32
  %v52 = vpack.c.b16 %v47, %v46
  %v53 = vpack.c.b16 %v49, %v48
  %v54 = vpack.c.b16 %v51, %v50
  %vm58 = vcmask 392192
  %v60 = vsel %vm58, %v25, 0
  %v63 = vsel %vm58, %v26, 0
  %65 = vmatprep.subr.bf16.mxu0 0
  %66 = vmatpush1.bf16.msra.mxu0 %v52
  %67 = vmatprep.subr.bf16.mxu0 0
  %68 = vmatpush1.bf16.msra.mxu0 %v53
  %69 = vmatprep.subr.bf16.mxu0 0
  %70 = vmatpush1.bf16.msra.mxu0 %v54
  %71 = vmatprep.subr.bf16.mxu0 0
  %72 = vmatpush1.bf16.msra.mxu0 0
  %73 = vmatprep.subr.bf16.mxu0 0
  %74 = vmatpush1.bf16.msra.mxu0 0
  %75 = vmatprep.subr.bf16.mxu0 0
  %76 = vmatpush1.bf16.msra.mxu0 0
  %77 = vmatprep.subr.bf16.mxu0 0
  %78 = vmatpush1.bf16.msra.mxu0 0
  %79 = vmatprep.subr.bf16.mxu0 0
  %80 = vmatpush1.bf16.msra.mxu0 0
  %81 = vmatprep.subr.bf16.mxu0 0
  %82 = vmatpush1.bf16.msra.mxu0 0
  %83 = vmatprep.subr.bf16.mxu0 0
  %84 = vmatpush1.bf16.msra.mxu0 0
  %85 = vmatprep.subr.bf16.mxu0 0
  %86 = vmatpush1.bf16.msra.mxu0 0
  %87 = vmatprep.subr.bf16.mxu0 0
  %88 = vmatpush1.bf16.msra.mxu0 0
  %89 = vmatprep.subr.bf16.mxu0 0
  %90 = vmatpush1.bf16.msra.mxu0 0
  %91 = vmatprep.subr.bf16.mxu0 0
  %92 = vmatpush1.bf16.msra.mxu0 0
  %93 = vmatprep.subr.bf16.mxu0 0
  %94 = vmatpush1.bf16.msra.mxu0 0
  %95 = vmatprep.subr.bf16.mxu0 0
  %96 = vmatpush1.bf16.msra.mxu0 0
  %97 = vmatprep.mubr.bf16.mxu0 0
  %98 = vmatmul.mubr.bf16.gmra.mrb[0].mxu0 %v60
  %v99 = vpop.f32.mrb[0].mxu0
  %v100 = vadd.f32 %v38, %v99
  %v101 = vpop.f32.mrb[0].mxu0
  %v102 = vpop.f32.mrb[0].mxu0
  %v103 = vadd.f32 %v38, %v102
  %v104 = vpop.f32.mrb[0].mxu0
  %105 = vmatprep.mubr.bf16.mxu0 0
  %106 = vmatmul.mubr.bf16.gmra.mrb[0].mxu0 %v63
  %v107 = vpop.f32.mrb[0].mxu0
  %v108 = vadd.f32 %v38, %v107
  %v109 = vpop.f32.mrb[0].mxu0
  %v110 = vpop.f32.mrb[0].mxu0
  %v111 = vadd.f32 %v38, %v110
  %v112 = vpop.f32.mrb[0].mxu0
  %113 = vdwg.mxu0
  %vm114 = vcmask 64512
  %v115 = vsel %vm114, %v100, 0.0
  %116 = vadd.xlane.f32.xlu0 %v115
  %v117 = vpop.xlane.xlu0 %116
  %v118 = vsel %vm114, %v103, 0.0
  %119 = vadd.xlane.f32.xlu0 %v118
  %v120 = vpop.xlane.xlu0 %119
  %v121 = vsel %vm114, %v108, 0.0
  %122 = vadd.xlane.f32.xlu0 %v121
  %v123 = vpop.xlane.xlu0 %122
  %v124 = vsel %vm114, %v111, 0.0
  %125 = vadd.xlane.f32.xlu0 %v124
  %v126 = vpop.xlane.xlu0 %125
  %v127 = vrcp.pop 8.0
  %v128 = vmul.f32 %v117, %v127
  %v129 = vmul.f32 %v120, %v127
  %v130 = vmul.f32 %v123, %v127
  %v131 = vmul.f32 %v126, %v127
  %v132 = vsub.f32 %v100, %v128
  %v133 = vsub.f32 %v103, %v129
  %v134 = vsub.f32 %v108, %v130
  %v135 = vsub.f32 %v111, %v131
  %v136 = vmul.f32 %v132, %v132
  %v137 = vmul.f32 %v133, %v133
  %v138 = vmul.f32 %v134, %v134
  %v139 = vmul.f32 %v135, %v135
  %v140 = vsel %vm114, %v136, 0.0
  %141 = vadd.xlane.f32.xlu0 %v140
  %v142 = vpop.xlane.xlu0 %141
  %v143 = vsel %vm114, %v137, 0.0
  %144 = vadd.xlane.f32.xlu0 %v143
  %v145 = vpop.xlane.xlu0 %144
  %v146 = vsel %vm114, %v138, 0.0
  %147 = vadd.xlane.f32.xlu0 %v146
  %v148 = vpop.xlane.xlu0 %147
  %v149 = vsel %vm114, %v139, 0.0
  %150 = vadd.xlane.f32.xlu0 %v149
  %v151 = vpop.xlane.xlu0 %150
  %v152 = vmul.f32 %v142, %v127
  %v153 = vmul.f32 %v145, %v127
  %v154 = vmul.f32 %v148, %v127
  %v155 = vmul.f32 %v151, %v127
  %v156 = vadd.f32 %v152, 1e-05
  %v157 = vadd.f32 %v153, 1e-05
  %v158 = vadd.f32 %v154, 1e-05
  %v159 = vadd.f32 %v155, 1e-05
  %v160 = vrsqrt.pop %v156
  %v161 = vrsqrt.pop %v157
  %v162 = vrsqrt.pop %v158
  %v163 = vrsqrt.pop %v159
  %v164 = vmul.f32 %v132, %v160
  %v165 = vmul.f32 %v133, %v161
  %v166 = vmul.f32 %v134, %v162
  %v167 = vmul.f32 %v135, %v163
  %v168 = vld [vmem:[%s3] sm:$0x1]
  %v170 = vlaneseq
  %v171 = vshrl.u32 %v170, 7
  %v172 = vsub.s32 0, %v171
  %v173 = vrot.slane %v168, %v172
  %v175 = vmul.f32 %v164, %v173
  %v176 = vmul.f32 %v165, %v173
  %v177 = vmul.f32 %v166, %v173
  %v178 = vmul.f32 %v167, %v173
  %v179 = vld [vmem:[%s4] sm:$0x1]
  %v181 = vlaneseq
  %v182 = vshrl.u32 %v181, 7
  %v183 = vsub.s32 0, %v182
  %v184 = vrot.slane %v179, %v183
  %v186 = vadd.f32 %v175, %v184
  %v187 = vadd.f32 %v176, %v184
  %v188 = vadd.f32 %v177, %v184
  %v189 = vadd.f32 %v178, %v184
  %v190 = vpack.c.bf16 %v187, %v186
  %v191 = vpack.c.bf16 %v189, %v188
  %v194 = vunpack.c.l.b16 %v190
  %v195 = vunpack.c.h.b16 %v190
  %v196 = vunpack.c.l.b16 %v191
  %v197 = vunpack.c.h.b16 %v191
  %v198 = vpack.c.b16 %v194, %v194
  %v199 = vpack.c.b16 %v195, %v195
  %v200 = vpack.c.b16 %v196, %v196
  %v201 = vpack.c.b16 %v197, %v197
  %vm206 = vcmask 60416
  %207 = vst.msk [vmem:[%s5] sm:$0xf] %vm206, %v198
  %208 = vst.msk [vmem:[%s5 + $0x4] sm:$0xf] %vm206, %v199
  %209 = vst.msk [vmem:[%s5 + $0x8] sm:$0xf] %vm206, %v200
  %210 = vst.msk [vmem:[%s5 + $0xc] sm:$0xf] %vm206, %v201
  // Predicated region
  $region22: #{swin_forward.20} parent=0 // pred_check
    _
  $region23: #{swin_forward.20} parent=0 // pred_check_branch
    %212 = sbr.rel (0) target = $region25
  $region24: #{swin_forward.20} parent=0 // pred_region
    _
  $region25: #{swin_forward.20} parent=0 // pred_fallthru
    _
  // Predicated region
  $region26: #{swin_forward.20} parent=0 // pred_check
    _
  $region27: #{swin_forward.20} parent=0 // pred_check_branch
    %214 = sbr.rel (0) target = $region29
  $region28: #{swin_forward.20} parent=0 // pred_region
    _
  $region29: #{swin_forward.20} parent=0 // pred_fallthru
    _

// kernel: swin_forward.22
$region0: #{swin_forward.22}
  #allocation0 [shape = 'u32[]', space=smem, size = 0x4, offset = 0x4, fixed_abs, tag = 'smem constant byte address 0x4 - core index']
  #allocation1 [shape = 'u32[144,128]{1,0:T(1,128)}', space=vmem, size = 0x12000, scoped, tag = 'internal scratch']
  %s0 = inlined_call_operand.vmem [shape: bf16[32,8], index: 0, kind: input, shape index: {}]
  %s1 = inlined_call_operand.vmem [shape: f32[1,8], index: 1, kind: input, shape index: {}]
  %s2 = inlined_call_operand.vmem [shape: f32[1,8], index: 2, kind: input, shape index: {}]
  %s3 = inlined_call_operand.vmem [shape: bf16[32,8], index: 3, kind: output, shape index: {}]
  %s4 = sld [smem:[#allocation0]]
  $region22: #{swin_forward.22} parent=0
    _
  %s6 = ssub.s32 1, %s4
  %s7 = scalar_select 0, %s6, %s4
  // Predicated region
  $region2: #{swin_forward.22} parent=0 // pred_check
    _
  $region3: #{swin_forward.22} parent=0 // pred_check_branch
    %9 = sbr.rel (0) target = $region5
  $region4: #{swin_forward.22} parent=0 // pred_region
    _
  $region5: #{swin_forward.22} parent=0 // pred_fallthru
    _
  // Predicated region
  $region6: #{swin_forward.22} parent=0 // pred_check
    _
  $region7: #{swin_forward.22} parent=0 // pred_check_branch
    %11 = sbr.rel (0) target = $region9
  $region8: #{swin_forward.22} parent=0 // pred_region
    _
  $region9: #{swin_forward.22} parent=0 // pred_fallthru
    _
  // Predicated region
  $region10: #{swin_forward.22} parent=0 // pred_check
    _
  $region11: #{swin_forward.22} parent=0 // pred_check_branch
    %13 = sbr.rel (0) target = $region13
  $region12: #{swin_forward.22} parent=0 // pred_region
    _
  $region13: #{swin_forward.22} parent=0 // pred_fallthru
    _
  %v14 = vld [vmem:[%s0] sm:$0xf]
  %v15 = vld [vmem:[%s0 + $0x4] sm:$0xf]
  %v16 = vld [vmem:[%s0 + $0x8] sm:$0xf]
  %v17 = vld [vmem:[%s0 + $0xc] sm:$0xf]
  %v18 = vunpack.c.l.bf16 %v14
  %v19 = vunpack.c.l.bf16 %v15
  %v20 = vunpack.c.l.bf16 %v16
  %v21 = vunpack.c.l.bf16 %v17
  %vm22 = vcmask 64512
  %v23 = vsel %vm22, %v18, 0.0
  %24 = vadd.xlane.f32.xlu0 %v23
  %v25 = vpop.xlane.xlu0 %24
  %v26 = vsel %vm22, %v19, 0.0
  %27 = vadd.xlane.f32.xlu0 %v26
  %v28 = vpop.xlane.xlu0 %27
  %v29 = vsel %vm22, %v20, 0.0
  %30 = vadd.xlane.f32.xlu0 %v29
  %v31 = vpop.xlane.xlu0 %30
  %v32 = vsel %vm22, %v21, 0.0
  %33 = vadd.xlane.f32.xlu0 %v32
  %v34 = vpop.xlane.xlu0 %33
  %v35 = vrcp.pop 8.0
  %v36 = vmul.f32 %v25, %v35
  %v37 = vmul.f32 %v28, %v35
  %v38 = vmul.f32 %v31, %v35
  %v39 = vmul.f32 %v34, %v35
  %v40 = vsub.f32 %v18, %v36
  %v41 = vsub.f32 %v19, %v37
  %v42 = vsub.f32 %v20, %v38
  %v43 = vsub.f32 %v21, %v39
  %v44 = vmul.f32 %v40, %v40
  %v45 = vmul.f32 %v41, %v41
  %v46 = vmul.f32 %v42, %v42
  %v47 = vmul.f32 %v43, %v43
  %v48 = vsel %vm22, %v44, 0.0
  %49 = vadd.xlane.f32.xlu0 %v48
  %v50 = vpop.xlane.xlu0 %49
  %v51 = vsel %vm22, %v45, 0.0
  %52 = vadd.xlane.f32.xlu0 %v51
  %v53 = vpop.xlane.xlu0 %52
  %v54 = vsel %vm22, %v46, 0.0
  %55 = vadd.xlane.f32.xlu0 %v54
  %v56 = vpop.xlane.xlu0 %55
  %v57 = vsel %vm22, %v47, 0.0
  %58 = vadd.xlane.f32.xlu0 %v57
  %v59 = vpop.xlane.xlu0 %58
  %v60 = vmul.f32 %v50, %v35
  %v61 = vmul.f32 %v53, %v35
  %v62 = vmul.f32 %v56, %v35
  %v63 = vmul.f32 %v59, %v35
  %v64 = vadd.f32 %v60, 1e-05
  %v65 = vadd.f32 %v61, 1e-05
  %v66 = vadd.f32 %v62, 1e-05
  %v67 = vadd.f32 %v63, 1e-05
  %v68 = vrsqrt.pop %v64
  %v69 = vrsqrt.pop %v65
  %v70 = vrsqrt.pop %v66
  %v71 = vrsqrt.pop %v67
  %v72 = vmul.f32 %v40, %v68
  %v73 = vmul.f32 %v41, %v69
  %v74 = vmul.f32 %v42, %v70
  %v75 = vmul.f32 %v43, %v71
  %v76 = vld [vmem:[%s1] sm:$0x1]
  %v78 = vlaneseq
  %v79 = vshrl.u32 %v78, 7
  %v80 = vsub.s32 0, %v79
  %v81 = vrot.slane %v76, %v80
  %v83 = vmul.f32 %v72, %v81
  %v84 = vmul.f32 %v73, %v81
  %v85 = vmul.f32 %v74, %v81
  %v86 = vmul.f32 %v75, %v81
  %v87 = vadd.f32 %v18, %v83
  %v88 = vadd.f32 %v19, %v84
  %v89 = vadd.f32 %v20, %v85
  %v90 = vadd.f32 %v21, %v86
  %v91 = vld [vmem:[%s2] sm:$0x1]
  %v93 = vlaneseq
  %v94 = vshrl.u32 %v93, 7
  %v95 = vsub.s32 0, %v94
  %v96 = vrot.slane %v91, %v95
  %v98 = vadd.f32 %v87, %v96
  %v99 = vadd.f32 %v88, %v96
  %v100 = vadd.f32 %v89, %v96
  %v101 = vadd.f32 %v90, %v96
  %v102 = vpack.c.bf16 %v99, %v98
  %v103 = vpack.c.bf16 %v101, %v100
  %v106 = vunpack.c.l.b16 %v102
  %v107 = vunpack.c.h.b16 %v102
  %v108 = vunpack.c.l.b16 %v103
  %v109 = vunpack.c.h.b16 %v103
  %v110 = vpack.c.b16 %v106, %v106
  %v111 = vpack.c.b16 %v107, %v107
  %v112 = vpack.c.b16 %v108, %v108
  %v113 = vpack.c.b16 %v109, %v109
  %vm118 = vcmask 60416
  %119 = vst.msk [vmem:[%s3] sm:$0xf] %vm118, %v110
  %120 = vst.msk [vmem:[%s3 + $0x4] sm:$0xf] %vm118, %v111
  %121 = vst.msk [vmem:[%s3 + $0x8] sm:$0xf] %vm118, %v112
  %122 = vst.msk [vmem:[%s3 + $0xc] sm:$0xf] %vm118, %v113
  // Predicated region
  $region14: #{swin_forward.22} parent=0 // pred_check
    _
  $region15: #{swin_forward.22} parent=0 // pred_check_branch
    %124 = sbr.rel (0) target = $region17
  $region16: #{swin_forward.22} parent=0 // pred_region
    _
  $region17: #{swin_forward.22} parent=0 // pred_fallthru
    _
  // Predicated region
  $region18: #{swin_forward.22} parent=0 // pred_check
    _
  $region19: #{swin_forward.22} parent=0 // pred_check_branch
    %126 = sbr.rel (0) target = $region21
  $region20: #{swin_forward.22} parent=0 // pred_region
    _
  $region21: #{swin_forward.22} parent=0 // pred_fallthru
    _

// kernel: swin_forward.23
$region0: #{swin_forward.23}
  #allocation0 [shape = 'u32[]', space=smem, size = 0x4, offset = 0x4, fixed_abs, tag = 'smem constant byte address 0x4 - core index']
  #allocation1 [shape = 'u32[144,128]{1,0:T(1,128)}', space=vmem, size = 0x12000, scoped, tag = 'internal scratch']
  %s0 = inlined_call_operand.vmem [shape: bf16[32,8], index: 0, kind: input, shape index: {}]
  %s1 = inlined_call_operand.vmem [shape: f32[1,8], index: 1, kind: input, shape index: {}]
  %s2 = inlined_call_operand.vmem [shape: f32[1,8], index: 2, kind: input, shape index: {}]
  %s3 = inlined_call_operand.vmem [shape: bf16[8,32], index: 3, kind: input, shape index: {}]
  %s4 = inlined_call_operand.vmem [shape: f32[1,32], index: 4, kind: input, shape index: {}]
  %s5 = inlined_call_operand.vmem [shape: bf16[32,32], index: 5, kind: output, shape index: {}]
  %s6 = sld [smem:[#allocation0]]
  $region30: #{swin_forward.23} parent=0
    _
  %s8 = ssub.s32 1, %s6
  %s9 = scalar_select 0, %s8, %s6
  // Predicated region
  $region2: #{swin_forward.23} parent=0 // pred_check
    _
  $region3: #{swin_forward.23} parent=0 // pred_check_branch
    %11 = sbr.rel (0) target = $region5
  $region4: #{swin_forward.23} parent=0 // pred_region
    _
  $region5: #{swin_forward.23} parent=0 // pred_fallthru
    _
  // Predicated region
  $region6: #{swin_forward.23} parent=0 // pred_check
    _
  $region7: #{swin_forward.23} parent=0 // pred_check_branch
    %13 = sbr.rel (0) target = $region9
  $region8: #{swin_forward.23} parent=0 // pred_region
    _
  $region9: #{swin_forward.23} parent=0 // pred_fallthru
    _
  // Predicated region
  $region10: #{swin_forward.23} parent=0 // pred_check
    _
  $region11: #{swin_forward.23} parent=0 // pred_check_branch
    %15 = sbr.rel (0) target = $region13
  $region12: #{swin_forward.23} parent=0 // pred_region
    _
  $region13: #{swin_forward.23} parent=0 // pred_fallthru
    _
  // Predicated region
  $region14: #{swin_forward.23} parent=0 // pred_check
    _
  $region15: #{swin_forward.23} parent=0 // pred_check_branch
    %17 = sbr.rel (0) target = $region17
  $region16: #{swin_forward.23} parent=0 // pred_region
    _
  $region17: #{swin_forward.23} parent=0 // pred_fallthru
    _
  // Predicated region
  $region18: #{swin_forward.23} parent=0 // pred_check
    _
  $region19: #{swin_forward.23} parent=0 // pred_check_branch
    %19 = sbr.rel (0) target = $region21
  $region20: #{swin_forward.23} parent=0 // pred_region
    _
  $region21: #{swin_forward.23} parent=0 // pred_fallthru
    _
  %v21 = vld [vmem:[%s0] sm:$0xf]
  %v22 = vld [vmem:[%s0 + $0x4] sm:$0xf]
  %v23 = vld [vmem:[%s0 + $0x8] sm:$0xf]
  %v24 = vld [vmem:[%s0 + $0xc] sm:$0xf]
  %v25 = vunpack.c.l.bf16 %v21
  %v26 = vunpack.c.l.bf16 %v22
  %v27 = vunpack.c.l.bf16 %v23
  %v28 = vunpack.c.l.bf16 %v24
  %vm29 = vcmask 64512
  %v30 = vsel %vm29, %v25, 0.0
  %31 = vadd.xlane.f32.xlu0 %v30
  %v32 = vpop.xlane.xlu0 %31
  %v33 = vsel %vm29, %v26, 0.0
  %34 = vadd.xlane.f32.xlu0 %v33
  %v35 = vpop.xlane.xlu0 %34
  %v36 = vsel %vm29, %v27, 0.0
  %37 = vadd.xlane.f32.xlu0 %v36
  %v38 = vpop.xlane.xlu0 %37
  %v39 = vsel %vm29, %v28, 0.0
  %40 = vadd.xlane.f32.xlu0 %v39
  %v41 = vpop.xlane.xlu0 %40
  %v42 = vrcp.pop 8.0
  %v43 = vmul.f32 %v32, %v42
  %v44 = vmul.f32 %v35, %v42
  %v45 = vmul.f32 %v38, %v42
  %v46 = vmul.f32 %v41, %v42
  %v47 = vsub.f32 %v25, %v43
  %v48 = vsub.f32 %v26, %v44
  %v49 = vsub.f32 %v27, %v45
  %v50 = vsub.f32 %v28, %v46
  %v51 = vmul.f32 %v47, %v47
  %v52 = vmul.f32 %v48, %v48
  %v53 = vmul.f32 %v49, %v49
  %v54 = vmul.f32 %v50, %v50
  %v55 = vsel %vm29, %v51, 0.0
  %56 = vadd.xlane.f32.xlu0 %v55
  %v57 = vpop.xlane.xlu0 %56
  %v58 = vsel %vm29, %v52, 0.0
  %59 = vadd.xlane.f32.xlu0 %v58
  %v60 = vpop.xlane.xlu0 %59
  %v61 = vsel %vm29, %v53, 0.0
  %62 = vadd.xlane.f32.xlu0 %v61
  %v63 = vpop.xlane.xlu0 %62
  %v64 = vsel %vm29, %v54, 0.0
  %65 = vadd.xlane.f32.xlu0 %v64
  %v66 = vpop.xlane.xlu0 %65
  %v67 = vmul.f32 %v57, %v42
  %v68 = vmul.f32 %v60, %v42
  %v69 = vmul.f32 %v63, %v42
  %v70 = vmul.f32 %v66, %v42
  %v71 = vadd.f32 %v67, 1e-05
  %v72 = vadd.f32 %v68, 1e-05
  %v73 = vadd.f32 %v69, 1e-05
  %v74 = vadd.f32 %v70, 1e-05
  %v75 = vrsqrt.pop %v71
  %v76 = vrsqrt.pop %v72
  %v77 = vrsqrt.pop %v73
  %v78 = vrsqrt.pop %v74
  %v79 = vmul.f32 %v47, %v75
  %v80 = vmul.f32 %v48, %v76
  %v81 = vmul.f32 %v49, %v77
  %v82 = vmul.f32 %v50, %v78
  %v83 = vld [vmem:[%s1] sm:$0x1]
  %v85 = vlaneseq
  %v86 = vshrl.u32 %v85, 7
  %v87 = vsub.s32 0, %v86
  %v88 = vrot.slane %v83, %v87
  %v90 = vmul.f32 %v79, %v88
  %v91 = vmul.f32 %v80, %v88
  %v92 = vmul.f32 %v81, %v88
  %v93 = vmul.f32 %v82, %v88
  %v94 = vld [vmem:[%s2] sm:$0x1]
  %v96 = vlaneseq
  %v97 = vshrl.u32 %v96, 7
  %v98 = vsub.s32 0, %v97
  %v99 = vrot.slane %v94, %v98
  %v101 = vadd.f32 %v90, %v99
  %v102 = vadd.f32 %v91, %v99
  %v103 = vadd.f32 %v92, %v99
  %v104 = vadd.f32 %v93, %v99
  %v105 = vpack.c.bf16 %v102, %v101
  %v106 = vpack.c.bf16 %v104, %v103
  %v107 = vld [vmem:[%s3] sm:$0xf]
  %v108 = vld [vmem:[%s4] sm:$0x1]
  %v110 = vlaneseq
  %v111 = vshrl.u32 %v110, 7
  %v112 = vsub.s32 0, %v111
  %v113 = vrot.slane %v108, %v112
  %v116 = vsel %vm29, %v105, 0
  %v119 = vsel %vm29, %v106, 0
  %vm121 = vcmask 1043456
  %v123 = vsel %vm121, %v107, 0
  %125 = vmatprep.subr.bf16.mxu0 0
  %126 = vmatpush1.bf16.msra.mxu0 %v123
  %127 = vmatprep.subr.bf16.mxu0 0
  %128 = vmatpush1.bf16.msra.mxu0 0
  %129 = vmatprep.subr.bf16.mxu0 0
  %130 = vmatpush1.bf16.msra.mxu0 0
  %131 = vmatprep.subr.bf16.mxu0 0
  %132 = vmatpush1.bf16.msra.mxu0 0
  %133 = vmatprep.subr.bf16.mxu0 0
  %134 = vmatpush1.bf16.msra.mxu0 0
  %135 = vmatprep.subr.bf16.mxu0 0
  %136 = vmatpush1.bf16.msra.mxu0 0
  %137 = vmatprep.subr.bf16.mxu0 0
  %138 = vmatpush1.bf16.msra.mxu0 0
  %139 = vmatprep.subr.bf16.mxu0 0
  %140 = vmatpush1.bf16.msra.mxu0 0
  %141 = vmatprep.subr.bf16.mxu0 0
  %142 = vmatpush1.bf16.msra.mxu0 0
  %143 = vmatprep.subr.bf16.mxu0 0
  %144 = vmatpush1.bf16.msra.mxu0 0
  %145 = vmatprep.subr.bf16.mxu0 0
  %146 = vmatpush1.bf16.msra.mxu0 0
  %147 = vmatprep.subr.bf16.mxu0 0
  %148 = vmatpush1.bf16.msra.mxu0 0
  %149 = vmatprep.subr.bf16.mxu0 0
  %150 = vmatpush1.bf16.msra.mxu0 0
  %151 = vmatprep.subr.bf16.mxu0 0
  %152 = vmatpush1.bf16.msra.mxu0 0
  %153 = vmatprep.subr.bf16.mxu0 0
  %154 = vmatpush1.bf16.msra.mxu0 0
  %155 = vmatprep.subr.bf16.mxu0 0
  %156 = vmatpush1.bf16.msra.mxu0 0
  %157 = vmatprep.mubr.bf16.mxu0 0
  %158 = vmatmul.mubr.bf16.gmra.mrb[0].mxu0 %v116
  %v159 = vpop.f32.mrb[0].mxu0
  %v160 = vadd.f32 %v113, %v159
  %v161 = vpop.f32.mrb[0].mxu0
  %v162 = vpop.f32.mrb[0].mxu0
  %v163 = vadd.f32 %v113, %v162
  %v164 = vpop.f32.mrb[0].mxu0
  %165 = vmatprep.mubr.bf16.mxu0 0
  %166 = vmatmul.mubr.bf16.gmra.mrb[0].mxu0 %v119
  %v167 = vpop.f32.mrb[0].mxu0
  %v168 = vadd.f32 %v113, %v167
  %v169 = vpop.f32.mrb[0].mxu0
  %v170 = vpop.f32.mrb[0].mxu0
  %v171 = vadd.f32 %v113, %v170
  %v172 = vpop.f32.mrb[0].mxu0
  %173 = vdwg.mxu0
  %v174 = vmul.f32 %v160, 0.5
  %v175 = vmul.f32 %v163, 0.5
  %v176 = vmul.f32 %v168, 0.5
  %v177 = vmul.f32 %v171, 0.5
  %v178 = vmul.f32 %v160, 0.70710677
  %v179 = vmul.f32 %v163, 0.70710677
  %v180 = vmul.f32 %v168, 0.70710677
  %v181 = vmul.f32 %v171, 0.70710677
  %v182 = verf.f32.pop %v178
  %v183 = verf.f32.pop %v179
  %v184 = verf.f32.pop %v180
  %v185 = verf.f32.pop %v181
  %v186 = vadd.f32 %v182, 1.0
  %v187 = vadd.f32 %v183, 1.0
  %v188 = vadd.f32 %v184, 1.0
  %v189 = vadd.f32 %v185, 1.0
  %v190 = vmul.f32 %v174, %v186
  %v191 = vmul.f32 %v175, %v187
  %v192 = vmul.f32 %v176, %v188
  %v193 = vmul.f32 %v177, %v189
  %v194 = vpack.c.bf16 %v191, %v190
  %v195 = vpack.c.bf16 %v193, %v192
  %v198 = vunpack.c.l.b16 %v194
  %v199 = vunpack.c.h.b16 %v194
  %v200 = vunpack.c.l.b16 %v195
  %v201 = vunpack.c.h.b16 %v195
  %v202 = vpack.c.b16 %v198, %v198
  %v203 = vpack.c.b16 %v199, %v199
  %v204 = vpack.c.b16 %v200, %v200
  %v205 = vpack.c.b16 %v201, %v201
  %vm210 = vcmask 257024
  %211 = vst.msk [vmem:[%s5] sm:$0xf] %vm210, %v202
  %212 = vst.msk [vmem:[%s5 + $0x4] sm:$0xf] %vm210, %v203
  %213 = vst.msk [vmem:[%s5 + $0x8] sm:$0xf] %vm210, %v204
  %214 = vst.msk [vmem:[%s5 + $0xc] sm:$0xf] %vm210, %v205
  // Predicated region
  $region22: #{swin_forward.23} parent=0 // pred_check
    _
  $region23: #{swin_forward.23} parent=0 // pred_check_branch
    %216 = sbr.rel (0) target = $region25
  $region24: #{swin_forward.23} parent=0 // pred_region
    _
  $region25: #{swin_forward.23} parent=0 // pred_fallthru
    _
  // Predicated region
  $region26: #{swin_forward.23} parent=0 // pred_check
    _
  $region27: #{swin_forward.23} parent=0 // pred_check_branch
    %218 = sbr.rel (0) target = $region29
  $region28: #{swin_forward.23} parent=0 // pred_region
    _
  $region29: #{swin_forward.23} parent=0 // pred_fallthru
    _

// kernel: swin_forward.24
$region0: #{swin_forward.24}
  #allocation0 [shape = 'u32[]', space=smem, size = 0x4, offset = 0x4, fixed_abs, tag = 'smem constant byte address 0x4 - core index']
  #allocation1 [shape = 'u32[144,128]{1,0:T(1,128)}', space=vmem, size = 0x12000, scoped, tag = 'internal scratch']
  %s0 = inlined_call_operand.vmem [shape: bf16[32,32], index: 0, kind: input, shape index: {}]
  %s1 = inlined_call_operand.vmem [shape: bf16[32,8], index: 1, kind: input, shape index: {}]
  %s2 = inlined_call_operand.vmem [shape: bf16[32,8], index: 2, kind: input, shape index: {}]
  %s3 = inlined_call_operand.vmem [shape: f32[1,8], index: 3, kind: input, shape index: {}]
  %s4 = inlined_call_operand.vmem [shape: bf16[32,8], index: 4, kind: output, shape index: {}]
  %s5 = sld [smem:[#allocation0]]
  $region26: #{swin_forward.24} parent=0
    _
  %s7 = ssub.s32 1, %s5
  %s8 = scalar_select 0, %s7, %s5
  // Predicated region
  $region2: #{swin_forward.24} parent=0 // pred_check
    _
  $region3: #{swin_forward.24} parent=0 // pred_check_branch
    %10 = sbr.rel (0) target = $region5
  $region4: #{swin_forward.24} parent=0 // pred_region
    _
  $region5: #{swin_forward.24} parent=0 // pred_fallthru
    _
  // Predicated region
  $region6: #{swin_forward.24} parent=0 // pred_check
    _
  $region7: #{swin_forward.24} parent=0 // pred_check_branch
    %12 = sbr.rel (0) target = $region9
  $region8: #{swin_forward.24} parent=0 // pred_region
    _
  $region9: #{swin_forward.24} parent=0 // pred_fallthru
    _
  // Predicated region
  $region10: #{swin_forward.24} parent=0 // pred_check
    _
  $region11: #{swin_forward.24} parent=0 // pred_check_branch
    %14 = sbr.rel (0) target = $region13
  $region12: #{swin_forward.24} parent=0 // pred_region
    _
  $region13: #{swin_forward.24} parent=0 // pred_fallthru
    _
  // Predicated region
  $region14: #{swin_forward.24} parent=0 // pred_check
    _
  $region15: #{swin_forward.24} parent=0 // pred_check_branch
    %16 = sbr.rel (0) target = $region17
  $region16: #{swin_forward.24} parent=0 // pred_region
    _
  $region17: #{swin_forward.24} parent=0 // pred_fallthru
    _
  %v18 = vld [vmem:[%s1] sm:$0xf]
  %v19 = vld [vmem:[%s1 + $0x4] sm:$0xf]
  %v20 = vld [vmem:[%s1 + $0x8] sm:$0xf]
  %v21 = vld [vmem:[%s1 + $0xc] sm:$0xf]
  %v22 = vunpack.c.l.bf16 %v18
  %v23 = vunpack.c.l.bf16 %v19
  %v24 = vunpack.c.l.bf16 %v20
  %v25 = vunpack.c.l.bf16 %v21
  %v26 = vld [vmem:[%s0] sm:$0xf]
  %v27 = vld [vmem:[%s0 + $0x4] sm:$0xf]
  %v28 = vld [vmem:[%s0 + $0x8] sm:$0xf]
  %v29 = vld [vmem:[%s0 + $0xc] sm:$0xf]
  %v30 = vld [vmem:[%s2] sm:$0xf]
  %v31 = vld [vmem:[%s2 + $0x4] sm:$0xf]
  %v32 = vld [vmem:[%s2 + $0x8] sm:$0xf]
  %v33 = vld [vmem:[%s2 + $0xc] sm:$0xf]
  %v38 = vunpack.c.l.b16 %v26
  %v39 = vunpack.c.l.b16 %v27
  %v40 = vunpack.c.l.b16 %v28
  %v41 = vunpack.c.l.b16 %v29
  %v42 = vpack.c.b16 %v39, %v38
  %v43 = vpack.c.b16 %v41, %v40
  %v48 = vunpack.c.l.b16 %v30
  %v49 = vunpack.c.l.b16 %v31
  %v50 = vunpack.c.l.b16 %v32
  %v51 = vunpack.c.l.b16 %v33
  %v52 = vpack.c.b16 %v49, %v48
  %v53 = vpack.c.b16 %v51, %v50
  %vm56 = vcmask 261120
  %v58 = vsel %vm56, %v42, 0
  %v61 = vsel %vm56, %v43, 0
  %63 = vmatprep.subr.bf16.mxu0 0
  %64 = vmatpush1.bf16.msra.mxu0 %v52
  %65 = vmatprep.subr.bf16.mxu0 0
  %66 = vmatpush1.bf16.msra.mxu0 %v53
  %67 = vmatprep.subr.bf16.mxu0 0
  %68 = vmatpush1.bf16.msra.mxu0 0
  %69 = vmatprep.subr.bf16.mxu0 0
  %70 = vmatpush1.bf16.msra.mxu0 0
  %71 = vmatprep.subr.bf16.mxu0 0
  %72 = vmatpush1.bf16.msra.mxu0 0
  %73 = vmatprep.subr.bf16.mxu0 0
  %74 = vmatpush1.bf16.msra.mxu0 0
  %75 = vmatprep.subr.bf16.mxu0 0
  %76 = vmatpush1.bf16.msra.mxu0 0
  %77 = vmatprep.subr.bf16.mxu0 0
  %78 = vmatpush1.bf16.msra.mxu0 0
  %79 = vmatprep.subr.bf16.mxu0 0
  %80 = vmatpush1.bf16.msra.mxu0 0
  %81 = vmatprep.subr.bf16.mxu0 0
  %82 = vmatpush1.bf16.msra.mxu0 0
  %83 = vmatprep.subr.bf16.mxu0 0
  %84 = vmatpush1.bf16.msra.mxu0 0
  %85 = vmatprep.subr.bf16.mxu0 0
  %86 = vmatpush1.bf16.msra.mxu0 0
  %87 = vmatprep.subr.bf16.mxu0 0
  %88 = vmatpush1.bf16.msra.mxu0 0
  %89 = vmatprep.subr.bf16.mxu0 0
  %90 = vmatpush1.bf16.msra.mxu0 0
  %91 = vmatprep.subr.bf16.mxu0 0
  %92 = vmatpush1.bf16.msra.mxu0 0
  %93 = vmatprep.subr.bf16.mxu0 0
  %94 = vmatpush1.bf16.msra.mxu0 0
  %95 = vmatprep.mubr.bf16.mxu0 0
  %96 = vmatmul.mubr.bf16.gmra.mrb[0].mxu0 %v58
  %v97 = vpop.f32.mrb[0].mxu0
  %v98 = vadd.f32 0.0, %v97
  %v99 = vpop.f32.mrb[0].mxu0
  %v100 = vpop.f32.mrb[0].mxu0
  %v101 = vadd.f32 0.0, %v100
  %v102 = vpop.f32.mrb[0].mxu0
  %103 = vmatprep.mubr.bf16.mxu0 0
  %104 = vmatmul.mubr.bf16.gmra.mrb[0].mxu0 %v61
  %v105 = vpop.f32.mrb[0].mxu0
  %v106 = vadd.f32 0.0, %v105
  %v107 = vpop.f32.mrb[0].mxu0
  %v108 = vpop.f32.mrb[0].mxu0
  %v109 = vadd.f32 0.0, %v108
  %v110 = vpop.f32.mrb[0].mxu0
  %111 = vdwg.mxu0
  %v112 = vadd.f32 %v22, %v98
  %v113 = vadd.f32 %v23, %v101
  %v114 = vadd.f32 %v24, %v106
  %v115 = vadd.f32 %v25, %v109
  %v116 = vld [vmem:[%s3] sm:$0x1]
  %v118 = vlaneseq
  %v119 = vshrl.u32 %v118, 7
  %v120 = vsub.s32 0, %v119
  %v121 = vrot.slane %v116, %v120
  %v123 = vadd.f32 %v112, %v121
  %v124 = vadd.f32 %v113, %v121
  %v125 = vadd.f32 %v114, %v121
  %v126 = vadd.f32 %v115, %v121
  %v127 = vpack.c.bf16 %v124, %v123
  %v128 = vpack.c.bf16 %v126, %v125
  %v131 = vunpack.c.l.b16 %v127
  %v132 = vunpack.c.h.b16 %v127
  %v133 = vunpack.c.l.b16 %v128
  %v134 = vunpack.c.h.b16 %v128
  %v135 = vpack.c.b16 %v131, %v131
  %v136 = vpack.c.b16 %v132, %v132
  %v137 = vpack.c.b16 %v133, %v133
  %v138 = vpack.c.b16 %v134, %v134
  %vm143 = vcmask 60416
  %144 = vst.msk [vmem:[%s4] sm:$0xf] %vm143, %v135
  %145 = vst.msk [vmem:[%s4 + $0x4] sm:$0xf] %vm143, %v136
  %146 = vst.msk [vmem:[%s4 + $0x8] sm:$0xf] %vm143, %v137
  %147 = vst.msk [vmem:[%s4 + $0xc] sm:$0xf] %vm143, %v138
  // Predicated region
  $region18: #{swin_forward.24} parent=0 // pred_check
    _
  $region19: #{swin_forward.24} parent=0 // pred_check_branch
    %149 = sbr.rel (0) target = $region21
  $region20: #{swin_forward.24} parent=0 // pred_region
    _
  $region21: #{swin_forward.24} parent=0 // pred_fallthru
    _
  // Predicated region
  $region22: #{swin_forward.24} parent=0 // pred_check
    _
  $region23: #{swin_forward.24} parent=0 // pred_check_branch
    %151 = sbr.rel (0) target = $region25
  $region24: #{swin_forward.24} parent=0 // pred_region
    _
  $region25: #{swin_forward.24} parent=0 // pred_fallthru
    _

// kernel: swin_forward.21
$region0: #{swin_forward.21}
  #allocation0 [shape = 'u32[]', space=smem, size = 0x4, offset = 0x4, fixed_abs, tag = 'smem constant byte address 0x4 - core index']
  #allocation1 [shape = 'u32[144,128]{1,0:T(1,128)}', space=vmem, size = 0x12000, scoped, tag = 'internal scratch']
  %s0 = inlined_call_operand.vmem [shape: bf16[8,4,8], index: 0, kind: input, shape index: {}]
  %s1 = inlined_call_operand.vmem [shape: bf16[8,24], index: 1, kind: input, shape index: {}]
  %s2 = inlined_call_operand.vmem [shape: f32[1,24], index: 2, kind: input, shape index: {}]
  %s3 = inlined_call_operand.vmem [shape: f32[2,4,4], index: 3, kind: input, shape index: {}]
  %s4 = inlined_call_operand.vmem [shape: bf16[8,8], index: 4, kind: input, shape index: {}]
  %s5 = inlined_call_operand.vmem [shape: f32[1,8], index: 5, kind: input, shape index: {}]
  %s6 = inlined_call_operand.vmem [shape: bf16[8,4,8], index: 6, kind: output, shape index: {}]
  %s7 = sld [smem:[#allocation0]]
  $region34: #{swin_forward.21} parent=0
    _
  %s9 = ssub.s32 1, %s7
  %s10 = scalar_select 0, %s9, %s7
  // Predicated region
  $region2: #{swin_forward.21} parent=0 // pred_check
    _
  $region3: #{swin_forward.21} parent=0 // pred_check_branch
    %12 = sbr.rel (0) target = $region5
  $region4: #{swin_forward.21} parent=0 // pred_region
    _
  $region5: #{swin_forward.21} parent=0 // pred_fallthru
    _
  // Predicated region
  $region6: #{swin_forward.21} parent=0 // pred_check
    _
  $region7: #{swin_forward.21} parent=0 // pred_check_branch
    %14 = sbr.rel (0) target = $region9
  $region8: #{swin_forward.21} parent=0 // pred_region
    _
  $region9: #{swin_forward.21} parent=0 // pred_fallthru
    _
  // Predicated region
  $region10: #{swin_forward.21} parent=0 // pred_check
    _
  $region11: #{swin_forward.21} parent=0 // pred_check_branch
    %16 = sbr.rel (0) target = $region13
  $region12: #{swin_forward.21} parent=0 // pred_region
    _
  $region13: #{swin_forward.21} parent=0 // pred_fallthru
    _
  // Predicated region
  $region14: #{swin_forward.21} parent=0 // pred_check
    _
  $region15: #{swin_forward.21} parent=0 // pred_check_branch
    %18 = sbr.rel (0) target = $region17
  $region16: #{swin_forward.21} parent=0 // pred_region
    _
  $region17: #{swin_forward.21} parent=0 // pred_fallthru
    _
  // Predicated region
  $region18: #{swin_forward.21} parent=0 // pred_check
    _
  $region19: #{swin_forward.21} parent=0 // pred_check_branch
    %20 = sbr.rel (0) target = $region21
  $region20: #{swin_forward.21} parent=0 // pred_region
    _
  $region21: #{swin_forward.21} parent=0 // pred_fallthru
    _
  // Predicated region
  $region22: #{swin_forward.21} parent=0 // pred_check
    _
  $region23: #{swin_forward.21} parent=0 // pred_check_branch
    %22 = sbr.rel (0) target = $region25
  $region24: #{swin_forward.21} parent=0 // pred_region
    _
  $region25: #{swin_forward.21} parent=0 // pred_fallthru
    _
  %v24 = vld [vmem:[%s0] sm:$0x3]
  %v25 = vld [vmem:[%s0 + $0x2] sm:$0x3]
  %v26 = vld [vmem:[%s0 + $0x4] sm:$0x3]
  %v27 = vld [vmem:[%s0 + $0x6] sm:$0x3]
  %v28 = vld [vmem:[%s0 + $0x8] sm:$0x3]
  %v29 = vld [vmem:[%s0 + $0xa] sm:$0x3]
  %v30 = vld [vmem:[%s0 + $0xc] sm:$0x3]
  %v31 = vld [vmem:[%s0 + $0xe] sm:$0x3]
  %v32 = vld [vmem:[%s1] sm:$0xf]
  %v33 = vld [vmem:[%s2] sm:$0x1]
  %v35 = vlaneseq
  %v36 = vshrl.u32 %v35, 7
  %v37 = vsub.s32 0, %v36
  %v38 = vrot.slane %v33, %v37
  %v48 = vcombine.low %v24, %v25
  %v49 = vcombine.low %v26, %v27
  %v51 = vunpack.c.l.s4 1983009808
  %v52 = vunpack.c.0.s8 %v51
  %v53 = vlaneseq
  %v54 = vshrl.u32 %v53, 7
  %v55 = vsub.s32 %v52, %v54
  %v56 = vrot.slane %v48, %v55
  %v58 = vunpack.c.l.s4 1983009808
  %v59 = vunpack.c.0.s8 %v58
  %v60 = vlaneseq
  %v61 = vshrl.u32 %v60, 7
  %v62 = vsub.s32 %v59, %v61
  %v63 = vrot.slane %v49, %v62
  %v64 = vcombine.low %v56, %v63
  %v65 = vcombine.low %v28, %v29
  %v66 = vcombine.low %v30, %v31
  %v68 = vunpack.c.l.s4 1983009808
  %v69 = vunpack.c.0.s8 %v68
  %v70 = vlaneseq
  %v71 = vshrl.u32 %v70, 7
  %v72 = vsub.s32 %v69, %v71
  %v73 = vrot.slane %v65, %v72
  %v75 = vunpack.c.l.s4 1983009808
  %v76 = vunpack.c.0.s8 %v75
  %v77 = vlaneseq
  %v78 = vshrl.u32 %v77, 7
  %v79 = vsub.s32 %v76, %v78
  %v80 = vrot.slane %v66, %v79
  %v81 = vcombine.low %v73, %v80
  %vm82 = vcmask 64512
  %v84 = vsel %vm82, %v64, 0
  %v87 = vsel %vm82, %v81, 0
  %vm89 = vcmask 1043456
  %v91 = vsel %vm89, %v32, 0
  %93 = vmatprep.subr.bf16.mxu0 0
  %94 = vmatpush1.bf16.msra.mxu0 %v91
  %95 = vmatprep.subr.bf16.mxu0 0
  %96 = vmatpush1.bf16.msra.mxu0 0
  %97 = vmatprep.subr.bf16.mxu0 0
  %98 = vmatpush1.bf16.msra.mxu0 0
  %99 = vmatprep.subr.bf16.mxu0 0
  %100 = vmatpush1.bf16.msra.mxu0 0
  %101 = vmatprep.subr.bf16.mxu0 0
  %102 = vmatpush1.bf16.msra.mxu0 0
  %103 = vmatprep.subr.bf16.mxu0 0
  %104 = vmatpush1.bf16.msra.mxu0 0
  %105 = vmatprep.subr.bf16.mxu0 0
  %106 = vmatpush1.bf16.msra.mxu0 0
  %107 = vmatprep.subr.bf16.mxu0 0
  %108 = vmatpush1.bf16.msra.mxu0 0
  %109 = vmatprep.subr.bf16.mxu0 0
  %110 = vmatpush1.bf16.msra.mxu0 0
  %111 = vmatprep.subr.bf16.mxu0 0
  %112 = vmatpush1.bf16.msra.mxu0 0
  %113 = vmatprep.subr.bf16.mxu0 0
  %114 = vmatpush1.bf16.msra.mxu0 0
  %115 = vmatprep.subr.bf16.mxu0 0
  %116 = vmatpush1.bf16.msra.mxu0 0
  %117 = vmatprep.subr.bf16.mxu0 0
  %118 = vmatpush1.bf16.msra.mxu0 0
  %119 = vmatprep.subr.bf16.mxu0 0
  %120 = vmatpush1.bf16.msra.mxu0 0
  %121 = vmatprep.subr.bf16.mxu0 0
  %122 = vmatpush1.bf16.msra.mxu0 0
  %123 = vmatprep.subr.bf16.mxu0 0
  %124 = vmatpush1.bf16.msra.mxu0 0
  %125 = vmatprep.mubr.bf16.mxu0 0
  %126 = vmatmul.mubr.bf16.gmra.mrb[0].mxu0 %v84
  %v127 = vpop.f32.mrb[0].mxu0
  %v128 = vadd.f32 %v38, %v127
  %v129 = vpop.f32.mrb[0].mxu0
  %v130 = vpop.f32.mrb[0].mxu0
  %v131 = vadd.f32 %v38, %v130
  %v132 = vpop.f32.mrb[0].mxu0
  %133 = vmatprep.mubr.bf16.mxu0 0
  %134 = vmatmul.mubr.bf16.gmra.mrb[0].mxu0 %v87
  %v135 = vpop.f32.mrb[0].mxu0
  %v136 = vadd.f32 %v38, %v135
  %v137 = vpop.f32.mrb[0].mxu0
  %v138 = vpop.f32.mrb[0].mxu0
  %v139 = vadd.f32 %v38, %v138
  %v140 = vpop.f32.mrb[0].mxu0
  %141 = vdwg.mxu0
  %v146 = vcombine.high %v128, %v128
  %v147 = vcombine.high %v131, %v131
  %v148 = vcombine.high %v136, %v136
  %v149 = vcombine.high %v139, %v139
  %v154 = vpack.c.bf16 %v128, %v128
  %v155 = vpack.c.bf16 %v146, %v146
  %v156 = vpack.c.bf16 %v131, %v131
  %v157 = vpack.c.bf16 %v147, %v147
  %v158 = vpack.c.bf16 %v136, %v136
  %v159 = vpack.c.bf16 %v148, %v148
  %v160 = vpack.c.bf16 %v139, %v139
  %v161 = vpack.c.bf16 %v149, %v149
  %163 = vrot.lane.b32.xlu0 %v154, 120
  %v164 = vpop.permute.xlu0 %163
  %vm165 = vcmask 31744
  %v167 = vsel %vm165, %v154, 0
  %v170 = vsel %vm165, %v164, 0
  %172 = vmatprep.subr.bf16.mxu0 0
  %173 = vmatpush1.bf16.xpose.msra.mxu0 %v170
  %174 = vmatprep.subr.bf16.mxu0 0
  %175 = vmatpush1.bf16.xpose.msra.mxu0 0
  %176 = vmatprep.subr.bf16.mxu0 0
  %177 = vmatpush1.bf16.xpose.msra.mxu0 0
  %178 = vmatprep.subr.bf16.mxu0 0
  %179 = vmatpush1.bf16.xpose.msra.mxu0 0
  %180 = vmatprep.subr.bf16.mxu0 0
  %181 = vmatpush1.bf16.xpose.msra.mxu0 0
  %182 = vmatprep.subr.bf16.mxu0 0
  %183 = vmatpush1.bf16.xpose.msra.mxu0 0
  %184 = vmatprep.subr.bf16.mxu0 0
  %185 = vmatpush1.bf16.xpose.msra.mxu0 0
  %186 = vmatprep.subr.bf16.mxu0 0
  %187 = vmatpush1.bf16.xpose.msra.mxu0 0
  %188 = vmatprep.subr.bf16.mxu0 0
  %189 = vmatpush1.bf16.xpose.msra.mxu0 0
  %190 = vmatprep.subr.bf16.mxu0 0
  %191 = vmatpush1.bf16.xpose.msra.mxu0 0
  %192 = vmatprep.subr.bf16.mxu0 0
  %193 = vmatpush1.bf16.xpose.msra.mxu0 0
  %194 = vmatprep.subr.bf16.mxu0 0
  %195 = vmatpush1.bf16.xpose.msra.mxu0 0
  %196 = vmatprep.subr.bf16.mxu0 0
  %197 = vmatpush1.bf16.xpose.msra.mxu0 0
  %198 = vmatprep.subr.bf16.mxu0 0
  %199 = vmatpush1.bf16.xpose.msra.mxu0 0
  %200 = vmatprep.subr.bf16.mxu0 0
  %201 = vmatpush1.bf16.xpose.msra.mxu0 0
  %202 = vmatprep.subr.bf16.mxu0 0
  %203 = vmatpush1.bf16.xpose.msra.mxu0 0
  %204 = vmatprep.mubr.bf16.mxu0 0
  %205 = vmatmul.mubr.bf16.gmra.mrb[0].mxu0 %v167
  %v206 = vpop.f32.mrb[0].mxu0
  %v207 = vadd.f32 0.0, %v206
  %v208 = vpop.f32.mrb[0].mxu0
  %v209 = vpop.f32.mrb[0].mxu0
  %v210 = vpop.f32.mrb[0].mxu0
  %211 = vdwg.mxu0
  %213 = vrot.lane.b32.xlu0 %v155, 120
  %v214 = vpop.permute.xlu0 %213
  %v216 = vsel %vm165, %v155, 0
  %v219 = vsel %vm165, %v214, 0
  %221 = vmatprep.subr.bf16.mxu0 0
  %222 = vmatpush1.bf16.xpose.msra.mxu0 %v219
  %223 = vmatprep.subr.bf16.mxu0 0
  %224 = vmatpush1.bf16.xpose.msra.mxu0 0
  %225 = vmatprep.subr.bf16.mxu0 0
  %226 = vmatpush1.bf16.xpose.msra.mxu0 0
  %227 = vmatprep.subr.bf16.mxu0 0
  %228 = vmatpush1.bf16.xpose.msra.mxu0 0
  %229 = vmatprep.subr.bf16.mxu0 0
  %230 = vmatpush1.bf16.xpose.msra.mxu0 0
  %231 = vmatprep.subr.bf16.mxu0 0
  %232 = vmatpush1.bf16.xpose.msra.mxu0 0
  %233 = vmatprep.subr.bf16.mxu0 0
  %234 = vmatpush1.bf16.xpose.msra.mxu0 0
  %235 = vmatprep.subr.bf16.mxu0 0
  %236 = vmatpush1.bf16.xpose.msra.mxu0 0
  %237 = vmatprep.subr.bf16.mxu0 0
  %238 = vmatpush1.bf16.xpose.msra.mxu0 0
  %239 = vmatprep.subr.bf16.mxu0 0
  %240 = vmatpush1.bf16.xpose.msra.mxu0 0
  %241 = vmatprep.subr.bf16.mxu0 0
  %242 = vmatpush1.bf16.xpose.msra.mxu0 0
  %243 = vmatprep.subr.bf16.mxu0 0
  %244 = vmatpush1.bf16.xpose.msra.mxu0 0
  %245 = vmatprep.subr.bf16.mxu0 0
  %246 = vmatpush1.bf16.xpose.msra.mxu0 0
  %247 = vmatprep.subr.bf16.mxu0 0
  %248 = vmatpush1.bf16.xpose.msra.mxu0 0
  %249 = vmatprep.subr.bf16.mxu0 0
  %250 = vmatpush1.bf16.xpose.msra.mxu0 0
  %251 = vmatprep.subr.bf16.mxu0 0
  %252 = vmatpush1.bf16.xpose.msra.mxu0 0
  %253 = vmatprep.mubr.bf16.mxu0 0
  %254 = vmatmul.mubr.bf16.gmra.mrb[0].mxu0 %v216
  %v255 = vpop.f32.mrb[0].mxu0
  %v256 = vadd.f32 0.0, %v255
  %v257 = vpop.f32.mrb[0].mxu0
  %v258 = vpop.f32.mrb[0].mxu0
  %v259 = vpop.f32.mrb[0].mxu0
  %260 = vdwg.mxu0
  %262 = vrot.lane.b32.xlu0 %v156, 120
  %v263 = vpop.permute.xlu0 %262
  %v265 = vsel %vm165, %v156, 0
  %v268 = vsel %vm165, %v263, 0
  %270 = vmatprep.subr.bf16.mxu0 0
  %271 = vmatpush1.bf16.xpose.msra.mxu0 %v268
  %272 = vmatprep.subr.bf16.mxu0 0
  %273 = vmatpush1.bf16.xpose.msra.mxu0 0
  %274 = vmatprep.subr.bf16.mxu0 0
  %275 = vmatpush1.bf16.xpose.msra.mxu0 0
  %276 = vmatprep.subr.bf16.mxu0 0
  %277 = vmatpush1.bf16.xpose.msra.mxu0 0
  %278 = vmatprep.subr.bf16.mxu0 0
  %279 = vmatpush1.bf16.xpose.msra.mxu0 0
  %280 = vmatprep.subr.bf16.mxu0 0
  %281 = vmatpush1.bf16.xpose.msra.mxu0 0
  %282 = vmatprep.subr.bf16.mxu0 0
  %283 = vmatpush1.bf16.xpose.msra.mxu0 0
  %284 = vmatprep.subr.bf16.mxu0 0
  %285 = vmatpush1.bf16.xpose.msra.mxu0 0
  %286 = vmatprep.subr.bf16.mxu0 0
  %287 = vmatpush1.bf16.xpose.msra.mxu0 0
  %288 = vmatprep.subr.bf16.mxu0 0
  %289 = vmatpush1.bf16.xpose.msra.mxu0 0
  %290 = vmatprep.subr.bf16.mxu0 0
  %291 = vmatpush1.bf16.xpose.msra.mxu0 0
  %292 = vmatprep.subr.bf16.mxu0 0
  %293 = vmatpush1.bf16.xpose.msra.mxu0 0
  %294 = vmatprep.subr.bf16.mxu0 0
  %295 = vmatpush1.bf16.xpose.msra.mxu0 0
  %296 = vmatprep.subr.bf16.mxu0 0
  %297 = vmatpush1.bf16.xpose.msra.mxu0 0
  %298 = vmatprep.subr.bf16.mxu0 0
  %299 = vmatpush1.bf16.xpose.msra.mxu0 0
  %300 = vmatprep.subr.bf16.mxu0 0
  %301 = vmatpush1.bf16.xpose.msra.mxu0 0
  %302 = vmatprep.mubr.bf16.mxu0 0
  %303 = vmatmul.mubr.bf16.gmra.mrb[0].mxu0 %v265
  %v304 = vpop.f32.mrb[0].mxu0
  %v305 = vadd.f32 0.0, %v304
  %v306 = vpop.f32.mrb[0].mxu0
  %v307 = vpop.f32.mrb[0].mxu0
  %v308 = vpop.f32.mrb[0].mxu0
  %309 = vdwg.mxu0
  %311 = vrot.lane.b32.xlu0 %v157, 120
  %v312 = vpop.permute.xlu0 %311
  %v314 = vsel %vm165, %v157, 0
  %v317 = vsel %vm165, %v312, 0
  %319 = vmatprep.subr.bf16.mxu0 0
  %320 = vmatpush1.bf16.xpose.msra.mxu0 %v317
  %321 = vmatprep.subr.bf16.mxu0 0
  %322 = vmatpush1.bf16.xpose.msra.mxu0 0
  %323 = vmatprep.subr.bf16.mxu0 0
  %324 = vmatpush1.bf16.xpose.msra.mxu0 0
  %325 = vmatprep.subr.bf16.mxu0 0
  %326 = vmatpush1.bf16.xpose.msra.mxu0 0
  %327 = vmatprep.subr.bf16.mxu0 0
  %328 = vmatpush1.bf16.xpose.msra.mxu0 0
  %329 = vmatprep.subr.bf16.mxu0 0
  %330 = vmatpush1.bf16.xpose.msra.mxu0 0
  %331 = vmatprep.subr.bf16.mxu0 0
  %332 = vmatpush1.bf16.xpose.msra.mxu0 0
  %333 = vmatprep.subr.bf16.mxu0 0
  %334 = vmatpush1.bf16.xpose.msra.mxu0 0
  %335 = vmatprep.subr.bf16.mxu0 0
  %336 = vmatpush1.bf16.xpose.msra.mxu0 0
  %337 = vmatprep.subr.bf16.mxu0 0
  %338 = vmatpush1.bf16.xpose.msra.mxu0 0
  %339 = vmatprep.subr.bf16.mxu0 0
  %340 = vmatpush1.bf16.xpose.msra.mxu0 0
  %341 = vmatprep.subr.bf16.mxu0 0
  %342 = vmatpush1.bf16.xpose.msra.mxu0 0
  %343 = vmatprep.subr.bf16.mxu0 0
  %344 = vmatpush1.bf16.xpose.msra.mxu0 0
  %345 = vmatprep.subr.bf16.mxu0 0
  %346 = vmatpush1.bf16.xpose.msra.mxu0 0
  %347 = vmatprep.subr.bf16.mxu0 0
  %348 = vmatpush1.bf16.xpose.msra.mxu0 0
  %349 = vmatprep.subr.bf16.mxu0 0
  %350 = vmatpush1.bf16.xpose.msra.mxu0 0
  %351 = vmatprep.mubr.bf16.mxu0 0
  %352 = vmatmul.mubr.bf16.gmra.mrb[0].mxu0 %v314
  %v353 = vpop.f32.mrb[0].mxu0
  %v354 = vadd.f32 0.0, %v353
  %v355 = vpop.f32.mrb[0].mxu0
  %v356 = vpop.f32.mrb[0].mxu0
  %v357 = vpop.f32.mrb[0].mxu0
  %358 = vdwg.mxu0
  %360 = vrot.lane.b32.xlu0 %v158, 120
  %v361 = vpop.permute.xlu0 %360
  %v363 = vsel %vm165, %v158, 0
  %v366 = vsel %vm165, %v361, 0
  %368 = vmatprep.subr.bf16.mxu0 0
  %369 = vmatpush1.bf16.xpose.msra.mxu0 %v366
  %370 = vmatprep.subr.bf16.mxu0 0
  %371 = vmatpush1.bf16.xpose.msra.mxu0 0
  %372 = vmatprep.subr.bf16.mxu0 0
  %373 = vmatpush1.bf16.xpose.msra.mxu0 0
  %374 = vmatprep.subr.bf16.mxu0 0
  %375 = vmatpush1.bf16.xpose.msra.mxu0 0
  %376 = vmatprep.subr.bf16.mxu0 0
  %377 = vmatpush1.bf16.xpose.msra.mxu0 0
  %378 = vmatprep.subr.bf16.mxu0 0
  %379 = vmatpush1.bf16.xpose.msra.mxu0 0
  %380 = vmatprep.subr.bf16.mxu0 0
  %381 = vmatpush1.bf16.xpose.msra.mxu0 0
  %382 = vmatprep.subr.bf16.mxu0 0
  %383 = vmatpush1.bf16.xpose.msra.mxu0 0
  %384 = vmatprep.subr.bf16.mxu0 0
  %385 = vmatpush1.bf16.xpose.msra.mxu0 0
  %386 = vmatprep.subr.bf16.mxu0 0
  %387 = vmatpush1.bf16.xpose.msra.mxu0 0
  %388 = vmatprep.subr.bf16.mxu0 0
  %389 = vmatpush1.bf16.xpose.msra.mxu0 0
  %390 = vmatprep.subr.bf16.mxu0 0
  %391 = vmatpush1.bf16.xpose.msra.mxu0 0
  %392 = vmatprep.subr.bf16.mxu0 0
  %393 = vmatpush1.bf16.xpose.msra.mxu0 0
  %394 = vmatprep.subr.bf16.mxu0 0
  %395 = vmatpush1.bf16.xpose.msra.mxu0 0
  %396 = vmatprep.subr.bf16.mxu0 0
  %397 = vmatpush1.bf16.xpose.msra.mxu0 0
  %398 = vmatprep.subr.bf16.mxu0 0
  %399 = vmatpush1.bf16.xpose.msra.mxu0 0
  %400 = vmatprep.mubr.bf16.mxu0 0
  %401 = vmatmul.mubr.bf16.gmra.mrb[0].mxu0 %v363
  %v402 = vpop.f32.mrb[0].mxu0
  %v403 = vadd.f32 0.0, %v402
  %v404 = vpop.f32.mrb[0].mxu0
  %v405 = vpop.f32.mrb[0].mxu0
  %v406 = vpop.f32.mrb[0].mxu0
  %407 = vdwg.mxu0
  %409 = vrot.lane.b32.xlu0 %v159, 120
  %v410 = vpop.permute.xlu0 %409
  %v412 = vsel %vm165, %v159, 0
  %v415 = vsel %vm165, %v410, 0
  %417 = vmatprep.subr.bf16.mxu0 0
  %418 = vmatpush1.bf16.xpose.msra.mxu0 %v415
  %419 = vmatprep.subr.bf16.mxu0 0
  %420 = vmatpush1.bf16.xpose.msra.mxu0 0
  %421 = vmatprep.subr.bf16.mxu0 0
  %422 = vmatpush1.bf16.xpose.msra.mxu0 0
  %423 = vmatprep.subr.bf16.mxu0 0
  %424 = vmatpush1.bf16.xpose.msra.mxu0 0
  %425 = vmatprep.subr.bf16.mxu0 0
  %426 = vmatpush1.bf16.xpose.msra.mxu0 0
  %427 = vmatprep.subr.bf16.mxu0 0
  %428 = vmatpush1.bf16.xpose.msra.mxu0 0
  %429 = vmatprep.subr.bf16.mxu0 0
  %430 = vmatpush1.bf16.xpose.msra.mxu0 0
  %431 = vmatprep.subr.bf16.mxu0 0
  %432 = vmatpush1.bf16.xpose.msra.mxu0 0
  %433 = vmatprep.subr.bf16.mxu0 0
  %434 = vmatpush1.bf16.xpose.msra.mxu0 0
  %435 = vmatprep.subr.bf16.mxu0 0
  %436 = vmatpush1.bf16.xpose.msra.mxu0 0
  %437 = vmatprep.subr.bf16.mxu0 0
  %438 = vmatpush1.bf16.xpose.msra.mxu0 0
  %439 = vmatprep.subr.bf16.mxu0 0
  %440 = vmatpush1.bf16.xpose.msra.mxu0 0
  %441 = vmatprep.subr.bf16.mxu0 0
  %442 = vmatpush1.bf16.xpose.msra.mxu0 0
  %443 = vmatprep.subr.bf16.mxu0 0
  %444 = vmatpush1.bf16.xpose.msra.mxu0 0
  %445 = vmatprep.subr.bf16.mxu0 0
  %446 = vmatpush1.bf16.xpose.msra.mxu0 0
  %447 = vmatprep.subr.bf16.mxu0 0
  %448 = vmatpush1.bf16.xpose.msra.mxu0 0
  %449 = vmatprep.mubr.bf16.mxu0 0
  %450 = vmatmul.mubr.bf16.gmra.mrb[0].mxu0 %v412
  %v451 = vpop.f32.mrb[0].mxu0
  %v452 = vadd.f32 0.0, %v451
  %v453 = vpop.f32.mrb[0].mxu0
  %v454 = vpop.f32.mrb[0].mxu0
  %v455 = vpop.f32.mrb[0].mxu0
  %456 = vdwg.mxu0
  %458 = vrot.lane.b32.xlu0 %v160, 120
  %v459 = vpop.permute.xlu0 %458
  %v461 = vsel %vm165, %v160, 0
  %v464 = vsel %vm165, %v459, 0
  %466 = vmatprep.subr.bf16.mxu0 0
  %467 = vmatpush1.bf16.xpose.msra.mxu0 %v464
  %468 = vmatprep.subr.bf16.mxu0 0
  %469 = vmatpush1.bf16.xpose.msra.mxu0 0
  %470 = vmatprep.subr.bf16.mxu0 0
  %471 = vmatpush1.bf16.xpose.msra.mxu0 0
  %472 = vmatprep.subr.bf16.mxu0 0
  %473 = vmatpush1.bf16.xpose.msra.mxu0 0
  %474 = vmatprep.subr.bf16.mxu0 0
  %475 = vmatpush1.bf16.xpose.msra.mxu0 0
  %476 = vmatprep.subr.bf16.mxu0 0
  %477 = vmatpush1.bf16.xpose.msra.mxu0 0
  %478 = vmatprep.subr.bf16.mxu0 0
  %479 = vmatpush1.bf16.xpose.msra.mxu0 0
  %480 = vmatprep.subr.bf16.mxu0 0
  %481 = vmatpush1.bf16.xpose.msra.mxu0 0
  %482 = vmatprep.subr.bf16.mxu0 0
  %483 = vmatpush1.bf16.xpose.msra.mxu0 0
  %484 = vmatprep.subr.bf16.mxu0 0
  %485 = vmatpush1.bf16.xpose.msra.mxu0 0
  %486 = vmatprep.subr.bf16.mxu0 0
  %487 = vmatpush1.bf16.xpose.msra.mxu0 0
  %488 = vmatprep.subr.bf16.mxu0 0
  %489 = vmatpush1.bf16.xpose.msra.mxu0 0
  %490 = vmatprep.subr.bf16.mxu0 0
  %491 = vmatpush1.bf16.xpose.msra.mxu0 0
  %492 = vmatprep.subr.bf16.mxu0 0
  %493 = vmatpush1.bf16.xpose.msra.mxu0 0
  %494 = vmatprep.subr.bf16.mxu0 0
  %495 = vmatpush1.bf16.xpose.msra.mxu0 0
  %496 = vmatprep.subr.bf16.mxu0 0
  %497 = vmatpush1.bf16.xpose.msra.mxu0 0
  %498 = vmatprep.mubr.bf16.mxu0 0
  %499 = vmatmul.mubr.bf16.gmra.mrb[0].mxu0 %v461
  %v500 = vpop.f32.mrb[0].mxu0
  %v501 = vadd.f32 0.0, %v500
  %v502 = vpop.f32.mrb[0].mxu0
  %v503 = vpop.f32.mrb[0].mxu0
  %v504 = vpop.f32.mrb[0].mxu0
  %505 = vdwg.mxu0
  %507 = vrot.lane.b32.xlu0 %v161, 120
  %v508 = vpop.permute.xlu0 %507
  %v510 = vsel %vm165, %v161, 0
  %v513 = vsel %vm165, %v508, 0
  %515 = vmatprep.subr.bf16.mxu0 0
  %516 = vmatpush1.bf16.xpose.msra.mxu0 %v513
  %517 = vmatprep.subr.bf16.mxu0 0
  %518 = vmatpush1.bf16.xpose.msra.mxu0 0
  %519 = vmatprep.subr.bf16.mxu0 0
  %520 = vmatpush1.bf16.xpose.msra.mxu0 0
  %521 = vmatprep.subr.bf16.mxu0 0
  %522 = vmatpush1.bf16.xpose.msra.mxu0 0
  %523 = vmatprep.subr.bf16.mxu0 0
  %524 = vmatpush1.bf16.xpose.msra.mxu0 0
  %525 = vmatprep.subr.bf16.mxu0 0
  %526 = vmatpush1.bf16.xpose.msra.mxu0 0
  %527 = vmatprep.subr.bf16.mxu0 0
  %528 = vmatpush1.bf16.xpose.msra.mxu0 0
  %529 = vmatprep.subr.bf16.mxu0 0
  %530 = vmatpush1.bf16.xpose.msra.mxu0 0
  %531 = vmatprep.subr.bf16.mxu0 0
  %532 = vmatpush1.bf16.xpose.msra.mxu0 0
  %533 = vmatprep.subr.bf16.mxu0 0
  %534 = vmatpush1.bf16.xpose.msra.mxu0 0
  %535 = vmatprep.subr.bf16.mxu0 0
  %536 = vmatpush1.bf16.xpose.msra.mxu0 0
  %537 = vmatprep.subr.bf16.mxu0 0
  %538 = vmatpush1.bf16.xpose.msra.mxu0 0
  %539 = vmatprep.subr.bf16.mxu0 0
  %540 = vmatpush1.bf16.xpose.msra.mxu0 0
  %541 = vmatprep.subr.bf16.mxu0 0
  %542 = vmatpush1.bf16.xpose.msra.mxu0 0
  %543 = vmatprep.subr.bf16.mxu0 0
  %544 = vmatpush1.bf16.xpose.msra.mxu0 0
  %545 = vmatprep.subr.bf16.mxu0 0
  %546 = vmatpush1.bf16.xpose.msra.mxu0 0
  %547 = vmatprep.mubr.bf16.mxu0 0
  %548 = vmatmul.mubr.bf16.gmra.mrb[0].mxu0 %v510
  %v549 = vpop.f32.mrb[0].mxu0
  %v550 = vadd.f32 0.0, %v549
  %v551 = vpop.f32.mrb[0].mxu0
  %v552 = vpop.f32.mrb[0].mxu0
  %v553 = vpop.f32.mrb[0].mxu0
  %554 = vdwg.mxu0
  %v555 = vmul.f32 %v207, 0.5
  %v556 = vmul.f32 %v256, 0.5
  %v557 = vmul.f32 %v305, 0.5
  %v558 = vmul.f32 %v354, 0.5
  %v559 = vmul.f32 %v403, 0.5
  %v560 = vmul.f32 %v452, 0.5
  %v561 = vmul.f32 %v501, 0.5
  %v562 = vmul.f32 %v550, 0.5
  %v563 = vld [vmem:[%s3] sm:$0xf]
  %v564 = vadd.f32 %v555, %v563
  %v565 = vadd.f32 %v556, %v563
  %v566 = vadd.f32 %v557, %v563
  %v567 = vadd.f32 %v558, %v563
  %v568 = vadd.f32 %v559, %v563
  %v569 = vadd.f32 %v560, %v563
  %v570 = vadd.f32 %v561, %v563
  %v571 = vadd.f32 %v562, %v563
  %vm572 = vcmask 27648
  %v573 = vsel %vm572, %v564, -inf
  %574 = vmax.xlane.f32.xlu0 %v573
  %v575 = vpop.xlane.xlu0 %574
  %v576 = vsel %vm572, %v565, -inf
  %577 = vmax.xlane.f32.xlu0 %v576
  %v578 = vpop.xlane.xlu0 %577
  %v579 = vsel %vm572, %v566, -inf
  %580 = vmax.xlane.f32.xlu0 %v579
  %v581 = vpop.xlane.xlu0 %580
  %v582 = vsel %vm572, %v567, -inf
  %583 = vmax.xlane.f32.xlu0 %v582
  %v584 = vpop.xlane.xlu0 %583
  %v585 = vsel %vm572, %v568, -inf
  %586 = vmax.xlane.f32.xlu0 %v585
  %v587 = vpop.xlane.xlu0 %586
  %v588 = vsel %vm572, %v569, -inf
  %589 = vmax.xlane.f32.xlu0 %v588
  %v590 = vpop.xlane.xlu0 %589
  %v591 = vsel %vm572, %v570, -inf
  %592 = vmax.xlane.f32.xlu0 %v591
  %v593 = vpop.xlane.xlu0 %592
  %v594 = vsel %vm572, %v571, -inf
  %595 = vmax.xlane.f32.xlu0 %v594
  %v596 = vpop.xlane.xlu0 %595
  %v597 = vsub.f32 %v564, %v575
  %v598 = vsub.f32 %v565, %v578
  %v599 = vsub.f32 %v566, %v581
  %v600 = vsub.f32 %v567, %v584
  %v601 = vsub.f32 %v568, %v587
  %v602 = vsub.f32 %v569, %v590
  %v603 = vsub.f32 %v570, %v593
  %v604 = vsub.f32 %v571, %v596
  %v605 = vmul.f32 %v597, 1.442695
  %v606 = vpow.pop %v605
  %v607 = vmul.f32 %v598, 1.442695
  %v608 = vpow.pop %v607
  %v609 = vmul.f32 %v599, 1.442695
  %v610 = vpow.pop %v609
  %v611 = vmul.f32 %v600, 1.442695
  %v612 = vpow.pop %v611
  %v613 = vmul.f32 %v601, 1.442695
  %v614 = vpow.pop %v613
  %v615 = vmul.f32 %v602, 1.442695
  %v616 = vpow.pop %v615
  %v617 = vmul.f32 %v603, 1.442695
  %v618 = vpow.pop %v617
  %v619 = vmul.f32 %v604, 1.442695
  %v620 = vpow.pop %v619
  %v621 = vsel %vm572, %v606, 0.0
  %622 = vadd.xlane.f32.xlu0 %v621
  %v623 = vpop.xlane.xlu0 %622
  %v624 = vsel %vm572, %v608, 0.0
  %625 = vadd.xlane.f32.xlu0 %v624
  %v626 = vpop.xlane.xlu0 %625
  %v627 = vsel %vm572, %v610, 0.0
  %628 = vadd.xlane.f32.xlu0 %v627
  %v629 = vpop.xlane.xlu0 %628
  %v630 = vsel %vm572, %v612, 0.0
  %631 = vadd.xlane.f32.xlu0 %v630
  %v632 = vpop.xlane.xlu0 %631
  %v633 = vsel %vm572, %v614, 0.0
  %634 = vadd.xlane.f32.xlu0 %v633
  %v635 = vpop.xlane.xlu0 %634
  %v636 = vsel %vm572, %v616, 0.0
  %637 = vadd.xlane.f32.xlu0 %v636
  %v638 = vpop.xlane.xlu0 %637
  %v639 = vsel %vm572, %v618, 0.0
  %640 = vadd.xlane.f32.xlu0 %v639
  %v641 = vpop.xlane.xlu0 %640
  %v642 = vsel %vm572, %v620, 0.0
  %643 = vadd.xlane.f32.xlu0 %v642
  %v644 = vpop.xlane.xlu0 %643
  %v645 = vrcp.pop %v623
  %v646 = vrcp.pop %v626
  %v647 = vrcp.pop %v629
  %v648 = vrcp.pop %v632
  %v649 = vrcp.pop %v635
  %v650 = vrcp.pop %v638
  %v651 = vrcp.pop %v641
  %v652 = vrcp.pop %v644
  %v653 = vmul.f32 %v606, %v645
  %v654 = vmul.f32 %v608, %v646
  %v655 = vmul.f32 %v610, %v647
  %v656 = vmul.f32 %v612, %v648
  %v657 = vmul.f32 %v614, %v649
  %v658 = vmul.f32 %v616, %v650
  %v659 = vmul.f32 %v618, %v651
  %v660 = vmul.f32 %v620, %v652
  %v661 = vpack.c.bf16 %v653, %v653
  %v662 = vpack.c.bf16 %v654, %v654
  %v663 = vpack.c.bf16 %v655, %v655
  %v664 = vpack.c.bf16 %v656, %v656
  %v665 = vpack.c.bf16 %v657, %v657
  %v666 = vpack.c.bf16 %v658, %v658
  %v667 = vpack.c.bf16 %v659, %v659
  %v668 = vpack.c.bf16 %v660, %v660
  %669 = vrot.lane.b32.xlu0 %v154, 112
  %v670 = vpop.permute.xlu0 %669
  %v672 = vsel %vm165, %v661, 0
  %vm674 = vcmask 1041408
  %v676 = vsel %vm674, %v670, 0
  %678 = vmatprep.subr.bf16.mxu0 0
  %679 = vmatpush1.bf16.msra.mxu0 %v676
  %680 = vmatprep.subr.bf16.mxu0 0
  %681 = vmatpush1.bf16.msra.mxu0 0
  %682 = vmatprep.subr.bf16.mxu0 0
  %683 = vmatpush1.bf16.msra.mxu0 0
  %684 = vmatprep.subr.bf16.mxu0 0
  %685 = vmatpush1.bf16.msra.mxu0 0
  %686 = vmatprep.subr.bf16.mxu0 0
  %687 = vmatpush1.bf16.msra.mxu0 0
  %688 = vmatprep.subr.bf16.mxu0 0
  %689 = vmatpush1.bf16.msra.mxu0 0
  %690 = vmatprep.subr.bf16.mxu0 0
  %691 = vmatpush1.bf16.msra.mxu0 0
  %692 = vmatprep.subr.bf16.mxu0 0
  %693 = vmatpush1.bf16.msra.mxu0 0
  %694 = vmatprep.subr.bf16.mxu0 0
  %695 = vmatpush1.bf16.msra.mxu0 0
  %696 = vmatprep.subr.bf16.mxu0 0
  %697 = vmatpush1.bf16.msra.mxu0 0
  %698 = vmatprep.subr.bf16.mxu0 0
  %699 = vmatpush1.bf16.msra.mxu0 0
  %700 = vmatprep.subr.bf16.mxu0 0
  %701 = vmatpush1.bf16.msra.mxu0 0
  %702 = vmatprep.subr.bf16.mxu0 0
  %703 = vmatpush1.bf16.msra.mxu0 0
  %704 = vmatprep.subr.bf16.mxu0 0
  %705 = vmatpush1.bf16.msra.mxu0 0
  %706 = vmatprep.subr.bf16.mxu0 0
  %707 = vmatpush1.bf16.msra.mxu0 0
  %708 = vmatprep.subr.bf16.mxu0 0
  %709 = vmatpush1.bf16.msra.mxu0 0
  %710 = vmatprep.mubr.bf16.mxu0 0
  %711 = vmatmul.mubr.bf16.gmra.mrb[0].mxu0 %v672
  %v712 = vpop.f32.mrb[0].mxu0
  %v713 = vadd.f32 0.0, %v712
  %v714 = vpop.f32.mrb[0].mxu0
  %v715 = vpop.f32.mrb[0].mxu0
  %v716 = vpop.f32.mrb[0].mxu0
  %717 = vdwg.mxu0
  %718 = vrot.lane.b32.xlu0 %v155, 112
  %v719 = vpop.permute.xlu0 %718
  %v721 = vsel %vm165, %v662, 0
  %v724 = vsel %vm674, %v719, 0
  %726 = vmatprep.subr.bf16.mxu0 0
  %727 = vmatpush1.bf16.msra.mxu0 %v724
  %728 = vmatprep.subr.bf16.mxu0 0
  %729 = vmatpush1.bf16.msra.mxu0 0
  %730 = vmatprep.subr.bf16.mxu0 0
  %731 = vmatpush1.bf16.msra.mxu0 0
  %732 = vmatprep.subr.bf16.mxu0 0
  %733 = vmatpush1.bf16.msra.mxu0 0
  %734 = vmatprep.subr.bf16.mxu0 0
  %735 = vmatpush1.bf16.msra.mxu0 0
  %736 = vmatprep.subr.bf16.mxu0 0
  %737 = vmatpush1.bf16.msra.mxu0 0
  %738 = vmatprep.subr.bf16.mxu0 0
  %739 = vmatpush1.bf16.msra.mxu0 0
  %740 = vmatprep.subr.bf16.mxu0 0
  %741 = vmatpush1.bf16.msra.mxu0 0
  %742 = vmatprep.subr.bf16.mxu0 0
  %743 = vmatpush1.bf16.msra.mxu0 0
  %744 = vmatprep.subr.bf16.mxu0 0
  %745 = vmatpush1.bf16.msra.mxu0 0
  %746 = vmatprep.subr.bf16.mxu0 0
  %747 = vmatpush1.bf16.msra.mxu0 0
  %748 = vmatprep.subr.bf16.mxu0 0
  %749 = vmatpush1.bf16.msra.mxu0 0
  %750 = vmatprep.subr.bf16.mxu0 0
  %751 = vmatpush1.bf16.msra.mxu0 0
  %752 = vmatprep.subr.bf16.mxu0 0
  %753 = vmatpush1.bf16.msra.mxu0 0
  %754 = vmatprep.subr.bf16.mxu0 0
  %755 = vmatpush1.bf16.msra.mxu0 0
  %756 = vmatprep.subr.bf16.mxu0 0
  %757 = vmatpush1.bf16.msra.mxu0 0
  %758 = vmatprep.mubr.bf16.mxu0 0
  %759 = vmatmul.mubr.bf16.gmra.mrb[0].mxu0 %v721
  %v760 = vpop.f32.mrb[0].mxu0
  %v761 = vadd.f32 0.0, %v760
  %v762 = vpop.f32.mrb[0].mxu0
  %v763 = vpop.f32.mrb[0].mxu0
  %v764 = vpop.f32.mrb[0].mxu0
  %765 = vdwg.mxu0
  %766 = vrot.lane.b32.xlu0 %v156, 112
  %v767 = vpop.permute.xlu0 %766
  %v769 = vsel %vm165, %v663, 0
  %v772 = vsel %vm674, %v767, 0
  %774 = vmatprep.subr.bf16.mxu0 0
  %775 = vmatpush1.bf16.msra.mxu0 %v772
  %776 = vmatprep.subr.bf16.mxu0 0
  %777 = vmatpush1.bf16.msra.mxu0 0
  %778 = vmatprep.subr.bf16.mxu0 0
  %779 = vmatpush1.bf16.msra.mxu0 0
  %780 = vmatprep.subr.bf16.mxu0 0
  %781 = vmatpush1.bf16.msra.mxu0 0
  %782 = vmatprep.subr.bf16.mxu0 0
  %783 = vmatpush1.bf16.msra.mxu0 0
  %784 = vmatprep.subr.bf16.mxu0 0
  %785 = vmatpush1.bf16.msra.mxu0 0
  %786 = vmatprep.subr.bf16.mxu0 0
  %787 = vmatpush1.bf16.msra.mxu0 0
  %788 = vmatprep.subr.bf16.mxu0 0
  %789 = vmatpush1.bf16.msra.mxu0 0
  %790 = vmatprep.subr.bf16.mxu0 0
  %791 = vmatpush1.bf16.msra.mxu0 0
  %792 = vmatprep.subr.bf16.mxu0 0
  %793 = vmatpush1.bf16.msra.mxu0 0
  %794 = vmatprep.subr.bf16.mxu0 0
  %795 = vmatpush1.bf16.msra.mxu0 0
  %796 = vmatprep.subr.bf16.mxu0 0
  %797 = vmatpush1.bf16.msra.mxu0 0
  %798 = vmatprep.subr.bf16.mxu0 0
  %799 = vmatpush1.bf16.msra.mxu0 0
  %800 = vmatprep.subr.bf16.mxu0 0
  %801 = vmatpush1.bf16.msra.mxu0 0
  %802 = vmatprep.subr.bf16.mxu0 0
  %803 = vmatpush1.bf16.msra.mxu0 0
  %804 = vmatprep.subr.bf16.mxu0 0
  %805 = vmatpush1.bf16.msra.mxu0 0
  %806 = vmatprep.mubr.bf16.mxu0 0
  %807 = vmatmul.mubr.bf16.gmra.mrb[0].mxu0 %v769
  %v808 = vpop.f32.mrb[0].mxu0
  %v809 = vadd.f32 0.0, %v808
  %v810 = vpop.f32.mrb[0].mxu0
  %v811 = vpop.f32.mrb[0].mxu0
  %v812 = vpop.f32.mrb[0].mxu0
  %813 = vdwg.mxu0
  %814 = vrot.lane.b32.xlu0 %v157, 112
  %v815 = vpop.permute.xlu0 %814
  %v817 = vsel %vm165, %v664, 0
  %v820 = vsel %vm674, %v815, 0
  %822 = vmatprep.subr.bf16.mxu0 0
  %823 = vmatpush1.bf16.msra.mxu0 %v820
  %824 = vmatprep.subr.bf16.mxu0 0
  %825 = vmatpush1.bf16.msra.mxu0 0
  %826 = vmatprep.subr.bf16.mxu0 0
  %827 = vmatpush1.bf16.msra.mxu0 0
  %828 = vmatprep.subr.bf16.mxu0 0
  %829 = vmatpush1.bf16.msra.mxu0 0
  %830 = vmatprep.subr.bf16.mxu0 0
  %831 = vmatpush1.bf16.msra.mxu0 0
  %832 = vmatprep.subr.bf16.mxu0 0
  %833 = vmatpush1.bf16.msra.mxu0 0
  %834 = vmatprep.subr.bf16.mxu0 0
  %835 = vmatpush1.bf16.msra.mxu0 0
  %836 = vmatprep.subr.bf16.mxu0 0
  %837 = vmatpush1.bf16.msra.mxu0 0
  %838 = vmatprep.subr.bf16.mxu0 0
  %839 = vmatpush1.bf16.msra.mxu0 0
  %840 = vmatprep.subr.bf16.mxu0 0
  %841 = vmatpush1.bf16.msra.mxu0 0
  %842 = vmatprep.subr.bf16.mxu0 0
  %843 = vmatpush1.bf16.msra.mxu0 0
  %844 = vmatprep.subr.bf16.mxu0 0
  %845 = vmatpush1.bf16.msra.mxu0 0
  %846 = vmatprep.subr.bf16.mxu0 0
  %847 = vmatpush1.bf16.msra.mxu0 0
  %848 = vmatprep.subr.bf16.mxu0 0
  %849 = vmatpush1.bf16.msra.mxu0 0
  %850 = vmatprep.subr.bf16.mxu0 0
  %851 = vmatpush1.bf16.msra.mxu0 0
  %852 = vmatprep.subr.bf16.mxu0 0
  %853 = vmatpush1.bf16.msra.mxu0 0
  %854 = vmatprep.mubr.bf16.mxu0 0
  %855 = vmatmul.mubr.bf16.gmra.mrb[0].mxu0 %v817
  %v856 = vpop.f32.mrb[0].mxu0
  %v857 = vadd.f32 0.0, %v856
  %v858 = vpop.f32.mrb[0].mxu0
  %v859 = vpop.f32.mrb[0].mxu0
  %v860 = vpop.f32.mrb[0].mxu0
  %861 = vdwg.mxu0
  %862 = vrot.lane.b32.xlu0 %v158, 112
  %v863 = vpop.permute.xlu0 %862
  %v865 = vsel %vm165, %v665, 0
  %v868 = vsel %vm674, %v863, 0
  %870 = vmatprep.subr.bf16.mxu0 0
  %871 = vmatpush1.bf16.msra.mxu0 %v868
  %872 = vmatprep.subr.bf16.mxu0 0
  %873 = vmatpush1.bf16.msra.mxu0 0
  %874 = vmatprep.subr.bf16.mxu0 0
  %875 = vmatpush1.bf16.msra.mxu0 0
  %876 = vmatprep.subr.bf16.mxu0 0
  %877 = vmatpush1.bf16.msra.mxu0 0
  %878 = vmatprep.subr.bf16.mxu0 0
  %879 = vmatpush1.bf16.msra.mxu0 0
  %880 = vmatprep.subr.bf16.mxu0 0
  %881 = vmatpush1.bf16.msra.mxu0 0
  %882 = vmatprep.subr.bf16.mxu0 0
  %883 = vmatpush1.bf16.msra.mxu0 0
  %884 = vmatprep.subr.bf16.mxu0 0
  %885 = vmatpush1.bf16.msra.mxu0 0
  %886 = vmatprep.subr.bf16.mxu0 0
  %887 = vmatpush1.bf16.msra.mxu0 0
  %888 = vmatprep.subr.bf16.mxu0 0
  %889 = vmatpush1.bf16.msra.mxu0 0
  %890 = vmatprep.subr.bf16.mxu0 0
  %891 = vmatpush1.bf16.msra.mxu0 0
  %892 = vmatprep.subr.bf16.mxu0 0
  %893 = vmatpush1.bf16.msra.mxu0 0
  %894 = vmatprep.subr.bf16.mxu0 0
  %895 = vmatpush1.bf16.msra.mxu0 0
  %896 = vmatprep.subr.bf16.mxu0 0
  %897 = vmatpush1.bf16.msra.mxu0 0
  %898 = vmatprep.subr.bf16.mxu0 0
  %899 = vmatpush1.bf16.msra.mxu0 0
  %900 = vmatprep.subr.bf16.mxu0 0
  %901 = vmatpush1.bf16.msra.mxu0 0
  %902 = vmatprep.mubr.bf16.mxu0 0
  %903 = vmatmul.mubr.bf16.gmra.mrb[0].mxu0 %v865
  %v904 = vpop.f32.mrb[0].mxu0
  %v905 = vadd.f32 0.0, %v904
  %v906 = vpop.f32.mrb[0].mxu0
  %v907 = vpop.f32.mrb[0].mxu0
  %v908 = vpop.f32.mrb[0].mxu0
  %909 = vdwg.mxu0
  %910 = vrot.lane.b32.xlu0 %v159, 112
  %v911 = vpop.permute.xlu0 %910
  %v913 = vsel %vm165, %v666, 0
  %v916 = vsel %vm674, %v911, 0
  %918 = vmatprep.subr.bf16.mxu0 0
  %919 = vmatpush1.bf16.msra.mxu0 %v916
  %920 = vmatprep.subr.bf16.mxu0 0
  %921 = vmatpush1.bf16.msra.mxu0 0
  %922 = vmatprep.subr.bf16.mxu0 0
  %923 = vmatpush1.bf16.msra.mxu0 0
  %924 = vmatprep.subr.bf16.mxu0 0
  %925 = vmatpush1.bf16.msra.mxu0 0
  %926 = vmatprep.subr.bf16.mxu0 0
  %927 = vmatpush1.bf16.msra.mxu0 0
  %928 = vmatprep.subr.bf16.mxu0 0
  %929 = vmatpush1.bf16.msra.mxu0 0
  %930 = vmatprep.subr.bf16.mxu0 0
  %931 = vmatpush1.bf16.msra.mxu0 0
  %932 = vmatprep.subr.bf16.mxu0 0
  %933 = vmatpush1.bf16.msra.mxu0 0
  %934 = vmatprep.subr.bf16.mxu0 0
  %935 = vmatpush1.bf16.msra.mxu0 0
  %936 = vmatprep.subr.bf16.mxu0 0
  %937 = vmatpush1.bf16.msra.mxu0 0
  %938 = vmatprep.subr.bf16.mxu0 0
  %939 = vmatpush1.bf16.msra.mxu0 0
  %940 = vmatprep.subr.bf16.mxu0 0
  %941 = vmatpush1.bf16.msra.mxu0 0
  %942 = vmatprep.subr.bf16.mxu0 0
  %943 = vmatpush1.bf16.msra.mxu0 0
  %944 = vmatprep.subr.bf16.mxu0 0
  %945 = vmatpush1.bf16.msra.mxu0 0
  %946 = vmatprep.subr.bf16.mxu0 0
  %947 = vmatpush1.bf16.msra.mxu0 0
  %948 = vmatprep.subr.bf16.mxu0 0
  %949 = vmatpush1.bf16.msra.mxu0 0
  %950 = vmatprep.mubr.bf16.mxu0 0
  %951 = vmatmul.mubr.bf16.gmra.mrb[0].mxu0 %v913
  %v952 = vpop.f32.mrb[0].mxu0
  %v953 = vadd.f32 0.0, %v952
  %v954 = vpop.f32.mrb[0].mxu0
  %v955 = vpop.f32.mrb[0].mxu0
  %v956 = vpop.f32.mrb[0].mxu0
  %957 = vdwg.mxu0
  %958 = vrot.lane.b32.xlu0 %v160, 112
  %v959 = vpop.permute.xlu0 %958
  %v961 = vsel %vm165, %v667, 0
  %v964 = vsel %vm674, %v959, 0
  %966 = vmatprep.subr.bf16.mxu0 0
  %967 = vmatpush1.bf16.msra.mxu0 %v964
  %968 = vmatprep.subr.bf16.mxu0 0
  %969 = vmatpush1.bf16.msra.mxu0 0
  %970 = vmatprep.subr.bf16.mxu0 0
  %971 = vmatpush1.bf16.msra.mxu0 0
  %972 = vmatprep.subr.bf16.mxu0 0
  %973 = vmatpush1.bf16.msra.mxu0 0
  %974 = vmatprep.subr.bf16.mxu0 0
  %975 = vmatpush1.bf16.msra.mxu0 0
  %976 = vmatprep.subr.bf16.mxu0 0
  %977 = vmatpush1.bf16.msra.mxu0 0
  %978 = vmatprep.subr.bf16.mxu0 0
  %979 = vmatpush1.bf16.msra.mxu0 0
  %980 = vmatprep.subr.bf16.mxu0 0
  %981 = vmatpush1.bf16.msra.mxu0 0
  %982 = vmatprep.subr.bf16.mxu0 0
  %983 = vmatpush1.bf16.msra.mxu0 0
  %984 = vmatprep.subr.bf16.mxu0 0
  %985 = vmatpush1.bf16.msra.mxu0 0
  %986 = vmatprep.subr.bf16.mxu0 0
  %987 = vmatpush1.bf16.msra.mxu0 0
  %988 = vmatprep.subr.bf16.mxu0 0
  %989 = vmatpush1.bf16.msra.mxu0 0
  %990 = vmatprep.subr.bf16.mxu0 0
  %991 = vmatpush1.bf16.msra.mxu0 0
  %992 = vmatprep.subr.bf16.mxu0 0
  %993 = vmatpush1.bf16.msra.mxu0 0
  %994 = vmatprep.subr.bf16.mxu0 0
  %995 = vmatpush1.bf16.msra.mxu0 0
  %996 = vmatprep.subr.bf16.mxu0 0
  %997 = vmatpush1.bf16.msra.mxu0 0
  %998 = vmatprep.mubr.bf16.mxu0 0
  %999 = vmatmul.mubr.bf16.gmra.mrb[0].mxu0 %v961
  %v1000 = vpop.f32.mrb[0].mxu0
  %v1001 = vadd.f32 0.0, %v1000
  %v1002 = vpop.f32.mrb[0].mxu0
  %v1003 = vpop.f32.mrb[0].mxu0
  %v1004 = vpop.f32.mrb[0].mxu0
  %1005 = vdwg.mxu0
  %1006 = vrot.lane.b32.xlu0 %v161, 112
  %v1007 = vpop.permute.xlu0 %1006
  %v1009 = vsel %vm165, %v668, 0
  %v1012 = vsel %vm674, %v1007, 0
  %1014 = vmatprep.subr.bf16.mxu0 0
  %1015 = vmatpush1.bf16.msra.mxu0 %v1012
  %1016 = vmatprep.subr.bf16.mxu0 0
  %1017 = vmatpush1.bf16.msra.mxu0 0
  %1018 = vmatprep.subr.bf16.mxu0 0
  %1019 = vmatpush1.bf16.msra.mxu0 0
  %1020 = vmatprep.subr.bf16.mxu0 0
  %1021 = vmatpush1.bf16.msra.mxu0 0
  %1022 = vmatprep.subr.bf16.mxu0 0
  %1023 = vmatpush1.bf16.msra.mxu0 0
  %1024 = vmatprep.subr.bf16.mxu0 0
  %1025 = vmatpush1.bf16.msra.mxu0 0
  %1026 = vmatprep.subr.bf16.mxu0 0
  %1027 = vmatpush1.bf16.msra.mxu0 0
  %1028 = vmatprep.subr.bf16.mxu0 0
  %1029 = vmatpush1.bf16.msra.mxu0 0
  %1030 = vmatprep.subr.bf16.mxu0 0
  %1031 = vmatpush1.bf16.msra.mxu0 0
  %1032 = vmatprep.subr.bf16.mxu0 0
  %1033 = vmatpush1.bf16.msra.mxu0 0
  %1034 = vmatprep.subr.bf16.mxu0 0
  %1035 = vmatpush1.bf16.msra.mxu0 0
  %1036 = vmatprep.subr.bf16.mxu0 0
  %1037 = vmatpush1.bf16.msra.mxu0 0
  %1038 = vmatprep.subr.bf16.mxu0 0
  %1039 = vmatpush1.bf16.msra.mxu0 0
  %1040 = vmatprep.subr.bf16.mxu0 0
  %1041 = vmatpush1.bf16.msra.mxu0 0
  %1042 = vmatprep.subr.bf16.mxu0 0
  %1043 = vmatpush1.bf16.msra.mxu0 0
  %1044 = vmatprep.subr.bf16.mxu0 0
  %1045 = vmatpush1.bf16.msra.mxu0 0
  %1046 = vmatprep.mubr.bf16.mxu0 0
  %1047 = vmatmul.mubr.bf16.gmra.mrb[0].mxu0 %v1009
  %v1048 = vpop.f32.mrb[0].mxu0
  %v1049 = vadd.f32 0.0, %v1048
  %v1050 = vpop.f32.mrb[0].mxu0
  %v1051 = vpop.f32.mrb[0].mxu0
  %v1052 = vpop.f32.mrb[0].mxu0
  %1053 = vdwg.mxu0
  %v1062 = vcombine.low %v713, %v761
  %v1063 = vcombine.low %v809, %v857
  %v1064 = vcombine.low %v905, %v953
  %v1065 = vcombine.low %v1001, %v1049
  %v1070 = vpack.c.bf16 %v1063, %v1062
  %v1071 = vpack.c.bf16 %v1065, %v1064
  %v1072 = vld [vmem:[%s4] sm:$0x3]
  %1073 = vrot.lane.b32.xlu0 %v154, 124
  %v1074 = vpop.permute.xlu0 %1073
  %1075 = vrot.lane.b32.xlu0 %v154, 116
  %v1076 = vpop.permute.xlu0 %1075
  %v1078 = vsel %vm165, %v1074, 0
  %v1081 = vsel %vm165, %v1076, 0
  %1083 = vmatprep.subr.bf16.mxu0 0
  %1084 = vmatpush1.bf16.xpose.msra.mxu0 %v1081
  %1085 = vmatprep.subr.bf16.mxu0 0
  %1086 = vmatpush1.bf16.xpose.msra.mxu0 0
  %1087 = vmatprep.subr.bf16.mxu0 0
  %1088 = vmatpush1.bf16.xpose.msra.mxu0 0
  %1089 = vmatprep.subr.bf16.mxu0 0
  %1090 = vmatpush1.bf16.xpose.msra.mxu0 0
  %1091 = vmatprep.subr.bf16.mxu0 0
  %1092 = vmatpush1.bf16.xpose.msra.mxu0 0
  %1093 = vmatprep.subr.bf16.mxu0 0
  %1094 = vmatpush1.bf16.xpose.msra.mxu0 0
  %1095 = vmatprep.subr.bf16.mxu0 0
  %1096 = vmatpush1.bf16.xpose.msra.mxu0 0
  %1097 = vmatprep.subr.bf16.mxu0 0
  %1098 = vmatpush1.bf16.xpose.msra.mxu0 0
  %1099 = vmatprep.subr.bf16.mxu0 0
  %1100 = vmatpush1.bf16.xpose.msra.mxu0 0
  %1101 = vmatprep.subr.bf16.mxu0 0
  %1102 = vmatpush1.bf16.xpose.msra.mxu0 0
  %1103 = vmatprep.subr.bf16.mxu0 0
  %1104 = vmatpush1.bf16.xpose.msra.mxu0 0
  %1105 = vmatprep.subr.bf16.mxu0 0
  %1106 = vmatpush1.bf16.xpose.msra.mxu0 0
  %1107 = vmatprep.subr.bf16.mxu0 0
  %1108 = vmatpush1.bf16.xpose.msra.mxu0 0
  %1109 = vmatprep.subr.bf16.mxu0 0
  %1110 = vmatpush1.bf16.xpose.msra.mxu0 0
  %1111 = vmatprep.subr.bf16.mxu0 0
  %1112 = vmatpush1.bf16.xpose.msra.mxu0 0
  %1113 = vmatprep.subr.bf16.mxu0 0
  %1114 = vmatpush1.bf16.xpose.msra.mxu0 0
  %1115 = vmatprep.mubr.bf16.mxu0 0
  %1116 = vmatmul.mubr.bf16.gmra.mrb[0].mxu0 %v1078
  %v1117 = vpop.f32.mrb[0].mxu0
  %v1118 = vadd.f32 0.0, %v1117
  %v1119 = vpop.f32.mrb[0].mxu0
  %v1120 = vpop.f32.mrb[0].mxu0
  %v1121 = vpop.f32.mrb[0].mxu0
  %1122 = vdwg.mxu0
  %1123 = vrot.lane.b32.xlu0 %v155, 124
  %v1124 = vpop.permute.xlu0 %1123
  %1125 = vrot.lane.b32.xlu0 %v155, 116
  %v1126 = vpop.permute.xlu0 %1125
  %v1128 = vsel %vm165, %v1124, 0
  %v1131 = vsel %vm165, %v1126, 0
  %1133 = vmatprep.subr.bf16.mxu0 0
  %1134 = vmatpush1.bf16.xpose.msra.mxu0 %v1131
  %1135 = vmatprep.subr.bf16.mxu0 0
  %1136 = vmatpush1.bf16.xpose.msra.mxu0 0
  %1137 = vmatprep.subr.bf16.mxu0 0
  %1138 = vmatpush1.bf16.xpose.msra.mxu0 0
  %1139 = vmatprep.subr.bf16.mxu0 0
  %1140 = vmatpush1.bf16.xpose.msra.mxu0 0
  %1141 = vmatprep.subr.bf16.mxu0 0
  %1142 = vmatpush1.bf16.xpose.msra.mxu0 0
  %1143 = vmatprep.subr.bf16.mxu0 0
  %1144 = vmatpush1.bf16.xpose.msra.mxu0 0
  %1145 = vmatprep.subr.bf16.mxu0 0
  %1146 = vmatpush1.bf16.xpose.msra.mxu0 0
  %1147 = vmatprep.subr.bf16.mxu0 0
  %1148 = vmatpush1.bf16.xpose.msra.mxu0 0
  %1149 = vmatprep.subr.bf16.mxu0 0
  %1150 = vmatpush1.bf16.xpose.msra.mxu0 0
  %1151 = vmatprep.subr.bf16.mxu0 0
  %1152 = vmatpush1.bf16.xpose.msra.mxu0 0
  %1153 = vmatprep.subr.bf16.mxu0 0
  %1154 = vmatpush1.bf16.xpose.msra.mxu0 0
  %1155 = vmatprep.subr.bf16.mxu0 0
  %1156 = vmatpush1.bf16.xpose.msra.mxu0 0
  %1157 = vmatprep.subr.bf16.mxu0 0
  %1158 = vmatpush1.bf16.xpose.msra.mxu0 0
  %1159 = vmatprep.subr.bf16.mxu0 0
  %1160 = vmatpush1.bf16.xpose.msra.mxu0 0
  %1161 = vmatprep.subr.bf16.mxu0 0
  %1162 = vmatpush1.bf16.xpose.msra.mxu0 0
  %1163 = vmatprep.subr.bf16.mxu0 0
  %1164 = vmatpush1.bf16.xpose.msra.mxu0 0
  %1165 = vmatprep.mubr.bf16.mxu0 0
  %1166 = vmatmul.mubr.bf16.gmra.mrb[0].mxu0 %v1128
  %v1167 = vpop.f32.mrb[0].mxu0
  %v1168 = vadd.f32 0.0, %v1167
  %v1169 = vpop.f32.mrb[0].mxu0
  %v1170 = vpop.f32.mrb[0].mxu0
  %v1171 = vpop.f32.mrb[0].mxu0
  %1172 = vdwg.mxu0
  %1173 = vrot.lane.b32.xlu0 %v156, 124
  %v1174 = vpop.permute.xlu0 %1173
  %1175 = vrot.lane.b32.xlu0 %v156, 116
  %v1176 = vpop.permute.xlu0 %1175
  %v1178 = vsel %vm165, %v1174, 0
  %v1181 = vsel %vm165, %v1176, 0
  %1183 = vmatprep.subr.bf16.mxu0 0
  %1184 = vmatpush1.bf16.xpose.msra.mxu0 %v1181
  %1185 = vmatprep.subr.bf16.mxu0 0
  %1186 = vmatpush1.bf16.xpose.msra.mxu0 0
  %1187 = vmatprep.subr.bf16.mxu0 0
  %1188 = vmatpush1.bf16.xpose.msra.mxu0 0
  %1189 = vmatprep.subr.bf16.mxu0 0
  %1190 = vmatpush1.bf16.xpose.msra.mxu0 0
  %1191 = vmatprep.subr.bf16.mxu0 0
  %1192 = vmatpush1.bf16.xpose.msra.mxu0 0
  %1193 = vmatprep.subr.bf16.mxu0 0
  %1194 = vmatpush1.bf16.xpose.msra.mxu0 0
  %1195 = vmatprep.subr.bf16.mxu0 0
  %1196 = vmatpush1.bf16.xpose.msra.mxu0 0
  %1197 = vmatprep.subr.bf16.mxu0 0
  %1198 = vmatpush1.bf16.xpose.msra.mxu0 0
  %1199 = vmatprep.subr.bf16.mxu0 0
  %1200 = vmatpush1.bf16.xpose.msra.mxu0 0
  %1201 = vmatprep.subr.bf16.mxu0 0
  %1202 = vmatpush1.bf16.xpose.msra.mxu0 0
  %1203 = vmatprep.subr.bf16.mxu0 0
  %1204 = vmatpush1.bf16.xpose.msra.mxu0 0
  %1205 = vmatprep.subr.bf16.mxu0 0
  %1206 = vmatpush1.bf16.xpose.msra.mxu0 0
  %1207 = vmatprep.subr.bf16.mxu0 0
  %1208 = vmatpush1.bf16.xpose.msra.mxu0 0
  %1209 = vmatprep.subr.bf16.mxu0 0
  %1210 = vmatpush1.bf16.xpose.msra.mxu0 0
  %1211 = vmatprep.subr.bf16.mxu0 0
  %1212 = vmatpush1.bf16.xpose.msra.mxu0 0
  %1213 = vmatprep.subr.bf16.mxu0 0
  %1214 = vmatpush1.bf16.xpose.msra.mxu0 0
  %1215 = vmatprep.mubr.bf16.mxu0 0
  %1216 = vmatmul.mubr.bf16.gmra.mrb[0].mxu0 %v1178
  %v1217 = vpop.f32.mrb[0].mxu0
  %v1218 = vadd.f32 0.0, %v1217
  %v1219 = vpop.f32.mrb[0].mxu0
  %v1220 = vpop.f32.mrb[0].mxu0
  %v1221 = vpop.f32.mrb[0].mxu0
  %1222 = vdwg.mxu0
  %1223 = vrot.lane.b32.xlu0 %v157, 124
  %v1224 = vpop.permute.xlu0 %1223
  %1225 = vrot.lane.b32.xlu0 %v157, 116
  %v1226 = vpop.permute.xlu0 %1225
  %v1228 = vsel %vm165, %v1224, 0
  %v1231 = vsel %vm165, %v1226, 0
  %1233 = vmatprep.subr.bf16.mxu0 0
  %1234 = vmatpush1.bf16.xpose.msra.mxu0 %v1231
  %1235 = vmatprep.subr.bf16.mxu0 0
  %1236 = vmatpush1.bf16.xpose.msra.mxu0 0
  %1237 = vmatprep.subr.bf16.mxu0 0
  %1238 = vmatpush1.bf16.xpose.msra.mxu0 0
  %1239 = vmatprep.subr.bf16.mxu0 0
  %1240 = vmatpush1.bf16.xpose.msra.mxu0 0
  %1241 = vmatprep.subr.bf16.mxu0 0
  %1242 = vmatpush1.bf16.xpose.msra.mxu0 0
  %1243 = vmatprep.subr.bf16.mxu0 0
  %1244 = vmatpush1.bf16.xpose.msra.mxu0 0
  %1245 = vmatprep.subr.bf16.mxu0 0
  %1246 = vmatpush1.bf16.xpose.msra.mxu0 0
  %1247 = vmatprep.subr.bf16.mxu0 0
  %1248 = vmatpush1.bf16.xpose.msra.mxu0 0
  %1249 = vmatprep.subr.bf16.mxu0 0
  %1250 = vmatpush1.bf16.xpose.msra.mxu0 0
  %1251 = vmatprep.subr.bf16.mxu0 0
  %1252 = vmatpush1.bf16.xpose.msra.mxu0 0
  %1253 = vmatprep.subr.bf16.mxu0 0
  %1254 = vmatpush1.bf16.xpose.msra.mxu0 0
  %1255 = vmatprep.subr.bf16.mxu0 0
  %1256 = vmatpush1.bf16.xpose.msra.mxu0 0
  %1257 = vmatprep.subr.bf16.mxu0 0
  %1258 = vmatpush1.bf16.xpose.msra.mxu0 0
  %1259 = vmatprep.subr.bf16.mxu0 0
  %1260 = vmatpush1.bf16.xpose.msra.mxu0 0
  %1261 = vmatprep.subr.bf16.mxu0 0
  %1262 = vmatpush1.bf16.xpose.msra.mxu0 0
  %1263 = vmatprep.subr.bf16.mxu0 0
  %1264 = vmatpush1.bf16.xpose.msra.mxu0 0
  %1265 = vmatprep.mubr.bf16.mxu0 0
  %1266 = vmatmul.mubr.bf16.gmra.mrb[0].mxu0 %v1228
  %v1267 = vpop.f32.mrb[0].mxu0
  %v1268 = vadd.f32 0.0, %v1267
  %v1269 = vpop.f32.mrb[0].mxu0
  %v1270 = vpop.f32.mrb[0].mxu0
  %v1271 = vpop.f32.mrb[0].mxu0
  %1272 = vdwg.mxu0
  %1273 = vrot.lane.b32.xlu0 %v158, 124
  %v1274 = vpop.permute.xlu0 %1273
  %1275 = vrot.lane.b32.xlu0 %v158, 116
  %v1276 = vpop.permute.xlu0 %1275
  %v1278 = vsel %vm165, %v1274, 0
  %v1281 = vsel %vm165, %v1276, 0
  %1283 = vmatprep.subr.bf16.mxu0 0
  %1284 = vmatpush1.bf16.xpose.msra.mxu0 %v1281
  %1285 = vmatprep.subr.bf16.mxu0 0
  %1286 = vmatpush1.bf16.xpose.msra.mxu0 0
  %1287 = vmatprep.subr.bf16.mxu0 0
  %1288 = vmatpush1.bf16.xpose.msra.mxu0 0
  %1289 = vmatprep.subr.bf16.mxu0 0
  %1290 = vmatpush1.bf16.xpose.msra.mxu0 0
  %1291 = vmatprep.subr.bf16.mxu0 0
  %1292 = vmatpush1.bf16.xpose.msra.mxu0 0
  %1293 = vmatprep.subr.bf16.mxu0 0
  %1294 = vmatpush1.bf16.xpose.msra.mxu0 0
  %1295 = vmatprep.subr.bf16.mxu0 0
  %1296 = vmatpush1.bf16.xpose.msra.mxu0 0
  %1297 = vmatprep.subr.bf16.mxu0 0
  %1298 = vmatpush1.bf16.xpose.msra.mxu0 0
  %1299 = vmatprep.subr.bf16.mxu0 0
  %1300 = vmatpush1.bf16.xpose.msra.mxu0 0
  %1301 = vmatprep.subr.bf16.mxu0 0
  %1302 = vmatpush1.bf16.xpose.msra.mxu0 0
  %1303 = vmatprep.subr.bf16.mxu0 0
  %1304 = vmatpush1.bf16.xpose.msra.mxu0 0
  %1305 = vmatprep.subr.bf16.mxu0 0
  %1306 = vmatpush1.bf16.xpose.msra.mxu0 0
  %1307 = vmatprep.subr.bf16.mxu0 0
  %1308 = vmatpush1.bf16.xpose.msra.mxu0 0
  %1309 = vmatprep.subr.bf16.mxu0 0
  %1310 = vmatpush1.bf16.xpose.msra.mxu0 0
  %1311 = vmatprep.subr.bf16.mxu0 0
  %1312 = vmatpush1.bf16.xpose.msra.mxu0 0
  %1313 = vmatprep.subr.bf16.mxu0 0
  %1314 = vmatpush1.bf16.xpose.msra.mxu0 0
  %1315 = vmatprep.mubr.bf16.mxu0 0
  %1316 = vmatmul.mubr.bf16.gmra.mrb[0].mxu0 %v1278
  %v1317 = vpop.f32.mrb[0].mxu0
  %v1318 = vadd.f32 0.0, %v1317
  %v1319 = vpop.f32.mrb[0].mxu0
  %v1320 = vpop.f32.mrb[0].mxu0
  %v1321 = vpop.f32.mrb[0].mxu0
  %1322 = vdwg.mxu0
  %1323 = vrot.lane.b32.xlu0 %v159, 124
  %v1324 = vpop.permute.xlu0 %1323
  %1325 = vrot.lane.b32.xlu0 %v159, 116
  %v1326 = vpop.permute.xlu0 %1325
  %v1328 = vsel %vm165, %v1324, 0
  %v1331 = vsel %vm165, %v1326, 0
  %1333 = vmatprep.subr.bf16.mxu0 0
  %1334 = vmatpush1.bf16.xpose.msra.mxu0 %v1331
  %1335 = vmatprep.subr.bf16.mxu0 0
  %1336 = vmatpush1.bf16.xpose.msra.mxu0 0
  %1337 = vmatprep.subr.bf16.mxu0 0
  %1338 = vmatpush1.bf16.xpose.msra.mxu0 0
  %1339 = vmatprep.subr.bf16.mxu0 0
  %1340 = vmatpush1.bf16.xpose.msra.mxu0 0
  %1341 = vmatprep.subr.bf16.mxu0 0
  %1342 = vmatpush1.bf16.xpose.msra.mxu0 0
  %1343 = vmatprep.subr.bf16.mxu0 0
  %1344 = vmatpush1.bf16.xpose.msra.mxu0 0
  %1345 = vmatprep.subr.bf16.mxu0 0
  %1346 = vmatpush1.bf16.xpose.msra.mxu0 0
  %1347 = vmatprep.subr.bf16.mxu0 0
  %1348 = vmatpush1.bf16.xpose.msra.mxu0 0
  %1349 = vmatprep.subr.bf16.mxu0 0
  %1350 = vmatpush1.bf16.xpose.msra.mxu0 0
  %1351 = vmatprep.subr.bf16.mxu0 0
  %1352 = vmatpush1.bf16.xpose.msra.mxu0 0
  %1353 = vmatprep.subr.bf16.mxu0 0
  %1354 = vmatpush1.bf16.xpose.msra.mxu0 0
  %1355 = vmatprep.subr.bf16.mxu0 0
  %1356 = vmatpush1.bf16.xpose.msra.mxu0 0
  %1357 = vmatprep.subr.bf16.mxu0 0
  %1358 = vmatpush1.bf16.xpose.msra.mxu0 0
  %1359 = vmatprep.subr.bf16.mxu0 0
  %1360 = vmatpush1.bf16.xpose.msra.mxu0 0
  %1361 = vmatprep.subr.bf16.mxu0 0
  %1362 = vmatpush1.bf16.xpose.msra.mxu0 0
  %1363 = vmatprep.subr.bf16.mxu0 0
  %1364 = vmatpush1.bf16.xpose.msra.mxu0 0
  %1365 = vmatprep.mubr.bf16.mxu0 0
  %1366 = vmatmul.mubr.bf16.gmra.mrb[0].mxu0 %v1328
  %v1367 = vpop.f32.mrb[0].mxu0
  %v1368 = vadd.f32 0.0, %v1367
  %v1369 = vpop.f32.mrb[0].mxu0
  %v1370 = vpop.f32.mrb[0].mxu0
  %v1371 = vpop.f32.mrb[0].mxu0
  %1372 = vdwg.mxu0
  %1373 = vrot.lane.b32.xlu0 %v160, 124
  %v1374 = vpop.permute.xlu0 %1373
  %1375 = vrot.lane.b32.xlu0 %v160, 116
  %v1376 = vpop.permute.xlu0 %1375
  %v1378 = vsel %vm165, %v1374, 0
  %v1381 = vsel %vm165, %v1376, 0
  %1383 = vmatprep.subr.bf16.mxu0 0
  %1384 = vmatpush1.bf16.xpose.msra.mxu0 %v1381
  %1385 = vmatprep.subr.bf16.mxu0 0
  %1386 = vmatpush1.bf16.xpose.msra.mxu0 0
  %1387 = vmatprep.subr.bf16.mxu0 0
  %1388 = vmatpush1.bf16.xpose.msra.mxu0 0
  %1389 = vmatprep.subr.bf16.mxu0 0
  %1390 = vmatpush1.bf16.xpose.msra.mxu0 0
  %1391 = vmatprep.subr.bf16.mxu0 0
  %1392 = vmatpush1.bf16.xpose.msra.mxu0 0
  %1393 = vmatprep.subr.bf16.mxu0 0
  %1394 = vmatpush1.bf16.xpose.msra.mxu0 0
  %1395 = vmatprep.subr.bf16.mxu0 0
  %1396 = vmatpush1.bf16.xpose.msra.mxu0 0
  %1397 = vmatprep.subr.bf16.mxu0 0
  %1398 = vmatpush1.bf16.xpose.msra.mxu0 0
  %1399 = vmatprep.subr.bf16.mxu0 0
  %1400 = vmatpush1.bf16.xpose.msra.mxu0 0
  %1401 = vmatprep.subr.bf16.mxu0 0
  %1402 = vmatpush1.bf16.xpose.msra.mxu0 0
  %1403 = vmatprep.subr.bf16.mxu0 0
  %1404 = vmatpush1.bf16.xpose.msra.mxu0 0
  %1405 = vmatprep.subr.bf16.mxu0 0
  %1406 = vmatpush1.bf16.xpose.msra.mxu0 0
  %1407 = vmatprep.subr.bf16.mxu0 0
  %1408 = vmatpush1.bf16.xpose.msra.mxu0 0
  %1409 = vmatprep.subr.bf16.mxu0 0
  %1410 = vmatpush1.bf16.xpose.msra.mxu0 0
  %1411 = vmatprep.subr.bf16.mxu0 0
  %1412 = vmatpush1.bf16.xpose.msra.mxu0 0
  %1413 = vmatprep.subr.bf16.mxu0 0
  %1414 = vmatpush1.bf16.xpose.msra.mxu0 0
  %1415 = vmatprep.mubr.bf16.mxu0 0
  %1416 = vmatmul.mubr.bf16.gmra.mrb[0].mxu0 %v1378
  %v1417 = vpop.f32.mrb[0].mxu0
  %v1418 = vadd.f32 0.0, %v1417
  %v1419 = vpop.f32.mrb[0].mxu0
  %v1420 = vpop.f32.mrb[0].mxu0
  %v1421 = vpop.f32.mrb[0].mxu0
  %1422 = vdwg.mxu0
  %1423 = vrot.lane.b32.xlu0 %v161, 124
  %v1424 = vpop.permute.xlu0 %1423
  %1425 = vrot.lane.b32.xlu0 %v161, 116
  %v1426 = vpop.permute.xlu0 %1425
  %v1428 = vsel %vm165, %v1424, 0
  %v1431 = vsel %vm165, %v1426, 0
  %1433 = vmatprep.subr.bf16.mxu0 0
  %1434 = vmatpush1.bf16.xpose.msra.mxu0 %v1431
  %1435 = vmatprep.subr.bf16.mxu0 0
  %1436 = vmatpush1.bf16.xpose.msra.mxu0 0
  %1437 = vmatprep.subr.bf16.mxu0 0
  %1438 = vmatpush1.bf16.xpose.msra.mxu0 0
  %1439 = vmatprep.subr.bf16.mxu0 0
  %1440 = vmatpush1.bf16.xpose.msra.mxu0 0
  %1441 = vmatprep.subr.bf16.mxu0 0
  %1442 = vmatpush1.bf16.xpose.msra.mxu0 0
  %1443 = vmatprep.subr.bf16.mxu0 0
  %1444 = vmatpush1.bf16.xpose.msra.mxu0 0
  %1445 = vmatprep.subr.bf16.mxu0 0
  %1446 = vmatpush1.bf16.xpose.msra.mxu0 0
  %1447 = vmatprep.subr.bf16.mxu0 0
  %1448 = vmatpush1.bf16.xpose.msra.mxu0 0
  %1449 = vmatprep.subr.bf16.mxu0 0
  %1450 = vmatpush1.bf16.xpose.msra.mxu0 0
  %1451 = vmatprep.subr.bf16.mxu0 0
  %1452 = vmatpush1.bf16.xpose.msra.mxu0 0
  %1453 = vmatprep.subr.bf16.mxu0 0
  %1454 = vmatpush1.bf16.xpose.msra.mxu0 0
  %1455 = vmatprep.subr.bf16.mxu0 0
  %1456 = vmatpush1.bf16.xpose.msra.mxu0 0
  %1457 = vmatprep.subr.bf16.mxu0 0
  %1458 = vmatpush1.bf16.xpose.msra.mxu0 0
  %1459 = vmatprep.subr.bf16.mxu0 0
  %1460 = vmatpush1.bf16.xpose.msra.mxu0 0
  %1461 = vmatprep.subr.bf16.mxu0 0
  %1462 = vmatpush1.bf16.xpose.msra.mxu0 0
  %1463 = vmatprep.subr.bf16.mxu0 0
  %1464 = vmatpush1.bf16.xpose.msra.mxu0 0
  %1465 = vmatprep.mubr.bf16.mxu0 0
  %1466 = vmatmul.mubr.bf16.gmra.mrb[0].mxu0 %v1428
  %v1467 = vpop.f32.mrb[0].mxu0
  %v1468 = vadd.f32 0.0, %v1467
  %v1469 = vpop.f32.mrb[0].mxu0
  %v1470 = vpop.f32.mrb[0].mxu0
  %v1471 = vpop.f32.mrb[0].mxu0
  %1472 = vdwg.mxu0
  %v1473 = vmul.f32 %v1118, 0.5
  %v1474 = vmul.f32 %v1168, 0.5
  %v1475 = vmul.f32 %v1218, 0.5
  %v1476 = vmul.f32 %v1268, 0.5
  %v1477 = vmul.f32 %v1318, 0.5
  %v1478 = vmul.f32 %v1368, 0.5
  %v1479 = vmul.f32 %v1418, 0.5
  %v1480 = vmul.f32 %v1468, 0.5
  %s1481 = scalar_lea.vmem %s3, 4
  %v1482 = vld [vmem:[%s1481] sm:$0xf]
  %v1483 = vadd.f32 %v1473, %v1482
  %v1484 = vadd.f32 %v1474, %v1482
  %v1485 = vadd.f32 %v1475, %v1482
  %v1486 = vadd.f32 %v1476, %v1482
  %v1487 = vadd.f32 %v1477, %v1482
  %v1488 = vadd.f32 %v1478, %v1482
  %v1489 = vadd.f32 %v1479, %v1482
  %v1490 = vadd.f32 %v1480, %v1482
  %v1491 = vsel %vm572, %v1483, -inf
  %1492 = vmax.xlane.f32.xlu0 %v1491
  %v1493 = vpop.xlane.xlu0 %1492
  %v1494 = vsel %vm572, %v1484, -inf
  %1495 = vmax.xlane.f32.xlu0 %v1494
  %v1496 = vpop.xlane.xlu0 %1495
  %v1497 = vsel %vm572, %v1485, -inf
  %1498 = vmax.xlane.f32.xlu0 %v1497
  %v1499 = vpop.xlane.xlu0 %1498
  %v1500 = vsel %vm572, %v1486, -inf
  %1501 = vmax.xlane.f32.xlu0 %v1500
  %v1502 = vpop.xlane.xlu0 %1501
  %v1503 = vsel %vm572, %v1487, -inf
  %1504 = vmax.xlane.f32.xlu0 %v1503
  %v1505 = vpop.xlane.xlu0 %1504
  %v1506 = vsel %vm572, %v1488, -inf
  %1507 = vmax.xlane.f32.xlu0 %v1506
  %v1508 = vpop.xlane.xlu0 %1507
  %v1509 = vsel %vm572, %v1489, -inf
  %1510 = vmax.xlane.f32.xlu0 %v1509
  %v1511 = vpop.xlane.xlu0 %1510
  %v1512 = vsel %vm572, %v1490, -inf
  %1513 = vmax.xlane.f32.xlu0 %v1512
  %v1514 = vpop.xlane.xlu0 %1513
  %v1515 = vsub.f32 %v1483, %v1493
  %v1516 = vsub.f32 %v1484, %v1496
  %v1517 = vsub.f32 %v1485, %v1499
  %v1518 = vsub.f32 %v1486, %v1502
  %v1519 = vsub.f32 %v1487, %v1505
  %v1520 = vsub.f32 %v1488, %v1508
  %v1521 = vsub.f32 %v1489, %v1511
  %v1522 = vsub.f32 %v1490, %v1514
  %v1523 = vmul.f32 %v1515, 1.442695
  %v1524 = vpow.pop %v1523
  %v1525 = vmul.f32 %v1516, 1.442695
  %v1526 = vpow.pop %v1525
  %v1527 = vmul.f32 %v1517, 1.442695
  %v1528 = vpow.pop %v1527
  %v1529 = vmul.f32 %v1518, 1.442695
  %v1530 = vpow.pop %v1529
  %v1531 = vmul.f32 %v1519, 1.442695
  %v1532 = vpow.pop %v1531
  %v1533 = vmul.f32 %v1520, 1.442695
  %v1534 = vpow.pop %v1533
  %v1535 = vmul.f32 %v1521, 1.442695
  %v1536 = vpow.pop %v1535
  %v1537 = vmul.f32 %v1522, 1.442695
  %v1538 = vpow.pop %v1537
  %v1539 = vsel %vm572, %v1524, 0.0
  %1540 = vadd.xlane.f32.xlu0 %v1539
  %v1541 = vpop.xlane.xlu0 %1540
  %v1542 = vsel %vm572, %v1526, 0.0
  %1543 = vadd.xlane.f32.xlu0 %v1542
  %v1544 = vpop.xlane.xlu0 %1543
  %v1545 = vsel %vm572, %v1528, 0.0
  %1546 = vadd.xlane.f32.xlu0 %v1545
  %v1547 = vpop.xlane.xlu0 %1546
  %v1548 = vsel %vm572, %v1530, 0.0
  %1549 = vadd.xlane.f32.xlu0 %v1548
  %v1550 = vpop.xlane.xlu0 %1549
  %v1551 = vsel %vm572, %v1532, 0.0
  %1552 = vadd.xlane.f32.xlu0 %v1551
  %v1553 = vpop.xlane.xlu0 %1552
  %v1554 = vsel %vm572, %v1534, 0.0
  %1555 = vadd.xlane.f32.xlu0 %v1554
  %v1556 = vpop.xlane.xlu0 %1555
  %v1557 = vsel %vm572, %v1536, 0.0
  %1558 = vadd.xlane.f32.xlu0 %v1557
  %v1559 = vpop.xlane.xlu0 %1558
  %v1560 = vsel %vm572, %v1538, 0.0
  %1561 = vadd.xlane.f32.xlu0 %v1560
  %v1562 = vpop.xlane.xlu0 %1561
  %v1563 = vrcp.pop %v1541
  %v1564 = vrcp.pop %v1544
  %v1565 = vrcp.pop %v1547
  %v1566 = vrcp.pop %v1550
  %v1567 = vrcp.pop %v1553
  %v1568 = vrcp.pop %v1556
  %v1569 = vrcp.pop %v1559
  %v1570 = vrcp.pop %v1562
  %v1571 = vmul.f32 %v1524, %v1563
  %v1572 = vmul.f32 %v1526, %v1564
  %v1573 = vmul.f32 %v1528, %v1565
  %v1574 = vmul.f32 %v1530, %v1566
  %v1575 = vmul.f32 %v1532, %v1567
  %v1576 = vmul.f32 %v1534, %v1568
  %v1577 = vmul.f32 %v1536, %v1569
  %v1578 = vmul.f32 %v1538, %v1570
  %v1579 = vpack.c.bf16 %v1571, %v1571
  %v1580 = vpack.c.bf16 %v1572, %v1572
  %v1581 = vpack.c.bf16 %v1573, %v1573
  %v1582 = vpack.c.bf16 %v1574, %v1574
  %v1583 = vpack.c.bf16 %v1575, %v1575
  %v1584 = vpack.c.bf16 %v1576, %v1576
  %v1585 = vpack.c.bf16 %v1577, %v1577
  %v1586 = vpack.c.bf16 %v1578, %v1578
  %1587 = vrot.lane.b32.xlu0 %v154, 108
  %v1588 = vpop.permute.xlu0 %1587
  %v1590 = vsel %vm165, %v1579, 0
  %v1593 = vsel %vm674, %v1588, 0
  %1595 = vmatprep.subr.bf16.mxu0 0
  %1596 = vmatpush1.bf16.msra.mxu0 %v1593
  %1597 = vmatprep.subr.bf16.mxu0 0
  %1598 = vmatpush1.bf16.msra.mxu0 0
  %1599 = vmatprep.subr.bf16.mxu0 0
  %1600 = vmatpush1.bf16.msra.mxu0 0
  %1601 = vmatprep.subr.bf16.mxu0 0
  %1602 = vmatpush1.bf16.msra.mxu0 0
  %1603 = vmatprep.subr.bf16.mxu0 0
  %1604 = vmatpush1.bf16.msra.mxu0 0
  %1605 = vmatprep.subr.bf16.mxu0 0
  %1606 = vmatpush1.bf16.msra.mxu0 0
  %1607 = vmatprep.subr.bf16.mxu0 0
  %1608 = vmatpush1.bf16.msra.mxu0 0
  %1609 = vmatprep.subr.bf16.mxu0 0
  %1610 = vmatpush1.bf16.msra.mxu0 0
  %1611 = vmatprep.subr.bf16.mxu0 0
  %1612 = vmatpush1.bf16.msra.mxu0 0
  %1613 = vmatprep.subr.bf16.mxu0 0
  %1614 = vmatpush1.bf16.msra.mxu0 0
  %1615 = vmatprep.subr.bf16.mxu0 0
  %1616 = vmatpush1.bf16.msra.mxu0 0
  %1617 = vmatprep.subr.bf16.mxu0 0
  %1618 = vmatpush1.bf16.msra.mxu0 0
  %1619 = vmatprep.subr.bf16.mxu0 0
  %1620 = vmatpush1.bf16.msra.mxu0 0
  %1621 = vmatprep.subr.bf16.mxu0 0
  %1622 = vmatpush1.bf16.msra.mxu0 0
  %1623 = vmatprep.subr.bf16.mxu0 0
  %1624 = vmatpush1.bf16.msra.mxu0 0
  %1625 = vmatprep.subr.bf16.mxu0 0
  %1626 = vmatpush1.bf16.msra.mxu0 0
  %1627 = vmatprep.mubr.bf16.mxu0 0
  %1628 = vmatmul.mubr.bf16.gmra.mrb[0].mxu0 %v1590
  %v1629 = vpop.f32.mrb[0].mxu0
  %v1630 = vadd.f32 0.0, %v1629
  %v1631 = vpop.f32.mrb[0].mxu0
  %v1632 = vpop.f32.mrb[0].mxu0
  %v1633 = vpop.f32.mrb[0].mxu0
  %1634 = vdwg.mxu0
  %1635 = vrot.lane.b32.xlu0 %v155, 108
  %v1636 = vpop.permute.xlu0 %1635
  %v1638 = vsel %vm165, %v1580, 0
  %v1641 = vsel %vm674, %v1636, 0
  %1643 = vmatprep.subr.bf16.mxu0 0
  %1644 = vmatpush1.bf16.msra.mxu0 %v1641
  %1645 = vmatprep.subr.bf16.mxu0 0
  %1646 = vmatpush1.bf16.msra.mxu0 0
  %1647 = vmatprep.subr.bf16.mxu0 0
  %1648 = vmatpush1.bf16.msra.mxu0 0
  %1649 = vmatprep.subr.bf16.mxu0 0
  %1650 = vmatpush1.bf16.msra.mxu0 0
  %1651 = vmatprep.subr.bf16.mxu0 0
  %1652 = vmatpush1.bf16.msra.mxu0 0
  %1653 = vmatprep.subr.bf16.mxu0 0
  %1654 = vmatpush1.bf16.msra.mxu0 0
  %1655 = vmatprep.subr.bf16.mxu0 0
  %1656 = vmatpush1.bf16.msra.mxu0 0
  %1657 = vmatprep.subr.bf16.mxu0 0
  %1658 = vmatpush1.bf16.msra.mxu0 0
  %1659 = vmatprep.subr.bf16.mxu0 0
  %1660 = vmatpush1.bf16.msra.mxu0 0
  %1661 = vmatprep.subr.bf16.mxu0 0
  %1662 = vmatpush1.bf16.msra.mxu0 0
  %1663 = vmatprep.subr.bf16.mxu0 0
  %1664 = vmatpush1.bf16.msra.mxu0 0
  %1665 = vmatprep.subr.bf16.mxu0 0
  %1666 = vmatpush1.bf16.msra.mxu0 0
  %1667 = vmatprep.subr.bf16.mxu0 0
  %1668 = vmatpush1.bf16.msra.mxu0 0
  %1669 = vmatprep.subr.bf16.mxu0 0
  %1670 = vmatpush1.bf16.msra.mxu0 0
  %1671 = vmatprep.subr.bf16.mxu0 0
  %1672 = vmatpush1.bf16.msra.mxu0 0
  %1673 = vmatprep.subr.bf16.mxu0 0
  %1674 = vmatpush1.bf16.msra.mxu0 0
  %1675 = vmatprep.mubr.bf16.mxu0 0
  %1676 = vmatmul.mubr.bf16.gmra.mrb[0].mxu0 %v1638
  %v1677 = vpop.f32.mrb[0].mxu0
  %v1678 = vadd.f32 0.0, %v1677
  %v1679 = vpop.f32.mrb[0].mxu0
  %v1680 = vpop.f32.mrb[0].mxu0
  %v1681 = vpop.f32.mrb[0].mxu0
  %1682 = vdwg.mxu0
  %1683 = vrot.lane.b32.xlu0 %v156, 108
  %v1684 = vpop.permute.xlu0 %1683
  %v1686 = vsel %vm165, %v1581, 0
  %v1689 = vsel %vm674, %v1684, 0
  %1691 = vmatprep.subr.bf16.mxu0 0
  %1692 = vmatpush1.bf16.msra.mxu0 %v1689
  %1693 = vmatprep.subr.bf16.mxu0 0
  %1694 = vmatpush1.bf16.msra.mxu0 0
  %1695 = vmatprep.subr.bf16.mxu0 0
  %1696 = vmatpush1.bf16.msra.mxu0 0
  %1697 = vmatprep.subr.bf16.mxu0 0
  %1698 = vmatpush1.bf16.msra.mxu0 0
  %1699 = vmatprep.subr.bf16.mxu0 0
  %1700 = vmatpush1.bf16.msra.mxu0 0
  %1701 = vmatprep.subr.bf16.mxu0 0
  %1702 = vmatpush1.bf16.msra.mxu0 0
  %1703 = vmatprep.subr.bf16.mxu0 0
  %1704 = vmatpush1.bf16.msra.mxu0 0
  %1705 = vmatprep.subr.bf16.mxu0 0
  %1706 = vmatpush1.bf16.msra.mxu0 0
  %1707 = vmatprep.subr.bf16.mxu0 0
  %1708 = vmatpush1.bf16.msra.mxu0 0
  %1709 = vmatprep.subr.bf16.mxu0 0
  %1710 = vmatpush1.bf16.msra.mxu0 0
  %1711 = vmatprep.subr.bf16.mxu0 0
  %1712 = vmatpush1.bf16.msra.mxu0 0
  %1713 = vmatprep.subr.bf16.mxu0 0
  %1714 = vmatpush1.bf16.msra.mxu0 0
  %1715 = vmatprep.subr.bf16.mxu0 0
  %1716 = vmatpush1.bf16.msra.mxu0 0
  %1717 = vmatprep.subr.bf16.mxu0 0
  %1718 = vmatpush1.bf16.msra.mxu0 0
  %1719 = vmatprep.subr.bf16.mxu0 0
  %1720 = vmatpush1.bf16.msra.mxu0 0
  %1721 = vmatprep.subr.bf16.mxu0 0
  %1722 = vmatpush1.bf16.msra.mxu0 0
  %1723 = vmatprep.mubr.bf16.mxu0 0
  %1724 = vmatmul.mubr.bf16.gmra.mrb[0].mxu0 %v1686
  %v1725 = vpop.f32.mrb[0].mxu0
  %v1726 = vadd.f32 0.0, %v1725
  %v1727 = vpop.f32.mrb[0].mxu0
  %v1728 = vpop.f32.mrb[0].mxu0
  %v1729 = vpop.f32.mrb[0].mxu0
  %1730 = vdwg.mxu0
  %1731 = vrot.lane.b32.xlu0 %v157, 108
  %v1732 = vpop.permute.xlu0 %1731
  %v1734 = vsel %vm165, %v1582, 0
  %v1737 = vsel %vm674, %v1732, 0
  %1739 = vmatprep.subr.bf16.mxu0 0
  %1740 = vmatpush1.bf16.msra.mxu0 %v1737
  %1741 = vmatprep.subr.bf16.mxu0 0
  %1742 = vmatpush1.bf16.msra.mxu0 0
  %1743 = vmatprep.subr.bf16.mxu0 0
  %1744 = vmatpush1.bf16.msra.mxu0 0
  %1745 = vmatprep.subr.bf16.mxu0 0
  %1746 = vmatpush1.bf16.msra.mxu0 0
  %1747 = vmatprep.subr.bf16.mxu0 0
  %1748 = vmatpush1.bf16.msra.mxu0 0
  %1749 = vmatprep.subr.bf16.mxu0 0
  %1750 = vmatpush1.bf16.msra.mxu0 0
  %1751 = vmatprep.subr.bf16.mxu0 0
  %1752 = vmatpush1.bf16.msra.mxu0 0
  %1753 = vmatprep.subr.bf16.mxu0 0
  %1754 = vmatpush1.bf16.msra.mxu0 0
  %1755 = vmatprep.subr.bf16.mxu0 0
  %1756 = vmatpush1.bf16.msra.mxu0 0
  %1757 = vmatprep.subr.bf16.mxu0 0
  %1758 = vmatpush1.bf16.msra.mxu0 0
  %1759 = vmatprep.subr.bf16.mxu0 0
  %1760 = vmatpush1.bf16.msra.mxu0 0
  %1761 = vmatprep.subr.bf16.mxu0 0
  %1762 = vmatpush1.bf16.msra.mxu0 0
  %1763 = vmatprep.subr.bf16.mxu0 0
  %1764 = vmatpush1.bf16.msra.mxu0 0
  %1765 = vmatprep.subr.bf16.mxu0 0
  %1766 = vmatpush1.bf16.msra.mxu0 0
  %1767 = vmatprep.subr.bf16.mxu0 0
  %1768 = vmatpush1.bf16.msra.mxu0 0
  %1769 = vmatprep.subr.bf16.mxu0 0
  %1770 = vmatpush1.bf16.msra.mxu0 0
  %1771 = vmatprep.mubr.bf16.mxu0 0
  %1772 = vmatmul.mubr.bf16.gmra.mrb[0].mxu0 %v1734
  %v1773 = vpop.f32.mrb[0].mxu0
  %v1774 = vadd.f32 0.0, %v1773
  %v1775 = vpop.f32.mrb[0].mxu0
  %v1776 = vpop.f32.mrb[0].mxu0
  %v1777 = vpop.f32.mrb[0].mxu0
  %1778 = vdwg.mxu0
  %1779 = vrot.lane.b32.xlu0 %v158, 108
  %v1780 = vpop.permute.xlu0 %1779
  %v1782 = vsel %vm165, %v1583, 0
  %v1785 = vsel %vm674, %v1780, 0
  %1787 = vmatprep.subr.bf16.mxu0 0
  %1788 = vmatpush1.bf16.msra.mxu0 %v1785
  %1789 = vmatprep.subr.bf16.mxu0 0
  %1790 = vmatpush1.bf16.msra.mxu0 0
  %1791 = vmatprep.subr.bf16.mxu0 0
  %1792 = vmatpush1.bf16.msra.mxu0 0
  %1793 = vmatprep.subr.bf16.mxu0 0
  %1794 = vmatpush1.bf16.msra.mxu0 0
  %1795 = vmatprep.subr.bf16.mxu0 0
  %1796 = vmatpush1.bf16.msra.mxu0 0
  %1797 = vmatprep.subr.bf16.mxu0 0
  %1798 = vmatpush1.bf16.msra.mxu0 0
  %1799 = vmatprep.subr.bf16.mxu0 0
  %1800 = vmatpush1.bf16.msra.mxu0 0
  %1801 = vmatprep.subr.bf16.mxu0 0
  %1802 = vmatpush1.bf16.msra.mxu0 0
  %1803 = vmatprep.subr.bf16.mxu0 0
  %1804 = vmatpush1.bf16.msra.mxu0 0
  %1805 = vmatprep.subr.bf16.mxu0 0
  %1806 = vmatpush1.bf16.msra.mxu0 0
  %1807 = vmatprep.subr.bf16.mxu0 0
  %1808 = vmatpush1.bf16.msra.mxu0 0
  %1809 = vmatprep.subr.bf16.mxu0 0
  %1810 = vmatpush1.bf16.msra.mxu0 0
  %1811 = vmatprep.subr.bf16.mxu0 0
  %1812 = vmatpush1.bf16.msra.mxu0 0
  %1813 = vmatprep.subr.bf16.mxu0 0
  %1814 = vmatpush1.bf16.msra.mxu0 0
  %1815 = vmatprep.subr.bf16.mxu0 0
  %1816 = vmatpush1.bf16.msra.mxu0 0
  %1817 = vmatprep.subr.bf16.mxu0 0
  %1818 = vmatpush1.bf16.msra.mxu0 0
  %1819 = vmatprep.mubr.bf16.mxu0 0
  %1820 = vmatmul.mubr.bf16.gmra.mrb[0].mxu0 %v1782
  %v1821 = vpop.f32.mrb[0].mxu0
  %v1822 = vadd.f32 0.0, %v1821
  %v1823 = vpop.f32.mrb[0].mxu0
  %v1824 = vpop.f32.mrb[0].mxu0
  %v1825 = vpop.f32.mrb[0].mxu0
  %1826 = vdwg.mxu0
  %1827 = vrot.lane.b32.xlu0 %v159, 108
  %v1828 = vpop.permute.xlu0 %1827
  %v1830 = vsel %vm165, %v1584, 0
  %v1833 = vsel %vm674, %v1828, 0
  %1835 = vmatprep.subr.bf16.mxu0 0
  %1836 = vmatpush1.bf16.msra.mxu0 %v1833
  %1837 = vmatprep.subr.bf16.mxu0 0
  %1838 = vmatpush1.bf16.msra.mxu0 0
  %1839 = vmatprep.subr.bf16.mxu0 0
  %1840 = vmatpush1.bf16.msra.mxu0 0
  %1841 = vmatprep.subr.bf16.mxu0 0
  %1842 = vmatpush1.bf16.msra.mxu0 0
  %1843 = vmatprep.subr.bf16.mxu0 0
  %1844 = vmatpush1.bf16.msra.mxu0 0
  %1845 = vmatprep.subr.bf16.mxu0 0
  %1846 = vmatpush1.bf16.msra.mxu0 0
  %1847 = vmatprep.subr.bf16.mxu0 0
  %1848 = vmatpush1.bf16.msra.mxu0 0
  %1849 = vmatprep.subr.bf16.mxu0 0
  %1850 = vmatpush1.bf16.msra.mxu0 0
  %1851 = vmatprep.subr.bf16.mxu0 0
  %1852 = vmatpush1.bf16.msra.mxu0 0
  %1853 = vmatprep.subr.bf16.mxu0 0
  %1854 = vmatpush1.bf16.msra.mxu0 0
  %1855 = vmatprep.subr.bf16.mxu0 0
  %1856 = vmatpush1.bf16.msra.mxu0 0
  %1857 = vmatprep.subr.bf16.mxu0 0
  %1858 = vmatpush1.bf16.msra.mxu0 0
  %1859 = vmatprep.subr.bf16.mxu0 0
  %1860 = vmatpush1.bf16.msra.mxu0 0
  %1861 = vmatprep.subr.bf16.mxu0 0
  %1862 = vmatpush1.bf16.msra.mxu0 0
  %1863 = vmatprep.subr.bf16.mxu0 0
  %1864 = vmatpush1.bf16.msra.mxu0 0
  %1865 = vmatprep.subr.bf16.mxu0 0
  %1866 = vmatpush1.bf16.msra.mxu0 0
  %1867 = vmatprep.mubr.bf16.mxu0 0
  %1868 = vmatmul.mubr.bf16.gmra.mrb[0].mxu0 %v1830
  %v1869 = vpop.f32.mrb[0].mxu0
  %v1870 = vadd.f32 0.0, %v1869
  %v1871 = vpop.f32.mrb[0].mxu0
  %v1872 = vpop.f32.mrb[0].mxu0
  %v1873 = vpop.f32.mrb[0].mxu0
  %1874 = vdwg.mxu0
  %1875 = vrot.lane.b32.xlu0 %v160, 108
  %v1876 = vpop.permute.xlu0 %1875
  %v1878 = vsel %vm165, %v1585, 0
  %v1881 = vsel %vm674, %v1876, 0
  %1883 = vmatprep.subr.bf16.mxu0 0
  %1884 = vmatpush1.bf16.msra.mxu0 %v1881
  %1885 = vmatprep.subr.bf16.mxu0 0
  %1886 = vmatpush1.bf16.msra.mxu0 0
  %1887 = vmatprep.subr.bf16.mxu0 0
  %1888 = vmatpush1.bf16.msra.mxu0 0
  %1889 = vmatprep.subr.bf16.mxu0 0
  %1890 = vmatpush1.bf16.msra.mxu0 0
  %1891 = vmatprep.subr.bf16.mxu0 0
  %1892 = vmatpush1.bf16.msra.mxu0 0
  %1893 = vmatprep.subr.bf16.mxu0 0
  %1894 = vmatpush1.bf16.msra.mxu0 0
  %1895 = vmatprep.subr.bf16.mxu0 0
  %1896 = vmatpush1.bf16.msra.mxu0 0
  %1897 = vmatprep.subr.bf16.mxu0 0
  %1898 = vmatpush1.bf16.msra.mxu0 0
  %1899 = vmatprep.subr.bf16.mxu0 0
  %1900 = vmatpush1.bf16.msra.mxu0 0
  %1901 = vmatprep.subr.bf16.mxu0 0
  %1902 = vmatpush1.bf16.msra.mxu0 0
  %1903 = vmatprep.subr.bf16.mxu0 0
  %1904 = vmatpush1.bf16.msra.mxu0 0
  %1905 = vmatprep.subr.bf16.mxu0 0
  %1906 = vmatpush1.bf16.msra.mxu0 0
  %1907 = vmatprep.subr.bf16.mxu0 0
  %1908 = vmatpush1.bf16.msra.mxu0 0
  %1909 = vmatprep.subr.bf16.mxu0 0
  %1910 = vmatpush1.bf16.msra.mxu0 0
  %1911 = vmatprep.subr.bf16.mxu0 0
  %1912 = vmatpush1.bf16.msra.mxu0 0
  %1913 = vmatprep.subr.bf16.mxu0 0
  %1914 = vmatpush1.bf16.msra.mxu0 0
  %1915 = vmatprep.mubr.bf16.mxu0 0
  %1916 = vmatmul.mubr.bf16.gmra.mrb[0].mxu0 %v1878
  %v1917 = vpop.f32.mrb[0].mxu0
  %v1918 = vadd.f32 0.0, %v1917
  %v1919 = vpop.f32.mrb[0].mxu0
  %v1920 = vpop.f32.mrb[0].mxu0
  %v1921 = vpop.f32.mrb[0].mxu0
  %1922 = vdwg.mxu0
  %1923 = vrot.lane.b32.xlu0 %v161, 108
  %v1924 = vpop.permute.xlu0 %1923
  %v1926 = vsel %vm165, %v1586, 0
  %v1929 = vsel %vm674, %v1924, 0
  %1931 = vmatprep.subr.bf16.mxu0 0
  %1932 = vmatpush1.bf16.msra.mxu0 %v1929
  %1933 = vmatprep.subr.bf16.mxu0 0
  %1934 = vmatpush1.bf16.msra.mxu0 0
  %1935 = vmatprep.subr.bf16.mxu0 0
  %1936 = vmatpush1.bf16.msra.mxu0 0
  %1937 = vmatprep.subr.bf16.mxu0 0
  %1938 = vmatpush1.bf16.msra.mxu0 0
  %1939 = vmatprep.subr.bf16.mxu0 0
  %1940 = vmatpush1.bf16.msra.mxu0 0
  %1941 = vmatprep.subr.bf16.mxu0 0
  %1942 = vmatpush1.bf16.msra.mxu0 0
  %1943 = vmatprep.subr.bf16.mxu0 0
  %1944 = vmatpush1.bf16.msra.mxu0 0
  %1945 = vmatprep.subr.bf16.mxu0 0
  %1946 = vmatpush1.bf16.msra.mxu0 0
  %1947 = vmatprep.subr.bf16.mxu0 0
  %1948 = vmatpush1.bf16.msra.mxu0 0
  %1949 = vmatprep.subr.bf16.mxu0 0
  %1950 = vmatpush1.bf16.msra.mxu0 0
  %1951 = vmatprep.subr.bf16.mxu0 0
  %1952 = vmatpush1.bf16.msra.mxu0 0
  %1953 = vmatprep.subr.bf16.mxu0 0
  %1954 = vmatpush1.bf16.msra.mxu0 0
  %1955 = vmatprep.subr.bf16.mxu0 0
  %1956 = vmatpush1.bf16.msra.mxu0 0
  %1957 = vmatprep.subr.bf16.mxu0 0
  %1958 = vmatpush1.bf16.msra.mxu0 0
  %1959 = vmatprep.subr.bf16.mxu0 0
  %1960 = vmatpush1.bf16.msra.mxu0 0
  %1961 = vmatprep.subr.bf16.mxu0 0
  %1962 = vmatpush1.bf16.msra.mxu0 0
  %1963 = vmatprep.mubr.bf16.mxu0 0
  %1964 = vmatmul.mubr.bf16.gmra.mrb[0].mxu0 %v1926
  %v1965 = vpop.f32.mrb[0].mxu0
  %v1966 = vadd.f32 0.0, %v1965
  %v1967 = vpop.f32.mrb[0].mxu0
  %v1968 = vpop.f32.mrb[0].mxu0
  %v1969 = vpop.f32.mrb[0].mxu0
  %1970 = vdwg.mxu0
  %v1979 = vcombine.low %v1630, %v1678
  %v1980 = vcombine.low %v1726, %v1774
  %v1981 = vcombine.low %v1822, %v1870
  %v1982 = vcombine.low %v1918, %v1966
  %v1987 = vpack.c.bf16 %v1980, %v1979
  %v1988 = vpack.c.bf16 %v1982, %v1981
  %v1989 = vld [vmem:[%s4] sm:$0xc]
  %v1991 = vunpack.c.l.b16 %v1989
  %v1992 = vpack.c.b16 %v1991, %v1991
  %v1993 = vrot.slane %v1992, 2
  %v1995 = vsel %vm165, %v1987, 0
  %v1998 = vsel %vm165, %v1988, 0
  %v2001 = vsel %vm674, %v1993, 0
  %2003 = vmatprep.subr.bf16.mxu0 0
  %2004 = vmatpush1.bf16.msra.mxu0 %v2001
  %2005 = vmatprep.subr.bf16.mxu0 0
  %2006 = vmatpush1.bf16.msra.mxu0 0
  %2007 = vmatprep.subr.bf16.mxu0 0
  %2008 = vmatpush1.bf16.msra.mxu0 0
  %2009 = vmatprep.subr.bf16.mxu0 0
  %2010 = vmatpush1.bf16.msra.mxu0 0
  %2011 = vmatprep.subr.bf16.mxu0 0
  %2012 = vmatpush1.bf16.msra.mxu0 0
  %2013 = vmatprep.subr.bf16.mxu0 0
  %2014 = vmatpush1.bf16.msra.mxu0 0
  %2015 = vmatprep.subr.bf16.mxu0 0
  %2016 = vmatpush1.bf16.msra.mxu0 0
  %2017 = vmatprep.subr.bf16.mxu0 0
  %2018 = vmatpush1.bf16.msra.mxu0 0
  %2019 = vmatprep.subr.bf16.mxu0 0
  %2020 = vmatpush1.bf16.msra.mxu0 0
  %2021 = vmatprep.subr.bf16.mxu0 0
  %2022 = vmatpush1.bf16.msra.mxu0 0
  %2023 = vmatprep.subr.bf16.mxu0 0
  %2024 = vmatpush1.bf16.msra.mxu0 0
  %2025 = vmatprep.subr.bf16.mxu0 0
  %2026 = vmatpush1.bf16.msra.mxu0 0
  %2027 = vmatprep.subr.bf16.mxu0 0
  %2028 = vmatpush1.bf16.msra.mxu0 0
  %2029 = vmatprep.subr.bf16.mxu0 0
  %2030 = vmatpush1.bf16.msra.mxu0 0
  %2031 = vmatprep.subr.bf16.mxu0 0
  %2032 = vmatpush1.bf16.msra.mxu0 0
  %2033 = vmatprep.subr.bf16.mxu0 0
  %2034 = vmatpush1.bf16.msra.mxu0 0
  %2035 = vmatprep.mubr.bf16.mxu0 0
  %2036 = vmatmul.mubr.bf16.gmra.mrb[0].mxu0 %v1995
  %v2037 = vpop.f32.mrb[0].mxu0
  %v2038 = vadd.f32 0.0, %v2037
  %v2039 = vpop.f32.mrb[0].mxu0
  %v2040 = vpop.f32.mrb[0].mxu0
  %v2041 = vadd.f32 0.0, %v2040
  %v2042 = vpop.f32.mrb[0].mxu0
  %2043 = vmatprep.mubr.bf16.mxu0 0
  %2044 = vmatmul.mubr.bf16.gmra.mrb[0].mxu0 %v1998
  %v2045 = vpop.f32.mrb[0].mxu0
  %v2046 = vadd.f32 0.0, %v2045
  %v2047 = vpop.f32.mrb[0].mxu0
  %v2048 = vpop.f32.mrb[0].mxu0
  %v2049 = vadd.f32 0.0, %v2048
  %v2050 = vpop.f32.mrb[0].mxu0
  %2051 = vdwg.mxu0
  %v2053 = vsel %vm165, %v1070, 0
  %v2056 = vsel %vm165, %v1071, 0
  %v2059 = vsel %vm674, %v1072, 0
  %2061 = vmatprep.subr.bf16.mxu0 0
  %2062 = vmatpush1.bf16.msra.mxu0 %v2059
  %2063 = vmatprep.subr.bf16.mxu0 0
  %2064 = vmatpush1.bf16.msra.mxu0 0
  %2065 = vmatprep.subr.bf16.mxu0 0
  %2066 = vmatpush1.bf16.msra.mxu0 0
  %2067 = vmatprep.subr.bf16.mxu0 0
  %2068 = vmatpush1.bf16.msra.mxu0 0
  %2069 = vmatprep.subr.bf16.mxu0 0
  %2070 = vmatpush1.bf16.msra.mxu0 0
  %2071 = vmatprep.subr.bf16.mxu0 0
  %2072 = vmatpush1.bf16.msra.mxu0 0
  %2073 = vmatprep.subr.bf16.mxu0 0
  %2074 = vmatpush1.bf16.msra.mxu0 0
  %2075 = vmatprep.subr.bf16.mxu0 0
  %2076 = vmatpush1.bf16.msra.mxu0 0
  %2077 = vmatprep.subr.bf16.mxu0 0
  %2078 = vmatpush1.bf16.msra.mxu0 0
  %2079 = vmatprep.subr.bf16.mxu0 0
  %2080 = vmatpush1.bf16.msra.mxu0 0
  %2081 = vmatprep.subr.bf16.mxu0 0
  %2082 = vmatpush1.bf16.msra.mxu0 0
  %2083 = vmatprep.subr.bf16.mxu0 0
  %2084 = vmatpush1.bf16.msra.mxu0 0
  %2085 = vmatprep.subr.bf16.mxu0 0
  %2086 = vmatpush1.bf16.msra.mxu0 0
  %2087 = vmatprep.subr.bf16.mxu0 0
  %2088 = vmatpush1.bf16.msra.mxu0 0
  %2089 = vmatprep.subr.bf16.mxu0 0
  %2090 = vmatpush1.bf16.msra.mxu0 0
  %2091 = vmatprep.subr.bf16.mxu0 0
  %2092 = vmatpush1.bf16.msra.mxu0 0
  %2093 = vmatprep.mubr.bf16.mxu0 0
  %2094 = vmatmul.mubr.bf16.gmra.mrb[0].mxu0 %v2053
  %v2095 = vpop.f32.mrb[0].mxu0
  %v2096 = vadd.f32 %v2038, %v2095
  %v2097 = vpop.f32.mrb[0].mxu0
  %v2098 = vpop.f32.mrb[0].mxu0
  %v2099 = vadd.f32 %v2041, %v2098
  %v2100 = vpop.f32.mrb[0].mxu0
  %2101 = vmatprep.mubr.bf16.mxu0 0
  %2102 = vmatmul.mubr.bf16.gmra.mrb[0].mxu0 %v2056
  %v2103 = vpop.f32.mrb[0].mxu0
  %v2104 = vadd.f32 %v2046, %v2103
  %v2105 = vpop.f32.mrb[0].mxu0
  %v2106 = vpop.f32.mrb[0].mxu0
  %v2107 = vadd.f32 %v2049, %v2106
  %v2108 = vpop.f32.mrb[0].mxu0
  %2109 = vdwg.mxu0
  %v2110 = vld [vmem:[%s5] sm:$0x1]
  %v2112 = vlaneseq
  %v2113 = vshrl.u32 %v2112, 7
  %v2114 = vsub.s32 0, %v2113
  %v2115 = vrot.slane %v2110, %v2114
  %v2117 = vadd.f32 %v2096, %v2115
  %v2118 = vadd.f32 %v2099, %v2115
  %v2119 = vadd.f32 %v2104, %v2115
  %v2120 = vadd.f32 %v2107, %v2115
  %v2125 = vcombine.high %v2117, %v2117
  %v2126 = vcombine.high %v2118, %v2118
  %v2127 = vcombine.high %v2119, %v2119
  %v2128 = vcombine.high %v2120, %v2120
  %v2133 = vpack.c.bf16 %v2117, %v2117
  %v2134 = vpack.c.bf16 %v2125, %v2125
  %v2135 = vpack.c.bf16 %v2118, %v2118
  %v2136 = vpack.c.bf16 %v2126, %v2126
  %v2137 = vpack.c.bf16 %v2119, %v2119
  %v2138 = vpack.c.bf16 %v2127, %v2127
  %v2139 = vpack.c.bf16 %v2120, %v2120
  %v2140 = vpack.c.bf16 %v2128, %v2128
  %vm2141 = vcmask 58368
  %2142 = vst.msk [vmem:[%s6] sm:$0x3] %vm2141, %v2133
  %2143 = vst.msk [vmem:[%s6 + $0x2] sm:$0x3] %vm2141, %v2134
  %2144 = vst.msk [vmem:[%s6 + $0x4] sm:$0x3] %vm2141, %v2135
  %2145 = vst.msk [vmem:[%s6 + $0x6] sm:$0x3] %vm2141, %v2136
  %2146 = vst.msk [vmem:[%s6 + $0x8] sm:$0x3] %vm2141, %v2137
  %2147 = vst.msk [vmem:[%s6 + $0xa] sm:$0x3] %vm2141, %v2138
  %2148 = vst.msk [vmem:[%s6 + $0xc] sm:$0x3] %vm2141, %v2139
  %2149 = vst.msk [vmem:[%s6 + $0xe] sm:$0x3] %vm2141, %v2140
  // Predicated region
  $region26: #{swin_forward.21} parent=0 // pred_check
    _
  $region27: #{swin_forward.21} parent=0 // pred_check_branch
    %2151 = sbr.rel (0) target = $region29
  $region28: #{swin_forward.21} parent=0 // pred_region
    _
  $region29: #{swin_forward.21} parent=0 // pred_fallthru
    _
  // Predicated region
  $region30: #{swin_forward.21} parent=0 // pred_check
    _
  $region31: #{swin_forward.21} parent=0 // pred_check_branch
    %2153 = sbr.rel (0) target = $region33
  $region32: #{swin_forward.21} parent=0 // pred_region
    _
  $region33: #{swin_forward.21} parent=0 // pred_fallthru
    _

// kernel: swin_forward.29
$region0: #{swin_forward.29}
  #allocation0 [shape = 'u32[]', space=smem, size = 0x4, offset = 0x4, fixed_abs, tag = 'smem constant byte address 0x4 - core index']
  #allocation1 [shape = 'u32[144,128]{1,0:T(1,128)}', space=vmem, size = 0x12000, scoped, tag = 'internal scratch']
  %s0 = inlined_call_operand.vmem [shape: bf16[8,32], index: 0, kind: input, shape index: {}]
  %s1 = inlined_call_operand.vmem [shape: f32[1,32], index: 1, kind: input, shape index: {}]
  %s2 = inlined_call_operand.vmem [shape: f32[1,32], index: 2, kind: input, shape index: {}]
  %s3 = inlined_call_operand.vmem [shape: bf16[32,16], index: 3, kind: input, shape index: {}]
  %s4 = inlined_call_operand.vmem [shape: f32[1,16], index: 4, kind: input, shape index: {}]
  %s5 = inlined_call_operand.vmem [shape: bf16[8,16], index: 5, kind: output, shape index: {}]
  %s6 = sld [smem:[#allocation0]]
  $region30: #{swin_forward.29} parent=0
    _
  %s8 = ssub.s32 1, %s6
  %s9 = scalar_select 0, %s8, %s6
  // Predicated region
  $region2: #{swin_forward.29} parent=0 // pred_check
    _
  $region3: #{swin_forward.29} parent=0 // pred_check_branch
    %11 = sbr.rel (0) target = $region5
  $region4: #{swin_forward.29} parent=0 // pred_region
    _
  $region5: #{swin_forward.29} parent=0 // pred_fallthru
    _
  // Predicated region
  $region6: #{swin_forward.29} parent=0 // pred_check
    _
  $region7: #{swin_forward.29} parent=0 // pred_check_branch
    %13 = sbr.rel (0) target = $region9
  $region8: #{swin_forward.29} parent=0 // pred_region
    _
  $region9: #{swin_forward.29} parent=0 // pred_fallthru
    _
  // Predicated region
  $region10: #{swin_forward.29} parent=0 // pred_check
    _
  $region11: #{swin_forward.29} parent=0 // pred_check_branch
    %15 = sbr.rel (0) target = $region13
  $region12: #{swin_forward.29} parent=0 // pred_region
    _
  $region13: #{swin_forward.29} parent=0 // pred_fallthru
    _
  // Predicated region
  $region14: #{swin_forward.29} parent=0 // pred_check
    _
  $region15: #{swin_forward.29} parent=0 // pred_check_branch
    %17 = sbr.rel (0) target = $region17
  $region16: #{swin_forward.29} parent=0 // pred_region
    _
  $region17: #{swin_forward.29} parent=0 // pred_fallthru
    _
  // Predicated region
  $region18: #{swin_forward.29} parent=0 // pred_check
    _
  $region19: #{swin_forward.29} parent=0 // pred_check_branch
    %19 = sbr.rel (0) target = $region21
  $region20: #{swin_forward.29} parent=0 // pred_region
    _
  $region21: #{swin_forward.29} parent=0 // pred_fallthru
    _
  %v21 = vld [vmem:[%s0] sm:$0xf]
  %v22 = vunpack.c.l.bf16 %v21
  %vm23 = vcmask 261120
  %v24 = vsel %vm23, %v22, 0.0
  %25 = vadd.xlane.f32.xlu0 %v24
  %v26 = vpop.xlane.xlu0 %25
  %v27 = vrcp.pop 32.0
  %v28 = vmul.f32 %v26, %v27
  %v29 = vsub.f32 %v22, %v28
  %v30 = vmul.f32 %v29, %v29
  %v31 = vsel %vm23, %v30, 0.0
  %32 = vadd.xlane.f32.xlu0 %v31
  %v33 = vpop.xlane.xlu0 %32
  %v34 = vmul.f32 %v33, %v27
  %v35 = vadd.f32 %v34, 1e-05
  %v36 = vrsqrt.pop %v35
  %v37 = vmul.f32 %v29, %v36
  %v38 = vld [vmem:[%s1] sm:$0x1]
  %v40 = vlaneseq
  %v41 = vshrl.u32 %v40, 7
  %v42 = vsub.s32 0, %v41
  %v43 = vrot.slane %v38, %v42
  %v45 = vmul.f32 %v37, %v43
  %v46 = vld [vmem:[%s2] sm:$0x1]
  %v48 = vlaneseq
  %v49 = vshrl.u32 %v48, 7
  %v50 = vsub.s32 0, %v49
  %v51 = vrot.slane %v46, %v50
  %v53 = vadd.f32 %v45, %v51
  %v54 = vpack.c.bf16 %v53, %v53
  %v55 = vld [vmem:[%s3] sm:$0xf]
  %v56 = vld [vmem:[%s3 + $0x4] sm:$0xf]
  %v57 = vld [vmem:[%s3 + $0x8] sm:$0xf]
  %v58 = vld [vmem:[%s3 + $0xc] sm:$0xf]
  %v59 = vld [vmem:[%s4] sm:$0x1]
  %v61 = vlaneseq
  %v62 = vshrl.u32 %v61, 7
  %v63 = vsub.s32 0, %v62
  %v64 = vrot.slane %v59, %v63
  %v70 = vunpack.c.l.b16 %v55
  %v71 = vunpack.c.l.b16 %v56
  %v72 = vunpack.c.l.b16 %v57
  %v73 = vunpack.c.l.b16 %v58
  %v74 = vpack.c.b16 %v71, %v70
  %v75 = vpack.c.b16 %v73, %v72
  %v79 = vsel %vm23, %v54, 0
  %81 = vmatprep.subr.bf16.mxu0 0
  %82 = vmatpush1.bf16.msra.mxu0 %v74
  %83 = vmatprep.subr.bf16.mxu0 0
  %84 = vmatpush1.bf16.msra.mxu0 %v75
  %85 = vmatprep.subr.bf16.mxu0 0
  %86 = vmatpush1.bf16.msra.mxu0 0
  %87 = vmatprep.subr.bf16.mxu0 0
  %88 = vmatpush1.bf16.msra.mxu0 0
  %89 = vmatprep.subr.bf16.mxu0 0
  %90 = vmatpush1.bf16.msra.mxu0 0
  %91 = vmatprep.subr.bf16.mxu0 0
  %92 = vmatpush1.bf16.msra.mxu0 0
  %93 = vmatprep.subr.bf16.mxu0 0
  %94 = vmatpush1.bf16.msra.mxu0 0
  %95 = vmatprep.subr.bf16.mxu0 0
  %96 = vmatpush1.bf16.msra.mxu0 0
  %97 = vmatprep.subr.bf16.mxu0 0
  %98 = vmatpush1.bf16.msra.mxu0 0
  %99 = vmatprep.subr.bf16.mxu0 0
  %100 = vmatpush1.bf16.msra.mxu0 0
  %101 = vmatprep.subr.bf16.mxu0 0
  %102 = vmatpush1.bf16.msra.mxu0 0
  %103 = vmatprep.subr.bf16.mxu0 0
  %104 = vmatpush1.bf16.msra.mxu0 0
  %105 = vmatprep.subr.bf16.mxu0 0
  %106 = vmatpush1.bf16.msra.mxu0 0
  %107 = vmatprep.subr.bf16.mxu0 0
  %108 = vmatpush1.bf16.msra.mxu0 0
  %109 = vmatprep.subr.bf16.mxu0 0
  %110 = vmatpush1.bf16.msra.mxu0 0
  %111 = vmatprep.subr.bf16.mxu0 0
  %112 = vmatpush1.bf16.msra.mxu0 0
  %113 = vmatprep.mubr.bf16.mxu0 0
  %114 = vmatmul.mubr.bf16.gmra.mrb[0].mxu0 %v79
  %v115 = vpop.f32.mrb[0].mxu0
  %v116 = vadd.f32 %v64, %v115
  %v117 = vpop.f32.mrb[0].mxu0
  %v118 = vpop.f32.mrb[0].mxu0
  %v119 = vpop.f32.mrb[0].mxu0
  %120 = vdwg.mxu0
  %v121 = vpack.c.bf16 %v116, %v116
  %vm122 = vcmask 125952
  %123 = vst.msk [vmem:[%s5] sm:$0xf] %vm122, %v121
  // Predicated region
  $region22: #{swin_forward.29} parent=0 // pred_check
    _
  $region23: #{swin_forward.29} parent=0 // pred_check_branch
    %125 = sbr.rel (0) target = $region25
  $region24: #{swin_forward.29} parent=0 // pred_region
    _
  $region25: #{swin_forward.29} parent=0 // pred_fallthru
    _
  // Predicated region
  $region26: #{swin_forward.29} parent=0 // pred_check
    _
  $region27: #{swin_forward.29} parent=0 // pred_check_branch
    %127 = sbr.rel (0) target = $region29
  $region28: #{swin_forward.29} parent=0 // pred_region
    _
  $region29: #{swin_forward.29} parent=0 // pred_fallthru
    _

// kernel: swin_forward.31
$region0: #{swin_forward.31}
  #allocation0 [shape = 'u32[]', space=smem, size = 0x4, offset = 0x4, fixed_abs, tag = 'smem constant byte address 0x4 - core index']
  #allocation1 [shape = 'u32[144,128]{1,0:T(1,128)}', space=vmem, size = 0x12000, scoped, tag = 'internal scratch']
  %s0 = inlined_call_operand.vmem [shape: bf16[8,16], index: 0, kind: input, shape index: {}]
  %s1 = inlined_call_operand.vmem [shape: f32[1,16], index: 1, kind: input, shape index: {}]
  %s2 = inlined_call_operand.vmem [shape: f32[1,16], index: 2, kind: input, shape index: {}]
  %s3 = inlined_call_operand.vmem [shape: bf16[8,16], index: 3, kind: output, shape index: {}]
  %s4 = sld [smem:[#allocation0]]
  $region22: #{swin_forward.31} parent=0
    _
  %s6 = ssub.s32 1, %s4
  %s7 = scalar_select 0, %s6, %s4
  // Predicated region
  $region2: #{swin_forward.31} parent=0 // pred_check
    _
  $region3: #{swin_forward.31} parent=0 // pred_check_branch
    %9 = sbr.rel (0) target = $region5
  $region4: #{swin_forward.31} parent=0 // pred_region
    _
  $region5: #{swin_forward.31} parent=0 // pred_fallthru
    _
  // Predicated region
  $region6: #{swin_forward.31} parent=0 // pred_check
    _
  $region7: #{swin_forward.31} parent=0 // pred_check_branch
    %11 = sbr.rel (0) target = $region9
  $region8: #{swin_forward.31} parent=0 // pred_region
    _
  $region9: #{swin_forward.31} parent=0 // pred_fallthru
    _
  // Predicated region
  $region10: #{swin_forward.31} parent=0 // pred_check
    _
  $region11: #{swin_forward.31} parent=0 // pred_check_branch
    %13 = sbr.rel (0) target = $region13
  $region12: #{swin_forward.31} parent=0 // pred_region
    _
  $region13: #{swin_forward.31} parent=0 // pred_fallthru
    _
  %v14 = vld [vmem:[%s0] sm:$0xf]
  %v15 = vunpack.c.l.bf16 %v14
  %vm16 = vcmask 130048
  %v17 = vsel %vm16, %v15, 0.0
  %18 = vadd.xlane.f32.xlu0 %v17
  %v19 = vpop.xlane.xlu0 %18
  %v20 = vrcp.pop 16.0
  %v21 = vmul.f32 %v19, %v20
  %v22 = vsub.f32 %v15, %v21
  %v23 = vmul.f32 %v22, %v22
  %v24 = vsel %vm16, %v23, 0.0
  %25 = vadd.xlane.f32.xlu0 %v24
  %v26 = vpop.xlane.xlu0 %25
  %v27 = vmul.f32 %v26, %v20
  %v28 = vadd.f32 %v27, 1e-05
  %v29 = vrsqrt.pop %v28
  %v30 = vmul.f32 %v22, %v29
  %v31 = vld [vmem:[%s1] sm:$0x1]
  %v33 = vlaneseq
  %v34 = vshrl.u32 %v33, 7
  %v35 = vsub.s32 0, %v34
  %v36 = vrot.slane %v31, %v35
  %v38 = vmul.f32 %v30, %v36
  %v39 = vadd.f32 %v15, %v38
  %v40 = vld [vmem:[%s2] sm:$0x1]
  %v42 = vlaneseq
  %v43 = vshrl.u32 %v42, 7
  %v44 = vsub.s32 0, %v43
  %v45 = vrot.slane %v40, %v44
  %v47 = vadd.f32 %v39, %v45
  %v48 = vpack.c.bf16 %v47, %v47
  %vm49 = vcmask 125952
  %50 = vst.msk [vmem:[%s3] sm:$0xf] %vm49, %v48
  // Predicated region
  $region14: #{swin_forward.31} parent=0 // pred_check
    _
  $region15: #{swin_forward.31} parent=0 // pred_check_branch
    %52 = sbr.rel (0) target = $region17
  $region16: #{swin_forward.31} parent=0 // pred_region
    _
  $region17: #{swin_forward.31} parent=0 // pred_fallthru
    _
  // Predicated region
  $region18: #{swin_forward.31} parent=0 // pred_check
    _
  $region19: #{swin_forward.31} parent=0 // pred_check_branch
    %54 = sbr.rel (0) target = $region21
  $region20: #{swin_forward.31} parent=0 // pred_region
    _
  $region21: #{swin_forward.31} parent=0 // pred_fallthru
    _

// kernel: swin_forward.32
$region0: #{swin_forward.32}
  #allocation0 [shape = 'u32[]', space=smem, size = 0x4, offset = 0x4, fixed_abs, tag = 'smem constant byte address 0x4 - core index']
  #allocation1 [shape = 'u32[144,128]{1,0:T(1,128)}', space=vmem, size = 0x12000, scoped, tag = 'internal scratch']
  %s0 = inlined_call_operand.vmem [shape: bf16[8,16], index: 0, kind: input, shape index: {}]
  %s1 = inlined_call_operand.vmem [shape: f32[1,16], index: 1, kind: input, shape index: {}]
  %s2 = inlined_call_operand.vmem [shape: f32[1,16], index: 2, kind: input, shape index: {}]
  %s3 = inlined_call_operand.vmem [shape: bf16[16,64], index: 3, kind: input, shape index: {}]
  %s4 = inlined_call_operand.vmem [shape: f32[1,64], index: 4, kind: input, shape index: {}]
  %s5 = inlined_call_operand.vmem [shape: bf16[8,64], index: 5, kind: output, shape index: {}]
  %s6 = sld [smem:[#allocation0]]
  $region30: #{swin_forward.32} parent=0
    _
  %s8 = ssub.s32 1, %s6
  %s9 = scalar_select 0, %s8, %s6
  // Predicated region
  $region2: #{swin_forward.32} parent=0 // pred_check
    _
  $region3: #{swin_forward.32} parent=0 // pred_check_branch
    %11 = sbr.rel (0) target = $region5
  $region4: #{swin_forward.32} parent=0 // pred_region
    _
  $region5: #{swin_forward.32} parent=0 // pred_fallthru
    _
  // Predicated region
  $region6: #{swin_forward.32} parent=0 // pred_check
    _
  $region7: #{swin_forward.32} parent=0 // pred_check_branch
    %13 = sbr.rel (0) target = $region9
  $region8: #{swin_forward.32} parent=0 // pred_region
    _
  $region9: #{swin_forward.32} parent=0 // pred_fallthru
    _
  // Predicated region
  $region10: #{swin_forward.32} parent=0 // pred_check
    _
  $region11: #{swin_forward.32} parent=0 // pred_check_branch
    %15 = sbr.rel (0) target = $region13
  $region12: #{swin_forward.32} parent=0 // pred_region
    _
  $region13: #{swin_forward.32} parent=0 // pred_fallthru
    _
  // Predicated region
  $region14: #{swin_forward.32} parent=0 // pred_check
    _
  $region15: #{swin_forward.32} parent=0 // pred_check_branch
    %17 = sbr.rel (0) target = $region17
  $region16: #{swin_forward.32} parent=0 // pred_region
    _
  $region17: #{swin_forward.32} parent=0 // pred_fallthru
    _
  // Predicated region
  $region18: #{swin_forward.32} parent=0 // pred_check
    _
  $region19: #{swin_forward.32} parent=0 // pred_check_branch
    %19 = sbr.rel (0) target = $region21
  $region20: #{swin_forward.32} parent=0 // pred_region
    _
  $region21: #{swin_forward.32} parent=0 // pred_fallthru
    _
  %v21 = vld [vmem:[%s0] sm:$0xf]
  %v22 = vunpack.c.l.bf16 %v21
  %vm23 = vcmask 130048
  %v24 = vsel %vm23, %v22, 0.0
  %25 = vadd.xlane.f32.xlu0 %v24
  %v26 = vpop.xlane.xlu0 %25
  %v27 = vrcp.pop 16.0
  %v28 = vmul.f32 %v26, %v27
  %v29 = vsub.f32 %v22, %v28
  %v30 = vmul.f32 %v29, %v29
  %v31 = vsel %vm23, %v30, 0.0
  %32 = vadd.xlane.f32.xlu0 %v31
  %v33 = vpop.xlane.xlu0 %32
  %v34 = vmul.f32 %v33, %v27
  %v35 = vadd.f32 %v34, 1e-05
  %v36 = vrsqrt.pop %v35
  %v37 = vmul.f32 %v29, %v36
  %v38 = vld [vmem:[%s1] sm:$0x1]
  %v40 = vlaneseq
  %v41 = vshrl.u32 %v40, 7
  %v42 = vsub.s32 0, %v41
  %v43 = vrot.slane %v38, %v42
  %v45 = vmul.f32 %v37, %v43
  %v46 = vld [vmem:[%s2] sm:$0x1]
  %v48 = vlaneseq
  %v49 = vshrl.u32 %v48, 7
  %v50 = vsub.s32 0, %v49
  %v51 = vrot.slane %v46, %v50
  %v53 = vadd.f32 %v45, %v51
  %v54 = vpack.c.bf16 %v53, %v53
  %v55 = vld [vmem:[%s3] sm:$0xf]
  %v56 = vld [vmem:[%s3 + $0x4] sm:$0xf]
  %v57 = vld [vmem:[%s4] sm:$0x1]
  %v59 = vlaneseq
  %v60 = vshrl.u32 %v59, 7
  %v61 = vsub.s32 0, %v60
  %v62 = vrot.slane %v57, %v61
  %v66 = vunpack.c.l.b16 %v55
  %v67 = vunpack.c.l.b16 %v56
  %v68 = vpack.c.b16 %v67, %v66
  %v71 = vsel %vm23, %v54, 0
  %73 = vmatprep.subr.bf16.mxu0 0
  %74 = vmatpush1.bf16.msra.mxu0 %v68
  %75 = vmatprep.subr.bf16.mxu0 0
  %76 = vmatpush1.bf16.msra.mxu0 0
  %77 = vmatprep.subr.bf16.mxu0 0
  %78 = vmatpush1.bf16.msra.mxu0 0
  %79 = vmatprep.subr.bf16.mxu0 0
  %80 = vmatpush1.bf16.msra.mxu0 0
  %81 = vmatprep.subr.bf16.mxu0 0
  %82 = vmatpush1.bf16.msra.mxu0 0
  %83 = vmatprep.subr.bf16.mxu0 0
  %84 = vmatpush1.bf16.msra.mxu0 0
  %85 = vmatprep.subr.bf16.mxu0 0
  %86 = vmatpush1.bf16.msra.mxu0 0
  %87 = vmatprep.subr.bf16.mxu0 0
  %88 = vmatpush1.bf16.msra.mxu0 0
  %89 = vmatprep.subr.bf16.mxu0 0
  %90 = vmatpush1.bf16.msra.mxu0 0
  %91 = vmatprep.subr.bf16.mxu0 0
  %92 = vmatpush1.bf16.msra.mxu0 0
  %93 = vmatprep.subr.bf16.mxu0 0
  %94 = vmatpush1.bf16.msra.mxu0 0
  %95 = vmatprep.subr.bf16.mxu0 0
  %96 = vmatpush1.bf16.msra.mxu0 0
  %97 = vmatprep.subr.bf16.mxu0 0
  %98 = vmatpush1.bf16.msra.mxu0 0
  %99 = vmatprep.subr.bf16.mxu0 0
  %100 = vmatpush1.bf16.msra.mxu0 0
  %101 = vmatprep.subr.bf16.mxu0 0
  %102 = vmatpush1.bf16.msra.mxu0 0
  %103 = vmatprep.subr.bf16.mxu0 0
  %104 = vmatpush1.bf16.msra.mxu0 0
  %105 = vmatprep.mubr.bf16.mxu0 0
  %106 = vmatmul.mubr.bf16.gmra.mrb[0].mxu0 %v71
  %v107 = vpop.f32.mrb[0].mxu0
  %v108 = vadd.f32 %v62, %v107
  %v109 = vpop.f32.mrb[0].mxu0
  %v110 = vpop.f32.mrb[0].mxu0
  %v111 = vpop.f32.mrb[0].mxu0
  %112 = vdwg.mxu0
  %v113 = vmul.f32 %v108, 0.5
  %v114 = vmul.f32 %v108, 0.70710677
  %v115 = verf.f32.pop %v114
  %v116 = vadd.f32 %v115, 1.0
  %v117 = vmul.f32 %v113, %v116
  %v118 = vpack.c.bf16 %v117, %v117
  %vm119 = vcmask 519168
  %120 = vst.msk [vmem:[%s5] sm:$0xf] %vm119, %v118
  // Predicated region
  $region22: #{swin_forward.32} parent=0 // pred_check
    _
  $region23: #{swin_forward.32} parent=0 // pred_check_branch
    %122 = sbr.rel (0) target = $region25
  $region24: #{swin_forward.32} parent=0 // pred_region
    _
  $region25: #{swin_forward.32} parent=0 // pred_fallthru
    _
  // Predicated region
  $region26: #{swin_forward.32} parent=0 // pred_check
    _
  $region27: #{swin_forward.32} parent=0 // pred_check_branch
    %124 = sbr.rel (0) target = $region29
  $region28: #{swin_forward.32} parent=0 // pred_region
    _
  $region29: #{swin_forward.32} parent=0 // pred_fallthru
    _

// kernel: swin_forward.30
$region0: #{swin_forward.30}
  #allocation0 [shape = 'u32[]', space=smem, size = 0x4, offset = 0x4, fixed_abs, tag = 'smem constant byte address 0x4 - core index']
  #allocation1 [shape = 'u32[144,128]{1,0:T(1,128)}', space=vmem, size = 0x12000, scoped, tag = 'internal scratch']
  %s0 = inlined_call_operand.vmem [shape: bf16[2,4,16], index: 0, kind: input, shape index: {}]
  %s1 = inlined_call_operand.vmem [shape: bf16[16,48], index: 1, kind: input, shape index: {}]
  %s2 = inlined_call_operand.vmem [shape: f32[1,48], index: 2, kind: input, shape index: {}]
  %s3 = inlined_call_operand.vmem [shape: f32[4,4,4], index: 3, kind: input, shape index: {}]
  %s4 = inlined_call_operand.vmem [shape: bf16[16,16], index: 4, kind: input, shape index: {}]
  %s5 = inlined_call_operand.vmem [shape: f32[1,16], index: 5, kind: input, shape index: {}]
  %s6 = inlined_call_operand.vmem [shape: bf16[2,4,16], index: 6, kind: output, shape index: {}]
  %s7 = sld [smem:[#allocation0]]
  $region34: #{swin_forward.30} parent=0
    _
  %s9 = ssub.s32 1, %s7
  %s10 = scalar_select 0, %s9, %s7
  // Predicated region
  $region2: #{swin_forward.30} parent=0 // pred_check
    _
  $region3: #{swin_forward.30} parent=0 // pred_check_branch
    %12 = sbr.rel (0) target = $region5
  $region4: #{swin_forward.30} parent=0 // pred_region
    _
  $region5: #{swin_forward.30} parent=0 // pred_fallthru
    _
  // Predicated region
  $region6: #{swin_forward.30} parent=0 // pred_check
    _
  $region7: #{swin_forward.30} parent=0 // pred_check_branch
    %14 = sbr.rel (0) target = $region9
  $region8: #{swin_forward.30} parent=0 // pred_region
    _
  $region9: #{swin_forward.30} parent=0 // pred_fallthru
    _
  // Predicated region
  $region10: #{swin_forward.30} parent=0 // pred_check
    _
  $region11: #{swin_forward.30} parent=0 // pred_check_branch
    %16 = sbr.rel (0) target = $region13
  $region12: #{swin_forward.30} parent=0 // pred_region
    _
  $region13: #{swin_forward.30} parent=0 // pred_fallthru
    _
  // Predicated region
  $region14: #{swin_forward.30} parent=0 // pred_check
    _
  $region15: #{swin_forward.30} parent=0 // pred_check_branch
    %18 = sbr.rel (0) target = $region17
  $region16: #{swin_forward.30} parent=0 // pred_region
    _
  $region17: #{swin_forward.30} parent=0 // pred_fallthru
    _
  // Predicated region
  $region18: #{swin_forward.30} parent=0 // pred_check
    _
  $region19: #{swin_forward.30} parent=0 // pred_check_branch
    %20 = sbr.rel (0) target = $region21
  $region20: #{swin_forward.30} parent=0 // pred_region
    _
  $region21: #{swin_forward.30} parent=0 // pred_fallthru
    _
  // Predicated region
  $region22: #{swin_forward.30} parent=0 // pred_check
    _
  $region23: #{swin_forward.30} parent=0 // pred_check_branch
    %22 = sbr.rel (0) target = $region25
  $region24: #{swin_forward.30} parent=0 // pred_region
    _
  $region25: #{swin_forward.30} parent=0 // pred_fallthru
    _
  %v24 = vld [vmem:[%s0] sm:$0x3]
  %v25 = vld [vmem:[%s0 + $0x2] sm:$0x3]
  %v26 = vld [vmem:[%s1] sm:$0xf]
  %v27 = vld [vmem:[%s1 + $0x4] sm:$0xf]
  %v28 = vld [vmem:[%s2] sm:$0x1]
  %v30 = vlaneseq
  %v31 = vshrl.u32 %v30, 7
  %v32 = vsub.s32 0, %v31
  %v33 = vrot.slane %v28, %v32
  %v37 = vcombine.low %v24, %v25
  %v39 = vunpack.c.l.s4 1983009808
  %v40 = vunpack.c.0.s8 %v39
  %v41 = vlaneseq
  %v42 = vshrl.u32 %v41, 7
  %v43 = vsub.s32 %v40, %v42
  %v44 = vrot.slane %v37, %v43
  %v47 = vunpack.c.l.b16 %v26
  %v48 = vunpack.c.l.b16 %v27
  %v49 = vpack.c.b16 %v48, %v47
  %vm51 = vcmask 130048
  %v53 = vsel %vm51, %v44, 0
  %55 = vmatprep.subr.bf16.mxu0 0
  %56 = vmatpush1.bf16.msra.mxu0 %v49
  %57 = vmatprep.subr.bf16.mxu0 0
  %58 = vmatpush1.bf16.msra.mxu0 0
  %59 = vmatprep.subr.bf16.mxu0 0
  %60 = vmatpush1.bf16.msra.mxu0 0
  %61 = vmatprep.subr.bf16.mxu0 0
  %62 = vmatpush1.bf16.msra.mxu0 0
  %63 = vmatprep.subr.bf16.mxu0 0
  %64 = vmatpush1.bf16.msra.mxu0 0
  %65 = vmatprep.subr.bf16.mxu0 0
  %66 = vmatpush1.bf16.msra.mxu0 0
  %67 = vmatprep.subr.bf16.mxu0 0
  %68 = vmatpush1.bf16.msra.mxu0 0
  %69 = vmatprep.subr.bf16.mxu0 0
  %70 = vmatpush1.bf16.msra.mxu0 0
  %71 = vmatprep.subr.bf16.mxu0 0
  %72 = vmatpush1.bf16.msra.mxu0 0
  %73 = vmatprep.subr.bf16.mxu0 0
  %74 = vmatpush1.bf16.msra.mxu0 0
  %75 = vmatprep.subr.bf16.mxu0 0
  %76 = vmatpush1.bf16.msra.mxu0 0
  %77 = vmatprep.subr.bf16.mxu0 0
  %78 = vmatpush1.bf16.msra.mxu0 0
  %79 = vmatprep.subr.bf16.mxu0 0
  %80 = vmatpush1.bf16.msra.mxu0 0
  %81 = vmatprep.subr.bf16.mxu0 0
  %82 = vmatpush1.bf16.msra.mxu0 0
  %83 = vmatprep.subr.bf16.mxu0 0
  %84 = vmatpush1.bf16.msra.mxu0 0
  %85 = vmatprep.subr.bf16.mxu0 0
  %86 = vmatpush1.bf16.msra.mxu0 0
  %87 = vmatprep.mubr.bf16.mxu0 0
  %88 = vmatmul.mubr.bf16.gmra.mrb[0].mxu0 %v53
  %v89 = vpop.f32.mrb[0].mxu0
  %v90 = vadd.f32 %v33, %v89
  %v91 = vpop.f32.mrb[0].mxu0
  %v92 = vpop.f32.mrb[0].mxu0
  %v93 = vpop.f32.mrb[0].mxu0
  %94 = vdwg.mxu0
  %v96 = vcombine.high %v90, %v90
  %v98 = vpack.c.bf16 %v90, %v90
  %v99 = vpack.c.bf16 %v96, %v96
  %101 = vrot.lane.b32.xlu0 %v98, 112
  %v102 = vpop.permute.xlu0 %101
  %vm103 = vcmask 31744
  %v105 = vsel %vm103, %v98, 0
  %v108 = vsel %vm103, %v102, 0
  %110 = vmatprep.subr.bf16.mxu0 0
  %111 = vmatpush1.bf16.xpose.msra.mxu0 %v108
  %112 = vmatprep.subr.bf16.mxu0 0
  %113 = vmatpush1.bf16.xpose.msra.mxu0 0
  %114 = vmatprep.subr.bf16.mxu0 0
  %115 = vmatpush1.bf16.xpose.msra.mxu0 0
  %116 = vmatprep.subr.bf16.mxu0 0
  %117 = vmatpush1.bf16.xpose.msra.mxu0 0
  %118 = vmatprep.subr.bf16.mxu0 0
  %119 = vmatpush1.bf16.xpose.msra.mxu0 0
  %120 = vmatprep.subr.bf16.mxu0 0
  %121 = vmatpush1.bf16.xpose.msra.mxu0 0
  %122 = vmatprep.subr.bf16.mxu0 0
  %123 = vmatpush1.bf16.xpose.msra.mxu0 0
  %124 = vmatprep.subr.bf16.mxu0 0
  %125 = vmatpush1.bf16.xpose.msra.mxu0 0
  %126 = vmatprep.subr.bf16.mxu0 0
  %127 = vmatpush1.bf16.xpose.msra.mxu0 0
  %128 = vmatprep.subr.bf16.mxu0 0
  %129 = vmatpush1.bf16.xpose.msra.mxu0 0
  %130 = vmatprep.subr.bf16.mxu0 0
  %131 = vmatpush1.bf16.xpose.msra.mxu0 0
  %132 = vmatprep.subr.bf16.mxu0 0
  %133 = vmatpush1.bf16.xpose.msra.mxu0 0
  %134 = vmatprep.subr.bf16.mxu0 0
  %135 = vmatpush1.bf16.xpose.msra.mxu0 0
  %136 = vmatprep.subr.bf16.mxu0 0
  %137 = vmatpush1.bf16.xpose.msra.mxu0 0
  %138 = vmatprep.subr.bf16.mxu0 0
  %139 = vmatpush1.bf16.xpose.msra.mxu0 0
  %140 = vmatprep.subr.bf16.mxu0 0
  %141 = vmatpush1.bf16.xpose.msra.mxu0 0
  %142 = vmatprep.mubr.bf16.mxu0 0
  %143 = vmatmul.mubr.bf16.gmra.mrb[0].mxu0 %v105
  %v144 = vpop.f32.mrb[0].mxu0
  %v145 = vadd.f32 0.0, %v144
  %v146 = vpop.f32.mrb[0].mxu0
  %v147 = vpop.f32.mrb[0].mxu0
  %v148 = vpop.f32.mrb[0].mxu0
  %149 = vdwg.mxu0
  %151 = vrot.lane.b32.xlu0 %v99, 112
  %v152 = vpop.permute.xlu0 %151
  %v154 = vsel %vm103, %v99, 0
  %v157 = vsel %vm103, %v152, 0
  %159 = vmatprep.subr.bf16.mxu0 0
  %160 = vmatpush1.bf16.xpose.msra.mxu0 %v157
  %161 = vmatprep.subr.bf16.mxu0 0
  %162 = vmatpush1.bf16.xpose.msra.mxu0 0
  %163 = vmatprep.subr.bf16.mxu0 0
  %164 = vmatpush1.bf16.xpose.msra.mxu0 0
  %165 = vmatprep.subr.bf16.mxu0 0
  %166 = vmatpush1.bf16.xpose.msra.mxu0 0
  %167 = vmatprep.subr.bf16.mxu0 0
  %168 = vmatpush1.bf16.xpose.msra.mxu0 0
  %169 = vmatprep.subr.bf16.mxu0 0
  %170 = vmatpush1.bf16.xpose.msra.mxu0 0
  %171 = vmatprep.subr.bf16.mxu0 0
  %172 = vmatpush1.bf16.xpose.msra.mxu0 0
  %173 = vmatprep.subr.bf16.mxu0 0
  %174 = vmatpush1.bf16.xpose.msra.mxu0 0
  %175 = vmatprep.subr.bf16.mxu0 0
  %176 = vmatpush1.bf16.xpose.msra.mxu0 0
  %177 = vmatprep.subr.bf16.mxu0 0
  %178 = vmatpush1.bf16.xpose.msra.mxu0 0
  %179 = vmatprep.subr.bf16.mxu0 0
  %180 = vmatpush1.bf16.xpose.msra.mxu0 0
  %181 = vmatprep.subr.bf16.mxu0 0
  %182 = vmatpush1.bf16.xpose.msra.mxu0 0
  %183 = vmatprep.subr.bf16.mxu0 0
  %184 = vmatpush1.bf16.xpose.msra.mxu0 0
  %185 = vmatprep.subr.bf16.mxu0 0
  %186 = vmatpush1.bf16.xpose.msra.mxu0 0
  %187 = vmatprep.subr.bf16.mxu0 0
  %188 = vmatpush1.bf16.xpose.msra.mxu0 0
  %189 = vmatprep.subr.bf16.mxu0 0
  %190 = vmatpush1.bf16.xpose.msra.mxu0 0
  %191 = vmatprep.mubr.bf16.mxu0 0
  %192 = vmatmul.mubr.bf16.gmra.mrb[0].mxu0 %v154
  %v193 = vpop.f32.mrb[0].mxu0
  %v194 = vadd.f32 0.0, %v193
  %v195 = vpop.f32.mrb[0].mxu0
  %v196 = vpop.f32.mrb[0].mxu0
  %v197 = vpop.f32.mrb[0].mxu0
  %198 = vdwg.mxu0
  %v199 = vmul.f32 %v145, 0.5
  %v200 = vmul.f32 %v194, 0.5
  %v201 = vld [vmem:[%s3] sm:$0xf]
  %v202 = vadd.f32 %v199, %v201
  %v203 = vadd.f32 %v200, %v201
  %vm204 = vcmask 27648
  %v205 = vsel %vm204, %v202, -inf
  %206 = vmax.xlane.f32.xlu0 %v205
  %v207 = vpop.xlane.xlu0 %206
  %v208 = vsel %vm204, %v203, -inf
  %209 = vmax.xlane.f32.xlu0 %v208
  %v210 = vpop.xlane.xlu0 %209
  %v211 = vsub.f32 %v202, %v207
  %v212 = vsub.f32 %v203, %v210
  %v213 = vmul.f32 %v211, 1.442695
  %v214 = vpow.pop %v213
  %v215 = vmul.f32 %v212, 1.442695
  %v216 = vpow.pop %v215
  %v217 = vsel %vm204, %v214, 0.0
  %218 = vadd.xlane.f32.xlu0 %v217
  %v219 = vpop.xlane.xlu0 %218
  %v220 = vsel %vm204, %v216, 0.0
  %221 = vadd.xlane.f32.xlu0 %v220
  %v222 = vpop.xlane.xlu0 %221
  %v223 = vrcp.pop %v219
  %v224 = vrcp.pop %v222
  %v225 = vmul.f32 %v214, %v223
  %v226 = vmul.f32 %v216, %v224
  %v227 = vpack.c.bf16 %v225, %v225
  %v228 = vpack.c.bf16 %v226, %v226
  %229 = vrot.lane.b32.xlu0 %v98, 96
  %v230 = vpop.permute.xlu0 %229
  %v232 = vsel %vm103, %v227, 0
  %vm234 = vcmask 1041408
  %v236 = vsel %vm234, %v230, 0
  %238 = vmatprep.subr.bf16.mxu0 0
  %239 = vmatpush1.bf16.msra.mxu0 %v236
  %240 = vmatprep.subr.bf16.mxu0 0
  %241 = vmatpush1.bf16.msra.mxu0 0
  %242 = vmatprep.subr.bf16.mxu0 0
  %243 = vmatpush1.bf16.msra.mxu0 0
  %244 = vmatprep.subr.bf16.mxu0 0
  %245 = vmatpush1.bf16.msra.mxu0 0
  %246 = vmatprep.subr.bf16.mxu0 0
  %247 = vmatpush1.bf16.msra.mxu0 0
  %248 = vmatprep.subr.bf16.mxu0 0
  %249 = vmatpush1.bf16.msra.mxu0 0
  %250 = vmatprep.subr.bf16.mxu0 0
  %251 = vmatpush1.bf16.msra.mxu0 0
  %252 = vmatprep.subr.bf16.mxu0 0
  %253 = vmatpush1.bf16.msra.mxu0 0
  %254 = vmatprep.subr.bf16.mxu0 0
  %255 = vmatpush1.bf16.msra.mxu0 0
  %256 = vmatprep.subr.bf16.mxu0 0
  %257 = vmatpush1.bf16.msra.mxu0 0
  %258 = vmatprep.subr.bf16.mxu0 0
  %259 = vmatpush1.bf16.msra.mxu0 0
  %260 = vmatprep.subr.bf16.mxu0 0
  %261 = vmatpush1.bf16.msra.mxu0 0
  %262 = vmatprep.subr.bf16.mxu0 0
  %263 = vmatpush1.bf16.msra.mxu0 0
  %264 = vmatprep.subr.bf16.mxu0 0
  %265 = vmatpush1.bf16.msra.mxu0 0
  %266 = vmatprep.subr.bf16.mxu0 0
  %267 = vmatpush1.bf16.msra.mxu0 0
  %268 = vmatprep.subr.bf16.mxu0 0
  %269 = vmatpush1.bf16.msra.mxu0 0
  %270 = vmatprep.mubr.bf16.mxu0 0
  %271 = vmatmul.mubr.bf16.gmra.mrb[0].mxu0 %v232
  %v272 = vpop.f32.mrb[0].mxu0
  %v273 = vadd.f32 0.0, %v272
  %v274 = vpop.f32.mrb[0].mxu0
  %v275 = vpop.f32.mrb[0].mxu0
  %v276 = vpop.f32.mrb[0].mxu0
  %277 = vdwg.mxu0
  %278 = vrot.lane.b32.xlu0 %v99, 96
  %v279 = vpop.permute.xlu0 %278
  %v281 = vsel %vm103, %v228, 0
  %v284 = vsel %vm234, %v279, 0
  %286 = vmatprep.subr.bf16.mxu0 0
  %287 = vmatpush1.bf16.msra.mxu0 %v284
  %288 = vmatprep.subr.bf16.mxu0 0
  %289 = vmatpush1.bf16.msra.mxu0 0
  %290 = vmatprep.subr.bf16.mxu0 0
  %291 = vmatpush1.bf16.msra.mxu0 0
  %292 = vmatprep.subr.bf16.mxu0 0
  %293 = vmatpush1.bf16.msra.mxu0 0
  %294 = vmatprep.subr.bf16.mxu0 0
  %295 = vmatpush1.bf16.msra.mxu0 0
  %296 = vmatprep.subr.bf16.mxu0 0
  %297 = vmatpush1.bf16.msra.mxu0 0
  %298 = vmatprep.subr.bf16.mxu0 0
  %299 = vmatpush1.bf16.msra.mxu0 0
  %300 = vmatprep.subr.bf16.mxu0 0
  %301 = vmatpush1.bf16.msra.mxu0 0
  %302 = vmatprep.subr.bf16.mxu0 0
  %303 = vmatpush1.bf16.msra.mxu0 0
  %304 = vmatprep.subr.bf16.mxu0 0
  %305 = vmatpush1.bf16.msra.mxu0 0
  %306 = vmatprep.subr.bf16.mxu0 0
  %307 = vmatpush1.bf16.msra.mxu0 0
  %308 = vmatprep.subr.bf16.mxu0 0
  %309 = vmatpush1.bf16.msra.mxu0 0
  %310 = vmatprep.subr.bf16.mxu0 0
  %311 = vmatpush1.bf16.msra.mxu0 0
  %312 = vmatprep.subr.bf16.mxu0 0
  %313 = vmatpush1.bf16.msra.mxu0 0
  %314 = vmatprep.subr.bf16.mxu0 0
  %315 = vmatpush1.bf16.msra.mxu0 0
  %316 = vmatprep.subr.bf16.mxu0 0
  %317 = vmatpush1.bf16.msra.mxu0 0
  %318 = vmatprep.mubr.bf16.mxu0 0
  %319 = vmatmul.mubr.bf16.gmra.mrb[0].mxu0 %v281
  %v320 = vpop.f32.mrb[0].mxu0
  %v321 = vadd.f32 0.0, %v320
  %v322 = vpop.f32.mrb[0].mxu0
  %v323 = vpop.f32.mrb[0].mxu0
  %v324 = vpop.f32.mrb[0].mxu0
  %325 = vdwg.mxu0
  %v328 = vcombine.low %v273, %v321
  %v330 = vpack.c.bf16 %v328, %v328
  %v331 = vld [vmem:[%s4] sm:$0x3]
  %332 = vrot.lane.b32.xlu0 %v98, 124
  %v333 = vpop.permute.xlu0 %332
  %334 = vrot.lane.b32.xlu0 %v98, 108
  %v335 = vpop.permute.xlu0 %334
  %v337 = vsel %vm103, %v333, 0
  %v340 = vsel %vm103, %v335, 0
  %342 = vmatprep.subr.bf16.mxu0 0
  %343 = vmatpush1.bf16.xpose.msra.mxu0 %v340
  %344 = vmatprep.subr.bf16.mxu0 0
  %345 = vmatpush1.bf16.xpose.msra.mxu0 0
  %346 = vmatprep.subr.bf16.mxu0 0
  %347 = vmatpush1.bf16.xpose.msra.mxu0 0
  %348 = vmatprep.subr.bf16.mxu0 0
  %349 = vmatpush1.bf16.xpose.msra.mxu0 0
  %350 = vmatprep.subr.bf16.mxu0 0
  %351 = vmatpush1.bf16.xpose.msra.mxu0 0
  %352 = vmatprep.subr.bf16.mxu0 0
  %353 = vmatpush1.bf16.xpose.msra.mxu0 0
  %354 = vmatprep.subr.bf16.mxu0 0
  %355 = vmatpush1.bf16.xpose.msra.mxu0 0
  %356 = vmatprep.subr.bf16.mxu0 0
  %357 = vmatpush1.bf16.xpose.msra.mxu0 0
  %358 = vmatprep.subr.bf16.mxu0 0
  %359 = vmatpush1.bf16.xpose.msra.mxu0 0
  %360 = vmatprep.subr.bf16.mxu0 0
  %361 = vmatpush1.bf16.xpose.msra.mxu0 0
  %362 = vmatprep.subr.bf16.mxu0 0
  %363 = vmatpush1.bf16.xpose.msra.mxu0 0
  %364 = vmatprep.subr.bf16.mxu0 0
  %365 = vmatpush1.bf16.xpose.msra.mxu0 0
  %366 = vmatprep.subr.bf16.mxu0 0
  %367 = vmatpush1.bf16.xpose.msra.mxu0 0
  %368 = vmatprep.subr.bf16.mxu0 0
  %369 = vmatpush1.bf16.xpose.msra.mxu0 0
  %370 = vmatprep.subr.bf16.mxu0 0
  %371 = vmatpush1.bf16.xpose.msra.mxu0 0
  %372 = vmatprep.subr.bf16.mxu0 0
  %373 = vmatpush1.bf16.xpose.msra.mxu0 0
  %374 = vmatprep.mubr.bf16.mxu0 0
  %375 = vmatmul.mubr.bf16.gmra.mrb[0].mxu0 %v337
  %v376 = vpop.f32.mrb[0].mxu0
  %v377 = vadd.f32 0.0, %v376
  %v378 = vpop.f32.mrb[0].mxu0
  %v379 = vpop.f32.mrb[0].mxu0
  %v380 = vpop.f32.mrb[0].mxu0
  %381 = vdwg.mxu0
  %382 = vrot.lane.b32.xlu0 %v99, 124
  %v383 = vpop.permute.xlu0 %382
  %384 = vrot.lane.b32.xlu0 %v99, 108
  %v385 = vpop.permute.xlu0 %384
  %v387 = vsel %vm103, %v383, 0
  %v390 = vsel %vm103, %v385, 0
  %392 = vmatprep.subr.bf16.mxu0 0
  %393 = vmatpush1.bf16.xpose.msra.mxu0 %v390
  %394 = vmatprep.subr.bf16.mxu0 0
  %395 = vmatpush1.bf16.xpose.msra.mxu0 0
  %396 = vmatprep.subr.bf16.mxu0 0
  %397 = vmatpush1.bf16.xpose.msra.mxu0 0
  %398 = vmatprep.subr.bf16.mxu0 0
  %399 = vmatpush1.bf16.xpose.msra.mxu0 0
  %400 = vmatprep.subr.bf16.mxu0 0
  %401 = vmatpush1.bf16.xpose.msra.mxu0 0
  %402 = vmatprep.subr.bf16.mxu0 0
  %403 = vmatpush1.bf16.xpose.msra.mxu0 0
  %404 = vmatprep.subr.bf16.mxu0 0
  %405 = vmatpush1.bf16.xpose.msra.mxu0 0
  %406 = vmatprep.subr.bf16.mxu0 0
  %407 = vmatpush1.bf16.xpose.msra.mxu0 0
  %408 = vmatprep.subr.bf16.mxu0 0
  %409 = vmatpush1.bf16.xpose.msra.mxu0 0
  %410 = vmatprep.subr.bf16.mxu0 0
  %411 = vmatpush1.bf16.xpose.msra.mxu0 0
  %412 = vmatprep.subr.bf16.mxu0 0
  %413 = vmatpush1.bf16.xpose.msra.mxu0 0
  %414 = vmatprep.subr.bf16.mxu0 0
  %415 = vmatpush1.bf16.xpose.msra.mxu0 0
  %416 = vmatprep.subr.bf16.mxu0 0
  %417 = vmatpush1.bf16.xpose.msra.mxu0 0
  %418 = vmatprep.subr.bf16.mxu0 0
  %419 = vmatpush1.bf16.xpose.msra.mxu0 0
  %420 = vmatprep.subr.bf16.mxu0 0
  %421 = vmatpush1.bf16.xpose.msra.mxu0 0
  %422 = vmatprep.subr.bf16.mxu0 0
  %423 = vmatpush1.bf16.xpose.msra.mxu0 0
  %424 = vmatprep.mubr.bf16.mxu0 0
  %425 = vmatmul.mubr.bf16.gmra.mrb[0].mxu0 %v387
  %v426 = vpop.f32.mrb[0].mxu0
  %v427 = vadd.f32 0.0, %v426
  %v428 = vpop.f32.mrb[0].mxu0
  %v429 = vpop.f32.mrb[0].mxu0
  %v430 = vpop.f32.mrb[0].mxu0
  %431 = vdwg.mxu0
  %v432 = vmul.f32 %v377, 0.5
  %v433 = vmul.f32 %v427, 0.5
  %s434 = scalar_lea.vmem %s3, 4
  %v435 = vld [vmem:[%s434] sm:$0xf]
  %v436 = vadd.f32 %v432, %v435
  %v437 = vadd.f32 %v433, %v435
  %v438 = vsel %vm204, %v436, -inf
  %439 = vmax.xlane.f32.xlu0 %v438
  %v440 = vpop.xlane.xlu0 %439
  %v441 = vsel %vm204, %v437, -inf
  %442 = vmax.xlane.f32.xlu0 %v441
  %v443 = vpop.xlane.xlu0 %442
  %v444 = vsub.f32 %v436, %v440
  %v445 = vsub.f32 %v437, %v443
  %v446 = vmul.f32 %v444, 1.442695
  %v447 = vpow.pop %v446
  %v448 = vmul.f32 %v445, 1.442695
  %v449 = vpow.pop %v448
  %v450 = vsel %vm204, %v447, 0.0
  %451 = vadd.xlane.f32.xlu0 %v450
  %v452 = vpop.xlane.xlu0 %451
  %v453 = vsel %vm204, %v449, 0.0
  %454 = vadd.xlane.f32.xlu0 %v453
  %v455 = vpop.xlane.xlu0 %454
  %v456 = vrcp.pop %v452
  %v457 = vrcp.pop %v455
  %v458 = vmul.f32 %v447, %v456
  %v459 = vmul.f32 %v449, %v457
  %v460 = vpack.c.bf16 %v458, %v458
  %v461 = vpack.c.bf16 %v459, %v459
  %462 = vrot.lane.b32.xlu0 %v98, 92
  %v463 = vpop.permute.xlu0 %462
  %v465 = vsel %vm103, %v460, 0
  %v468 = vsel %vm234, %v463, 0
  %470 = vmatprep.subr.bf16.mxu0 0
  %471 = vmatpush1.bf16.msra.mxu0 %v468
  %472 = vmatprep.subr.bf16.mxu0 0
  %473 = vmatpush1.bf16.msra.mxu0 0
  %474 = vmatprep.subr.bf16.mxu0 0
  %475 = vmatpush1.bf16.msra.mxu0 0
  %476 = vmatprep.subr.bf16.mxu0 0
  %477 = vmatpush1.bf16.msra.mxu0 0
  %478 = vmatprep.subr.bf16.mxu0 0
  %479 = vmatpush1.bf16.msra.mxu0 0
  %480 = vmatprep.subr.bf16.mxu0 0
  %481 = vmatpush1.bf16.msra.mxu0 0
  %482 = vmatprep.subr.bf16.mxu0 0
  %483 = vmatpush1.bf16.msra.mxu0 0
  %484 = vmatprep.subr.bf16.mxu0 0
  %485 = vmatpush1.bf16.msra.mxu0 0
  %486 = vmatprep.subr.bf16.mxu0 0
  %487 = vmatpush1.bf16.msra.mxu0 0
  %488 = vmatprep.subr.bf16.mxu0 0
  %489 = vmatpush1.bf16.msra.mxu0 0
  %490 = vmatprep.subr.bf16.mxu0 0
  %491 = vmatpush1.bf16.msra.mxu0 0
  %492 = vmatprep.subr.bf16.mxu0 0
  %493 = vmatpush1.bf16.msra.mxu0 0
  %494 = vmatprep.subr.bf16.mxu0 0
  %495 = vmatpush1.bf16.msra.mxu0 0
  %496 = vmatprep.subr.bf16.mxu0 0
  %497 = vmatpush1.bf16.msra.mxu0 0
  %498 = vmatprep.subr.bf16.mxu0 0
  %499 = vmatpush1.bf16.msra.mxu0 0
  %500 = vmatprep.subr.bf16.mxu0 0
  %501 = vmatpush1.bf16.msra.mxu0 0
  %502 = vmatprep.mubr.bf16.mxu0 0
  %503 = vmatmul.mubr.bf16.gmra.mrb[0].mxu0 %v465
  %v504 = vpop.f32.mrb[0].mxu0
  %v505 = vadd.f32 0.0, %v504
  %v506 = vpop.f32.mrb[0].mxu0
  %v507 = vpop.f32.mrb[0].mxu0
  %v508 = vpop.f32.mrb[0].mxu0
  %509 = vdwg.mxu0
  %510 = vrot.lane.b32.xlu0 %v99, 92
  %v511 = vpop.permute.xlu0 %510
  %v513 = vsel %vm103, %v461, 0
  %v516 = vsel %vm234, %v511, 0
  %518 = vmatprep.subr.bf16.mxu0 0
  %519 = vmatpush1.bf16.msra.mxu0 %v516
  %520 = vmatprep.subr.bf16.mxu0 0
  %521 = vmatpush1.bf16.msra.mxu0 0
  %522 = vmatprep.subr.bf16.mxu0 0
  %523 = vmatpush1.bf16.msra.mxu0 0
  %524 = vmatprep.subr.bf16.mxu0 0
  %525 = vmatpush1.bf16.msra.mxu0 0
  %526 = vmatprep.subr.bf16.mxu0 0
  %527 = vmatpush1.bf16.msra.mxu0 0
  %528 = vmatprep.subr.bf16.mxu0 0
  %529 = vmatpush1.bf16.msra.mxu0 0
  %530 = vmatprep.subr.bf16.mxu0 0
  %531 = vmatpush1.bf16.msra.mxu0 0
  %532 = vmatprep.subr.bf16.mxu0 0
  %533 = vmatpush1.bf16.msra.mxu0 0
  %534 = vmatprep.subr.bf16.mxu0 0
  %535 = vmatpush1.bf16.msra.mxu0 0
  %536 = vmatprep.subr.bf16.mxu0 0
  %537 = vmatpush1.bf16.msra.mxu0 0
  %538 = vmatprep.subr.bf16.mxu0 0
  %539 = vmatpush1.bf16.msra.mxu0 0
  %540 = vmatprep.subr.bf16.mxu0 0
  %541 = vmatpush1.bf16.msra.mxu0 0
  %542 = vmatprep.subr.bf16.mxu0 0
  %543 = vmatpush1.bf16.msra.mxu0 0
  %544 = vmatprep.subr.bf16.mxu0 0
  %545 = vmatpush1.bf16.msra.mxu0 0
  %546 = vmatprep.subr.bf16.mxu0 0
  %547 = vmatpush1.bf16.msra.mxu0 0
  %548 = vmatprep.subr.bf16.mxu0 0
  %549 = vmatpush1.bf16.msra.mxu0 0
  %550 = vmatprep.mubr.bf16.mxu0 0
  %551 = vmatmul.mubr.bf16.gmra.mrb[0].mxu0 %v513
  %v552 = vpop.f32.mrb[0].mxu0
  %v553 = vadd.f32 0.0, %v552
  %v554 = vpop.f32.mrb[0].mxu0
  %v555 = vpop.f32.mrb[0].mxu0
  %v556 = vpop.f32.mrb[0].mxu0
  %557 = vdwg.mxu0
  %v560 = vcombine.low %v505, %v553
  %v562 = vpack.c.bf16 %v560, %v560
  %v563 = vld [vmem:[%s4] sm:$0xc]
  %v565 = vunpack.c.l.b16 %v563
  %v566 = vpack.c.b16 %v565, %v565
  %v567 = vrot.slane %v566, 2
  %v569 = vsel %vm103, %v562, 0
  %v572 = vsel %vm234, %v567, 0
  %574 = vmatprep.subr.bf16.mxu0 0
  %575 = vmatpush1.bf16.msra.mxu0 %v572
  %576 = vmatprep.subr.bf16.mxu0 0
  %577 = vmatpush1.bf16.msra.mxu0 0
  %578 = vmatprep.subr.bf16.mxu0 0
  %579 = vmatpush1.bf16.msra.mxu0 0
  %580 = vmatprep.subr.bf16.mxu0 0
  %581 = vmatpush1.bf16.msra.mxu0 0
  %582 = vmatprep.subr.bf16.mxu0 0
  %583 = vmatpush1.bf16.msra.mxu0 0
  %584 = vmatprep.subr.bf16.mxu0 0
  %585 = vmatpush1.bf16.msra.mxu0 0
  %586 = vmatprep.subr.bf16.mxu0 0
  %587 = vmatpush1.bf16.msra.mxu0 0
  %588 = vmatprep.subr.bf16.mxu0 0
  %589 = vmatpush1.bf16.msra.mxu0 0
  %590 = vmatprep.subr.bf16.mxu0 0
  %591 = vmatpush1.bf16.msra.mxu0 0
  %592 = vmatprep.subr.bf16.mxu0 0
  %593 = vmatpush1.bf16.msra.mxu0 0
  %594 = vmatprep.subr.bf16.mxu0 0
  %595 = vmatpush1.bf16.msra.mxu0 0
  %596 = vmatprep.subr.bf16.mxu0 0
  %597 = vmatpush1.bf16.msra.mxu0 0
  %598 = vmatprep.subr.bf16.mxu0 0
  %599 = vmatpush1.bf16.msra.mxu0 0
  %600 = vmatprep.subr.bf16.mxu0 0
  %601 = vmatpush1.bf16.msra.mxu0 0
  %602 = vmatprep.subr.bf16.mxu0 0
  %603 = vmatpush1.bf16.msra.mxu0 0
  %604 = vmatprep.subr.bf16.mxu0 0
  %605 = vmatpush1.bf16.msra.mxu0 0
  %606 = vmatprep.mubr.bf16.mxu0 0
  %607 = vmatmul.mubr.bf16.gmra.mrb[0].mxu0 %v569
  %v608 = vpop.f32.mrb[0].mxu0
  %v609 = vadd.f32 0.0, %v608
  %v610 = vpop.f32.mrb[0].mxu0
  %v611 = vpop.f32.mrb[0].mxu0
  %v612 = vpop.f32.mrb[0].mxu0
  %613 = vdwg.mxu0
  %v615 = vsel %vm103, %v330, 0
  %v618 = vsel %vm234, %v331, 0
  %620 = vmatprep.subr.bf16.mxu0 0
  %621 = vmatpush1.bf16.msra.mxu0 %v618
  %622 = vmatprep.subr.bf16.mxu0 0
  %623 = vmatpush1.bf16.msra.mxu0 0
  %624 = vmatprep.subr.bf16.mxu0 0
  %625 = vmatpush1.bf16.msra.mxu0 0
  %626 = vmatprep.subr.bf16.mxu0 0
  %627 = vmatpush1.bf16.msra.mxu0 0
  %628 = vmatprep.subr.bf16.mxu0 0
  %629 = vmatpush1.bf16.msra.mxu0 0
  %630 = vmatprep.subr.bf16.mxu0 0
  %631 = vmatpush1.bf16.msra.mxu0 0
  %632 = vmatprep.subr.bf16.mxu0 0
  %633 = vmatpush1.bf16.msra.mxu0 0
  %634 = vmatprep.subr.bf16.mxu0 0
  %635 = vmatpush1.bf16.msra.mxu0 0
  %636 = vmatprep.subr.bf16.mxu0 0
  %637 = vmatpush1.bf16.msra.mxu0 0
  %638 = vmatprep.subr.bf16.mxu0 0
  %639 = vmatpush1.bf16.msra.mxu0 0
  %640 = vmatprep.subr.bf16.mxu0 0
  %641 = vmatpush1.bf16.msra.mxu0 0
  %642 = vmatprep.subr.bf16.mxu0 0
  %643 = vmatpush1.bf16.msra.mxu0 0
  %644 = vmatprep.subr.bf16.mxu0 0
  %645 = vmatpush1.bf16.msra.mxu0 0
  %646 = vmatprep.subr.bf16.mxu0 0
  %647 = vmatpush1.bf16.msra.mxu0 0
  %648 = vmatprep.subr.bf16.mxu0 0
  %649 = vmatpush1.bf16.msra.mxu0 0
  %650 = vmatprep.subr.bf16.mxu0 0
  %651 = vmatpush1.bf16.msra.mxu0 0
  %652 = vmatprep.mubr.bf16.mxu0 0
  %653 = vmatmul.mubr.bf16.gmra.mrb[0].mxu0 %v615
  %v654 = vpop.f32.mrb[0].mxu0
  %v655 = vadd.f32 %v609, %v654
  %v656 = vpop.f32.mrb[0].mxu0
  %v657 = vpop.f32.mrb[0].mxu0
  %v658 = vpop.f32.mrb[0].mxu0
  %659 = vdwg.mxu0
  %660 = vrot.lane.b32.xlu0 %v98, 120
  %v661 = vpop.permute.xlu0 %660
  %662 = vrot.lane.b32.xlu0 %v98, 104
  %v663 = vpop.permute.xlu0 %662
  %v665 = vsel %vm103, %v661, 0
  %v668 = vsel %vm103, %v663, 0
  %670 = vmatprep.subr.bf16.mxu0 0
  %671 = vmatpush1.bf16.xpose.msra.mxu0 %v668
  %672 = vmatprep.subr.bf16.mxu0 0
  %673 = vmatpush1.bf16.xpose.msra.mxu0 0
  %674 = vmatprep.subr.bf16.mxu0 0
  %675 = vmatpush1.bf16.xpose.msra.mxu0 0
  %676 = vmatprep.subr.bf16.mxu0 0
  %677 = vmatpush1.bf16.xpose.msra.mxu0 0
  %678 = vmatprep.subr.bf16.mxu0 0
  %679 = vmatpush1.bf16.xpose.msra.mxu0 0
  %680 = vmatprep.subr.bf16.mxu0 0
  %681 = vmatpush1.bf16.xpose.msra.mxu0 0
  %682 = vmatprep.subr.bf16.mxu0 0
  %683 = vmatpush1.bf16.xpose.msra.mxu0 0
  %684 = vmatprep.subr.bf16.mxu0 0
  %685 = vmatpush1.bf16.xpose.msra.mxu0 0
  %686 = vmatprep.subr.bf16.mxu0 0
  %687 = vmatpush1.bf16.xpose.msra.mxu0 0
  %688 = vmatprep.subr.bf16.mxu0 0
  %689 = vmatpush1.bf16.xpose.msra.mxu0 0
  %690 = vmatprep.subr.bf16.mxu0 0
  %691 = vmatpush1.bf16.xpose.msra.mxu0 0
  %692 = vmatprep.subr.bf16.mxu0 0
  %693 = vmatpush1.bf16.xpose.msra.mxu0 0
  %694 = vmatprep.subr.bf16.mxu0 0
  %695 = vmatpush1.bf16.xpose.msra.mxu0 0
  %696 = vmatprep.subr.bf16.mxu0 0
  %697 = vmatpush1.bf16.xpose.msra.mxu0 0
  %698 = vmatprep.subr.bf16.mxu0 0
  %699 = vmatpush1.bf16.xpose.msra.mxu0 0
  %700 = vmatprep.subr.bf16.mxu0 0
  %701 = vmatpush1.bf16.xpose.msra.mxu0 0
  %702 = vmatprep.mubr.bf16.mxu0 0
  %703 = vmatmul.mubr.bf16.gmra.mrb[0].mxu0 %v665
  %v704 = vpop.f32.mrb[0].mxu0
  %v705 = vadd.f32 0.0, %v704
  %v706 = vpop.f32.mrb[0].mxu0
  %v707 = vpop.f32.mrb[0].mxu0
  %v708 = vpop.f32.mrb[0].mxu0
  %709 = vdwg.mxu0
  %710 = vrot.lane.b32.xlu0 %v99, 120
  %v711 = vpop.permute.xlu0 %710
  %712 = vrot.lane.b32.xlu0 %v99, 104
  %v713 = vpop.permute.xlu0 %712
  %v715 = vsel %vm103, %v711, 0
  %v718 = vsel %vm103, %v713, 0
  %720 = vmatprep.subr.bf16.mxu0 0
  %721 = vmatpush1.bf16.xpose.msra.mxu0 %v718
  %722 = vmatprep.subr.bf16.mxu0 0
  %723 = vmatpush1.bf16.xpose.msra.mxu0 0
  %724 = vmatprep.subr.bf16.mxu0 0
  %725 = vmatpush1.bf16.xpose.msra.mxu0 0
  %726 = vmatprep.subr.bf16.mxu0 0
  %727 = vmatpush1.bf16.xpose.msra.mxu0 0
  %728 = vmatprep.subr.bf16.mxu0 0
  %729 = vmatpush1.bf16.xpose.msra.mxu0 0
  %730 = vmatprep.subr.bf16.mxu0 0
  %731 = vmatpush1.bf16.xpose.msra.mxu0 0
  %732 = vmatprep.subr.bf16.mxu0 0
  %733 = vmatpush1.bf16.xpose.msra.mxu0 0
  %734 = vmatprep.subr.bf16.mxu0 0
  %735 = vmatpush1.bf16.xpose.msra.mxu0 0
  %736 = vmatprep.subr.bf16.mxu0 0
  %737 = vmatpush1.bf16.xpose.msra.mxu0 0
  %738 = vmatprep.subr.bf16.mxu0 0
  %739 = vmatpush1.bf16.xpose.msra.mxu0 0
  %740 = vmatprep.subr.bf16.mxu0 0
  %741 = vmatpush1.bf16.xpose.msra.mxu0 0
  %742 = vmatprep.subr.bf16.mxu0 0
  %743 = vmatpush1.bf16.xpose.msra.mxu0 0
  %744 = vmatprep.subr.bf16.mxu0 0
  %745 = vmatpush1.bf16.xpose.msra.mxu0 0
  %746 = vmatprep.subr.bf16.mxu0 0
  %747 = vmatpush1.bf16.xpose.msra.mxu0 0
  %748 = vmatprep.subr.bf16.mxu0 0
  %749 = vmatpush1.bf16.xpose.msra.mxu0 0
  %750 = vmatprep.subr.bf16.mxu0 0
  %751 = vmatpush1.bf16.xpose.msra.mxu0 0
  %752 = vmatprep.mubr.bf16.mxu0 0
  %753 = vmatmul.mubr.bf16.gmra.mrb[0].mxu0 %v715
  %v754 = vpop.f32.mrb[0].mxu0
  %v755 = vadd.f32 0.0, %v754
  %v756 = vpop.f32.mrb[0].mxu0
  %v757 = vpop.f32.mrb[0].mxu0
  %v758 = vpop.f32.mrb[0].mxu0
  %759 = vdwg.mxu0
  %v760 = vmul.f32 %v705, 0.5
  %v761 = vmul.f32 %v755, 0.5
  %s762 = scalar_lea.vmem %s3, 8
  %v763 = vld [vmem:[%s762] sm:$0xf]
  %v764 = vadd.f32 %v760, %v763
  %v765 = vadd.f32 %v761, %v763
  %v766 = vsel %vm204, %v764, -inf
  %767 = vmax.xlane.f32.xlu0 %v766
  %v768 = vpop.xlane.xlu0 %767
  %v769 = vsel %vm204, %v765, -inf
  %770 = vmax.xlane.f32.xlu0 %v769
  %v771 = vpop.xlane.xlu0 %770
  %v772 = vsub.f32 %v764, %v768
  %v773 = vsub.f32 %v765, %v771
  %v774 = vmul.f32 %v772, 1.442695
  %v775 = vpow.pop %v774
  %v776 = vmul.f32 %v773, 1.442695
  %v777 = vpow.pop %v776
  %v778 = vsel %vm204, %v775, 0.0
  %779 = vadd.xlane.f32.xlu0 %v778
  %v780 = vpop.xlane.xlu0 %779
  %v781 = vsel %vm204, %v777, 0.0
  %782 = vadd.xlane.f32.xlu0 %v781
  %v783 = vpop.xlane.xlu0 %782
  %v784 = vrcp.pop %v780
  %v785 = vrcp.pop %v783
  %v786 = vmul.f32 %v775, %v784
  %v787 = vmul.f32 %v777, %v785
  %v788 = vpack.c.bf16 %v786, %v786
  %v789 = vpack.c.bf16 %v787, %v787
  %790 = vrot.lane.b32.xlu0 %v98, 88
  %v791 = vpop.permute.xlu0 %790
  %v793 = vsel %vm103, %v788, 0
  %v796 = vsel %vm234, %v791, 0
  %798 = vmatprep.subr.bf16.mxu0 0
  %799 = vmatpush1.bf16.msra.mxu0 %v796
  %800 = vmatprep.subr.bf16.mxu0 0
  %801 = vmatpush1.bf16.msra.mxu0 0
  %802 = vmatprep.subr.bf16.mxu0 0
  %803 = vmatpush1.bf16.msra.mxu0 0
  %804 = vmatprep.subr.bf16.mxu0 0
  %805 = vmatpush1.bf16.msra.mxu0 0
  %806 = vmatprep.subr.bf16.mxu0 0
  %807 = vmatpush1.bf16.msra.mxu0 0
  %808 = vmatprep.subr.bf16.mxu0 0
  %809 = vmatpush1.bf16.msra.mxu0 0
  %810 = vmatprep.subr.bf16.mxu0 0
  %811 = vmatpush1.bf16.msra.mxu0 0
  %812 = vmatprep.subr.bf16.mxu0 0
  %813 = vmatpush1.bf16.msra.mxu0 0
  %814 = vmatprep.subr.bf16.mxu0 0
  %815 = vmatpush1.bf16.msra.mxu0 0
  %816 = vmatprep.subr.bf16.mxu0 0
  %817 = vmatpush1.bf16.msra.mxu0 0
  %818 = vmatprep.subr.bf16.mxu0 0
  %819 = vmatpush1.bf16.msra.mxu0 0
  %820 = vmatprep.subr.bf16.mxu0 0
  %821 = vmatpush1.bf16.msra.mxu0 0
  %822 = vmatprep.subr.bf16.mxu0 0
  %823 = vmatpush1.bf16.msra.mxu0 0
  %824 = vmatprep.subr.bf16.mxu0 0
  %825 = vmatpush1.bf16.msra.mxu0 0
  %826 = vmatprep.subr.bf16.mxu0 0
  %827 = vmatpush1.bf16.msra.mxu0 0
  %828 = vmatprep.subr.bf16.mxu0 0
  %829 = vmatpush1.bf16.msra.mxu0 0
  %830 = vmatprep.mubr.bf16.mxu0 0
  %831 = vmatmul.mubr.bf16.gmra.mrb[0].mxu0 %v793
  %v832 = vpop.f32.mrb[0].mxu0
  %v833 = vadd.f32 0.0, %v832
  %v834 = vpop.f32.mrb[0].mxu0
  %v835 = vpop.f32.mrb[0].mxu0
  %v836 = vpop.f32.mrb[0].mxu0
  %837 = vdwg.mxu0
  %838 = vrot.lane.b32.xlu0 %v99, 88
  %v839 = vpop.permute.xlu0 %838
  %v841 = vsel %vm103, %v789, 0
  %v844 = vsel %vm234, %v839, 0
  %846 = vmatprep.subr.bf16.mxu0 0
  %847 = vmatpush1.bf16.msra.mxu0 %v844
  %848 = vmatprep.subr.bf16.mxu0 0
  %849 = vmatpush1.bf16.msra.mxu0 0
  %850 = vmatprep.subr.bf16.mxu0 0
  %851 = vmatpush1.bf16.msra.mxu0 0
  %852 = vmatprep.subr.bf16.mxu0 0
  %853 = vmatpush1.bf16.msra.mxu0 0
  %854 = vmatprep.subr.bf16.mxu0 0
  %855 = vmatpush1.bf16.msra.mxu0 0
  %856 = vmatprep.subr.bf16.mxu0 0
  %857 = vmatpush1.bf16.msra.mxu0 0
  %858 = vmatprep.subr.bf16.mxu0 0
  %859 = vmatpush1.bf16.msra.mxu0 0
  %860 = vmatprep.subr.bf16.mxu0 0
  %861 = vmatpush1.bf16.msra.mxu0 0
  %862 = vmatprep.subr.bf16.mxu0 0
  %863 = vmatpush1.bf16.msra.mxu0 0
  %864 = vmatprep.subr.bf16.mxu0 0
  %865 = vmatpush1.bf16.msra.mxu0 0
  %866 = vmatprep.subr.bf16.mxu0 0
  %867 = vmatpush1.bf16.msra.mxu0 0
  %868 = vmatprep.subr.bf16.mxu0 0
  %869 = vmatpush1.bf16.msra.mxu0 0
  %870 = vmatprep.subr.bf16.mxu0 0
  %871 = vmatpush1.bf16.msra.mxu0 0
  %872 = vmatprep.subr.bf16.mxu0 0
  %873 = vmatpush1.bf16.msra.mxu0 0
  %874 = vmatprep.subr.bf16.mxu0 0
  %875 = vmatpush1.bf16.msra.mxu0 0
  %876 = vmatprep.subr.bf16.mxu0 0
  %877 = vmatpush1.bf16.msra.mxu0 0
  %878 = vmatprep.mubr.bf16.mxu0 0
  %879 = vmatmul.mubr.bf16.gmra.mrb[0].mxu0 %v841
  %v880 = vpop.f32.mrb[0].mxu0
  %v881 = vadd.f32 0.0, %v880
  %v882 = vpop.f32.mrb[0].mxu0
  %v883 = vpop.f32.mrb[0].mxu0
  %v884 = vpop.f32.mrb[0].mxu0
  %885 = vdwg.mxu0
  %v888 = vcombine.low %v833, %v881
  %v890 = vpack.c.bf16 %v888, %v888
  %v891 = vld [vmem:[%s4 + $0x4] sm:$0x3]
  %v893 = vsel %vm103, %v890, 0
  %v896 = vsel %vm234, %v891, 0
  %898 = vmatprep.subr.bf16.mxu0 0
  %899 = vmatpush1.bf16.msra.mxu0 %v896
  %900 = vmatprep.subr.bf16.mxu0 0
  %901 = vmatpush1.bf16.msra.mxu0 0
  %902 = vmatprep.subr.bf16.mxu0 0
  %903 = vmatpush1.bf16.msra.mxu0 0
  %904 = vmatprep.subr.bf16.mxu0 0
  %905 = vmatpush1.bf16.msra.mxu0 0
  %906 = vmatprep.subr.bf16.mxu0 0
  %907 = vmatpush1.bf16.msra.mxu0 0
  %908 = vmatprep.subr.bf16.mxu0 0
  %909 = vmatpush1.bf16.msra.mxu0 0
  %910 = vmatprep.subr.bf16.mxu0 0
  %911 = vmatpush1.bf16.msra.mxu0 0
  %912 = vmatprep.subr.bf16.mxu0 0
  %913 = vmatpush1.bf16.msra.mxu0 0
  %914 = vmatprep.subr.bf16.mxu0 0
  %915 = vmatpush1.bf16.msra.mxu0 0
  %916 = vmatprep.subr.bf16.mxu0 0
  %917 = vmatpush1.bf16.msra.mxu0 0
  %918 = vmatprep.subr.bf16.mxu0 0
  %919 = vmatpush1.bf16.msra.mxu0 0
  %920 = vmatprep.subr.bf16.mxu0 0
  %921 = vmatpush1.bf16.msra.mxu0 0
  %922 = vmatprep.subr.bf16.mxu0 0
  %923 = vmatpush1.bf16.msra.mxu0 0
  %924 = vmatprep.subr.bf16.mxu0 0
  %925 = vmatpush1.bf16.msra.mxu0 0
  %926 = vmatprep.subr.bf16.mxu0 0
  %927 = vmatpush1.bf16.msra.mxu0 0
  %928 = vmatprep.subr.bf16.mxu0 0
  %929 = vmatpush1.bf16.msra.mxu0 0
  %930 = vmatprep.mubr.bf16.mxu0 0
  %931 = vmatmul.mubr.bf16.gmra.mrb[0].mxu0 %v893
  %v932 = vpop.f32.mrb[0].mxu0
  %v933 = vadd.f32 0.0, %v932
  %v934 = vpop.f32.mrb[0].mxu0
  %v935 = vpop.f32.mrb[0].mxu0
  %v936 = vpop.f32.mrb[0].mxu0
  %937 = vdwg.mxu0
  %v938 = vadd.f32 %v655, %v933
  %939 = vrot.lane.b32.xlu0 %v98, 116
  %v940 = vpop.permute.xlu0 %939
  %941 = vrot.lane.b32.xlu0 %v98, 100
  %v942 = vpop.permute.xlu0 %941
  %v944 = vsel %vm103, %v940, 0
  %v947 = vsel %vm103, %v942, 0
  %949 = vmatprep.subr.bf16.mxu0 0
  %950 = vmatpush1.bf16.xpose.msra.mxu0 %v947
  %951 = vmatprep.subr.bf16.mxu0 0
  %952 = vmatpush1.bf16.xpose.msra.mxu0 0
  %953 = vmatprep.subr.bf16.mxu0 0
  %954 = vmatpush1.bf16.xpose.msra.mxu0 0
  %955 = vmatprep.subr.bf16.mxu0 0
  %956 = vmatpush1.bf16.xpose.msra.mxu0 0
  %957 = vmatprep.subr.bf16.mxu0 0
  %958 = vmatpush1.bf16.xpose.msra.mxu0 0
  %959 = vmatprep.subr.bf16.mxu0 0
  %960 = vmatpush1.bf16.xpose.msra.mxu0 0
  %961 = vmatprep.subr.bf16.mxu0 0
  %962 = vmatpush1.bf16.xpose.msra.mxu0 0
  %963 = vmatprep.subr.bf16.mxu0 0
  %964 = vmatpush1.bf16.xpose.msra.mxu0 0
  %965 = vmatprep.subr.bf16.mxu0 0
  %966 = vmatpush1.bf16.xpose.msra.mxu0 0
  %967 = vmatprep.subr.bf16.mxu0 0
  %968 = vmatpush1.bf16.xpose.msra.mxu0 0
  %969 = vmatprep.subr.bf16.mxu0 0
  %970 = vmatpush1.bf16.xpose.msra.mxu0 0
  %971 = vmatprep.subr.bf16.mxu0 0
  %972 = vmatpush1.bf16.xpose.msra.mxu0 0
  %973 = vmatprep.subr.bf16.mxu0 0
  %974 = vmatpush1.bf16.xpose.msra.mxu0 0
  %975 = vmatprep.subr.bf16.mxu0 0
  %976 = vmatpush1.bf16.xpose.msra.mxu0 0
  %977 = vmatprep.subr.bf16.mxu0 0
  %978 = vmatpush1.bf16.xpose.msra.mxu0 0
  %979 = vmatprep.subr.bf16.mxu0 0
  %980 = vmatpush1.bf16.xpose.msra.mxu0 0
  %981 = vmatprep.mubr.bf16.mxu0 0
  %982 = vmatmul.mubr.bf16.gmra.mrb[0].mxu0 %v944
  %v983 = vpop.f32.mrb[0].mxu0
  %v984 = vadd.f32 0.0, %v983
  %v985 = vpop.f32.mrb[0].mxu0
  %v986 = vpop.f32.mrb[0].mxu0
  %v987 = vpop.f32.mrb[0].mxu0
  %988 = vdwg.mxu0
  %989 = vrot.lane.b32.xlu0 %v99, 116
  %v990 = vpop.permute.xlu0 %989
  %991 = vrot.lane.b32.xlu0 %v99, 100
  %v992 = vpop.permute.xlu0 %991
  %v994 = vsel %vm103, %v990, 0
  %v997 = vsel %vm103, %v992, 0
  %999 = vmatprep.subr.bf16.mxu0 0
  %1000 = vmatpush1.bf16.xpose.msra.mxu0 %v997
  %1001 = vmatprep.subr.bf16.mxu0 0
  %1002 = vmatpush1.bf16.xpose.msra.mxu0 0
  %1003 = vmatprep.subr.bf16.mxu0 0
  %1004 = vmatpush1.bf16.xpose.msra.mxu0 0
  %1005 = vmatprep.subr.bf16.mxu0 0
  %1006 = vmatpush1.bf16.xpose.msra.mxu0 0
  %1007 = vmatprep.subr.bf16.mxu0 0
  %1008 = vmatpush1.bf16.xpose.msra.mxu0 0
  %1009 = vmatprep.subr.bf16.mxu0 0
  %1010 = vmatpush1.bf16.xpose.msra.mxu0 0
  %1011 = vmatprep.subr.bf16.mxu0 0
  %1012 = vmatpush1.bf16.xpose.msra.mxu0 0
  %1013 = vmatprep.subr.bf16.mxu0 0
  %1014 = vmatpush1.bf16.xpose.msra.mxu0 0
  %1015 = vmatprep.subr.bf16.mxu0 0
  %1016 = vmatpush1.bf16.xpose.msra.mxu0 0
  %1017 = vmatprep.subr.bf16.mxu0 0
  %1018 = vmatpush1.bf16.xpose.msra.mxu0 0
  %1019 = vmatprep.subr.bf16.mxu0 0
  %1020 = vmatpush1.bf16.xpose.msra.mxu0 0
  %1021 = vmatprep.subr.bf16.mxu0 0
  %1022 = vmatpush1.bf16.xpose.msra.mxu0 0
  %1023 = vmatprep.subr.bf16.mxu0 0
  %1024 = vmatpush1.bf16.xpose.msra.mxu0 0
  %1025 = vmatprep.subr.bf16.mxu0 0
  %1026 = vmatpush1.bf16.xpose.msra.mxu0 0
  %1027 = vmatprep.subr.bf16.mxu0 0
  %1028 = vmatpush1.bf16.xpose.msra.mxu0 0
  %1029 = vmatprep.subr.bf16.mxu0 0
  %1030 = vmatpush1.bf16.xpose.msra.mxu0 0
  %1031 = vmatprep.mubr.bf16.mxu0 0
  %1032 = vmatmul.mubr.bf16.gmra.mrb[0].mxu0 %v994
  %v1033 = vpop.f32.mrb[0].mxu0
  %v1034 = vadd.f32 0.0, %v1033
  %v1035 = vpop.f32.mrb[0].mxu0
  %v1036 = vpop.f32.mrb[0].mxu0
  %v1037 = vpop.f32.mrb[0].mxu0
  %1038 = vdwg.mxu0
  %v1039 = vmul.f32 %v984, 0.5
  %v1040 = vmul.f32 %v1034, 0.5
  %s1041 = scalar_lea.vmem %s3, 12
  %v1042 = vld [vmem:[%s1041] sm:$0xf]
  %v1043 = vadd.f32 %v1039, %v1042
  %v1044 = vadd.f32 %v1040, %v1042
  %v1045 = vsel %vm204, %v1043, -inf
  %1046 = vmax.xlane.f32.xlu0 %v1045
  %v1047 = vpop.xlane.xlu0 %1046
  %v1048 = vsel %vm204, %v1044, -inf
  %1049 = vmax.xlane.f32.xlu0 %v1048
  %v1050 = vpop.xlane.xlu0 %1049
  %v1051 = vsub.f32 %v1043, %v1047
  %v1052 = vsub.f32 %v1044, %v1050
  %v1053 = vmul.f32 %v1051, 1.442695
  %v1054 = vpow.pop %v1053
  %v1055 = vmul.f32 %v1052, 1.442695
  %v1056 = vpow.pop %v1055
  %v1057 = vsel %vm204, %v1054, 0.0
  %1058 = vadd.xlane.f32.xlu0 %v1057
  %v1059 = vpop.xlane.xlu0 %1058
  %v1060 = vsel %vm204, %v1056, 0.0
  %1061 = vadd.xlane.f32.xlu0 %v1060
  %v1062 = vpop.xlane.xlu0 %1061
  %v1063 = vrcp.pop %v1059
  %v1064 = vrcp.pop %v1062
  %v1065 = vmul.f32 %v1054, %v1063
  %v1066 = vmul.f32 %v1056, %v1064
  %v1067 = vpack.c.bf16 %v1065, %v1065
  %v1068 = vpack.c.bf16 %v1066, %v1066
  %1069 = vrot.lane.b32.xlu0 %v98, 84
  %v1070 = vpop.permute.xlu0 %1069
  %v1072 = vsel %vm103, %v1067, 0
  %v1075 = vsel %vm234, %v1070, 0
  %1077 = vmatprep.subr.bf16.mxu0 0
  %1078 = vmatpush1.bf16.msra.mxu0 %v1075
  %1079 = vmatprep.subr.bf16.mxu0 0
  %1080 = vmatpush1.bf16.msra.mxu0 0
  %1081 = vmatprep.subr.bf16.mxu0 0
  %1082 = vmatpush1.bf16.msra.mxu0 0
  %1083 = vmatprep.subr.bf16.mxu0 0
  %1084 = vmatpush1.bf16.msra.mxu0 0
  %1085 = vmatprep.subr.bf16.mxu0 0
  %1086 = vmatpush1.bf16.msra.mxu0 0
  %1087 = vmatprep.subr.bf16.mxu0 0
  %1088 = vmatpush1.bf16.msra.mxu0 0
  %1089 = vmatprep.subr.bf16.mxu0 0
  %1090 = vmatpush1.bf16.msra.mxu0 0
  %1091 = vmatprep.subr.bf16.mxu0 0
  %1092 = vmatpush1.bf16.msra.mxu0 0
  %1093 = vmatprep.subr.bf16.mxu0 0
  %1094 = vmatpush1.bf16.msra.mxu0 0
  %1095 = vmatprep.subr.bf16.mxu0 0
  %1096 = vmatpush1.bf16.msra.mxu0 0
  %1097 = vmatprep.subr.bf16.mxu0 0
  %1098 = vmatpush1.bf16.msra.mxu0 0
  %1099 = vmatprep.subr.bf16.mxu0 0
  %1100 = vmatpush1.bf16.msra.mxu0 0
  %1101 = vmatprep.subr.bf16.mxu0 0
  %1102 = vmatpush1.bf16.msra.mxu0 0
  %1103 = vmatprep.subr.bf16.mxu0 0
  %1104 = vmatpush1.bf16.msra.mxu0 0
  %1105 = vmatprep.subr.bf16.mxu0 0
  %1106 = vmatpush1.bf16.msra.mxu0 0
  %1107 = vmatprep.subr.bf16.mxu0 0
  %1108 = vmatpush1.bf16.msra.mxu0 0
  %1109 = vmatprep.mubr.bf16.mxu0 0
  %1110 = vmatmul.mubr.bf16.gmra.mrb[0].mxu0 %v1072
  %v1111 = vpop.f32.mrb[0].mxu0
  %v1112 = vadd.f32 0.0, %v1111
  %v1113 = vpop.f32.mrb[0].mxu0
  %v1114 = vpop.f32.mrb[0].mxu0
  %v1115 = vpop.f32.mrb[0].mxu0
  %1116 = vdwg.mxu0
  %1117 = vrot.lane.b32.xlu0 %v99, 84
  %v1118 = vpop.permute.xlu0 %1117
  %v1120 = vsel %vm103, %v1068, 0
  %v1123 = vsel %vm234, %v1118, 0
  %1125 = vmatprep.subr.bf16.mxu0 0
  %1126 = vmatpush1.bf16.msra.mxu0 %v1123
  %1127 = vmatprep.subr.bf16.mxu0 0
  %1128 = vmatpush1.bf16.msra.mxu0 0
  %1129 = vmatprep.subr.bf16.mxu0 0
  %1130 = vmatpush1.bf16.msra.mxu0 0
  %1131 = vmatprep.subr.bf16.mxu0 0
  %1132 = vmatpush1.bf16.msra.mxu0 0
  %1133 = vmatprep.subr.bf16.mxu0 0
  %1134 = vmatpush1.bf16.msra.mxu0 0
  %1135 = vmatprep.subr.bf16.mxu0 0
  %1136 = vmatpush1.bf16.msra.mxu0 0
  %1137 = vmatprep.subr.bf16.mxu0 0
  %1138 = vmatpush1.bf16.msra.mxu0 0
  %1139 = vmatprep.subr.bf16.mxu0 0
  %1140 = vmatpush1.bf16.msra.mxu0 0
  %1141 = vmatprep.subr.bf16.mxu0 0
  %1142 = vmatpush1.bf16.msra.mxu0 0
  %1143 = vmatprep.subr.bf16.mxu0 0
  %1144 = vmatpush1.bf16.msra.mxu0 0
  %1145 = vmatprep.subr.bf16.mxu0 0
  %1146 = vmatpush1.bf16.msra.mxu0 0
  %1147 = vmatprep.subr.bf16.mxu0 0
  %1148 = vmatpush1.bf16.msra.mxu0 0
  %1149 = vmatprep.subr.bf16.mxu0 0
  %1150 = vmatpush1.bf16.msra.mxu0 0
  %1151 = vmatprep.subr.bf16.mxu0 0
  %1152 = vmatpush1.bf16.msra.mxu0 0
  %1153 = vmatprep.subr.bf16.mxu0 0
  %1154 = vmatpush1.bf16.msra.mxu0 0
  %1155 = vmatprep.subr.bf16.mxu0 0
  %1156 = vmatpush1.bf16.msra.mxu0 0
  %1157 = vmatprep.mubr.bf16.mxu0 0
  %1158 = vmatmul.mubr.bf16.gmra.mrb[0].mxu0 %v1120
  %v1159 = vpop.f32.mrb[0].mxu0
  %v1160 = vadd.f32 0.0, %v1159
  %v1161 = vpop.f32.mrb[0].mxu0
  %v1162 = vpop.f32.mrb[0].mxu0
  %v1163 = vpop.f32.mrb[0].mxu0
  %1164 = vdwg.mxu0
  %v1167 = vcombine.low %v1112, %v1160
  %v1169 = vpack.c.bf16 %v1167, %v1167
  %v1170 = vld [vmem:[%s4 + $0x4] sm:$0xc]
  %v1172 = vunpack.c.l.b16 %v1170
  %v1173 = vpack.c.b16 %v1172, %v1172
  %v1174 = vrot.slane %v1173, 2
  %v1176 = vsel %vm103, %v1169, 0
  %v1179 = vsel %vm234, %v1174, 0
  %1181 = vmatprep.subr.bf16.mxu0 0
  %1182 = vmatpush1.bf16.msra.mxu0 %v1179
  %1183 = vmatprep.subr.bf16.mxu0 0
  %1184 = vmatpush1.bf16.msra.mxu0 0
  %1185 = vmatprep.subr.bf16.mxu0 0
  %1186 = vmatpush1.bf16.msra.mxu0 0
  %1187 = vmatprep.subr.bf16.mxu0 0
  %1188 = vmatpush1.bf16.msra.mxu0 0
  %1189 = vmatprep.subr.bf16.mxu0 0
  %1190 = vmatpush1.bf16.msra.mxu0 0
  %1191 = vmatprep.subr.bf16.mxu0 0
  %1192 = vmatpush1.bf16.msra.mxu0 0
  %1193 = vmatprep.subr.bf16.mxu0 0
  %1194 = vmatpush1.bf16.msra.mxu0 0
  %1195 = vmatprep.subr.bf16.mxu0 0
  %1196 = vmatpush1.bf16.msra.mxu0 0
  %1197 = vmatprep.subr.bf16.mxu0 0
  %1198 = vmatpush1.bf16.msra.mxu0 0
  %1199 = vmatprep.subr.bf16.mxu0 0
  %1200 = vmatpush1.bf16.msra.mxu0 0
  %1201 = vmatprep.subr.bf16.mxu0 0
  %1202 = vmatpush1.bf16.msra.mxu0 0
  %1203 = vmatprep.subr.bf16.mxu0 0
  %1204 = vmatpush1.bf16.msra.mxu0 0
  %1205 = vmatprep.subr.bf16.mxu0 0
  %1206 = vmatpush1.bf16.msra.mxu0 0
  %1207 = vmatprep.subr.bf16.mxu0 0
  %1208 = vmatpush1.bf16.msra.mxu0 0
  %1209 = vmatprep.subr.bf16.mxu0 0
  %1210 = vmatpush1.bf16.msra.mxu0 0
  %1211 = vmatprep.subr.bf16.mxu0 0
  %1212 = vmatpush1.bf16.msra.mxu0 0
  %1213 = vmatprep.mubr.bf16.mxu0 0
  %1214 = vmatmul.mubr.bf16.gmra.mrb[0].mxu0 %v1176
  %v1215 = vpop.f32.mrb[0].mxu0
  %v1216 = vadd.f32 0.0, %v1215
  %v1217 = vpop.f32.mrb[0].mxu0
  %v1218 = vpop.f32.mrb[0].mxu0
  %v1219 = vpop.f32.mrb[0].mxu0
  %1220 = vdwg.mxu0
  %v1221 = vadd.f32 %v938, %v1216
  %v1222 = vld [vmem:[%s5] sm:$0x1]
  %v1224 = vlaneseq
  %v1225 = vshrl.u32 %v1224, 7
  %v1226 = vsub.s32 0, %v1225
  %v1227 = vrot.slane %v1222, %v1226
  %v1229 = vadd.f32 %v1221, %v1227
  %v1231 = vcombine.high %v1229, %v1229
  %v1233 = vpack.c.bf16 %v1229, %v1229
  %v1234 = vpack.c.bf16 %v1231, %v1231
  %vm1235 = vcmask 123904
  %1236 = vst.msk [vmem:[%s6] sm:$0x3] %vm1235, %v1233
  %1237 = vst.msk [vmem:[%s6 + $0x2] sm:$0x3] %vm1235, %v1234
  // Predicated region
  $region26: #{swin_forward.30} parent=0 // pred_check
    _
  $region27: #{swin_forward.30} parent=0 // pred_check_branch
    %1239 = sbr.rel (0) target = $region29
  $region28: #{swin_forward.30} parent=0 // pred_region
    _
  $region29: #{swin_forward.30} parent=0 // pred_fallthru
    _
  // Predicated region
  $region30: #{swin_forward.30} parent=0 // pred_check
    _
  $region31: #{swin_forward.30} parent=0 // pred_check_branch
    %1241 = sbr.rel (0) target = $region33
  $region32: #{swin_forward.30} parent=0 // pred_region
    _
  $region33: #{swin_forward.30} parent=0 // pred_fallthru
    _

// kernel: swin_forward.33
$region0: #{swin_forward.33}
  #allocation0 [shape = 'u32[]', space=smem, size = 0x4, offset = 0x4, fixed_abs, tag = 'smem constant byte address 0x4 - core index']
  #allocation1 [shape = 'u32[144,128]{1,0:T(1,128)}', space=vmem, size = 0x12000, scoped, tag = 'internal scratch']
  %s0 = inlined_call_operand.vmem [shape: bf16[8,64], index: 0, kind: input, shape index: {}]
  %s1 = inlined_call_operand.vmem [shape: bf16[8,16], index: 1, kind: input, shape index: {}]
  %s2 = inlined_call_operand.vmem [shape: bf16[64,16], index: 2, kind: input, shape index: {}]
  %s3 = inlined_call_operand.vmem [shape: f32[1,16], index: 3, kind: input, shape index: {}]
  %s4 = inlined_call_operand.vmem [shape: bf16[8,16], index: 4, kind: output, shape index: {}]
  %s5 = sld [smem:[#allocation0]]
  $region26: #{swin_forward.33} parent=0
    _
  %s7 = ssub.s32 1, %s5
  %s8 = scalar_select 0, %s7, %s5
  // Predicated region
  $region2: #{swin_forward.33} parent=0 // pred_check
    _
  $region3: #{swin_forward.33} parent=0 // pred_check_branch
    %10 = sbr.rel (0) target = $region5
  $region4: #{swin_forward.33} parent=0 // pred_region
    _
  $region5: #{swin_forward.33} parent=0 // pred_fallthru
    _
  // Predicated region
  $region6: #{swin_forward.33} parent=0 // pred_check
    _
  $region7: #{swin_forward.33} parent=0 // pred_check_branch
    %12 = sbr.rel (0) target = $region9
  $region8: #{swin_forward.33} parent=0 // pred_region
    _
  $region9: #{swin_forward.33} parent=0 // pred_fallthru
    _
  // Predicated region
  $region10: #{swin_forward.33} parent=0 // pred_check
    _
  $region11: #{swin_forward.33} parent=0 // pred_check_branch
    %14 = sbr.rel (0) target = $region13
  $region12: #{swin_forward.33} parent=0 // pred_region
    _
  $region13: #{swin_forward.33} parent=0 // pred_fallthru
    _
  // Predicated region
  $region14: #{swin_forward.33} parent=0 // pred_check
    _
  $region15: #{swin_forward.33} parent=0 // pred_check_branch
    %16 = sbr.rel (0) target = $region17
  $region16: #{swin_forward.33} parent=0 // pred_region
    _
  $region17: #{swin_forward.33} parent=0 // pred_fallthru
    _
  %v18 = vld [vmem:[%s1] sm:$0xf]
  %v19 = vunpack.c.l.bf16 %v18
  %v20 = vld [vmem:[%s0] sm:$0xf]
  %v21 = vld [vmem:[%s2] sm:$0xf]
  %v22 = vld [vmem:[%s2 + $0x4] sm:$0xf]
  %v23 = vld [vmem:[%s2 + $0x8] sm:$0xf]
  %v24 = vld [vmem:[%s2 + $0xc] sm:$0xf]
  %v25 = vld [vmem:[%s2 + $0x10] sm:$0xf]
  %v26 = vld [vmem:[%s2 + $0x14] sm:$0xf]
  %v27 = vld [vmem:[%s2 + $0x18] sm:$0xf]
  %v28 = vld [vmem:[%s2 + $0x1c] sm:$0xf]
  %v37 = vunpack.c.l.b16 %v21
  %v38 = vunpack.c.l.b16 %v22
  %v39 = vunpack.c.l.b16 %v23
  %v40 = vunpack.c.l.b16 %v24
  %v41 = vunpack.c.l.b16 %v25
  %v42 = vunpack.c.l.b16 %v26
  %v43 = vunpack.c.l.b16 %v27
  %v44 = vunpack.c.l.b16 %v28
  %v45 = vpack.c.b16 %v38, %v37
  %v46 = vpack.c.b16 %v40, %v39
  %v47 = vpack.c.b16 %v42, %v41
  %v48 = vpack.c.b16 %v44, %v43
  %vm53 = vcmask 523264
  %v55 = vsel %vm53, %v20, 0
  %57 = vmatprep.subr.bf16.mxu0 0
  %58 = vmatpush1.bf16.msra.mxu0 %v45
  %59 = vmatprep.subr.bf16.mxu0 0
  %60 = vmatpush1.bf16.msra.mxu0 %v46
  %61 = vmatprep.subr.bf16.mxu0 0
  %62 = vmatpush1.bf16.msra.mxu0 %v47
  %63 = vmatprep.subr.bf16.mxu0 0
  %64 = vmatpush1.bf16.msra.mxu0 %v48
  %65 = vmatprep.subr.bf16.mxu0 0
  %66 = vmatpush1.bf16.msra.mxu0 0
  %67 = vmatprep.subr.bf16.mxu0 0
  %68 = vmatpush1.bf16.msra.mxu0 0
  %69 = vmatprep.subr.bf16.mxu0 0
  %70 = vmatpush1.bf16.msra.mxu0 0
  %71 = vmatprep.subr.bf16.mxu0 0
  %72 = vmatpush1.bf16.msra.mxu0 0
  %73 = vmatprep.subr.bf16.mxu0 0
  %74 = vmatpush1.bf16.msra.mxu0 0
  %75 = vmatprep.subr.bf16.mxu0 0
  %76 = vmatpush1.bf16.msra.mxu0 0
  %77 = vmatprep.subr.bf16.mxu0 0
  %78 = vmatpush1.bf16.msra.mxu0 0
  %79 = vmatprep.subr.bf16.mxu0 0
  %80 = vmatpush1.bf16.msra.mxu0 0
  %81 = vmatprep.subr.bf16.mxu0 0
  %82 = vmatpush1.bf16.msra.mxu0 0
  %83 = vmatprep.subr.bf16.mxu0 0
  %84 = vmatpush1.bf16.msra.mxu0 0
  %85 = vmatprep.subr.bf16.mxu0 0
  %86 = vmatpush1.bf16.msra.mxu0 0
  %87 = vmatprep.subr.bf16.mxu0 0
  %88 = vmatpush1.bf16.msra.mxu0 0
  %89 = vmatprep.mubr.bf16.mxu0 0
  %90 = vmatmul.mubr.bf16.gmra.mrb[0].mxu0 %v55
  %v91 = vpop.f32.mrb[0].mxu0
  %v92 = vadd.f32 0.0, %v91
  %v93 = vpop.f32.mrb[0].mxu0
  %v94 = vpop.f32.mrb[0].mxu0
  %v95 = vpop.f32.mrb[0].mxu0
  %96 = vdwg.mxu0
  %v97 = vadd.f32 %v19, %v92
  %v98 = vld [vmem:[%s3] sm:$0x1]
  %v100 = vlaneseq
  %v101 = vshrl.u32 %v100, 7
  %v102 = vsub.s32 0, %v101
  %v103 = vrot.slane %v98, %v102
  %v105 = vadd.f32 %v97, %v103
  %v106 = vpack.c.bf16 %v105, %v105
  %vm107 = vcmask 125952
  %108 = vst.msk [vmem:[%s4] sm:$0xf] %vm107, %v106
  // Predicated region
  $region18: #{swin_forward.33} parent=0 // pred_check
    _
  $region19: #{swin_forward.33} parent=0 // pred_check_branch
    %110 = sbr.rel (0) target = $region21
  $region20: #{swin_forward.33} parent=0 // pred_region
    _
  $region21: #{swin_forward.33} parent=0 // pred_fallthru
    _
  // Predicated region
  $region22: #{swin_forward.33} parent=0 // pred_check
    _
  $region23: #{swin_forward.33} parent=0 // pred_check_branch
    %112 = sbr.rel (0) target = $region25
  $region24: #{swin_forward.33} parent=0 // pred_region
    _
  $region25: #{swin_forward.33} parent=0 // pred_fallthru
    _

// kernel: swin_forward.38
$region0: #{swin_forward.38}
  #allocation0 [shape = 'u32[]', space=smem, size = 0x4, offset = 0x4, fixed_abs, tag = 'smem constant byte address 0x4 - core index']
  #allocation1 [shape = 'u32[144,128]{1,0:T(1,128)}', space=vmem, size = 0x12000, scoped, tag = 'internal scratch']
  %s0 = inlined_call_operand.vmem [shape: bf16[8,64], index: 0, kind: input, shape index: {}]
  %s1 = inlined_call_operand.vmem [shape: f32[1,64], index: 1, kind: input, shape index: {}]
  %s2 = inlined_call_operand.vmem [shape: f32[1,64], index: 2, kind: input, shape index: {}]
  %s3 = inlined_call_operand.vmem [shape: bf16[64,32], index: 3, kind: input, shape index: {}]
  %s4 = inlined_call_operand.vmem [shape: f32[1,32], index: 4, kind: input, shape index: {}]
  %s5 = inlined_call_operand.vmem [shape: bf16[8,32], index: 5, kind: output, shape index: {}]
  %s6 = sld [smem:[#allocation0]]
  $region30: #{swin_forward.38} parent=0
    _
  %s8 = ssub.s32 1, %s6
  %s9 = scalar_select 0, %s8, %s6
  // Predicated region
  $region2: #{swin_forward.38} parent=0 // pred_check
    _
  $region3: #{swin_forward.38} parent=0 // pred_check_branch
    %11 = sbr.rel (0) target = $region5
  $region4: #{swin_forward.38} parent=0 // pred_region
    _
  $region5: #{swin_forward.38} parent=0 // pred_fallthru
    _
  // Predicated region
  $region6: #{swin_forward.38} parent=0 // pred_check
    _
  $region7: #{swin_forward.38} parent=0 // pred_check_branch
    %13 = sbr.rel (0) target = $region9
  $region8: #{swin_forward.38} parent=0 // pred_region
    _
  $region9: #{swin_forward.38} parent=0 // pred_fallthru
    _
  // Predicated region
  $region10: #{swin_forward.38} parent=0 // pred_check
    _
  $region11: #{swin_forward.38} parent=0 // pred_check_branch
    %15 = sbr.rel (0) target = $region13
  $region12: #{swin_forward.38} parent=0 // pred_region
    _
  $region13: #{swin_forward.38} parent=0 // pred_fallthru
    _
  // Predicated region
  $region14: #{swin_forward.38} parent=0 // pred_check
    _
  $region15: #{swin_forward.38} parent=0 // pred_check_branch
    %17 = sbr.rel (0) target = $region17
  $region16: #{swin_forward.38} parent=0 // pred_region
    _
  $region17: #{swin_forward.38} parent=0 // pred_fallthru
    _
  // Predicated region
  $region18: #{swin_forward.38} parent=0 // pred_check
    _
  $region19: #{swin_forward.38} parent=0 // pred_check_branch
    %19 = sbr.rel (0) target = $region21
  $region20: #{swin_forward.38} parent=0 // pred_region
    _
  $region21: #{swin_forward.38} parent=0 // pred_fallthru
    _
  %v21 = vld [vmem:[%s0] sm:$0xf]
  %v22 = vunpack.c.l.bf16 %v21
  %vm23 = vcmask 523264
  %v24 = vsel %vm23, %v22, 0.0
  %25 = vadd.xlane.f32.xlu0 %v24
  %v26 = vpop.xlane.xlu0 %25
  %v27 = vrcp.pop 64.0
  %v28 = vmul.f32 %v26, %v27
  %v29 = vsub.f32 %v22, %v28
  %v30 = vmul.f32 %v29, %v29
  %v31 = vsel %vm23, %v30, 0.0
  %32 = vadd.xlane.f32.xlu0 %v31
  %v33 = vpop.xlane.xlu0 %32
  %v34 = vmul.f32 %v33, %v27
  %v35 = vadd.f32 %v34, 1e-05
  %v36 = vrsqrt.pop %v35
  %v37 = vmul.f32 %v29, %v36
  %v38 = vld [vmem:[%s1] sm:$0x1]
  %v40 = vlaneseq
  %v41 = vshrl.u32 %v40, 7
  %v42 = vsub.s32 0, %v41
  %v43 = vrot.slane %v38, %v42
  %v45 = vmul.f32 %v37, %v43
  %v46 = vld [vmem:[%s2] sm:$0x1]
  %v48 = vlaneseq
  %v49 = vshrl.u32 %v48, 7
  %v50 = vsub.s32 0, %v49
  %v51 = vrot.slane %v46, %v50
  %v53 = vadd.f32 %v45, %v51
  %v54 = vpack.c.bf16 %v53, %v53
  %v55 = vld [vmem:[%s3] sm:$0xf]
  %v56 = vld [vmem:[%s3 + $0x4] sm:$0xf]
  %v57 = vld [vmem:[%s3 + $0x8] sm:$0xf]
  %v58 = vld [vmem:[%s3 + $0xc] sm:$0xf]
  %v59 = vld [vmem:[%s3 + $0x10] sm:$0xf]
  %v60 = vld [vmem:[%s3 + $0x14] sm:$0xf]
  %v61 = vld [vmem:[%s3 + $0x18] sm:$0xf]
  %v62 = vld [vmem:[%s3 + $0x1c] sm:$0xf]
  %v63 = vld [vmem:[%s4] sm:$0x1]
  %v65 = vlaneseq
  %v66 = vshrl.u32 %v65, 7
  %v67 = vsub.s32 0, %v66
  %v68 = vrot.slane %v63, %v67
  %v78 = vunpack.c.l.b16 %v55
  %v79 = vunpack.c.l.b16 %v56
  %v80 = vunpack.c.l.b16 %v57
  %v81 = vunpack.c.l.b16 %v58
  %v82 = vunpack.c.l.b16 %v59
  %v83 = vunpack.c.l.b16 %v60
  %v84 = vunpack.c.l.b16 %v61
  %v85 = vunpack.c.l.b16 %v62
  %v86 = vpack.c.b16 %v79, %v78
  %v87 = vpack.c.b16 %v81, %v80
  %v88 = vpack.c.b16 %v83, %v82
  %v89 = vpack.c.b16 %v85, %v84
  %v95 = vsel %vm23, %v54, 0
  %97 = vmatprep.subr.bf16.mxu0 0
  %98 = vmatpush1.bf16.msra.mxu0 %v86
  %99 = vmatprep.subr.bf16.mxu0 0
  %100 = vmatpush1.bf16.msra.mxu0 %v87
  %101 = vmatprep.subr.bf16.mxu0 0
  %102 = vmatpush1.bf16.msra.mxu0 %v88
  %103 = vmatprep.subr.bf16.mxu0 0
  %104 = vmatpush1.bf16.msra.mxu0 %v89
  %105 = vmatprep.subr.bf16.mxu0 0
  %106 = vmatpush1.bf16.msra.mxu0 0
  %107 = vmatprep.subr.bf16.mxu0 0
  %108 = vmatpush1.bf16.msra.mxu0 0
  %109 = vmatprep.subr.bf16.mxu0 0
  %110 = vmatpush1.bf16.msra.mxu0 0
  %111 = vmatprep.subr.bf16.mxu0 0
  %112 = vmatpush1.bf16.msra.mxu0 0
  %113 = vmatprep.subr.bf16.mxu0 0
  %114 = vmatpush1.bf16.msra.mxu0 0
  %115 = vmatprep.subr.bf16.mxu0 0
  %116 = vmatpush1.bf16.msra.mxu0 0
  %117 = vmatprep.subr.bf16.mxu0 0
  %118 = vmatpush1.bf16.msra.mxu0 0
  %119 = vmatprep.subr.bf16.mxu0 0
  %120 = vmatpush1.bf16.msra.mxu0 0
  %121 = vmatprep.subr.bf16.mxu0 0
  %122 = vmatpush1.bf16.msra.mxu0 0
  %123 = vmatprep.subr.bf16.mxu0 0
  %124 = vmatpush1.bf16.msra.mxu0 0
  %125 = vmatprep.subr.bf16.mxu0 0
  %126 = vmatpush1.bf16.msra.mxu0 0
  %127 = vmatprep.subr.bf16.mxu0 0
  %128 = vmatpush1.bf16.msra.mxu0 0
  %129 = vmatprep.mubr.bf16.mxu0 0
  %130 = vmatmul.mubr.bf16.gmra.mrb[0].mxu0 %v95
  %v131 = vpop.f32.mrb[0].mxu0
  %v132 = vadd.f32 %v68, %v131
  %v133 = vpop.f32.mrb[0].mxu0
  %v134 = vpop.f32.mrb[0].mxu0
  %v135 = vpop.f32.mrb[0].mxu0
  %136 = vdwg.mxu0
  %v137 = vpack.c.bf16 %v132, %v132
  %vm138 = vcmask 257024
  %139 = vst.msk [vmem:[%s5] sm:$0xf] %vm138, %v137
  // Predicated region
  $region22: #{swin_forward.38} parent=0 // pred_check
    _
  $region23: #{swin_forward.38} parent=0 // pred_check_branch
    %141 = sbr.rel (0) target = $region25
  $region24: #{swin_forward.38} parent=0 // pred_region
    _
  $region25: #{swin_forward.38} parent=0 // pred_fallthru
    _
  // Predicated region
  $region26: #{swin_forward.38} parent=0 // pred_check
    _
  $region27: #{swin_forward.38} parent=0 // pred_check_branch
    %143 = sbr.rel (0) target = $region29
  $region28: #{swin_forward.38} parent=0 // pred_region
    _
  $region29: #{swin_forward.38} parent=0 // pred_fallthru
    _

// kernel: swin_forward.39
$region0: #{swin_forward.39}
  #allocation0 [shape = 'u32[]', space=smem, size = 0x4, offset = 0x4, fixed_abs, tag = 'smem constant byte address 0x4 - core index']
  #allocation1 [shape = 'u32[144,128]{1,0:T(1,128)}', space=vmem, size = 0x12000, scoped, tag = 'internal scratch']
  %s0 = inlined_call_operand.vmem [shape: bf16[2,1,32], index: 0, kind: input, shape index: {}]
  %s1 = inlined_call_operand.vmem [shape: f32[1,1,32], index: 1, kind: input, shape index: {}]
  %s2 = inlined_call_operand.vmem [shape: f32[1,1,32], index: 2, kind: input, shape index: {}]
  %s3 = inlined_call_operand.vmem [shape: bf16[32,2], index: 3, kind: input, shape index: {}]
  %s4 = inlined_call_operand.vmem [shape: f32[1,2], index: 4, kind: input, shape index: {}]
  %s5 = inlined_call_operand.hbm [shape: f32[2,2], index: 5, kind: output, shape index: {}]
  %s6 = sld [smem:[#allocation0]]
  $region30: #{swin_forward.39} parent=0
    _
  %s8 = ssub.s32 1, %s6
  %s9 = scalar_select 0, %s8, %s6
  $region1: #{swin_forward.39} parent=0
    #allocation2 [shape = 'u8[1024]{0}', space=vmem, size = 0x400, scoped, tag = 'output window, operand 0, single buffered']
    #allocation3 [shape = 's32[1]{0}', space=sflag, size = 0x4, scoped, tag = 'scoped memory for swin_forward.39']
    %10 = vsyncpa [#allocation3], 0
    // Predicated region
    $region2: #{swin_forward.39} parent=1 // pred_check
      _
    $region3: #{swin_forward.39} parent=1 // pred_check_branch
      %12 = sbr.rel (0) target = $region5
    $region4: #{swin_forward.39} parent=1 // pred_region
      _
    $region5: #{swin_forward.39} parent=1 // pred_fallthru
      _
    // Predicated region
    $region6: #{swin_forward.39} parent=1 // pred_check
      _
    $region7: #{swin_forward.39} parent=1 // pred_check_branch
      %14 = sbr.rel (0) target = $region9
    $region8: #{swin_forward.39} parent=1 // pred_region
      _
    $region9: #{swin_forward.39} parent=1 // pred_fallthru
      _
    // Predicated region
    $region10: #{swin_forward.39} parent=1 // pred_check
      _
    $region11: #{swin_forward.39} parent=1 // pred_check_branch
      %16 = sbr.rel (0) target = $region13
    $region12: #{swin_forward.39} parent=1 // pred_region
      _
    $region13: #{swin_forward.39} parent=1 // pred_fallthru
      _
    // Predicated region
    $region14: #{swin_forward.39} parent=1 // pred_check
      _
    $region15: #{swin_forward.39} parent=1 // pred_check_branch
      %18 = sbr.rel (0) target = $region17
    $region16: #{swin_forward.39} parent=1 // pred_region
      _
    $region17: #{swin_forward.39} parent=1 // pred_fallthru
      _
    // Predicated region
    $region18: #{swin_forward.39} parent=1 // pred_check
      _
    $region19: #{swin_forward.39} parent=1 // pred_check_branch
      %20 = sbr.rel (0) target = $region21
    $region20: #{swin_forward.39} parent=1 // pred_region
      _
    $region21: #{swin_forward.39} parent=1 // pred_fallthru
      _
    %v22 = vld [vmem:[%s0] sm:$0x1]
    %v23 = vld [vmem:[%s0 + $0x1] sm:$0x1]
    %v24 = vunpack.c.l.bf16 %v22
    %v25 = vunpack.c.l.bf16 %v23
    %vm26 = vcmask 253952
    %v27 = vsel %vm26, %v24, 0.0
    %28 = vadd.xlane.f32.xlu0 %v27
    %v29 = vpop.xlane.xlu0 %28
    %v30 = vsel %vm26, %v25, 0.0
    %31 = vadd.xlane.f32.xlu0 %v30
    %v32 = vpop.xlane.xlu0 %31
    %v33 = vrcp.pop 32.0
    %v34 = vmul.f32 %v29, %v33
    %v35 = vmul.f32 %v32, %v33
    %v36 = vsub.f32 %v24, %v34
    %v37 = vsub.f32 %v25, %v35
    %v38 = vmul.f32 %v36, %v36
    %v39 = vmul.f32 %v37, %v37
    %v40 = vsel %vm26, %v38, 0.0
    %41 = vadd.xlane.f32.xlu0 %v40
    %v42 = vpop.xlane.xlu0 %41
    %v43 = vsel %vm26, %v39, 0.0
    %44 = vadd.xlane.f32.xlu0 %v43
    %v45 = vpop.xlane.xlu0 %44
    %v46 = vmul.f32 %v42, %v33
    %v47 = vmul.f32 %v45, %v33
    %v48 = vadd.f32 %v46, 1e-05
    %v49 = vadd.f32 %v47, 1e-05
    %v50 = vrsqrt.pop %v48
    %v51 = vrsqrt.pop %v49
    %v52 = vmul.f32 %v36, %v50
    %v53 = vmul.f32 %v37, %v51
    %v54 = vld [vmem:[%s1] sm:$0x1]
    %v55 = vmul.f32 %v52, %v54
    %v56 = vmul.f32 %v53, %v54
    %v57 = vld [vmem:[%s2] sm:$0x1]
    %v58 = vadd.f32 %v55, %v57
    %v59 = vadd.f32 %v56, %v57
    %v60 = vadd.f32 %v58, 0.0
    %v61 = vadd.f32 %v59, 0.0
    %v62 = vpack.c.bf16 %v60, %v60
    %v63 = vpack.c.bf16 %v61, %v61
    %v64 = vld [vmem:[%s3] sm:$0xf]
    %v65 = vld [vmem:[%s3 + $0x4] sm:$0xf]
    %v66 = vld [vmem:[%s3 + $0x8] sm:$0xf]
    %v67 = vld [vmem:[%s3 + $0xc] sm:$0xf]
    %v68 = vld [vmem:[%s4] sm:$0x1]
    %v70 = vlaneseq
    %v71 = vshrl.u32 %v70, 7
    %v72 = vsub.s32 0, %v71
    %v73 = vrot.slane %v68, %v72
    %v77 = vunpack.c.l.b16 %v62
    %v78 = vunpack.c.l.b16 %v63
    %v79 = vrot.slane %v78, 7
    %vm80 = vcmask 1041409
    %v81 = vsel %vm80, %v79, %v77
    %v82 = vpack.c.b16 %v81, %v81
    %v87 = vunpack.c.l.b16 %v64
    %v88 = vunpack.c.l.b16 %v65
    %v89 = vunpack.c.l.b16 %v66
    %v90 = vunpack.c.l.b16 %v67
    %v91 = vpack.c.b16 %v88, %v87
    %v92 = vpack.c.b16 %v90, %v89
    %vm95 = vcmask 261120
    %v97 = vsel %vm95, %v82, 0
    %99 = vmatprep.subr.bf16.mxu0 0
    %100 = vmatpush1.bf16.msra.mxu0 %v91
    %101 = vmatprep.subr.bf16.mxu0 0
    %102 = vmatpush1.bf16.msra.mxu0 %v92
    %103 = vmatprep.subr.bf16.mxu0 0
    %104 = vmatpush1.bf16.msra.mxu0 0
    %105 = vmatprep.subr.bf16.mxu0 0
    %106 = vmatpush1.bf16.msra.mxu0 0
    %107 = vmatprep.subr.bf16.mxu0 0
    %108 = vmatpush1.bf16.msra.mxu0 0
    %109 = vmatprep.subr.bf16.mxu0 0
    %110 = vmatpush1.bf16.msra.mxu0 0
    %111 = vmatprep.subr.bf16.mxu0 0
    %112 = vmatpush1.bf16.msra.mxu0 0
    %113 = vmatprep.subr.bf16.mxu0 0
    %114 = vmatpush1.bf16.msra.mxu0 0
    %115 = vmatprep.subr.bf16.mxu0 0
    %116 = vmatpush1.bf16.msra.mxu0 0
    %117 = vmatprep.subr.bf16.mxu0 0
    %118 = vmatpush1.bf16.msra.mxu0 0
    %119 = vmatprep.subr.bf16.mxu0 0
    %120 = vmatpush1.bf16.msra.mxu0 0
    %121 = vmatprep.subr.bf16.mxu0 0
    %122 = vmatpush1.bf16.msra.mxu0 0
    %123 = vmatprep.subr.bf16.mxu0 0
    %124 = vmatpush1.bf16.msra.mxu0 0
    %125 = vmatprep.subr.bf16.mxu0 0
    %126 = vmatpush1.bf16.msra.mxu0 0
    %127 = vmatprep.subr.bf16.mxu0 0
    %128 = vmatpush1.bf16.msra.mxu0 0
    %129 = vmatprep.subr.bf16.mxu0 0
    %130 = vmatpush1.bf16.msra.mxu0 0
    %131 = vmatprep.mubr.bf16.mxu0 0
    %132 = vmatmul.mubr.bf16.gmra.mrb[0].mxu0 %v97
    %v133 = vpop.f32.mrb[0].mxu0
    %v134 = vadd.f32 %v73, %v133
    %v135 = vpop.f32.mrb[0].mxu0
    %v136 = vpop.f32.mrb[0].mxu0
    %v137 = vpop.f32.mrb[0].mxu0
    %138 = vdwg.mxu0
    %vm139 = vcmask 9216
    %140 = vst.msk [vmem:[#allocation2] sm:$0x3] %vm139, %v134
    // Predicated region
    $region22: #{swin_forward.39} parent=1 // pred_check
      _
    $region23: #{swin_forward.39} parent=1 // pred_check_branch
      %142 = sbr.rel (0) target = $region25
    $region24: #{swin_forward.39} parent=1 // pred_region
      %s144 = ssub.s32 32, 32
      %145 = vsyncadd [#allocation3], %s144
      %s147 = sshll.u32 [#allocation2], 4
      %s148 = int_to_ptr.vmem [resolvable:$true] %s147
      %150 = dma.vmem_to_hbm [thread:$0]  %s148, 32, %s5, [#allocation3]
    $region25: #{swin_forward.39} parent=1 // pred_fallthru
      _
    // Predicated region
    $region26: #{swin_forward.39} parent=1 // pred_check
      _
    $region27: #{swin_forward.39} parent=1 // pred_check_branch
      %152 = sbr.rel (0) target = $region29
    $region28: #{swin_forward.39} parent=1 // pred_region
      %153 = dma.done [#allocation3], 32
    $region29: #{swin_forward.39} parent=1 // pred_fallthru
      _
    %154 = vsyncpa [#allocation3], 1

</llo_original>
